<compile_context>
chip_gen: v7x
topology: tpu7x:2x2x1
jax: 0.10.0
libtpu: 0.0.40
codegen_flags: <defaults>
</compile_context>

<pallas_src>
import jax
import jax.numpy as jnp
from jax.experimental import pallas as pl
from jax.experimental.pallas import tpu as pltpu

C1 = 46      # conv1 output channels
C2 = 45      # conv2 output channels
CPAD = 128   # lane-dense padded output-channel count for kernel outputs
KH1 = KW1 = 9
KH2 = KW2 = 15
EPS = 1e-5
TK2 = 3456   # conv2 K-tile (multiple of 128); K2 is zero-padded to a multiple


def _full_spec(shape):
    return pl.BlockSpec(shape, lambda: (0,) * len(shape))


# --------------------------------------------------------------------------
# Kernel 1: conv1 (im2col GEMM) + bias + BatchNorm1, fused.
# --------------------------------------------------------------------------
def _conv1_bn_kernel(p_ref, w_ref, b_ref, g_ref, be_ref, o_ref, x_scr):
    # p_ref: [M1, K1] bf16 im2col patches;  w_ref: [K1, CPAD] bf16
    # b/g/be: [1, CPAD] f32;  o_ref: [M1, CPAD] bf16;  x_scr: [M1, CPAD] f32
    # Pass 1: GEMM + bias into an explicit VMEM scratch.
    x_scr[...] = jnp.dot(p_ref[...], w_ref[...],
                         preferred_element_type=jnp.float32) + b_ref[...]
    # Pass 2: BatchNorm with batch statistics over M (= N*H1*W1),
    # centered (biased) variance to avoid cancellation.
    x = x_scr[...]
    mean = jnp.mean(x, axis=0, keepdims=True)
    xc = x - mean
    var = jnp.mean(xc * xc, axis=0, keepdims=True)
    y = xc * jax.lax.rsqrt(var + EPS) * g_ref[...] + be_ref[...]
    o_ref[...] = y.astype(o_ref.dtype)


def conv1_bn(p1, w1g, b1p, g1p, be1p):
    M, K = p1.shape
    CP = w1g.shape[1]
    return pl.pallas_call(
        _conv1_bn_kernel,
        out_shape=jax.ShapeDtypeStruct((M, CP), jnp.bfloat16),
        in_specs=[_full_spec((M, K)), _full_spec((K, CP)),
                  _full_spec((1, CP)), _full_spec((1, CP)), _full_spec((1, CP))],
        out_specs=_full_spec((M, CP)),
        scratch_shapes=[pltpu.VMEM((M, CP), jnp.float32)],
    )(p1, w1g, b1p, g1p, be1p)


# --------------------------------------------------------------------------
# Kernel 2: conv2 as a single long-K GEMM (K-gridded) + bias + BN2 + GELU.
# --------------------------------------------------------------------------
def _conv2_bn_gelu_kernel(p_ref, w_ref, b_ref, g_ref, be_ref, o_ref, acc_ref):
    # p_ref: [M2, TK2] bf16 patch slab;  w_ref: [TK2, CPAD] bf16
    # acc_ref: [M2, CPAD] f32 accumulator (resident across the K grid)
    k = pl.program_id(0)

    @pl.when(k == 0)
    def _():
        acc_ref[...] = jnp.zeros_like(acc_ref)

    acc_ref[...] += jnp.dot(p_ref[...], w_ref[...],
                            preferred_element_type=jnp.float32)

    @pl.when(k == pl.num_programs(0) - 1)
    def _():
        # bias + BatchNorm2 (batch stats, centered biased variance) + tanh-GELU
        x = acc_ref[...] + b_ref[...]
        mean = jnp.mean(x, axis=0, keepdims=True)
        xc = x - mean
        var = jnp.mean(xc * xc, axis=0, keepdims=True)
        v4 = xc * jax.lax.rsqrt(var + EPS) * g_ref[...] + be_ref[...]
        v5 = v4 * 0.5
        v9 = v4 + (v4 * v4 * v4) * 0.044715
        o_ref[...] = v5 * (jnp.tanh(v9 * 0.7978845608028654) + 1.0)


def conv2_bn_gelu(p2, w2g, b2p, g2p, be2p):
    M2, K2P = p2.shape
    CP = w2g.shape[1]
    nk = K2P // TK2
    return pl.pallas_call(
        _conv2_bn_gelu_kernel,
        out_shape=jax.ShapeDtypeStruct((M2, CP), jnp.float32),
        grid_spec=pltpu.PrefetchScalarGridSpec(
            num_scalar_prefetch=0,
            grid=(nk,),
            in_specs=[pl.BlockSpec((M2, TK2), lambda k: (0, k)),
                      pl.BlockSpec((TK2, CP), lambda k: (k, 0)),
                      pl.BlockSpec((1, CP), lambda k: (0, 0)),
                      pl.BlockSpec((1, CP), lambda k: (0, 0)),
                      pl.BlockSpec((1, CP), lambda k: (0, 0))],
            out_specs=pl.BlockSpec((M2, CP), lambda k: (0, 0)),
            scratch_shapes=[pltpu.VMEM((M2, CP), jnp.float32)]),
        compiler_params=pltpu.CompilerParams(
            dimension_semantics=("arbitrary",)),
    )(p2, w2g, b2p, g2p, be2p)


# --------------------------------------------------------------------------
# Parameter / data plumbing (XLA side)
# --------------------------------------------------------------------------
def im2col(x_nhwc, kh, kw):
    # K ordering: (kh, kw, cin) -- matches the weight reshapes below.
    N, H, W, C = x_nhwc.shape
    Ho, Wo = H - kh + 1, W - kw + 1
    cols = [x_nhwc[:, i:i + Ho, j:j + Wo, :] for i in range(kh) for j in range(kw)]
    patches = jnp.stack(cols, axis=3)                  # [N, Ho, Wo, kh*kw, C]
    return patches.reshape(N * Ho * Wo, kh * kw * C), (N, Ho, Wo)


def _pad_last(a, to):
    return jnp.pad(a, [(0, 0)] * (a.ndim - 1) + [(0, to - a.shape[-1])])


def _pad_vec(v, to):
    return _pad_last(v.reshape(1, -1).astype(jnp.float32), to)


def conv_weight_to_gemm(w_oihw, pad_cout_to):
    # [Cout, Cin, kh, kw] -> [kh*kw*Cin, Cout]  (K order = (kh, kw, cin)), pad Cout.
    Cout, Cin, kh, kw = w_oihw.shape
    w = jnp.transpose(w_oihw, (2, 3, 1, 0)).reshape(kh * kw * Cin, Cout)
    return _pad_last(w, pad_cout_to)


def model_forward(x_nchw, params):
    w1, b1, g1, be1, w2, b2, g2, be2 = params
    x = jnp.transpose(x_nchw, (0, 2, 3, 1))            # NCHW -> NHWC

    # ---- conv1 (im2col GEMM) + bias + BN1, fused; bf16 lane-dense output ---
    p1, (N, H1, W1) = im2col(x, KH1, KW1)
    y1 = conv1_bn(
        p1.astype(jnp.bfloat16),
        conv_weight_to_gemm(w1, CPAD).astype(jnp.bfloat16),
        _pad_vec(b1, CPAD), _pad_vec(g1, CPAD), _pad_vec(be1, CPAD),
    )                                                  # [M1, 128] bf16

    # ---- conv2 im2col (XLA side, fuses the channel slice), K=(kh,kw,cin) ---
    fmap = y1[:, :C1].reshape(N, H1, W1, C1)           # logical 46 channels
    p2, (_, H2, W2) = im2col(fmap, KH2, KW2)           # [M2, 10350] bf16
    K2 = p2.shape[1]
    K2P = TK2 * (-(-K2 // TK2))                        # pad K up to TK2 multiple
    p2 = _pad_last(p2, K2P)
    w2g = conv_weight_to_gemm(w2, CPAD).astype(jnp.bfloat16)   # [K2, 128]
    w2g = jnp.pad(w2g, ((0, K2P - K2), (0, 0)))

    # ---- conv2 single long-K GEMM + bias + BN2 + GELU, fused ---------------
    outp = conv2_bn_gelu(
        p2, w2g,
        _pad_vec(b2, CPAD), _pad_vec(g2, CPAD), _pad_vec(be2, CPAD),
    )                                                  # [M2, 128] f32
    out = outp[:, :C2].reshape(N, H2, W2, C2)
    return jnp.transpose(out, (0, 3, 1, 2))            # NHWC -> NCHW


# --------------------------------------------------------------------------
# Pure-JAX f32 reference (module semantics) for correctness checking
# --------------------------------------------------------------------------
def _ref_forward(x_nchw, params):
    w1, b1, g1, be1, w2, b2, g2, be2 = params

    def conv(x, w, b):
        y = jax.lax.conv_general_dilated(
            x, w, window_strides=(1, 1), padding="VALID",
            dimension_numbers=("NCHW", "OIHW", "NCHW"),
            precision=jax.lax.Precision.HIGHEST)
        return y + b[None, :, None, None]

    def bn(x, g, b):
        mean = jnp.mean(x, axis=(0, 2, 3), keepdims=True)
        var = jnp.mean((x - mean) ** 2, axis=(0, 2, 3), keepdims=True)
        return (x - mean) * jax.lax.rsqrt(var + EPS) * g[None, :, None, None] \
            + b[None, :, None, None]

    v4 = bn(conv(bn(conv(x_nchw, w1, b1), g1, be1), w2, b2), g2, be2)
    v5 = v4 * 0.5
    v9 = v4 + (v4 * v4 * v4) * 0.044715
    return v5 * (jnp.tanh(v9 * 0.7978845608028654) + 1.0)


# --------------------------------------------------------------------------
if __name__ == "__main__":
    key = jax.random.PRNGKey(0)
    ks = jax.random.split(key, 9)

    # NOTE: the original module's example input (5,1,15,18) is too small for
    # conv2 (15x15 kernel on a 7x10 map) and fails in PyTorch as well; we use
    # a small valid spatial size implied by the forward pass instead.
    N, H, W = 2, 28, 30
    x = jax.random.normal(ks[0], (N, 1, H, W), dtype=jnp.float32)

    # Deterministic parameter init (Conv2d-like scales; non-trivial BatchNorm
    # gamma/beta to exercise the affine path).
    w1 = jax.random.normal(ks[1], (C1, 1, KH1, KW1), jnp.float32) / jnp.sqrt(1.0 * KH1 * KW1)
    b1 = jax.random.normal(ks[2], (C1,), jnp.float32) * 0.01
    w2 = jax.random.normal(ks[3], (C2, C1, KH2, KW2), jnp.float32) / jnp.sqrt(C1 * KH2 * KW2 * 1.0)
    b2 = jax.random.normal(ks[4], (C2,), jnp.float32) * 0.01
    g1 = 1.0 + 0.1 * jax.random.normal(ks[5], (C1,), jnp.float32)
    be1 = 0.1 * jax.random.normal(ks[6], (C1,), jnp.float32)
    g2 = 1.0 + 0.1 * jax.random.normal(ks[7], (C2,), jnp.float32)
    be2 = 0.1 * jax.random.normal(ks[8], (C2,), jnp.float32)

    params = (w1, b1, g1, be1, w2, b2, g2, be2)

    fwd = jax.jit(model_forward)
    out = jax.block_until_ready(fwd(x, params))
    ref = jax.block_until_ready(_ref_forward(x, params))

    H2 = H - (KH1 - 1) - (KH2 - 1)
    W2 = W - (KW1 - 1) - (KW2 - 1)
    assert out.shape == (N, C2, H2, W2), out.shape

    # bf16 MXU operands (f32 accumulation, f32 BN/GELU epilogues) vs the pure
    # f32 reference: expected max abs error ~1e-2; 5e-2 leaves margin.
    err = float(jnp.max(jnp.abs(out - ref)))
    assert err < 5e-2, err

    print("KERNEL_OK")
</pallas_src>

<mosaic_0001>
module attributes {stable_mosaic.version = 11 : i64} {
  func.func @_conv1_bn_kernel(%arg0: memref<880x81xbf16, #tpu.memory_space<vmem>>, %arg1: memref<81x128xbf16, #tpu.memory_space<vmem>>, %arg2: memref<1x128xf32, #tpu.memory_space<vmem>>, %arg3: memref<1x128xf32, #tpu.memory_space<vmem>>, %arg4: memref<1x128xf32, #tpu.memory_space<vmem>>, %arg5: memref<880x128xbf16, #tpu.memory_space<vmem>>, %arg6: memref<880x128xf32, #tpu.memory_space<vmem>>) attributes {dimension_semantics = [], scalar_prefetch = 0 : i64, scratch_operands = 1 : i64, tpu.core_type = #tpu.core_type<tc>} {
    %c0 = arith.constant 0 : index
    %c0_0 = arith.constant 0 : index
    %0 = vector.load %arg0[%c0, %c0_0] : memref<880x81xbf16, #tpu.memory_space<vmem>>, vector<880x81xbf16>
    %c0_1 = arith.constant 0 : index
    %c0_2 = arith.constant 0 : index
    %1 = vector.load %arg1[%c0_1, %c0_2] : memref<81x128xbf16, #tpu.memory_space<vmem>>, vector<81x128xbf16>
    %cst = arith.constant dense<0.000000e+00> : vector<880x128xf32>
    %2 = tpu.matmul %0, %1, %cst {dimension_numbers = #tpu.dot_dimension_numbers<[1], [0], [0], [1], [0, 0, 1, 1], [], []>} : vector<880x81xbf16>, vector<81x128xbf16>, vector<880x128xf32> -> vector<880x128xf32>
    %c0_3 = arith.constant 0 : index
    %c0_4 = arith.constant 0 : index
    %3 = vector.load %arg2[%c0_3, %c0_4] : memref<1x128xf32, #tpu.memory_space<vmem>>, vector<1x128xf32>
    %4 = vector.broadcast %3 : vector<1x128xf32> to vector<880x128xf32>
    %5 = arith.addf %2, %4 : vector<880x128xf32>
    %c0_5 = arith.constant 0 : index
    %c0_6 = arith.constant 0 : index
    %6 = vector.load %arg6[%c0_5, %c0_6] : memref<880x128xf32, #tpu.memory_space<vmem>>, vector<880x128xf32>
    tpu.vector_store %arg6[%c0_5, %c0_6], %5 {strides = array<i32>} : memref<880x128xf32, #tpu.memory_space<vmem>>, vector<880x128xf32>,
    %c0_7 = arith.constant 0 : index
    %c0_8 = arith.constant 0 : index
    %7 = vector.load %arg6[%c0_7, %c0_8] : memref<880x128xf32, #tpu.memory_space<vmem>>, vector<880x128xf32>
    %cst_9 = arith.constant dense<0.000000e+00> : vector<128xf32>
    %8 = vector.multi_reduction <add>, %7, %cst_9 [0] : vector<880x128xf32> to vector<128xf32>
    %9 = vector.shape_cast %8 : vector<128xf32> to vector<1x128xf32>
    %cst_10 = arith.constant 8.800000e+02 : f32
    %10 = vector.broadcast %cst_10 : f32 to vector<1x128xf32>
    %11 = arith.divf %9, %10 : vector<1x128xf32>
    %12 = vector.broadcast %11 : vector<1x128xf32> to vector<880x128xf32>
    %13 = arith.subf %7, %12 : vector<880x128xf32>
    %14 = arith.mulf %13, %13 : vector<880x128xf32>
    %cst_11 = arith.constant dense<0.000000e+00> : vector<128xf32>
    %15 = vector.multi_reduction <add>, %14, %cst_11 [0] : vector<880x128xf32> to vector<128xf32>
    %16 = vector.shape_cast %15 : vector<128xf32> to vector<1x128xf32>
    %cst_12 = arith.constant 8.800000e+02 : f32
    %17 = vector.broadcast %cst_12 : f32 to vector<1x128xf32>
    %18 = arith.divf %16, %17 : vector<1x128xf32>
    %cst_13 = arith.constant 9.99999974E-6 : f32
    %19 = vector.broadcast %cst_13 : f32 to vector<1x128xf32>
    %20 = arith.addf %18, %19 : vector<1x128xf32>
    %21 = math.rsqrt %20 : vector<1x128xf32>
    %22 = vector.broadcast %21 : vector<1x128xf32> to vector<880x128xf32>
    %23 = arith.mulf %13, %22 : vector<880x128xf32>
    %c0_14 = arith.constant 0 : index
    %c0_15 = arith.constant 0 : index
    %24 = vector.load %arg3[%c0_14, %c0_15] : memref<1x128xf32, #tpu.memory_space<vmem>>, vector<1x128xf32>
    %25 = vector.broadcast %24 : vector<1x128xf32> to vector<880x128xf32>
    %26 = arith.mulf %23, %25 : vector<880x128xf32>
    %c0_16 = arith.constant 0 : index
    %c0_17 = arith.constant 0 : index
    %27 = vector.load %arg4[%c0_16, %c0_17] : memref<1x128xf32, #tpu.memory_space<vmem>>, vector<1x128xf32>
    %28 = vector.broadcast %27 : vector<1x128xf32> to vector<880x128xf32>
    %29 = arith.addf %26, %28 : vector<880x128xf32>
    %30 = arith.truncf %29 : vector<880x128xf32> to vector<880x128xbf16>
    %c0_18 = arith.constant 0 : index
    %c0_19 = arith.constant 0 : index
    %31 = vector.load %arg5[%c0_18, %c0_19] : memref<880x128xbf16, #tpu.memory_space<vmem>>, vector<880x128xbf16>
    tpu.vector_store %arg5[%c0_18, %c0_19], %30 {strides = array<i32>} : memref<880x128xbf16, #tpu.memory_space<vmem>>, vector<880x128xbf16>,
    return
  }
}

module attributes {stable_mosaic.version = 11 : i64} {
  func.func @_conv2_bn_gelu_kernel(%arg0: i32, %arg1: memref<96x3456xbf16, #tpu.memory_space<vmem>>, %arg2: memref<3456x128xbf16, #tpu.memory_space<vmem>>, %arg3: memref<1x128xf32, #tpu.memory_space<vmem>>, %arg4: memref<1x128xf32, #tpu.memory_space<vmem>>, %arg5: memref<1x128xf32, #tpu.memory_space<vmem>>, %arg6: memref<96x128xf32, #tpu.memory_space<vmem>>, %arg7: memref<96x128xf32, #tpu.memory_space<vmem>>) attributes {dimension_semantics = [#tpu.dimension_semantics<arbitrary>], iteration_bounds = array<i64: 3>, scalar_prefetch = 0 : i64, scratch_operands = 1 : i64, tpu.core_type = #tpu.core_type<tc>, window_params = [{transform_indices = @transform_0, window_bounds = array<i64: 96, 3456>}, {transform_indices = @transform_1, window_bounds = array<i64: 3456, 128>}, {pipeline_mode = #tpu.pipeline_mode<synchronous>, transform_indices = @transform_2, window_bounds = array<i64: 1, 128>}, {pipeline_mode = #tpu.pipeline_mode<synchronous>, transform_indices = @transform_3, window_bounds = array<i64: 1, 128>}, {pipeline_mode = #tpu.pipeline_mode<synchronous>, transform_indices = @transform_4, window_bounds = array<i64: 1, 128>}, {pipeline_mode = #tpu.pipeline_mode<synchronous>, transform_indices = @transform_5, window_bounds = array<i64: 96, 128>}]} {
    %c0_i32 = arith.constant 0 : i32
    %0 = arith.cmpi eq, %arg0, %c0_i32 : i32
    %1 = arith.extui %0 : i1 to i32
    %c0_i32_0 = arith.constant 0 : i32
    %2 = arith.cmpi ne, %1, %c0_i32_0 : i32
    scf.if %2 {
      %cst_9 = arith.constant 0.000000e+00 : f32
      %12 = vector.broadcast %cst_9 : f32 to vector<96x128xf32>
      %c0_10 = arith.constant 0 : index
      %c0_11 = arith.constant 0 : index
      %13 = vector.load %arg7[%c0_10, %c0_11] : memref<96x128xf32, #tpu.memory_space<vmem>>, vector<96x128xf32>
      tpu.vector_store %arg7[%c0_10, %c0_11], %12 {strides = array<i32>} : memref<96x128xf32, #tpu.memory_space<vmem>>, vector<96x128xf32>,
    } else {
    }
    %c0 = arith.constant 0 : index
    %c0_1 = arith.constant 0 : index
    %3 = vector.load %arg7[%c0, %c0_1] : memref<96x128xf32, #tpu.memory_space<vmem>>, vector<96x128xf32>
    %c0_2 = arith.constant 0 : index
    %c0_3 = arith.constant 0 : index
    %4 = vector.load %arg1[%c0_2, %c0_3] : memref<96x3456xbf16, #tpu.memory_space<vmem>>, vector<96x3456xbf16>
    %c0_4 = arith.constant 0 : index
    %c0_5 = arith.constant 0 : index
    %5 = vector.load %arg2[%c0_4, %c0_5] : memref<3456x128xbf16, #tpu.memory_space<vmem>>, vector<3456x128xbf16>
    %cst = arith.constant dense<0.000000e+00> : vector<96x128xf32>
    %6 = tpu.matmul %4, %5, %cst {dimension_numbers = #tpu.dot_dimension_numbers<[1], [0], [0], [1], [0, 0, 1, 1], [], []>} : vector<96x3456xbf16>, vector<3456x128xbf16>, vector<96x128xf32> -> vector<96x128xf32>
    %7 = arith.addf %3, %6 : vector<96x128xf32>
    %c0_6 = arith.constant 0 : index
    %c0_7 = arith.constant 0 : index
    %8 = vector.load %arg7[%c0_6, %c0_7] : memref<96x128xf32, #tpu.memory_space<vmem>>, vector<96x128xf32>
    tpu.vector_store %arg7[%c0_6, %c0_7], %7 {strides = array<i32>} : memref<96x128xf32, #tpu.memory_space<vmem>>, vector<96x128xf32>,
    %c2_i32 = arith.constant 2 : i32
    %9 = arith.cmpi eq, %arg0, %c2_i32 : i32
    %10 = arith.extui %9 : i1 to i32
    %c0_i32_8 = arith.constant 0 : i32
    %11 = arith.cmpi ne, %10, %c0_i32_8 : i32
    scf.if %11 {
      %c0_9 = arith.constant 0 : index
      %c0_10 = arith.constant 0 : index
      %12 = vector.load %arg7[%c0_9, %c0_10] : memref<96x128xf32, #tpu.memory_space<vmem>>, vector<96x128xf32>
      %c0_11 = arith.constant 0 : index
      %c0_12 = arith.constant 0 : index
      %13 = vector.load %arg3[%c0_11, %c0_12] : memref<1x128xf32, #tpu.memory_space<vmem>>, vector<1x128xf32>
      %14 = vector.broadcast %13 : vector<1x128xf32> to vector<96x128xf32>
      %15 = arith.addf %12, %14 : vector<96x128xf32>
      %cst_13 = arith.constant dense<0.000000e+00> : vector<128xf32>
      %16 = vector.multi_reduction <add>, %15, %cst_13 [0] : vector<96x128xf32> to vector<128xf32>
      %17 = vector.shape_cast %16 : vector<128xf32> to vector<1x128xf32>
      %cst_14 = arith.constant 9.600000e+01 : f32
      %18 = vector.broadcast %cst_14 : f32 to vector<1x128xf32>
      %19 = arith.divf %17, %18 : vector<1x128xf32>
      %20 = vector.broadcast %19 : vector<1x128xf32> to vector<96x128xf32>
      %21 = arith.subf %15, %20 : vector<96x128xf32>
      %22 = arith.mulf %21, %21 : vector<96x128xf32>
      %cst_15 = arith.constant dense<0.000000e+00> : vector<128xf32>
      %23 = vector.multi_reduction <add>, %22, %cst_15 [0] : vector<96x128xf32> to vector<128xf32>
      %24 = vector.shape_cast %23 : vector<128xf32> to vector<1x128xf32>
      %cst_16 = arith.constant 9.600000e+01 : f32
      %25 = vector.broadcast %cst_16 : f32 to vector<1x128xf32>
      %26 = arith.divf %24, %25 : vector<1x128xf32>
      %cst_17 = arith.constant 9.99999974E-6 : f32
      %27 = vector.broadcast %cst_17 : f32 to vector<1x128xf32>
      %28 = arith.addf %26, %27 : vector<1x128xf32>
      %29 = math.rsqrt %28 : vector<1x128xf32>
      %30 = vector.broadcast %29 : vector<1x128xf32> to vector<96x128xf32>
      %31 = arith.mulf %21, %30 : vector<96x128xf32>
      %c0_18 = arith.constant 0 : index
      %c0_19 = arith.constant 0 : index
      %32 = vector.load %arg4[%c0_18, %c0_19] : memref<1x128xf32, #tpu.memory_space<vmem>>, vector<1x128xf32>
      %33 = vector.broadcast %32 : vector<1x128xf32> to vector<96x128xf32>
      %34 = arith.mulf %31, %33 : vector<96x128xf32>
      %c0_20 = arith.constant 0 : index
      %c0_21 = arith.constant 0 : index
      %35 = vector.load %arg5[%c0_20, %c0_21] : memref<1x128xf32, #tpu.memory_space<vmem>>, vector<1x128xf32>
      %36 = vector.broadcast %35 : vector<1x128xf32> to vector<96x128xf32>
      %37 = arith.addf %34, %36 : vector<96x128xf32>
      %cst_22 = arith.constant 5.000000e-01 : f32
      %38 = vector.broadcast %cst_22 : f32 to vector<96x128xf32>
      %39 = arith.mulf %37, %38 : vector<96x128xf32>
      %40 = arith.mulf %37, %37 : vector<96x128xf32>
      %41 = arith.mulf %40, %37 : vector<96x128xf32>
      %cst_23 = arith.constant 4.471500e-02 : f32
      %42 = vector.broadcast %cst_23 : f32 to vector<96x128xf32>
      %43 = arith.mulf %41, %42 : vector<96x128xf32>
      %44 = arith.addf %37, %43 : vector<96x128xf32>
      %cst_24 = arith.constant 0.797884583 : f32
      %45 = vector.broadcast %cst_24 : f32 to vector<96x128xf32>
      %46 = arith.mulf %44, %45 : vector<96x128xf32>
      %47 = math.tanh %46 : vector<96x128xf32>
      %cst_25 = arith.constant 1.000000e+00 : f32
      %48 = vector.broadcast %cst_25 : f32 to vector<96x128xf32>
      %49 = arith.addf %47, %48 : vector<96x128xf32>
      %50 = arith.mulf %39, %49 : vector<96x128xf32>
      %c0_26 = arith.constant 0 : index
      %c0_27 = arith.constant 0 : index
      %51 = vector.load %arg6[%c0_26, %c0_27] : memref<96x128xf32, #tpu.memory_space<vmem>>, vector<96x128xf32>
      tpu.vector_store %arg6[%c0_26, %c0_27], %50 {strides = array<i32>} : memref<96x128xf32, #tpu.memory_space<vmem>>, vector<96x128xf32>,
    } else {
    }
    return
  }
  func.func @transform_0(%arg0: i32) -> (i32, i32) {
    %c0_i32 = arith.constant 0 : i32
    %c0_i32_0 = arith.constant 0 : i32
    return %c0_i32, %arg0 : i32, i32
  }
  func.func @transform_1(%arg0: i32) -> (i32, i32) {
    %c0_i32 = arith.constant 0 : i32
    %c0_i32_0 = arith.constant 0 : i32
    return %arg0, %c0_i32 : i32, i32
  }
  func.func @transform_2(%arg0: i32) -> (i32, i32) {
    %c0_i32 = arith.constant 0 : i32
    %c0_i32_0 = arith.constant 0 : i32
    %c0_i32_1 = arith.constant 0 : i32
    return %c0_i32, %c0_i32_0 : i32, i32
  }
  func.func @transform_3(%arg0: i32) -> (i32, i32) {
    %c0_i32 = arith.constant 0 : i32
    %c0_i32_0 = arith.constant 0 : i32
    %c0_i32_1 = arith.constant 0 : i32
    return %c0_i32, %c0_i32_0 : i32, i32
  }
  func.func @transform_4(%arg0: i32) -> (i32, i32) {
    %c0_i32 = arith.constant 0 : i32
    %c0_i32_0 = arith.constant 0 : i32
    %c0_i32_1 = arith.constant 0 : i32
    return %c0_i32, %c0_i32_0 : i32, i32
  }
  func.func @transform_5(%arg0: i32) -> (i32, i32) {
    %c0_i32 = arith.constant 0 : i32
    %c0_i32_0 = arith.constant 0 : i32
    %c0_i32_1 = arith.constant 0 : i32
    return %c0_i32, %c0_i32_0 : i32, i32
  }
}

</mosaic_0001>

<llo_original>
// kernel: model_forward.2
$region0: #{model_forward.2}
  #allocation0 [shape = 'u32[]', space=smem, size = 0x4, offset = 0x4, fixed_abs, tag = 'smem constant byte address 0x4 - core index']
  #allocation1 [shape = 'u32[144,128]{1,0:T(1,128)}', space=vmem, size = 0x12000, scoped, tag = 'internal scratch']
  #allocation2 [shape = 'f32[880,128]{1,0:T(8,128)}', space=vmem, size = 0x6e000, scoped, tag = 'scratch operand']
  %s0 = inlined_call_operand.vmem [shape: bf16[880,81], index: 0, kind: input, shape index: {}]
  %s1 = inlined_call_operand.vmem [shape: bf16[81,128], index: 1, kind: input, shape index: {}]
  %s2 = inlined_call_operand.vmem [shape: f32[1,128], index: 2, kind: input, shape index: {}]
  %s3 = inlined_call_operand.vmem [shape: f32[1,128], index: 3, kind: input, shape index: {}]
  %s4 = inlined_call_operand.vmem [shape: f32[1,128], index: 4, kind: input, shape index: {}]
  %s5 = inlined_call_operand.vmem [shape: bf16[880,128], index: 5, kind: output, shape index: {}]
  %s6 = sld [smem:[#allocation0]]
  $region30: #{model_forward.2} parent=0
    _
  %s8 = ssub.s32 1, %s6
  %s9 = scalar_select 0, %s8, %s6
  // Predicated region
  $region2: #{model_forward.2} parent=0 // pred_check
    _
  $region3: #{model_forward.2} parent=0 // pred_check_branch
    %11 = sbr.rel (0) target = $region5
  $region4: #{model_forward.2} parent=0 // pred_region
    _
  $region5: #{model_forward.2} parent=0 // pred_fallthru
    _
  // Predicated region
  $region6: #{model_forward.2} parent=0 // pred_check
    _
  $region7: #{model_forward.2} parent=0 // pred_check_branch
    %13 = sbr.rel (0) target = $region9
  $region8: #{model_forward.2} parent=0 // pred_region
    _
  $region9: #{model_forward.2} parent=0 // pred_fallthru
    _
  // Predicated region
  $region10: #{model_forward.2} parent=0 // pred_check
    _
  $region11: #{model_forward.2} parent=0 // pred_check_branch
    %15 = sbr.rel (0) target = $region13
  $region12: #{model_forward.2} parent=0 // pred_region
    _
  $region13: #{model_forward.2} parent=0 // pred_fallthru
    _
  // Predicated region
  $region14: #{model_forward.2} parent=0 // pred_check
    _
  $region15: #{model_forward.2} parent=0 // pred_check_branch
    %17 = sbr.rel (0) target = $region17
  $region16: #{model_forward.2} parent=0 // pred_region
    _
  $region17: #{model_forward.2} parent=0 // pred_fallthru
    _
  // Predicated region
  $region18: #{model_forward.2} parent=0 // pred_check
    _
  $region19: #{model_forward.2} parent=0 // pred_check_branch
    %19 = sbr.rel (0) target = $region21
  $region20: #{model_forward.2} parent=0 // pred_region
    _
  $region21: #{model_forward.2} parent=0 // pred_fallthru
    _
  %v21 = vld [vmem:[%s0] sm:$0xf]
  %v22 = vld [vmem:[%s0 + $0x4] sm:$0xf]
  %v23 = vld [vmem:[%s0 + $0x8] sm:$0xf]
  %v24 = vld [vmem:[%s0 + $0xc] sm:$0xf]
  %v25 = vld [vmem:[%s0 + $0x10] sm:$0xf]
  %v26 = vld [vmem:[%s0 + $0x14] sm:$0xf]
  %v27 = vld [vmem:[%s0 + $0x18] sm:$0xf]
  %v28 = vld [vmem:[%s0 + $0x1c] sm:$0xf]
  %v29 = vld [vmem:[%s0 + $0x20] sm:$0xf]
  %v30 = vld [vmem:[%s0 + $0x24] sm:$0xf]
  %v31 = vld [vmem:[%s0 + $0x28] sm:$0xf]
  %v32 = vld [vmem:[%s0 + $0x2c] sm:$0xf]
  %v33 = vld [vmem:[%s0 + $0x30] sm:$0xf]
  %v34 = vld [vmem:[%s0 + $0x34] sm:$0xf]
  %v35 = vld [vmem:[%s0 + $0x38] sm:$0xf]
  %v36 = vld [vmem:[%s0 + $0x3c] sm:$0xf]
  %v37 = vld [vmem:[%s0 + $0x40] sm:$0xf]
  %v38 = vld [vmem:[%s0 + $0x44] sm:$0xf]
  %v39 = vld [vmem:[%s0 + $0x48] sm:$0xf]
  %v40 = vld [vmem:[%s0 + $0x4c] sm:$0xf]
  %v41 = vld [vmem:[%s0 + $0x50] sm:$0xf]
  %v42 = vld [vmem:[%s0 + $0x54] sm:$0xf]
  %v43 = vld [vmem:[%s0 + $0x58] sm:$0xf]
  %v44 = vld [vmem:[%s0 + $0x5c] sm:$0xf]
  %v45 = vld [vmem:[%s0 + $0x60] sm:$0xf]
  %v46 = vld [vmem:[%s0 + $0x64] sm:$0xf]
  %v47 = vld [vmem:[%s0 + $0x68] sm:$0xf]
  %v48 = vld [vmem:[%s0 + $0x6c] sm:$0xf]
  %v49 = vld [vmem:[%s0 + $0x70] sm:$0xf]
  %v50 = vld [vmem:[%s0 + $0x74] sm:$0xf]
  %v51 = vld [vmem:[%s0 + $0x78] sm:$0xf]
  %v52 = vld [vmem:[%s0 + $0x7c] sm:$0xf]
  %v53 = vld [vmem:[%s0 + $0x80] sm:$0xf]
  %v54 = vld [vmem:[%s0 + $0x84] sm:$0xf]
  %v55 = vld [vmem:[%s0 + $0x88] sm:$0xf]
  %v56 = vld [vmem:[%s0 + $0x8c] sm:$0xf]
  %v57 = vld [vmem:[%s0 + $0x90] sm:$0xf]
  %v58 = vld [vmem:[%s0 + $0x94] sm:$0xf]
  %v59 = vld [vmem:[%s0 + $0x98] sm:$0xf]
  %v60 = vld [vmem:[%s0 + $0x9c] sm:$0xf]
  %v61 = vld [vmem:[%s0 + $0xa0] sm:$0xf]
  %v62 = vld [vmem:[%s0 + $0xa4] sm:$0xf]
  %v63 = vld [vmem:[%s0 + $0xa8] sm:$0xf]
  %v64 = vld [vmem:[%s0 + $0xac] sm:$0xf]
  %v65 = vld [vmem:[%s0 + $0xb0] sm:$0xf]
  %v66 = vld [vmem:[%s0 + $0xb4] sm:$0xf]
  %v67 = vld [vmem:[%s0 + $0xb8] sm:$0xf]
  %v68 = vld [vmem:[%s0 + $0xbc] sm:$0xf]
  %v69 = vld [vmem:[%s0 + $0xc0] sm:$0xf]
  %v70 = vld [vmem:[%s0 + $0xc4] sm:$0xf]
  %v71 = vld [vmem:[%s0 + $0xc8] sm:$0xf]
  %v72 = vld [vmem:[%s0 + $0xcc] sm:$0xf]
  %v73 = vld [vmem:[%s0 + $0xd0] sm:$0xf]
  %v74 = vld [vmem:[%s0 + $0xd4] sm:$0xf]
  %v75 = vld [vmem:[%s0 + $0xd8] sm:$0xf]
  %v76 = vld [vmem:[%s0 + $0xdc] sm:$0xf]
  %v77 = vld [vmem:[%s0 + $0xe0] sm:$0xf]
  %v78 = vld [vmem:[%s0 + $0xe4] sm:$0xf]
  %v79 = vld [vmem:[%s0 + $0xe8] sm:$0xf]
  %v80 = vld [vmem:[%s0 + $0xec] sm:$0xf]
  %v81 = vld [vmem:[%s0 + $0xf0] sm:$0xf]
  %v82 = vld [vmem:[%s0 + $0xf4] sm:$0xf]
  %v83 = vld [vmem:[%s0 + $0xf8] sm:$0xf]
  %v84 = vld [vmem:[%s0 + $0xfc] sm:$0xf]
  %v85 = vld [vmem:[%s0 + $0x100] sm:$0xf]
  %v86 = vld [vmem:[%s0 + $0x104] sm:$0xf]
  %v87 = vld [vmem:[%s0 + $0x108] sm:$0xf]
  %v88 = vld [vmem:[%s0 + $0x10c] sm:$0xf]
  %v89 = vld [vmem:[%s0 + $0x110] sm:$0xf]
  %v90 = vld [vmem:[%s0 + $0x114] sm:$0xf]
  %v91 = vld [vmem:[%s0 + $0x118] sm:$0xf]
  %v92 = vld [vmem:[%s0 + $0x11c] sm:$0xf]
  %v93 = vld [vmem:[%s0 + $0x120] sm:$0xf]
  %v94 = vld [vmem:[%s0 + $0x124] sm:$0xf]
  %v95 = vld [vmem:[%s0 + $0x128] sm:$0xf]
  %v96 = vld [vmem:[%s0 + $0x12c] sm:$0xf]
  %v97 = vld [vmem:[%s0 + $0x130] sm:$0xf]
  %v98 = vld [vmem:[%s0 + $0x134] sm:$0xf]
  %v99 = vld [vmem:[%s0 + $0x138] sm:$0xf]
  %v100 = vld [vmem:[%s0 + $0x13c] sm:$0xf]
  %v101 = vld [vmem:[%s0 + $0x140] sm:$0xf]
  %v102 = vld [vmem:[%s0 + $0x144] sm:$0xf]
  %v103 = vld [vmem:[%s0 + $0x148] sm:$0xf]
  %v104 = vld [vmem:[%s0 + $0x14c] sm:$0xf]
  %v105 = vld [vmem:[%s0 + $0x150] sm:$0xf]
  %v106 = vld [vmem:[%s0 + $0x154] sm:$0xf]
  %v107 = vld [vmem:[%s0 + $0x158] sm:$0xf]
  %v108 = vld [vmem:[%s0 + $0x15c] sm:$0xf]
  %v109 = vld [vmem:[%s0 + $0x160] sm:$0xf]
  %v110 = vld [vmem:[%s0 + $0x164] sm:$0xf]
  %v111 = vld [vmem:[%s0 + $0x168] sm:$0xf]
  %v112 = vld [vmem:[%s0 + $0x16c] sm:$0xf]
  %v113 = vld [vmem:[%s0 + $0x170] sm:$0xf]
  %v114 = vld [vmem:[%s0 + $0x174] sm:$0xf]
  %v115 = vld [vmem:[%s0 + $0x178] sm:$0xf]
  %v116 = vld [vmem:[%s0 + $0x17c] sm:$0xf]
  %v117 = vld [vmem:[%s0 + $0x180] sm:$0xf]
  %v118 = vld [vmem:[%s0 + $0x184] sm:$0xf]
  %v119 = vld [vmem:[%s0 + $0x188] sm:$0xf]
  %v120 = vld [vmem:[%s0 + $0x18c] sm:$0xf]
  %v121 = vld [vmem:[%s0 + $0x190] sm:$0xf]
  %v122 = vld [vmem:[%s0 + $0x194] sm:$0xf]
  %v123 = vld [vmem:[%s0 + $0x198] sm:$0xf]
  %v124 = vld [vmem:[%s0 + $0x19c] sm:$0xf]
  %v125 = vld [vmem:[%s0 + $0x1a0] sm:$0xf]
  %v126 = vld [vmem:[%s0 + $0x1a4] sm:$0xf]
  %v127 = vld [vmem:[%s0 + $0x1a8] sm:$0xf]
  %v128 = vld [vmem:[%s0 + $0x1ac] sm:$0xf]
  %v129 = vld [vmem:[%s0 + $0x1b0] sm:$0xf]
  %v130 = vld [vmem:[%s0 + $0x1b4] sm:$0xf]
  %v131 = vld [vmem:[%s1] sm:$0xf]
  %v132 = vld [vmem:[%s1 + $0x4] sm:$0xf]
  %v133 = vld [vmem:[%s1 + $0x8] sm:$0xf]
  %v134 = vld [vmem:[%s1 + $0xc] sm:$0xf]
  %v135 = vld [vmem:[%s1 + $0x10] sm:$0xf]
  %v136 = vld [vmem:[%s1 + $0x14] sm:$0xf]
  %v137 = vld [vmem:[%s1 + $0x18] sm:$0xf]
  %v138 = vld [vmem:[%s1 + $0x1c] sm:$0xf]
  %v139 = vld [vmem:[%s1 + $0x20] sm:$0xf]
  %v140 = vld [vmem:[%s1 + $0x24] sm:$0xf]
  %v141 = vld [vmem:[%s1 + $0x28] sm:$0x1]
  %v142 = vld [vmem:[%s2] sm:$0x1]
  %v144 = vlaneseq
  %v145 = vshrl.u32 %v144, 7
  %v146 = vsub.s32 0, %v145
  %v147 = vrot.slane %v142, %v146
  %v259 = vunpack.c.l.b16 %v21
  %v260 = vunpack.c.l.b16 %v22
  %v261 = vunpack.c.l.b16 %v23
  %v262 = vunpack.c.l.b16 %v24
  %v263 = vunpack.c.l.b16 %v25
  %v264 = vunpack.c.l.b16 %v26
  %v265 = vunpack.c.l.b16 %v27
  %v266 = vunpack.c.l.b16 %v28
  %v267 = vunpack.c.l.b16 %v29
  %v268 = vunpack.c.l.b16 %v30
  %v269 = vunpack.c.l.b16 %v31
  %v270 = vunpack.c.l.b16 %v32
  %v271 = vunpack.c.l.b16 %v33
  %v272 = vunpack.c.l.b16 %v34
  %v273 = vunpack.c.l.b16 %v35
  %v274 = vunpack.c.l.b16 %v36
  %v275 = vunpack.c.l.b16 %v37
  %v276 = vunpack.c.l.b16 %v38
  %v277 = vunpack.c.l.b16 %v39
  %v278 = vunpack.c.l.b16 %v40
  %v279 = vunpack.c.l.b16 %v41
  %v280 = vunpack.c.l.b16 %v42
  %v281 = vunpack.c.l.b16 %v43
  %v282 = vunpack.c.l.b16 %v44
  %v283 = vunpack.c.l.b16 %v45
  %v284 = vunpack.c.l.b16 %v46
  %v285 = vunpack.c.l.b16 %v47
  %v286 = vunpack.c.l.b16 %v48
  %v287 = vunpack.c.l.b16 %v49
  %v288 = vunpack.c.l.b16 %v50
  %v289 = vunpack.c.l.b16 %v51
  %v290 = vunpack.c.l.b16 %v52
  %v291 = vunpack.c.l.b16 %v53
  %v292 = vunpack.c.l.b16 %v54
  %v293 = vunpack.c.l.b16 %v55
  %v294 = vunpack.c.l.b16 %v56
  %v295 = vunpack.c.l.b16 %v57
  %v296 = vunpack.c.l.b16 %v58
  %v297 = vunpack.c.l.b16 %v59
  %v298 = vunpack.c.l.b16 %v60
  %v299 = vunpack.c.l.b16 %v61
  %v300 = vunpack.c.l.b16 %v62
  %v301 = vunpack.c.l.b16 %v63
  %v302 = vunpack.c.l.b16 %v64
  %v303 = vunpack.c.l.b16 %v65
  %v304 = vunpack.c.l.b16 %v66
  %v305 = vunpack.c.l.b16 %v67
  %v306 = vunpack.c.l.b16 %v68
  %v307 = vunpack.c.l.b16 %v69
  %v308 = vunpack.c.l.b16 %v70
  %v309 = vunpack.c.l.b16 %v71
  %v310 = vunpack.c.l.b16 %v72
  %v311 = vunpack.c.l.b16 %v73
  %v312 = vunpack.c.l.b16 %v74
  %v313 = vunpack.c.l.b16 %v75
  %v314 = vunpack.c.l.b16 %v76
  %v315 = vunpack.c.l.b16 %v77
  %v316 = vunpack.c.l.b16 %v78
  %v317 = vunpack.c.l.b16 %v79
  %v318 = vunpack.c.l.b16 %v80
  %v319 = vunpack.c.l.b16 %v81
  %v320 = vunpack.c.l.b16 %v82
  %v321 = vunpack.c.l.b16 %v83
  %v322 = vunpack.c.l.b16 %v84
  %v323 = vunpack.c.l.b16 %v85
  %v324 = vunpack.c.l.b16 %v86
  %v325 = vunpack.c.l.b16 %v87
  %v326 = vunpack.c.l.b16 %v88
  %v327 = vunpack.c.l.b16 %v89
  %v328 = vunpack.c.l.b16 %v90
  %v329 = vunpack.c.l.b16 %v91
  %v330 = vunpack.c.l.b16 %v92
  %v331 = vunpack.c.l.b16 %v93
  %v332 = vunpack.c.l.b16 %v94
  %v333 = vunpack.c.l.b16 %v95
  %v334 = vunpack.c.l.b16 %v96
  %v335 = vunpack.c.l.b16 %v97
  %v336 = vunpack.c.l.b16 %v98
  %v337 = vunpack.c.l.b16 %v99
  %v338 = vunpack.c.l.b16 %v100
  %v339 = vunpack.c.l.b16 %v101
  %v340 = vunpack.c.l.b16 %v102
  %v341 = vunpack.c.l.b16 %v103
  %v342 = vunpack.c.l.b16 %v104
  %v343 = vunpack.c.l.b16 %v105
  %v344 = vunpack.c.l.b16 %v106
  %v345 = vunpack.c.l.b16 %v107
  %v346 = vunpack.c.l.b16 %v108
  %v347 = vunpack.c.l.b16 %v109
  %v348 = vunpack.c.l.b16 %v110
  %v349 = vunpack.c.l.b16 %v111
  %v350 = vunpack.c.l.b16 %v112
  %v351 = vunpack.c.l.b16 %v113
  %v352 = vunpack.c.l.b16 %v114
  %v353 = vunpack.c.l.b16 %v115
  %v354 = vunpack.c.l.b16 %v116
  %v355 = vunpack.c.l.b16 %v117
  %v356 = vunpack.c.l.b16 %v118
  %v357 = vunpack.c.l.b16 %v119
  %v358 = vunpack.c.l.b16 %v120
  %v359 = vunpack.c.l.b16 %v121
  %v360 = vunpack.c.l.b16 %v122
  %v361 = vunpack.c.l.b16 %v123
  %v362 = vunpack.c.l.b16 %v124
  %v363 = vunpack.c.l.b16 %v125
  %v364 = vunpack.c.l.b16 %v126
  %v365 = vunpack.c.l.b16 %v127
  %v366 = vunpack.c.l.b16 %v128
  %v367 = vunpack.c.l.b16 %v129
  %v368 = vunpack.c.l.b16 %v130
  %v369 = vpack.c.b16 %v260, %v259
  %v370 = vpack.c.b16 %v262, %v261
  %v371 = vpack.c.b16 %v264, %v263
  %v372 = vpack.c.b16 %v266, %v265
  %v373 = vpack.c.b16 %v268, %v267
  %v374 = vpack.c.b16 %v270, %v269
  %v375 = vpack.c.b16 %v272, %v271
  %v376 = vpack.c.b16 %v274, %v273
  %v377 = vpack.c.b16 %v276, %v275
  %v378 = vpack.c.b16 %v278, %v277
  %v379 = vpack.c.b16 %v280, %v279
  %v380 = vpack.c.b16 %v282, %v281
  %v381 = vpack.c.b16 %v284, %v283
  %v382 = vpack.c.b16 %v286, %v285
  %v383 = vpack.c.b16 %v288, %v287
  %v384 = vpack.c.b16 %v290, %v289
  %v385 = vpack.c.b16 %v292, %v291
  %v386 = vpack.c.b16 %v294, %v293
  %v387 = vpack.c.b16 %v296, %v295
  %v388 = vpack.c.b16 %v298, %v297
  %v389 = vpack.c.b16 %v300, %v299
  %v390 = vpack.c.b16 %v302, %v301
  %v391 = vpack.c.b16 %v304, %v303
  %v392 = vpack.c.b16 %v306, %v305
  %v393 = vpack.c.b16 %v308, %v307
  %v394 = vpack.c.b16 %v310, %v309
  %v395 = vpack.c.b16 %v312, %v311
  %v396 = vpack.c.b16 %v314, %v313
  %v397 = vpack.c.b16 %v316, %v315
  %v398 = vpack.c.b16 %v318, %v317
  %v399 = vpack.c.b16 %v320, %v319
  %v400 = vpack.c.b16 %v322, %v321
  %v401 = vpack.c.b16 %v324, %v323
  %v402 = vpack.c.b16 %v326, %v325
  %v403 = vpack.c.b16 %v328, %v327
  %v404 = vpack.c.b16 %v330, %v329
  %v405 = vpack.c.b16 %v332, %v331
  %v406 = vpack.c.b16 %v334, %v333
  %v407 = vpack.c.b16 %v336, %v335
  %v408 = vpack.c.b16 %v338, %v337
  %v409 = vpack.c.b16 %v340, %v339
  %v410 = vpack.c.b16 %v342, %v341
  %v411 = vpack.c.b16 %v344, %v343
  %v412 = vpack.c.b16 %v346, %v345
  %v413 = vpack.c.b16 %v348, %v347
  %v414 = vpack.c.b16 %v350, %v349
  %v415 = vpack.c.b16 %v352, %v351
  %v416 = vpack.c.b16 %v354, %v353
  %v417 = vpack.c.b16 %v356, %v355
  %v418 = vpack.c.b16 %v358, %v357
  %v419 = vpack.c.b16 %v360, %v359
  %v420 = vpack.c.b16 %v362, %v361
  %v421 = vpack.c.b16 %v364, %v363
  %v422 = vpack.c.b16 %v366, %v365
  %v423 = vpack.c.b16 %v368, %v367
  %v435 = vunpack.c.l.b16 %v131
  %v436 = vunpack.c.l.b16 %v132
  %v437 = vunpack.c.l.b16 %v133
  %v438 = vunpack.c.l.b16 %v134
  %v439 = vunpack.c.l.b16 %v135
  %v440 = vunpack.c.l.b16 %v136
  %v441 = vunpack.c.l.b16 %v137
  %v442 = vunpack.c.l.b16 %v138
  %v443 = vunpack.c.l.b16 %v139
  %v444 = vunpack.c.l.b16 %v140
  %v445 = vunpack.c.l.b16 %v141
  %v446 = vpack.c.b16 %v436, %v435
  %v447 = vpack.c.b16 %v438, %v437
  %v448 = vpack.c.b16 %v440, %v439
  %v449 = vpack.c.b16 %v442, %v441
  %v450 = vpack.c.b16 %v444, %v443
  %v451 = vpack.c.b16 %v445, %v445
  %vm457 = vcmask 662528
  %v459 = vsel %vm457, %v369, 0
  %v462 = vsel %vm457, %v370, 0
  %v465 = vsel %vm457, %v371, 0
  %v468 = vsel %vm457, %v372, 0
  %v471 = vsel %vm457, %v373, 0
  %v474 = vsel %vm457, %v374, 0
  %v477 = vsel %vm457, %v375, 0
  %v480 = vsel %vm457, %v376, 0
  %v483 = vsel %vm457, %v377, 0
  %v486 = vsel %vm457, %v378, 0
  %v489 = vsel %vm457, %v379, 0
  %v492 = vsel %vm457, %v380, 0
  %v495 = vsel %vm457, %v381, 0
  %v498 = vsel %vm457, %v382, 0
  %v501 = vsel %vm457, %v383, 0
  %v504 = vsel %vm457, %v384, 0
  %v507 = vsel %vm457, %v385, 0
  %v510 = vsel %vm457, %v386, 0
  %v513 = vsel %vm457, %v387, 0
  %v516 = vsel %vm457, %v388, 0
  %v519 = vsel %vm457, %v389, 0
  %v522 = vsel %vm457, %v390, 0
  %v525 = vsel %vm457, %v391, 0
  %v528 = vsel %vm457, %v392, 0
  %v531 = vsel %vm457, %v393, 0
  %v534 = vsel %vm457, %v394, 0
  %v537 = vsel %vm457, %v395, 0
  %v540 = vsel %vm457, %v396, 0
  %v543 = vsel %vm457, %v397, 0
  %v546 = vsel %vm457, %v398, 0
  %v549 = vsel %vm457, %v399, 0
  %v552 = vsel %vm457, %v400, 0
  %v555 = vsel %vm457, %v401, 0
  %v558 = vsel %vm457, %v402, 0
  %v561 = vsel %vm457, %v403, 0
  %v564 = vsel %vm457, %v404, 0
  %v567 = vsel %vm457, %v405, 0
  %v570 = vsel %vm457, %v406, 0
  %v573 = vsel %vm457, %v407, 0
  %v576 = vsel %vm457, %v408, 0
  %v579 = vsel %vm457, %v409, 0
  %v582 = vsel %vm457, %v410, 0
  %v585 = vsel %vm457, %v411, 0
  %v588 = vsel %vm457, %v412, 0
  %v591 = vsel %vm457, %v413, 0
  %v594 = vsel %vm457, %v414, 0
  %v597 = vsel %vm457, %v415, 0
  %v600 = vsel %vm457, %v416, 0
  %v603 = vsel %vm457, %v417, 0
  %v606 = vsel %vm457, %v418, 0
  %v609 = vsel %vm457, %v419, 0
  %v612 = vsel %vm457, %v420, 0
  %v615 = vsel %vm457, %v421, 0
  %v618 = vsel %vm457, %v422, 0
  %v621 = vsel %vm457, %v423, 0
  %vm623 = vcmask 1040384
  %v624 = vsel 0, 4294967295, 65535
  %v625 = vsel %vm623, %v624, 0
  %v627 = vand.u32 %v451, %v625
  %629 = vmatprep.subr.bf16.mxu0 0
  %630 = vmatpush1.bf16.msra.mxu0 %v446
  %631 = vmatprep.subr.bf16.mxu0 0
  %632 = vmatpush1.bf16.msra.mxu0 %v447
  %633 = vmatprep.subr.bf16.mxu0 0
  %634 = vmatpush1.bf16.msra.mxu0 %v448
  %635 = vmatprep.subr.bf16.mxu0 0
  %636 = vmatpush1.bf16.msra.mxu0 %v449
  %637 = vmatprep.subr.bf16.mxu0 0
  %638 = vmatpush1.bf16.msra.mxu0 %v450
  %639 = vmatprep.subr.bf16.mxu0 0
  %640 = vmatpush1.bf16.msra.mxu0 %v627
  %641 = vmatprep.subr.bf16.mxu0 0
  %642 = vmatpush1.bf16.msra.mxu0 0
  %643 = vmatprep.subr.bf16.mxu0 0
  %644 = vmatpush1.bf16.msra.mxu0 0
  %645 = vmatprep.subr.bf16.mxu0 0
  %646 = vmatpush1.bf16.msra.mxu0 0
  %647 = vmatprep.subr.bf16.mxu0 0
  %648 = vmatpush1.bf16.msra.mxu0 0
  %649 = vmatprep.subr.bf16.mxu0 0
  %650 = vmatpush1.bf16.msra.mxu0 0
  %651 = vmatprep.subr.bf16.mxu0 0
  %652 = vmatpush1.bf16.msra.mxu0 0
  %653 = vmatprep.subr.bf16.mxu0 0
  %654 = vmatpush1.bf16.msra.mxu0 0
  %655 = vmatprep.subr.bf16.mxu0 0
  %656 = vmatpush1.bf16.msra.mxu0 0
  %657 = vmatprep.subr.bf16.mxu0 0
  %658 = vmatpush1.bf16.msra.mxu0 0
  %659 = vmatprep.subr.bf16.mxu0 0
  %660 = vmatpush1.bf16.msra.mxu0 0
  %661 = vmatprep.mubr.bf16.mxu0 0
  %662 = vmatmul.mubr.bf16.gmra.mrb[0].mxu0 %v459
  %v663 = vpop.f32.mrb[0].mxu0
  %v664 = vadd.f32 %v147, %v663
  %v665 = vpop.f32.mrb[0].mxu0
  %v666 = vpop.f32.mrb[0].mxu0
  %v667 = vadd.f32 %v147, %v666
  %v668 = vpop.f32.mrb[0].mxu0
  %669 = vmatprep.mubr.bf16.mxu0 0
  %670 = vmatmul.mubr.bf16.gmra.mrb[0].mxu0 %v462
  %v671 = vpop.f32.mrb[0].mxu0
  %v672 = vadd.f32 %v147, %v671
  %v673 = vpop.f32.mrb[0].mxu0
  %v674 = vpop.f32.mrb[0].mxu0
  %v675 = vadd.f32 %v147, %v674
  %v676 = vpop.f32.mrb[0].mxu0
  %677 = vmatprep.mubr.bf16.mxu0 0
  %678 = vmatmul.mubr.bf16.gmra.mrb[0].mxu0 %v465
  %v679 = vpop.f32.mrb[0].mxu0
  %v680 = vadd.f32 %v147, %v679
  %v681 = vpop.f32.mrb[0].mxu0
  %v682 = vpop.f32.mrb[0].mxu0
  %v683 = vadd.f32 %v147, %v682
  %v684 = vpop.f32.mrb[0].mxu0
  %685 = vmatprep.mubr.bf16.mxu0 0
  %686 = vmatmul.mubr.bf16.gmra.mrb[0].mxu0 %v468
  %v687 = vpop.f32.mrb[0].mxu0
  %v688 = vadd.f32 %v147, %v687
  %v689 = vpop.f32.mrb[0].mxu0
  %v690 = vpop.f32.mrb[0].mxu0
  %v691 = vadd.f32 %v147, %v690
  %v692 = vpop.f32.mrb[0].mxu0
  %693 = vmatprep.mubr.bf16.mxu0 0
  %694 = vmatmul.mubr.bf16.gmra.mrb[0].mxu0 %v471
  %v695 = vpop.f32.mrb[0].mxu0
  %v696 = vadd.f32 %v147, %v695
  %v697 = vpop.f32.mrb[0].mxu0
  %v698 = vpop.f32.mrb[0].mxu0
  %v699 = vadd.f32 %v147, %v698
  %v700 = vpop.f32.mrb[0].mxu0
  %701 = vmatprep.mubr.bf16.mxu0 0
  %702 = vmatmul.mubr.bf16.gmra.mrb[0].mxu0 %v474
  %v703 = vpop.f32.mrb[0].mxu0
  %v704 = vadd.f32 %v147, %v703
  %v705 = vpop.f32.mrb[0].mxu0
  %v706 = vpop.f32.mrb[0].mxu0
  %v707 = vadd.f32 %v147, %v706
  %v708 = vpop.f32.mrb[0].mxu0
  %709 = vmatprep.mubr.bf16.mxu0 0
  %710 = vmatmul.mubr.bf16.gmra.mrb[0].mxu0 %v477
  %v711 = vpop.f32.mrb[0].mxu0
  %v712 = vadd.f32 %v147, %v711
  %v713 = vpop.f32.mrb[0].mxu0
  %v714 = vpop.f32.mrb[0].mxu0
  %v715 = vadd.f32 %v147, %v714
  %v716 = vpop.f32.mrb[0].mxu0
  %717 = vmatprep.mubr.bf16.mxu0 0
  %718 = vmatmul.mubr.bf16.gmra.mrb[0].mxu0 %v480
  %v719 = vpop.f32.mrb[0].mxu0
  %v720 = vadd.f32 %v147, %v719
  %v721 = vpop.f32.mrb[0].mxu0
  %v722 = vpop.f32.mrb[0].mxu0
  %v723 = vadd.f32 %v147, %v722
  %v724 = vpop.f32.mrb[0].mxu0
  %725 = vmatprep.mubr.bf16.mxu0 0
  %726 = vmatmul.mubr.bf16.gmra.mrb[0].mxu0 %v483
  %v727 = vpop.f32.mrb[0].mxu0
  %v728 = vadd.f32 %v147, %v727
  %v729 = vpop.f32.mrb[0].mxu0
  %v730 = vpop.f32.mrb[0].mxu0
  %v731 = vadd.f32 %v147, %v730
  %v732 = vpop.f32.mrb[0].mxu0
  %733 = vmatprep.mubr.bf16.mxu0 0
  %734 = vmatmul.mubr.bf16.gmra.mrb[0].mxu0 %v486
  %v735 = vpop.f32.mrb[0].mxu0
  %v736 = vadd.f32 %v147, %v735
  %v737 = vpop.f32.mrb[0].mxu0
  %v738 = vpop.f32.mrb[0].mxu0
  %v739 = vadd.f32 %v147, %v738
  %v740 = vpop.f32.mrb[0].mxu0
  %741 = vmatprep.mubr.bf16.mxu0 0
  %742 = vmatmul.mubr.bf16.gmra.mrb[0].mxu0 %v489
  %v743 = vpop.f32.mrb[0].mxu0
  %v744 = vadd.f32 %v147, %v743
  %v745 = vpop.f32.mrb[0].mxu0
  %v746 = vpop.f32.mrb[0].mxu0
  %v747 = vadd.f32 %v147, %v746
  %v748 = vpop.f32.mrb[0].mxu0
  %749 = vmatprep.mubr.bf16.mxu0 0
  %750 = vmatmul.mubr.bf16.gmra.mrb[0].mxu0 %v492
  %v751 = vpop.f32.mrb[0].mxu0
  %v752 = vadd.f32 %v147, %v751
  %v753 = vpop.f32.mrb[0].mxu0
  %v754 = vpop.f32.mrb[0].mxu0
  %v755 = vadd.f32 %v147, %v754
  %v756 = vpop.f32.mrb[0].mxu0
  %757 = vmatprep.mubr.bf16.mxu0 0
  %758 = vmatmul.mubr.bf16.gmra.mrb[0].mxu0 %v495
  %v759 = vpop.f32.mrb[0].mxu0
  %v760 = vadd.f32 %v147, %v759
  %v761 = vpop.f32.mrb[0].mxu0
  %v762 = vpop.f32.mrb[0].mxu0
  %v763 = vadd.f32 %v147, %v762
  %v764 = vpop.f32.mrb[0].mxu0
  %765 = vmatprep.mubr.bf16.mxu0 0
  %766 = vmatmul.mubr.bf16.gmra.mrb[0].mxu0 %v498
  %v767 = vpop.f32.mrb[0].mxu0
  %v768 = vadd.f32 %v147, %v767
  %v769 = vpop.f32.mrb[0].mxu0
  %v770 = vpop.f32.mrb[0].mxu0
  %v771 = vadd.f32 %v147, %v770
  %v772 = vpop.f32.mrb[0].mxu0
  %773 = vmatprep.mubr.bf16.mxu0 0
  %774 = vmatmul.mubr.bf16.gmra.mrb[0].mxu0 %v501
  %v775 = vpop.f32.mrb[0].mxu0
  %v776 = vadd.f32 %v147, %v775
  %v777 = vpop.f32.mrb[0].mxu0
  %v778 = vpop.f32.mrb[0].mxu0
  %v779 = vadd.f32 %v147, %v778
  %v780 = vpop.f32.mrb[0].mxu0
  %781 = vmatprep.mubr.bf16.mxu0 0
  %782 = vmatmul.mubr.bf16.gmra.mrb[0].mxu0 %v504
  %v783 = vpop.f32.mrb[0].mxu0
  %v784 = vadd.f32 %v147, %v783
  %v785 = vpop.f32.mrb[0].mxu0
  %v786 = vpop.f32.mrb[0].mxu0
  %v787 = vadd.f32 %v147, %v786
  %v788 = vpop.f32.mrb[0].mxu0
  %789 = vmatprep.mubr.bf16.mxu0 0
  %790 = vmatmul.mubr.bf16.gmra.mrb[0].mxu0 %v507
  %v791 = vpop.f32.mrb[0].mxu0
  %v792 = vadd.f32 %v147, %v791
  %v793 = vpop.f32.mrb[0].mxu0
  %v794 = vpop.f32.mrb[0].mxu0
  %v795 = vadd.f32 %v147, %v794
  %v796 = vpop.f32.mrb[0].mxu0
  %797 = vmatprep.mubr.bf16.mxu0 0
  %798 = vmatmul.mubr.bf16.gmra.mrb[0].mxu0 %v510
  %v799 = vpop.f32.mrb[0].mxu0
  %v800 = vadd.f32 %v147, %v799
  %v801 = vpop.f32.mrb[0].mxu0
  %v802 = vpop.f32.mrb[0].mxu0
  %v803 = vadd.f32 %v147, %v802
  %v804 = vpop.f32.mrb[0].mxu0
  %805 = vmatprep.mubr.bf16.mxu0 0
  %806 = vmatmul.mubr.bf16.gmra.mrb[0].mxu0 %v513
  %v807 = vpop.f32.mrb[0].mxu0
  %v808 = vadd.f32 %v147, %v807
  %v809 = vpop.f32.mrb[0].mxu0
  %v810 = vpop.f32.mrb[0].mxu0
  %v811 = vadd.f32 %v147, %v810
  %v812 = vpop.f32.mrb[0].mxu0
  %813 = vmatprep.mubr.bf16.mxu0 0
  %814 = vmatmul.mubr.bf16.gmra.mrb[0].mxu0 %v516
  %v815 = vpop.f32.mrb[0].mxu0
  %v816 = vadd.f32 %v147, %v815
  %v817 = vpop.f32.mrb[0].mxu0
  %v818 = vpop.f32.mrb[0].mxu0
  %v819 = vadd.f32 %v147, %v818
  %v820 = vpop.f32.mrb[0].mxu0
  %821 = vmatprep.mubr.bf16.mxu0 0
  %822 = vmatmul.mubr.bf16.gmra.mrb[0].mxu0 %v519
  %v823 = vpop.f32.mrb[0].mxu0
  %v824 = vadd.f32 %v147, %v823
  %v825 = vpop.f32.mrb[0].mxu0
  %v826 = vpop.f32.mrb[0].mxu0
  %v827 = vadd.f32 %v147, %v826
  %v828 = vpop.f32.mrb[0].mxu0
  %829 = vmatprep.mubr.bf16.mxu0 0
  %830 = vmatmul.mubr.bf16.gmra.mrb[0].mxu0 %v522
  %v831 = vpop.f32.mrb[0].mxu0
  %v832 = vadd.f32 %v147, %v831
  %v833 = vpop.f32.mrb[0].mxu0
  %v834 = vpop.f32.mrb[0].mxu0
  %v835 = vadd.f32 %v147, %v834
  %v836 = vpop.f32.mrb[0].mxu0
  %837 = vmatprep.mubr.bf16.mxu0 0
  %838 = vmatmul.mubr.bf16.gmra.mrb[0].mxu0 %v525
  %v839 = vpop.f32.mrb[0].mxu0
  %v840 = vadd.f32 %v147, %v839
  %v841 = vpop.f32.mrb[0].mxu0
  %v842 = vpop.f32.mrb[0].mxu0
  %v843 = vadd.f32 %v147, %v842
  %v844 = vpop.f32.mrb[0].mxu0
  %845 = vmatprep.mubr.bf16.mxu0 0
  %846 = vmatmul.mubr.bf16.gmra.mrb[0].mxu0 %v528
  %v847 = vpop.f32.mrb[0].mxu0
  %v848 = vadd.f32 %v147, %v847
  %v849 = vpop.f32.mrb[0].mxu0
  %v850 = vpop.f32.mrb[0].mxu0
  %v851 = vadd.f32 %v147, %v850
  %v852 = vpop.f32.mrb[0].mxu0
  %853 = vmatprep.mubr.bf16.mxu0 0
  %854 = vmatmul.mubr.bf16.gmra.mrb[0].mxu0 %v531
  %v855 = vpop.f32.mrb[0].mxu0
  %v856 = vadd.f32 %v147, %v855
  %v857 = vpop.f32.mrb[0].mxu0
  %v858 = vpop.f32.mrb[0].mxu0
  %v859 = vadd.f32 %v147, %v858
  %v860 = vpop.f32.mrb[0].mxu0
  %861 = vmatprep.mubr.bf16.mxu0 0
  %862 = vmatmul.mubr.bf16.gmra.mrb[0].mxu0 %v534
  %v863 = vpop.f32.mrb[0].mxu0
  %v864 = vadd.f32 %v147, %v863
  %v865 = vpop.f32.mrb[0].mxu0
  %v866 = vpop.f32.mrb[0].mxu0
  %v867 = vadd.f32 %v147, %v866
  %v868 = vpop.f32.mrb[0].mxu0
  %869 = vmatprep.mubr.bf16.mxu0 0
  %870 = vmatmul.mubr.bf16.gmra.mrb[0].mxu0 %v537
  %v871 = vpop.f32.mrb[0].mxu0
  %v872 = vadd.f32 %v147, %v871
  %v873 = vpop.f32.mrb[0].mxu0
  %v874 = vpop.f32.mrb[0].mxu0
  %v875 = vadd.f32 %v147, %v874
  %v876 = vpop.f32.mrb[0].mxu0
  %877 = vmatprep.mubr.bf16.mxu0 0
  %878 = vmatmul.mubr.bf16.gmra.mrb[0].mxu0 %v540
  %v879 = vpop.f32.mrb[0].mxu0
  %v880 = vadd.f32 %v147, %v879
  %v881 = vpop.f32.mrb[0].mxu0
  %v882 = vpop.f32.mrb[0].mxu0
  %v883 = vadd.f32 %v147, %v882
  %v884 = vpop.f32.mrb[0].mxu0
  %885 = vmatprep.mubr.bf16.mxu0 0
  %886 = vmatmul.mubr.bf16.gmra.mrb[0].mxu0 %v543
  %v887 = vpop.f32.mrb[0].mxu0
  %v888 = vadd.f32 %v147, %v887
  %v889 = vpop.f32.mrb[0].mxu0
  %v890 = vpop.f32.mrb[0].mxu0
  %v891 = vadd.f32 %v147, %v890
  %v892 = vpop.f32.mrb[0].mxu0
  %893 = vmatprep.mubr.bf16.mxu0 0
  %894 = vmatmul.mubr.bf16.gmra.mrb[0].mxu0 %v546
  %v895 = vpop.f32.mrb[0].mxu0
  %v896 = vadd.f32 %v147, %v895
  %v897 = vpop.f32.mrb[0].mxu0
  %v898 = vpop.f32.mrb[0].mxu0
  %v899 = vadd.f32 %v147, %v898
  %v900 = vpop.f32.mrb[0].mxu0
  %901 = vmatprep.mubr.bf16.mxu0 0
  %902 = vmatmul.mubr.bf16.gmra.mrb[0].mxu0 %v549
  %v903 = vpop.f32.mrb[0].mxu0
  %v904 = vadd.f32 %v147, %v903
  %v905 = vpop.f32.mrb[0].mxu0
  %v906 = vpop.f32.mrb[0].mxu0
  %v907 = vadd.f32 %v147, %v906
  %v908 = vpop.f32.mrb[0].mxu0
  %909 = vmatprep.mubr.bf16.mxu0 0
  %910 = vmatmul.mubr.bf16.gmra.mrb[0].mxu0 %v552
  %v911 = vpop.f32.mrb[0].mxu0
  %v912 = vadd.f32 %v147, %v911
  %v913 = vpop.f32.mrb[0].mxu0
  %v914 = vpop.f32.mrb[0].mxu0
  %v915 = vadd.f32 %v147, %v914
  %v916 = vpop.f32.mrb[0].mxu0
  %917 = vmatprep.mubr.bf16.mxu0 0
  %918 = vmatmul.mubr.bf16.gmra.mrb[0].mxu0 %v555
  %v919 = vpop.f32.mrb[0].mxu0
  %v920 = vadd.f32 %v147, %v919
  %v921 = vpop.f32.mrb[0].mxu0
  %v922 = vpop.f32.mrb[0].mxu0
  %v923 = vadd.f32 %v147, %v922
  %v924 = vpop.f32.mrb[0].mxu0
  %925 = vmatprep.mubr.bf16.mxu0 0
  %926 = vmatmul.mubr.bf16.gmra.mrb[0].mxu0 %v558
  %v927 = vpop.f32.mrb[0].mxu0
  %v928 = vadd.f32 %v147, %v927
  %v929 = vpop.f32.mrb[0].mxu0
  %v930 = vpop.f32.mrb[0].mxu0
  %v931 = vadd.f32 %v147, %v930
  %v932 = vpop.f32.mrb[0].mxu0
  %933 = vmatprep.mubr.bf16.mxu0 0
  %934 = vmatmul.mubr.bf16.gmra.mrb[0].mxu0 %v561
  %v935 = vpop.f32.mrb[0].mxu0
  %v936 = vadd.f32 %v147, %v935
  %v937 = vpop.f32.mrb[0].mxu0
  %v938 = vpop.f32.mrb[0].mxu0
  %v939 = vadd.f32 %v147, %v938
  %v940 = vpop.f32.mrb[0].mxu0
  %941 = vmatprep.mubr.bf16.mxu0 0
  %942 = vmatmul.mubr.bf16.gmra.mrb[0].mxu0 %v564
  %v943 = vpop.f32.mrb[0].mxu0
  %v944 = vadd.f32 %v147, %v943
  %v945 = vpop.f32.mrb[0].mxu0
  %v946 = vpop.f32.mrb[0].mxu0
  %v947 = vadd.f32 %v147, %v946
  %v948 = vpop.f32.mrb[0].mxu0
  %949 = vmatprep.mubr.bf16.mxu0 0
  %950 = vmatmul.mubr.bf16.gmra.mrb[0].mxu0 %v567
  %v951 = vpop.f32.mrb[0].mxu0
  %v952 = vadd.f32 %v147, %v951
  %v953 = vpop.f32.mrb[0].mxu0
  %v954 = vpop.f32.mrb[0].mxu0
  %v955 = vadd.f32 %v147, %v954
  %v956 = vpop.f32.mrb[0].mxu0
  %957 = vmatprep.mubr.bf16.mxu0 0
  %958 = vmatmul.mubr.bf16.gmra.mrb[0].mxu0 %v570
  %v959 = vpop.f32.mrb[0].mxu0
  %v960 = vadd.f32 %v147, %v959
  %v961 = vpop.f32.mrb[0].mxu0
  %v962 = vpop.f32.mrb[0].mxu0
  %v963 = vadd.f32 %v147, %v962
  %v964 = vpop.f32.mrb[0].mxu0
  %965 = vmatprep.mubr.bf16.mxu0 0
  %966 = vmatmul.mubr.bf16.gmra.mrb[0].mxu0 %v573
  %v967 = vpop.f32.mrb[0].mxu0
  %v968 = vadd.f32 %v147, %v967
  %v969 = vpop.f32.mrb[0].mxu0
  %v970 = vpop.f32.mrb[0].mxu0
  %v971 = vadd.f32 %v147, %v970
  %v972 = vpop.f32.mrb[0].mxu0
  %973 = vmatprep.mubr.bf16.mxu0 0
  %974 = vmatmul.mubr.bf16.gmra.mrb[0].mxu0 %v576
  %v975 = vpop.f32.mrb[0].mxu0
  %v976 = vadd.f32 %v147, %v975
  %v977 = vpop.f32.mrb[0].mxu0
  %v978 = vpop.f32.mrb[0].mxu0
  %v979 = vadd.f32 %v147, %v978
  %v980 = vpop.f32.mrb[0].mxu0
  %981 = vmatprep.mubr.bf16.mxu0 0
  %982 = vmatmul.mubr.bf16.gmra.mrb[0].mxu0 %v579
  %v983 = vpop.f32.mrb[0].mxu0
  %v984 = vadd.f32 %v147, %v983
  %v985 = vpop.f32.mrb[0].mxu0
  %v986 = vpop.f32.mrb[0].mxu0
  %v987 = vadd.f32 %v147, %v986
  %v988 = vpop.f32.mrb[0].mxu0
  %989 = vmatprep.mubr.bf16.mxu0 0
  %990 = vmatmul.mubr.bf16.gmra.mrb[0].mxu0 %v582
  %v991 = vpop.f32.mrb[0].mxu0
  %v992 = vadd.f32 %v147, %v991
  %v993 = vpop.f32.mrb[0].mxu0
  %v994 = vpop.f32.mrb[0].mxu0
  %v995 = vadd.f32 %v147, %v994
  %v996 = vpop.f32.mrb[0].mxu0
  %997 = vmatprep.mubr.bf16.mxu0 0
  %998 = vmatmul.mubr.bf16.gmra.mrb[0].mxu0 %v585
  %v999 = vpop.f32.mrb[0].mxu0
  %v1000 = vadd.f32 %v147, %v999
  %v1001 = vpop.f32.mrb[0].mxu0
  %v1002 = vpop.f32.mrb[0].mxu0
  %v1003 = vadd.f32 %v147, %v1002
  %v1004 = vpop.f32.mrb[0].mxu0
  %1005 = vmatprep.mubr.bf16.mxu0 0
  %1006 = vmatmul.mubr.bf16.gmra.mrb[0].mxu0 %v588
  %v1007 = vpop.f32.mrb[0].mxu0
  %v1008 = vadd.f32 %v147, %v1007
  %v1009 = vpop.f32.mrb[0].mxu0
  %v1010 = vpop.f32.mrb[0].mxu0
  %v1011 = vadd.f32 %v147, %v1010
  %v1012 = vpop.f32.mrb[0].mxu0
  %1013 = vmatprep.mubr.bf16.mxu0 0
  %1014 = vmatmul.mubr.bf16.gmra.mrb[0].mxu0 %v591
  %v1015 = vpop.f32.mrb[0].mxu0
  %v1016 = vadd.f32 %v147, %v1015
  %v1017 = vpop.f32.mrb[0].mxu0
  %v1018 = vpop.f32.mrb[0].mxu0
  %v1019 = vadd.f32 %v147, %v1018
  %v1020 = vpop.f32.mrb[0].mxu0
  %1021 = vmatprep.mubr.bf16.mxu0 0
  %1022 = vmatmul.mubr.bf16.gmra.mrb[0].mxu0 %v594
  %v1023 = vpop.f32.mrb[0].mxu0
  %v1024 = vadd.f32 %v147, %v1023
  %v1025 = vpop.f32.mrb[0].mxu0
  %v1026 = vpop.f32.mrb[0].mxu0
  %v1027 = vadd.f32 %v147, %v1026
  %v1028 = vpop.f32.mrb[0].mxu0
  %1029 = vmatprep.mubr.bf16.mxu0 0
  %1030 = vmatmul.mubr.bf16.gmra.mrb[0].mxu0 %v597
  %v1031 = vpop.f32.mrb[0].mxu0
  %v1032 = vadd.f32 %v147, %v1031
  %v1033 = vpop.f32.mrb[0].mxu0
  %v1034 = vpop.f32.mrb[0].mxu0
  %v1035 = vadd.f32 %v147, %v1034
  %v1036 = vpop.f32.mrb[0].mxu0
  %1037 = vmatprep.mubr.bf16.mxu0 0
  %1038 = vmatmul.mubr.bf16.gmra.mrb[0].mxu0 %v600
  %v1039 = vpop.f32.mrb[0].mxu0
  %v1040 = vadd.f32 %v147, %v1039
  %v1041 = vpop.f32.mrb[0].mxu0
  %v1042 = vpop.f32.mrb[0].mxu0
  %v1043 = vadd.f32 %v147, %v1042
  %v1044 = vpop.f32.mrb[0].mxu0
  %1045 = vmatprep.mubr.bf16.mxu0 0
  %1046 = vmatmul.mubr.bf16.gmra.mrb[0].mxu0 %v603
  %v1047 = vpop.f32.mrb[0].mxu0
  %v1048 = vadd.f32 %v147, %v1047
  %v1049 = vpop.f32.mrb[0].mxu0
  %v1050 = vpop.f32.mrb[0].mxu0
  %v1051 = vadd.f32 %v147, %v1050
  %v1052 = vpop.f32.mrb[0].mxu0
  %1053 = vmatprep.mubr.bf16.mxu0 0
  %1054 = vmatmul.mubr.bf16.gmra.mrb[0].mxu0 %v606
  %v1055 = vpop.f32.mrb[0].mxu0
  %v1056 = vadd.f32 %v147, %v1055
  %v1057 = vpop.f32.mrb[0].mxu0
  %v1058 = vpop.f32.mrb[0].mxu0
  %v1059 = vadd.f32 %v147, %v1058
  %v1060 = vpop.f32.mrb[0].mxu0
  %1061 = vmatprep.mubr.bf16.mxu0 0
  %1062 = vmatmul.mubr.bf16.gmra.mrb[0].mxu0 %v609
  %v1063 = vpop.f32.mrb[0].mxu0
  %v1064 = vadd.f32 %v147, %v1063
  %v1065 = vpop.f32.mrb[0].mxu0
  %v1066 = vpop.f32.mrb[0].mxu0
  %v1067 = vadd.f32 %v147, %v1066
  %v1068 = vpop.f32.mrb[0].mxu0
  %1069 = vmatprep.mubr.bf16.mxu0 0
  %1070 = vmatmul.mubr.bf16.gmra.mrb[0].mxu0 %v612
  %v1071 = vpop.f32.mrb[0].mxu0
  %v1072 = vadd.f32 %v147, %v1071
  %v1073 = vpop.f32.mrb[0].mxu0
  %v1074 = vpop.f32.mrb[0].mxu0
  %v1075 = vadd.f32 %v147, %v1074
  %v1076 = vpop.f32.mrb[0].mxu0
  %1077 = vmatprep.mubr.bf16.mxu0 0
  %1078 = vmatmul.mubr.bf16.gmra.mrb[0].mxu0 %v615
  %v1079 = vpop.f32.mrb[0].mxu0
  %v1080 = vadd.f32 %v147, %v1079
  %v1081 = vpop.f32.mrb[0].mxu0
  %v1082 = vpop.f32.mrb[0].mxu0
  %v1083 = vadd.f32 %v147, %v1082
  %v1084 = vpop.f32.mrb[0].mxu0
  %1085 = vmatprep.mubr.bf16.mxu0 0
  %1086 = vmatmul.mubr.bf16.gmra.mrb[0].mxu0 %v618
  %v1087 = vpop.f32.mrb[0].mxu0
  %v1088 = vadd.f32 %v147, %v1087
  %v1089 = vpop.f32.mrb[0].mxu0
  %v1090 = vpop.f32.mrb[0].mxu0
  %v1091 = vadd.f32 %v147, %v1090
  %v1092 = vpop.f32.mrb[0].mxu0
  %1093 = vmatprep.mubr.bf16.mxu0 0
  %1094 = vmatmul.mubr.bf16.gmra.mrb[0].mxu0 %v621
  %v1095 = vpop.f32.mrb[0].mxu0
  %v1096 = vadd.f32 %v147, %v1095
  %v1097 = vpop.f32.mrb[0].mxu0
  %v1098 = vpop.f32.mrb[0].mxu0
  %v1099 = vadd.f32 %v147, %v1098
  %v1100 = vpop.f32.mrb[0].mxu0
  %1101 = vdwg.mxu0
  %1102 = vst [vmem:[#allocation2] sm:$0xff] %v664
  %1103 = vst [vmem:[#allocation2 + $0x8] sm:$0xff] %v667
  %1104 = vst [vmem:[#allocation2 + $0x10] sm:$0xff] %v672
  %1105 = vst [vmem:[#allocation2 + $0x18] sm:$0xff] %v675
  %1106 = vst [vmem:[#allocation2 + $0x20] sm:$0xff] %v680
  %1107 = vst [vmem:[#allocation2 + $0x28] sm:$0xff] %v683
  %1108 = vst [vmem:[#allocation2 + $0x30] sm:$0xff] %v688
  %1109 = vst [vmem:[#allocation2 + $0x38] sm:$0xff] %v691
  %1110 = vst [vmem:[#allocation2 + $0x40] sm:$0xff] %v696
  %1111 = vst [vmem:[#allocation2 + $0x48] sm:$0xff] %v699
  %1112 = vst [vmem:[#allocation2 + $0x50] sm:$0xff] %v704
  %1113 = vst [vmem:[#allocation2 + $0x58] sm:$0xff] %v707
  %1114 = vst [vmem:[#allocation2 + $0x60] sm:$0xff] %v712
  %1115 = vst [vmem:[#allocation2 + $0x68] sm:$0xff] %v715
  %1116 = vst [vmem:[#allocation2 + $0x70] sm:$0xff] %v720
  %1117 = vst [vmem:[#allocation2 + $0x78] sm:$0xff] %v723
  %1118 = vst [vmem:[#allocation2 + $0x80] sm:$0xff] %v728
  %1119 = vst [vmem:[#allocation2 + $0x88] sm:$0xff] %v731
  %1120 = vst [vmem:[#allocation2 + $0x90] sm:$0xff] %v736
  %1121 = vst [vmem:[#allocation2 + $0x98] sm:$0xff] %v739
  %1122 = vst [vmem:[#allocation2 + $0xa0] sm:$0xff] %v744
  %1123 = vst [vmem:[#allocation2 + $0xa8] sm:$0xff] %v747
  %1124 = vst [vmem:[#allocation2 + $0xb0] sm:$0xff] %v752
  %1125 = vst [vmem:[#allocation2 + $0xb8] sm:$0xff] %v755
  %1126 = vst [vmem:[#allocation2 + $0xc0] sm:$0xff] %v760
  %1127 = vst [vmem:[#allocation2 + $0xc8] sm:$0xff] %v763
  %1128 = vst [vmem:[#allocation2 + $0xd0] sm:$0xff] %v768
  %1129 = vst [vmem:[#allocation2 + $0xd8] sm:$0xff] %v771
  %1130 = vst [vmem:[#allocation2 + $0xe0] sm:$0xff] %v776
  %1131 = vst [vmem:[#allocation2 + $0xe8] sm:$0xff] %v779
  %1132 = vst [vmem:[#allocation2 + $0xf0] sm:$0xff] %v784
  %1133 = vst [vmem:[#allocation2 + $0xf8] sm:$0xff] %v787
  %1134 = vst [vmem:[#allocation2 + $0x100] sm:$0xff] %v792
  %1135 = vst [vmem:[#allocation2 + $0x108] sm:$0xff] %v795
  %1136 = vst [vmem:[#allocation2 + $0x110] sm:$0xff] %v800
  %1137 = vst [vmem:[#allocation2 + $0x118] sm:$0xff] %v803
  %1138 = vst [vmem:[#allocation2 + $0x120] sm:$0xff] %v808
  %1139 = vst [vmem:[#allocation2 + $0x128] sm:$0xff] %v811
  %1140 = vst [vmem:[#allocation2 + $0x130] sm:$0xff] %v816
  %1141 = vst [vmem:[#allocation2 + $0x138] sm:$0xff] %v819
  %1142 = vst [vmem:[#allocation2 + $0x140] sm:$0xff] %v824
  %1143 = vst [vmem:[#allocation2 + $0x148] sm:$0xff] %v827
  %1144 = vst [vmem:[#allocation2 + $0x150] sm:$0xff] %v832
  %1145 = vst [vmem:[#allocation2 + $0x158] sm:$0xff] %v835
  %1146 = vst [vmem:[#allocation2 + $0x160] sm:$0xff] %v840
  %1147 = vst [vmem:[#allocation2 + $0x168] sm:$0xff] %v843
  %1148 = vst [vmem:[#allocation2 + $0x170] sm:$0xff] %v848
  %1149 = vst [vmem:[#allocation2 + $0x178] sm:$0xff] %v851
  %1150 = vst [vmem:[#allocation2 + $0x180] sm:$0xff] %v856
  %1151 = vst [vmem:[#allocation2 + $0x188] sm:$0xff] %v859
  %1152 = vst [vmem:[#allocation2 + $0x190] sm:$0xff] %v864
  %1153 = vst [vmem:[#allocation2 + $0x198] sm:$0xff] %v867
  %1154 = vst [vmem:[#allocation2 + $0x1a0] sm:$0xff] %v872
  %1155 = vst [vmem:[#allocation2 + $0x1a8] sm:$0xff] %v875
  %1156 = vst [vmem:[#allocation2 + $0x1b0] sm:$0xff] %v880
  %1157 = vst [vmem:[#allocation2 + $0x1b8] sm:$0xff] %v883
  %1158 = vst [vmem:[#allocation2 + $0x1c0] sm:$0xff] %v888
  %1159 = vst [vmem:[#allocation2 + $0x1c8] sm:$0xff] %v891
  %1160 = vst [vmem:[#allocation2 + $0x1d0] sm:$0xff] %v896
  %1161 = vst [vmem:[#allocation2 + $0x1d8] sm:$0xff] %v899
  %1162 = vst [vmem:[#allocation2 + $0x1e0] sm:$0xff] %v904
  %1163 = vst [vmem:[#allocation2 + $0x1e8] sm:$0xff] %v907
  %1164 = vst [vmem:[#allocation2 + $0x1f0] sm:$0xff] %v912
  %1165 = vst [vmem:[#allocation2 + $0x1f8] sm:$0xff] %v915
  %1166 = vst [vmem:[#allocation2 + $0x200] sm:$0xff] %v920
  %1167 = vst [vmem:[#allocation2 + $0x208] sm:$0xff] %v923
  %1168 = vst [vmem:[#allocation2 + $0x210] sm:$0xff] %v928
  %1169 = vst [vmem:[#allocation2 + $0x218] sm:$0xff] %v931
  %1170 = vst [vmem:[#allocation2 + $0x220] sm:$0xff] %v936
  %1171 = vst [vmem:[#allocation2 + $0x228] sm:$0xff] %v939
  %1172 = vst [vmem:[#allocation2 + $0x230] sm:$0xff] %v944
  %1173 = vst [vmem:[#allocation2 + $0x238] sm:$0xff] %v947
  %1174 = vst [vmem:[#allocation2 + $0x240] sm:$0xff] %v952
  %1175 = vst [vmem:[#allocation2 + $0x248] sm:$0xff] %v955
  %1176 = vst [vmem:[#allocation2 + $0x250] sm:$0xff] %v960
  %1177 = vst [vmem:[#allocation2 + $0x258] sm:$0xff] %v963
  %1178 = vst [vmem:[#allocation2 + $0x260] sm:$0xff] %v968
  %1179 = vst [vmem:[#allocation2 + $0x268] sm:$0xff] %v971
  %1180 = vst [vmem:[#allocation2 + $0x270] sm:$0xff] %v976
  %1181 = vst [vmem:[#allocation2 + $0x278] sm:$0xff] %v979
  %1182 = vst [vmem:[#allocation2 + $0x280] sm:$0xff] %v984
  %1183 = vst [vmem:[#allocation2 + $0x288] sm:$0xff] %v987
  %1184 = vst [vmem:[#allocation2 + $0x290] sm:$0xff] %v992
  %1185 = vst [vmem:[#allocation2 + $0x298] sm:$0xff] %v995
  %1186 = vst [vmem:[#allocation2 + $0x2a0] sm:$0xff] %v1000
  %1187 = vst [vmem:[#allocation2 + $0x2a8] sm:$0xff] %v1003
  %1188 = vst [vmem:[#allocation2 + $0x2b0] sm:$0xff] %v1008
  %1189 = vst [vmem:[#allocation2 + $0x2b8] sm:$0xff] %v1011
  %1190 = vst [vmem:[#allocation2 + $0x2c0] sm:$0xff] %v1016
  %1191 = vst [vmem:[#allocation2 + $0x2c8] sm:$0xff] %v1019
  %1192 = vst [vmem:[#allocation2 + $0x2d0] sm:$0xff] %v1024
  %1193 = vst [vmem:[#allocation2 + $0x2d8] sm:$0xff] %v1027
  %1194 = vst [vmem:[#allocation2 + $0x2e0] sm:$0xff] %v1032
  %1195 = vst [vmem:[#allocation2 + $0x2e8] sm:$0xff] %v1035
  %1196 = vst [vmem:[#allocation2 + $0x2f0] sm:$0xff] %v1040
  %1197 = vst [vmem:[#allocation2 + $0x2f8] sm:$0xff] %v1043
  %1198 = vst [vmem:[#allocation2 + $0x300] sm:$0xff] %v1048
  %1199 = vst [vmem:[#allocation2 + $0x308] sm:$0xff] %v1051
  %1200 = vst [vmem:[#allocation2 + $0x310] sm:$0xff] %v1056
  %1201 = vst [vmem:[#allocation2 + $0x318] sm:$0xff] %v1059
  %1202 = vst [vmem:[#allocation2 + $0x320] sm:$0xff] %v1064
  %1203 = vst [vmem:[#allocation2 + $0x328] sm:$0xff] %v1067
  %1204 = vst [vmem:[#allocation2 + $0x330] sm:$0xff] %v1072
  %1205 = vst [vmem:[#allocation2 + $0x338] sm:$0xff] %v1075
  %1206 = vst [vmem:[#allocation2 + $0x340] sm:$0xff] %v1080
  %1207 = vst [vmem:[#allocation2 + $0x348] sm:$0xff] %v1083
  %1208 = vst [vmem:[#allocation2 + $0x350] sm:$0xff] %v1088
  %1209 = vst [vmem:[#allocation2 + $0x358] sm:$0xff] %v1091
  %1210 = vst [vmem:[#allocation2 + $0x360] sm:$0xff] %v1096
  %1211 = vst [vmem:[#allocation2 + $0x368] sm:$0xff] %v1099
  %v1212 = vld [vmem:[#allocation2] sm:$0xff]
  %v1213 = vld [vmem:[#allocation2 + $0x8] sm:$0xff]
  %v1214 = vld [vmem:[#allocation2 + $0x10] sm:$0xff]
  %v1215 = vld [vmem:[#allocation2 + $0x18] sm:$0xff]
  %v1216 = vld [vmem:[#allocation2 + $0x20] sm:$0xff]
  %v1217 = vld [vmem:[#allocation2 + $0x28] sm:$0xff]
  %v1218 = vld [vmem:[#allocation2 + $0x30] sm:$0xff]
  %v1219 = vld [vmem:[#allocation2 + $0x38] sm:$0xff]
  %v1220 = vld [vmem:[#allocation2 + $0x40] sm:$0xff]
  %v1221 = vld [vmem:[#allocation2 + $0x48] sm:$0xff]
  %v1222 = vld [vmem:[#allocation2 + $0x50] sm:$0xff]
  %v1223 = vld [vmem:[#allocation2 + $0x58] sm:$0xff]
  %v1224 = vld [vmem:[#allocation2 + $0x60] sm:$0xff]
  %v1225 = vld [vmem:[#allocation2 + $0x68] sm:$0xff]
  %v1226 = vld [vmem:[#allocation2 + $0x70] sm:$0xff]
  %v1227 = vld [vmem:[#allocation2 + $0x78] sm:$0xff]
  %v1228 = vld [vmem:[#allocation2 + $0x80] sm:$0xff]
  %v1229 = vld [vmem:[#allocation2 + $0x88] sm:$0xff]
  %v1230 = vld [vmem:[#allocation2 + $0x90] sm:$0xff]
  %v1231 = vld [vmem:[#allocation2 + $0x98] sm:$0xff]
  %v1232 = vld [vmem:[#allocation2 + $0xa0] sm:$0xff]
  %v1233 = vld [vmem:[#allocation2 + $0xa8] sm:$0xff]
  %v1234 = vld [vmem:[#allocation2 + $0xb0] sm:$0xff]
  %v1235 = vld [vmem:[#allocation2 + $0xb8] sm:$0xff]
  %v1236 = vld [vmem:[#allocation2 + $0xc0] sm:$0xff]
  %v1237 = vld [vmem:[#allocation2 + $0xc8] sm:$0xff]
  %v1238 = vld [vmem:[#allocation2 + $0xd0] sm:$0xff]
  %v1239 = vld [vmem:[#allocation2 + $0xd8] sm:$0xff]
  %v1240 = vld [vmem:[#allocation2 + $0xe0] sm:$0xff]
  %v1241 = vld [vmem:[#allocation2 + $0xe8] sm:$0xff]
  %v1242 = vld [vmem:[#allocation2 + $0xf0] sm:$0xff]
  %v1243 = vld [vmem:[#allocation2 + $0xf8] sm:$0xff]
  %v1244 = vld [vmem:[#allocation2 + $0x100] sm:$0xff]
  %v1245 = vld [vmem:[#allocation2 + $0x108] sm:$0xff]
  %v1246 = vld [vmem:[#allocation2 + $0x110] sm:$0xff]
  %v1247 = vld [vmem:[#allocation2 + $0x118] sm:$0xff]
  %v1248 = vld [vmem:[#allocation2 + $0x120] sm:$0xff]
  %v1249 = vld [vmem:[#allocation2 + $0x128] sm:$0xff]
  %v1250 = vld [vmem:[#allocation2 + $0x130] sm:$0xff]
  %v1251 = vld [vmem:[#allocation2 + $0x138] sm:$0xff]
  %v1252 = vld [vmem:[#allocation2 + $0x140] sm:$0xff]
  %v1253 = vld [vmem:[#allocation2 + $0x148] sm:$0xff]
  %v1254 = vld [vmem:[#allocation2 + $0x150] sm:$0xff]
  %v1255 = vld [vmem:[#allocation2 + $0x158] sm:$0xff]
  %v1256 = vld [vmem:[#allocation2 + $0x160] sm:$0xff]
  %v1257 = vld [vmem:[#allocation2 + $0x168] sm:$0xff]
  %v1258 = vld [vmem:[#allocation2 + $0x170] sm:$0xff]
  %v1259 = vld [vmem:[#allocation2 + $0x178] sm:$0xff]
  %v1260 = vld [vmem:[#allocation2 + $0x180] sm:$0xff]
  %v1261 = vld [vmem:[#allocation2 + $0x188] sm:$0xff]
  %v1262 = vld [vmem:[#allocation2 + $0x190] sm:$0xff]
  %v1263 = vld [vmem:[#allocation2 + $0x198] sm:$0xff]
  %v1264 = vld [vmem:[#allocation2 + $0x1a0] sm:$0xff]
  %v1265 = vld [vmem:[#allocation2 + $0x1a8] sm:$0xff]
  %v1266 = vld [vmem:[#allocation2 + $0x1b0] sm:$0xff]
  %v1267 = vld [vmem:[#allocation2 + $0x1b8] sm:$0xff]
  %v1268 = vld [vmem:[#allocation2 + $0x1c0] sm:$0xff]
  %v1269 = vld [vmem:[#allocation2 + $0x1c8] sm:$0xff]
  %v1270 = vld [vmem:[#allocation2 + $0x1d0] sm:$0xff]
  %v1271 = vld [vmem:[#allocation2 + $0x1d8] sm:$0xff]
  %v1272 = vld [vmem:[#allocation2 + $0x1e0] sm:$0xff]
  %v1273 = vld [vmem:[#allocation2 + $0x1e8] sm:$0xff]
  %v1274 = vld [vmem:[#allocation2 + $0x1f0] sm:$0xff]
  %v1275 = vld [vmem:[#allocation2 + $0x1f8] sm:$0xff]
  %v1276 = vld [vmem:[#allocation2 + $0x200] sm:$0xff]
  %v1277 = vld [vmem:[#allocation2 + $0x208] sm:$0xff]
  %v1278 = vld [vmem:[#allocation2 + $0x210] sm:$0xff]
  %v1279 = vld [vmem:[#allocation2 + $0x218] sm:$0xff]
  %v1280 = vld [vmem:[#allocation2 + $0x220] sm:$0xff]
  %v1281 = vld [vmem:[#allocation2 + $0x228] sm:$0xff]
  %v1282 = vld [vmem:[#allocation2 + $0x230] sm:$0xff]
  %v1283 = vld [vmem:[#allocation2 + $0x238] sm:$0xff]
  %v1284 = vld [vmem:[#allocation2 + $0x240] sm:$0xff]
  %v1285 = vld [vmem:[#allocation2 + $0x248] sm:$0xff]
  %v1286 = vld [vmem:[#allocation2 + $0x250] sm:$0xff]
  %v1287 = vld [vmem:[#allocation2 + $0x258] sm:$0xff]
  %v1288 = vld [vmem:[#allocation2 + $0x260] sm:$0xff]
  %v1289 = vld [vmem:[#allocation2 + $0x268] sm:$0xff]
  %v1290 = vld [vmem:[#allocation2 + $0x270] sm:$0xff]
  %v1291 = vld [vmem:[#allocation2 + $0x278] sm:$0xff]
  %v1292 = vld [vmem:[#allocation2 + $0x280] sm:$0xff]
  %v1293 = vld [vmem:[#allocation2 + $0x288] sm:$0xff]
  %v1294 = vld [vmem:[#allocation2 + $0x290] sm:$0xff]
  %v1295 = vld [vmem:[#allocation2 + $0x298] sm:$0xff]
  %v1296 = vld [vmem:[#allocation2 + $0x2a0] sm:$0xff]
  %v1297 = vld [vmem:[#allocation2 + $0x2a8] sm:$0xff]
  %v1298 = vld [vmem:[#allocation2 + $0x2b0] sm:$0xff]
  %v1299 = vld [vmem:[#allocation2 + $0x2b8] sm:$0xff]
  %v1300 = vld [vmem:[#allocation2 + $0x2c0] sm:$0xff]
  %v1301 = vld [vmem:[#allocation2 + $0x2c8] sm:$0xff]
  %v1302 = vld [vmem:[#allocation2 + $0x2d0] sm:$0xff]
  %v1303 = vld [vmem:[#allocation2 + $0x2d8] sm:$0xff]
  %v1304 = vld [vmem:[#allocation2 + $0x2e0] sm:$0xff]
  %v1305 = vld [vmem:[#allocation2 + $0x2e8] sm:$0xff]
  %v1306 = vld [vmem:[#allocation2 + $0x2f0] sm:$0xff]
  %v1307 = vld [vmem:[#allocation2 + $0x2f8] sm:$0xff]
  %v1308 = vld [vmem:[#allocation2 + $0x300] sm:$0xff]
  %v1309 = vld [vmem:[#allocation2 + $0x308] sm:$0xff]
  %v1310 = vld [vmem:[#allocation2 + $0x310] sm:$0xff]
  %v1311 = vld [vmem:[#allocation2 + $0x318] sm:$0xff]
  %v1312 = vld [vmem:[#allocation2 + $0x320] sm:$0xff]
  %v1313 = vld [vmem:[#allocation2 + $0x328] sm:$0xff]
  %v1314 = vld [vmem:[#allocation2 + $0x330] sm:$0xff]
  %v1315 = vld [vmem:[#allocation2 + $0x338] sm:$0xff]
  %v1316 = vld [vmem:[#allocation2 + $0x340] sm:$0xff]
  %v1317 = vld [vmem:[#allocation2 + $0x348] sm:$0xff]
  %v1318 = vld [vmem:[#allocation2 + $0x350] sm:$0xff]
  %v1319 = vld [vmem:[#allocation2 + $0x358] sm:$0xff]
  %v1320 = vld [vmem:[#allocation2 + $0x360] sm:$0xff]
  %v1321 = vld [vmem:[#allocation2 + $0x368] sm:$0xff]
  %v1322 = vadd.f32 %v1212, %v1213
  %v1323 = vadd.f32 %v1322, %v1214
  %v1324 = vadd.f32 %v1323, %v1215
  %v1325 = vadd.f32 %v1324, %v1216
  %v1326 = vadd.f32 %v1325, %v1217
  %v1327 = vadd.f32 %v1326, %v1218
  %v1328 = vadd.f32 %v1327, %v1219
  %v1329 = vadd.f32 %v1328, %v1220
  %v1330 = vadd.f32 %v1329, %v1221
  %v1331 = vadd.f32 %v1330, %v1222
  %v1332 = vadd.f32 %v1331, %v1223
  %v1333 = vadd.f32 %v1332, %v1224
  %v1334 = vadd.f32 %v1333, %v1225
  %v1335 = vadd.f32 %v1334, %v1226
  %v1336 = vadd.f32 %v1335, %v1227
  %v1337 = vadd.f32 %v1336, %v1228
  %v1338 = vadd.f32 %v1337, %v1229
  %v1339 = vadd.f32 %v1338, %v1230
  %v1340 = vadd.f32 %v1339, %v1231
  %v1341 = vadd.f32 %v1340, %v1232
  %v1342 = vadd.f32 %v1341, %v1233
  %v1343 = vadd.f32 %v1342, %v1234
  %v1344 = vadd.f32 %v1343, %v1235
  %v1345 = vadd.f32 %v1344, %v1236
  %v1346 = vadd.f32 %v1345, %v1237
  %v1347 = vadd.f32 %v1346, %v1238
  %v1348 = vadd.f32 %v1347, %v1239
  %v1349 = vadd.f32 %v1348, %v1240
  %v1350 = vadd.f32 %v1349, %v1241
  %v1351 = vadd.f32 %v1350, %v1242
  %v1352 = vadd.f32 %v1351, %v1243
  %v1353 = vadd.f32 %v1352, %v1244
  %v1354 = vadd.f32 %v1353, %v1245
  %v1355 = vadd.f32 %v1354, %v1246
  %v1356 = vadd.f32 %v1355, %v1247
  %v1357 = vadd.f32 %v1356, %v1248
  %v1358 = vadd.f32 %v1357, %v1249
  %v1359 = vadd.f32 %v1358, %v1250
  %v1360 = vadd.f32 %v1359, %v1251
  %v1361 = vadd.f32 %v1360, %v1252
  %v1362 = vadd.f32 %v1361, %v1253
  %v1363 = vadd.f32 %v1362, %v1254
  %v1364 = vadd.f32 %v1363, %v1255
  %v1365 = vadd.f32 %v1364, %v1256
  %v1366 = vadd.f32 %v1365, %v1257
  %v1367 = vadd.f32 %v1366, %v1258
  %v1368 = vadd.f32 %v1367, %v1259
  %v1369 = vadd.f32 %v1368, %v1260
  %v1370 = vadd.f32 %v1369, %v1261
  %v1371 = vadd.f32 %v1370, %v1262
  %v1372 = vadd.f32 %v1371, %v1263
  %v1373 = vadd.f32 %v1372, %v1264
  %v1374 = vadd.f32 %v1373, %v1265
  %v1375 = vadd.f32 %v1374, %v1266
  %v1376 = vadd.f32 %v1375, %v1267
  %v1377 = vadd.f32 %v1376, %v1268
  %v1378 = vadd.f32 %v1377, %v1269
  %v1379 = vadd.f32 %v1378, %v1270
  %v1380 = vadd.f32 %v1379, %v1271
  %v1381 = vadd.f32 %v1380, %v1272
  %v1382 = vadd.f32 %v1381, %v1273
  %v1383 = vadd.f32 %v1382, %v1274
  %v1384 = vadd.f32 %v1383, %v1275
  %v1385 = vadd.f32 %v1384, %v1276
  %v1386 = vadd.f32 %v1385, %v1277
  %v1387 = vadd.f32 %v1386, %v1278
  %v1388 = vadd.f32 %v1387, %v1279
  %v1389 = vadd.f32 %v1388, %v1280
  %v1390 = vadd.f32 %v1389, %v1281
  %v1391 = vadd.f32 %v1390, %v1282
  %v1392 = vadd.f32 %v1391, %v1283
  %v1393 = vadd.f32 %v1392, %v1284
  %v1394 = vadd.f32 %v1393, %v1285
  %v1395 = vadd.f32 %v1394, %v1286
  %v1396 = vadd.f32 %v1395, %v1287
  %v1397 = vadd.f32 %v1396, %v1288
  %v1398 = vadd.f32 %v1397, %v1289
  %v1399 = vadd.f32 %v1398, %v1290
  %v1400 = vadd.f32 %v1399, %v1291
  %v1401 = vadd.f32 %v1400, %v1292
  %v1402 = vadd.f32 %v1401, %v1293
  %v1403 = vadd.f32 %v1402, %v1294
  %v1404 = vadd.f32 %v1403, %v1295
  %v1405 = vadd.f32 %v1404, %v1296
  %v1406 = vadd.f32 %v1405, %v1297
  %v1407 = vadd.f32 %v1406, %v1298
  %v1408 = vadd.f32 %v1407, %v1299
  %v1409 = vadd.f32 %v1408, %v1300
  %v1410 = vadd.f32 %v1409, %v1301
  %v1411 = vadd.f32 %v1410, %v1302
  %v1412 = vadd.f32 %v1411, %v1303
  %v1413 = vadd.f32 %v1412, %v1304
  %v1414 = vadd.f32 %v1413, %v1305
  %v1415 = vadd.f32 %v1414, %v1306
  %v1416 = vadd.f32 %v1415, %v1307
  %v1417 = vadd.f32 %v1416, %v1308
  %v1418 = vadd.f32 %v1417, %v1309
  %v1419 = vadd.f32 %v1418, %v1310
  %v1420 = vadd.f32 %v1419, %v1311
  %v1421 = vadd.f32 %v1420, %v1312
  %v1422 = vadd.f32 %v1421, %v1313
  %v1423 = vadd.f32 %v1422, %v1314
  %v1424 = vadd.f32 %v1423, %v1315
  %v1425 = vadd.f32 %v1424, %v1316
  %v1426 = vadd.f32 %v1425, %v1317
  %v1427 = vadd.f32 %v1426, %v1318
  %v1428 = vadd.f32 %v1427, %v1319
  %v1429 = vadd.f32 %v1428, %v1320
  %v1430 = vadd.f32 %v1429, %v1321
  %v1431 = vrot.slane %v1430, 4
  %v1432 = vadd.f32 %v1430, %v1431
  %v1433 = vrot.slane %v1432, 2
  %v1434 = vadd.f32 %v1432, %v1433
  %v1435 = vrot.slane %v1434, 1
  %v1436 = vadd.f32 %v1434, %v1435
  %v1437 = vrcp.pop 880.0
  %v1438 = vmul.f32 %v1436, %v1437
  %v1439 = vsub.f32 %v1212, %v1438
  %v1440 = vsub.f32 %v1213, %v1438
  %v1441 = vsub.f32 %v1214, %v1438
  %v1442 = vsub.f32 %v1215, %v1438
  %v1443 = vsub.f32 %v1216, %v1438
  %v1444 = vsub.f32 %v1217, %v1438
  %v1445 = vsub.f32 %v1218, %v1438
  %v1446 = vsub.f32 %v1219, %v1438
  %v1447 = vsub.f32 %v1220, %v1438
  %v1448 = vsub.f32 %v1221, %v1438
  %v1449 = vsub.f32 %v1222, %v1438
  %v1450 = vsub.f32 %v1223, %v1438
  %v1451 = vsub.f32 %v1224, %v1438
  %v1452 = vsub.f32 %v1225, %v1438
  %v1453 = vsub.f32 %v1226, %v1438
  %v1454 = vsub.f32 %v1227, %v1438
  %v1455 = vsub.f32 %v1228, %v1438
  %v1456 = vsub.f32 %v1229, %v1438
  %v1457 = vsub.f32 %v1230, %v1438
  %v1458 = vsub.f32 %v1231, %v1438
  %v1459 = vsub.f32 %v1232, %v1438
  %v1460 = vsub.f32 %v1233, %v1438
  %v1461 = vsub.f32 %v1234, %v1438
  %v1462 = vsub.f32 %v1235, %v1438
  %v1463 = vsub.f32 %v1236, %v1438
  %v1464 = vsub.f32 %v1237, %v1438
  %v1465 = vsub.f32 %v1238, %v1438
  %v1466 = vsub.f32 %v1239, %v1438
  %v1467 = vsub.f32 %v1240, %v1438
  %v1468 = vsub.f32 %v1241, %v1438
  %v1469 = vsub.f32 %v1242, %v1438
  %v1470 = vsub.f32 %v1243, %v1438
  %v1471 = vsub.f32 %v1244, %v1438
  %v1472 = vsub.f32 %v1245, %v1438
  %v1473 = vsub.f32 %v1246, %v1438
  %v1474 = vsub.f32 %v1247, %v1438
  %v1475 = vsub.f32 %v1248, %v1438
  %v1476 = vsub.f32 %v1249, %v1438
  %v1477 = vsub.f32 %v1250, %v1438
  %v1478 = vsub.f32 %v1251, %v1438
  %v1479 = vsub.f32 %v1252, %v1438
  %v1480 = vsub.f32 %v1253, %v1438
  %v1481 = vsub.f32 %v1254, %v1438
  %v1482 = vsub.f32 %v1255, %v1438
  %v1483 = vsub.f32 %v1256, %v1438
  %v1484 = vsub.f32 %v1257, %v1438
  %v1485 = vsub.f32 %v1258, %v1438
  %v1486 = vsub.f32 %v1259, %v1438
  %v1487 = vsub.f32 %v1260, %v1438
  %v1488 = vsub.f32 %v1261, %v1438
  %v1489 = vsub.f32 %v1262, %v1438
  %v1490 = vsub.f32 %v1263, %v1438
  %v1491 = vsub.f32 %v1264, %v1438
  %v1492 = vsub.f32 %v1265, %v1438
  %v1493 = vsub.f32 %v1266, %v1438
  %v1494 = vsub.f32 %v1267, %v1438
  %v1495 = vsub.f32 %v1268, %v1438
  %v1496 = vsub.f32 %v1269, %v1438
  %v1497 = vsub.f32 %v1270, %v1438
  %v1498 = vsub.f32 %v1271, %v1438
  %v1499 = vsub.f32 %v1272, %v1438
  %v1500 = vsub.f32 %v1273, %v1438
  %v1501 = vsub.f32 %v1274, %v1438
  %v1502 = vsub.f32 %v1275, %v1438
  %v1503 = vsub.f32 %v1276, %v1438
  %v1504 = vsub.f32 %v1277, %v1438
  %v1505 = vsub.f32 %v1278, %v1438
  %v1506 = vsub.f32 %v1279, %v1438
  %v1507 = vsub.f32 %v1280, %v1438
  %v1508 = vsub.f32 %v1281, %v1438
  %v1509 = vsub.f32 %v1282, %v1438
  %v1510 = vsub.f32 %v1283, %v1438
  %v1511 = vsub.f32 %v1284, %v1438
  %v1512 = vsub.f32 %v1285, %v1438
  %v1513 = vsub.f32 %v1286, %v1438
  %v1514 = vsub.f32 %v1287, %v1438
  %v1515 = vsub.f32 %v1288, %v1438
  %v1516 = vsub.f32 %v1289, %v1438
  %v1517 = vsub.f32 %v1290, %v1438
  %v1518 = vsub.f32 %v1291, %v1438
  %v1519 = vsub.f32 %v1292, %v1438
  %v1520 = vsub.f32 %v1293, %v1438
  %v1521 = vsub.f32 %v1294, %v1438
  %v1522 = vsub.f32 %v1295, %v1438
  %v1523 = vsub.f32 %v1296, %v1438
  %v1524 = vsub.f32 %v1297, %v1438
  %v1525 = vsub.f32 %v1298, %v1438
  %v1526 = vsub.f32 %v1299, %v1438
  %v1527 = vsub.f32 %v1300, %v1438
  %v1528 = vsub.f32 %v1301, %v1438
  %v1529 = vsub.f32 %v1302, %v1438
  %v1530 = vsub.f32 %v1303, %v1438
  %v1531 = vsub.f32 %v1304, %v1438
  %v1532 = vsub.f32 %v1305, %v1438
  %v1533 = vsub.f32 %v1306, %v1438
  %v1534 = vsub.f32 %v1307, %v1438
  %v1535 = vsub.f32 %v1308, %v1438
  %v1536 = vsub.f32 %v1309, %v1438
  %v1537 = vsub.f32 %v1310, %v1438
  %v1538 = vsub.f32 %v1311, %v1438
  %v1539 = vsub.f32 %v1312, %v1438
  %v1540 = vsub.f32 %v1313, %v1438
  %v1541 = vsub.f32 %v1314, %v1438
  %v1542 = vsub.f32 %v1315, %v1438
  %v1543 = vsub.f32 %v1316, %v1438
  %v1544 = vsub.f32 %v1317, %v1438
  %v1545 = vsub.f32 %v1318, %v1438
  %v1546 = vsub.f32 %v1319, %v1438
  %v1547 = vsub.f32 %v1320, %v1438
  %v1548 = vsub.f32 %v1321, %v1438
  %v1549 = vmul.f32 %v1439, %v1439
  %v1550 = vmul.f32 %v1440, %v1440
  %v1551 = vmul.f32 %v1441, %v1441
  %v1552 = vmul.f32 %v1442, %v1442
  %v1553 = vmul.f32 %v1443, %v1443
  %v1554 = vmul.f32 %v1444, %v1444
  %v1555 = vmul.f32 %v1445, %v1445
  %v1556 = vmul.f32 %v1446, %v1446
  %v1557 = vmul.f32 %v1447, %v1447
  %v1558 = vmul.f32 %v1448, %v1448
  %v1559 = vmul.f32 %v1449, %v1449
  %v1560 = vmul.f32 %v1450, %v1450
  %v1561 = vmul.f32 %v1451, %v1451
  %v1562 = vmul.f32 %v1452, %v1452
  %v1563 = vmul.f32 %v1453, %v1453
  %v1564 = vmul.f32 %v1454, %v1454
  %v1565 = vmul.f32 %v1455, %v1455
  %v1566 = vmul.f32 %v1456, %v1456
  %v1567 = vmul.f32 %v1457, %v1457
  %v1568 = vmul.f32 %v1458, %v1458
  %v1569 = vmul.f32 %v1459, %v1459
  %v1570 = vmul.f32 %v1460, %v1460
  %v1571 = vmul.f32 %v1461, %v1461
  %v1572 = vmul.f32 %v1462, %v1462
  %v1573 = vmul.f32 %v1463, %v1463
  %v1574 = vmul.f32 %v1464, %v1464
  %v1575 = vmul.f32 %v1465, %v1465
  %v1576 = vmul.f32 %v1466, %v1466
  %v1577 = vmul.f32 %v1467, %v1467
  %v1578 = vmul.f32 %v1468, %v1468
  %v1579 = vmul.f32 %v1469, %v1469
  %v1580 = vmul.f32 %v1470, %v1470
  %v1581 = vmul.f32 %v1471, %v1471
  %v1582 = vmul.f32 %v1472, %v1472
  %v1583 = vmul.f32 %v1473, %v1473
  %v1584 = vmul.f32 %v1474, %v1474
  %v1585 = vmul.f32 %v1475, %v1475
  %v1586 = vmul.f32 %v1476, %v1476
  %v1587 = vmul.f32 %v1477, %v1477
  %v1588 = vmul.f32 %v1478, %v1478
  %v1589 = vmul.f32 %v1479, %v1479
  %v1590 = vmul.f32 %v1480, %v1480
  %v1591 = vmul.f32 %v1481, %v1481
  %v1592 = vmul.f32 %v1482, %v1482
  %v1593 = vmul.f32 %v1483, %v1483
  %v1594 = vmul.f32 %v1484, %v1484
  %v1595 = vmul.f32 %v1485, %v1485
  %v1596 = vmul.f32 %v1486, %v1486
  %v1597 = vmul.f32 %v1487, %v1487
  %v1598 = vmul.f32 %v1488, %v1488
  %v1599 = vmul.f32 %v1489, %v1489
  %v1600 = vmul.f32 %v1490, %v1490
  %v1601 = vmul.f32 %v1491, %v1491
  %v1602 = vmul.f32 %v1492, %v1492
  %v1603 = vmul.f32 %v1493, %v1493
  %v1604 = vmul.f32 %v1494, %v1494
  %v1605 = vmul.f32 %v1495, %v1495
  %v1606 = vmul.f32 %v1496, %v1496
  %v1607 = vmul.f32 %v1497, %v1497
  %v1608 = vmul.f32 %v1498, %v1498
  %v1609 = vmul.f32 %v1499, %v1499
  %v1610 = vmul.f32 %v1500, %v1500
  %v1611 = vmul.f32 %v1501, %v1501
  %v1612 = vmul.f32 %v1502, %v1502
  %v1613 = vmul.f32 %v1503, %v1503
  %v1614 = vmul.f32 %v1504, %v1504
  %v1615 = vmul.f32 %v1505, %v1505
  %v1616 = vmul.f32 %v1506, %v1506
  %v1617 = vmul.f32 %v1507, %v1507
  %v1618 = vmul.f32 %v1508, %v1508
  %v1619 = vmul.f32 %v1509, %v1509
  %v1620 = vmul.f32 %v1510, %v1510
  %v1621 = vmul.f32 %v1511, %v1511
  %v1622 = vmul.f32 %v1512, %v1512
  %v1623 = vmul.f32 %v1513, %v1513
  %v1624 = vmul.f32 %v1514, %v1514
  %v1625 = vmul.f32 %v1515, %v1515
  %v1626 = vmul.f32 %v1516, %v1516
  %v1627 = vmul.f32 %v1517, %v1517
  %v1628 = vmul.f32 %v1518, %v1518
  %v1629 = vmul.f32 %v1519, %v1519
  %v1630 = vmul.f32 %v1520, %v1520
  %v1631 = vmul.f32 %v1521, %v1521
  %v1632 = vmul.f32 %v1522, %v1522
  %v1633 = vmul.f32 %v1523, %v1523
  %v1634 = vmul.f32 %v1524, %v1524
  %v1635 = vmul.f32 %v1525, %v1525
  %v1636 = vmul.f32 %v1526, %v1526
  %v1637 = vmul.f32 %v1527, %v1527
  %v1638 = vmul.f32 %v1528, %v1528
  %v1639 = vmul.f32 %v1529, %v1529
  %v1640 = vmul.f32 %v1530, %v1530
  %v1641 = vmul.f32 %v1531, %v1531
  %v1642 = vmul.f32 %v1532, %v1532
  %v1643 = vmul.f32 %v1533, %v1533
  %v1644 = vmul.f32 %v1534, %v1534
  %v1645 = vmul.f32 %v1535, %v1535
  %v1646 = vmul.f32 %v1536, %v1536
  %v1647 = vmul.f32 %v1537, %v1537
  %v1648 = vmul.f32 %v1538, %v1538
  %v1649 = vmul.f32 %v1539, %v1539
  %v1650 = vmul.f32 %v1540, %v1540
  %v1651 = vmul.f32 %v1541, %v1541
  %v1652 = vmul.f32 %v1542, %v1542
  %v1653 = vmul.f32 %v1543, %v1543
  %v1654 = vmul.f32 %v1544, %v1544
  %v1655 = vmul.f32 %v1545, %v1545
  %v1656 = vmul.f32 %v1546, %v1546
  %v1657 = vmul.f32 %v1547, %v1547
  %v1658 = vmul.f32 %v1548, %v1548
  %v1659 = vadd.f32 %v1549, %v1550
  %v1660 = vadd.f32 %v1659, %v1551
  %v1661 = vadd.f32 %v1660, %v1552
  %v1662 = vadd.f32 %v1661, %v1553
  %v1663 = vadd.f32 %v1662, %v1554
  %v1664 = vadd.f32 %v1663, %v1555
  %v1665 = vadd.f32 %v1664, %v1556
  %v1666 = vadd.f32 %v1665, %v1557
  %v1667 = vadd.f32 %v1666, %v1558
  %v1668 = vadd.f32 %v1667, %v1559
  %v1669 = vadd.f32 %v1668, %v1560
  %v1670 = vadd.f32 %v1669, %v1561
  %v1671 = vadd.f32 %v1670, %v1562
  %v1672 = vadd.f32 %v1671, %v1563
  %v1673 = vadd.f32 %v1672, %v1564
  %v1674 = vadd.f32 %v1673, %v1565
  %v1675 = vadd.f32 %v1674, %v1566
  %v1676 = vadd.f32 %v1675, %v1567
  %v1677 = vadd.f32 %v1676, %v1568
  %v1678 = vadd.f32 %v1677, %v1569
  %v1679 = vadd.f32 %v1678, %v1570
  %v1680 = vadd.f32 %v1679, %v1571
  %v1681 = vadd.f32 %v1680, %v1572
  %v1682 = vadd.f32 %v1681, %v1573
  %v1683 = vadd.f32 %v1682, %v1574
  %v1684 = vadd.f32 %v1683, %v1575
  %v1685 = vadd.f32 %v1684, %v1576
  %v1686 = vadd.f32 %v1685, %v1577
  %v1687 = vadd.f32 %v1686, %v1578
  %v1688 = vadd.f32 %v1687, %v1579
  %v1689 = vadd.f32 %v1688, %v1580
  %v1690 = vadd.f32 %v1689, %v1581
  %v1691 = vadd.f32 %v1690, %v1582
  %v1692 = vadd.f32 %v1691, %v1583
  %v1693 = vadd.f32 %v1692, %v1584
  %v1694 = vadd.f32 %v1693, %v1585
  %v1695 = vadd.f32 %v1694, %v1586
  %v1696 = vadd.f32 %v1695, %v1587
  %v1697 = vadd.f32 %v1696, %v1588
  %v1698 = vadd.f32 %v1697, %v1589
  %v1699 = vadd.f32 %v1698, %v1590
  %v1700 = vadd.f32 %v1699, %v1591
  %v1701 = vadd.f32 %v1700, %v1592
  %v1702 = vadd.f32 %v1701, %v1593
  %v1703 = vadd.f32 %v1702, %v1594
  %v1704 = vadd.f32 %v1703, %v1595
  %v1705 = vadd.f32 %v1704, %v1596
  %v1706 = vadd.f32 %v1705, %v1597
  %v1707 = vadd.f32 %v1706, %v1598
  %v1708 = vadd.f32 %v1707, %v1599
  %v1709 = vadd.f32 %v1708, %v1600
  %v1710 = vadd.f32 %v1709, %v1601
  %v1711 = vadd.f32 %v1710, %v1602
  %v1712 = vadd.f32 %v1711, %v1603
  %v1713 = vadd.f32 %v1712, %v1604
  %v1714 = vadd.f32 %v1713, %v1605
  %v1715 = vadd.f32 %v1714, %v1606
  %v1716 = vadd.f32 %v1715, %v1607
  %v1717 = vadd.f32 %v1716, %v1608
  %v1718 = vadd.f32 %v1717, %v1609
  %v1719 = vadd.f32 %v1718, %v1610
  %v1720 = vadd.f32 %v1719, %v1611
  %v1721 = vadd.f32 %v1720, %v1612
  %v1722 = vadd.f32 %v1721, %v1613
  %v1723 = vadd.f32 %v1722, %v1614
  %v1724 = vadd.f32 %v1723, %v1615
  %v1725 = vadd.f32 %v1724, %v1616
  %v1726 = vadd.f32 %v1725, %v1617
  %v1727 = vadd.f32 %v1726, %v1618
  %v1728 = vadd.f32 %v1727, %v1619
  %v1729 = vadd.f32 %v1728, %v1620
  %v1730 = vadd.f32 %v1729, %v1621
  %v1731 = vadd.f32 %v1730, %v1622
  %v1732 = vadd.f32 %v1731, %v1623
  %v1733 = vadd.f32 %v1732, %v1624
  %v1734 = vadd.f32 %v1733, %v1625
  %v1735 = vadd.f32 %v1734, %v1626
  %v1736 = vadd.f32 %v1735, %v1627
  %v1737 = vadd.f32 %v1736, %v1628
  %v1738 = vadd.f32 %v1737, %v1629
  %v1739 = vadd.f32 %v1738, %v1630
  %v1740 = vadd.f32 %v1739, %v1631
  %v1741 = vadd.f32 %v1740, %v1632
  %v1742 = vadd.f32 %v1741, %v1633
  %v1743 = vadd.f32 %v1742, %v1634
  %v1744 = vadd.f32 %v1743, %v1635
  %v1745 = vadd.f32 %v1744, %v1636
  %v1746 = vadd.f32 %v1745, %v1637
  %v1747 = vadd.f32 %v1746, %v1638
  %v1748 = vadd.f32 %v1747, %v1639
  %v1749 = vadd.f32 %v1748, %v1640
  %v1750 = vadd.f32 %v1749, %v1641
  %v1751 = vadd.f32 %v1750, %v1642
  %v1752 = vadd.f32 %v1751, %v1643
  %v1753 = vadd.f32 %v1752, %v1644
  %v1754 = vadd.f32 %v1753, %v1645
  %v1755 = vadd.f32 %v1754, %v1646
  %v1756 = vadd.f32 %v1755, %v1647
  %v1757 = vadd.f32 %v1756, %v1648
  %v1758 = vadd.f32 %v1757, %v1649
  %v1759 = vadd.f32 %v1758, %v1650
  %v1760 = vadd.f32 %v1759, %v1651
  %v1761 = vadd.f32 %v1760, %v1652
  %v1762 = vadd.f32 %v1761, %v1653
  %v1763 = vadd.f32 %v1762, %v1654
  %v1764 = vadd.f32 %v1763, %v1655
  %v1765 = vadd.f32 %v1764, %v1656
  %v1766 = vadd.f32 %v1765, %v1657
  %v1767 = vadd.f32 %v1766, %v1658
  %v1768 = vrot.slane %v1767, 4
  %v1769 = vadd.f32 %v1767, %v1768
  %v1770 = vrot.slane %v1769, 2
  %v1771 = vadd.f32 %v1769, %v1770
  %v1772 = vrot.slane %v1771, 1
  %v1773 = vadd.f32 %v1771, %v1772
  %v1774 = vmul.f32 %v1773, %v1437
  %v1775 = vadd.f32 %v1774, 1e-05
  %v1776 = vrsqrt.pop %v1775
  %v1777 = vmul.f32 %v1439, %v1776
  %v1778 = vmul.f32 %v1440, %v1776
  %v1779 = vmul.f32 %v1441, %v1776
  %v1780 = vmul.f32 %v1442, %v1776
  %v1781 = vmul.f32 %v1443, %v1776
  %v1782 = vmul.f32 %v1444, %v1776
  %v1783 = vmul.f32 %v1445, %v1776
  %v1784 = vmul.f32 %v1446, %v1776
  %v1785 = vmul.f32 %v1447, %v1776
  %v1786 = vmul.f32 %v1448, %v1776
  %v1787 = vmul.f32 %v1449, %v1776
  %v1788 = vmul.f32 %v1450, %v1776
  %v1789 = vmul.f32 %v1451, %v1776
  %v1790 = vmul.f32 %v1452, %v1776
  %v1791 = vmul.f32 %v1453, %v1776
  %v1792 = vmul.f32 %v1454, %v1776
  %v1793 = vmul.f32 %v1455, %v1776
  %v1794 = vmul.f32 %v1456, %v1776
  %v1795 = vmul.f32 %v1457, %v1776
  %v1796 = vmul.f32 %v1458, %v1776
  %v1797 = vmul.f32 %v1459, %v1776
  %v1798 = vmul.f32 %v1460, %v1776
  %v1799 = vmul.f32 %v1461, %v1776
  %v1800 = vmul.f32 %v1462, %v1776
  %v1801 = vmul.f32 %v1463, %v1776
  %v1802 = vmul.f32 %v1464, %v1776
  %v1803 = vmul.f32 %v1465, %v1776
  %v1804 = vmul.f32 %v1466, %v1776
  %v1805 = vmul.f32 %v1467, %v1776
  %v1806 = vmul.f32 %v1468, %v1776
  %v1807 = vmul.f32 %v1469, %v1776
  %v1808 = vmul.f32 %v1470, %v1776
  %v1809 = vmul.f32 %v1471, %v1776
  %v1810 = vmul.f32 %v1472, %v1776
  %v1811 = vmul.f32 %v1473, %v1776
  %v1812 = vmul.f32 %v1474, %v1776
  %v1813 = vmul.f32 %v1475, %v1776
  %v1814 = vmul.f32 %v1476, %v1776
  %v1815 = vmul.f32 %v1477, %v1776
  %v1816 = vmul.f32 %v1478, %v1776
  %v1817 = vmul.f32 %v1479, %v1776
  %v1818 = vmul.f32 %v1480, %v1776
  %v1819 = vmul.f32 %v1481, %v1776
  %v1820 = vmul.f32 %v1482, %v1776
  %v1821 = vmul.f32 %v1483, %v1776
  %v1822 = vmul.f32 %v1484, %v1776
  %v1823 = vmul.f32 %v1485, %v1776
  %v1824 = vmul.f32 %v1486, %v1776
  %v1825 = vmul.f32 %v1487, %v1776
  %v1826 = vmul.f32 %v1488, %v1776
  %v1827 = vmul.f32 %v1489, %v1776
  %v1828 = vmul.f32 %v1490, %v1776
  %v1829 = vmul.f32 %v1491, %v1776
  %v1830 = vmul.f32 %v1492, %v1776
  %v1831 = vmul.f32 %v1493, %v1776
  %v1832 = vmul.f32 %v1494, %v1776
  %v1833 = vmul.f32 %v1495, %v1776
  %v1834 = vmul.f32 %v1496, %v1776
  %v1835 = vmul.f32 %v1497, %v1776
  %v1836 = vmul.f32 %v1498, %v1776
  %v1837 = vmul.f32 %v1499, %v1776
  %v1838 = vmul.f32 %v1500, %v1776
  %v1839 = vmul.f32 %v1501, %v1776
  %v1840 = vmul.f32 %v1502, %v1776
  %v1841 = vmul.f32 %v1503, %v1776
  %v1842 = vmul.f32 %v1504, %v1776
  %v1843 = vmul.f32 %v1505, %v1776
  %v1844 = vmul.f32 %v1506, %v1776
  %v1845 = vmul.f32 %v1507, %v1776
  %v1846 = vmul.f32 %v1508, %v1776
  %v1847 = vmul.f32 %v1509, %v1776
  %v1848 = vmul.f32 %v1510, %v1776
  %v1849 = vmul.f32 %v1511, %v1776
  %v1850 = vmul.f32 %v1512, %v1776
  %v1851 = vmul.f32 %v1513, %v1776
  %v1852 = vmul.f32 %v1514, %v1776
  %v1853 = vmul.f32 %v1515, %v1776
  %v1854 = vmul.f32 %v1516, %v1776
  %v1855 = vmul.f32 %v1517, %v1776
  %v1856 = vmul.f32 %v1518, %v1776
  %v1857 = vmul.f32 %v1519, %v1776
  %v1858 = vmul.f32 %v1520, %v1776
  %v1859 = vmul.f32 %v1521, %v1776
  %v1860 = vmul.f32 %v1522, %v1776
  %v1861 = vmul.f32 %v1523, %v1776
  %v1862 = vmul.f32 %v1524, %v1776
  %v1863 = vmul.f32 %v1525, %v1776
  %v1864 = vmul.f32 %v1526, %v1776
  %v1865 = vmul.f32 %v1527, %v1776
  %v1866 = vmul.f32 %v1528, %v1776
  %v1867 = vmul.f32 %v1529, %v1776
  %v1868 = vmul.f32 %v1530, %v1776
  %v1869 = vmul.f32 %v1531, %v1776
  %v1870 = vmul.f32 %v1532, %v1776
  %v1871 = vmul.f32 %v1533, %v1776
  %v1872 = vmul.f32 %v1534, %v1776
  %v1873 = vmul.f32 %v1535, %v1776
  %v1874 = vmul.f32 %v1536, %v1776
  %v1875 = vmul.f32 %v1537, %v1776
  %v1876 = vmul.f32 %v1538, %v1776
  %v1877 = vmul.f32 %v1539, %v1776
  %v1878 = vmul.f32 %v1540, %v1776
  %v1879 = vmul.f32 %v1541, %v1776
  %v1880 = vmul.f32 %v1542, %v1776
  %v1881 = vmul.f32 %v1543, %v1776
  %v1882 = vmul.f32 %v1544, %v1776
  %v1883 = vmul.f32 %v1545, %v1776
  %v1884 = vmul.f32 %v1546, %v1776
  %v1885 = vmul.f32 %v1547, %v1776
  %v1886 = vmul.f32 %v1548, %v1776
  %v1887 = vld [vmem:[%s3] sm:$0x1]
  %v1889 = vlaneseq
  %v1890 = vshrl.u32 %v1889, 7
  %v1891 = vsub.s32 0, %v1890
  %v1892 = vrot.slane %v1887, %v1891
  %v1894 = vmul.f32 %v1777, %v1892
  %v1895 = vmul.f32 %v1778, %v1892
  %v1896 = vmul.f32 %v1779, %v1892
  %v1897 = vmul.f32 %v1780, %v1892
  %v1898 = vmul.f32 %v1781, %v1892
  %v1899 = vmul.f32 %v1782, %v1892
  %v1900 = vmul.f32 %v1783, %v1892
  %v1901 = vmul.f32 %v1784, %v1892
  %v1902 = vmul.f32 %v1785, %v1892
  %v1903 = vmul.f32 %v1786, %v1892
  %v1904 = vmul.f32 %v1787, %v1892
  %v1905 = vmul.f32 %v1788, %v1892
  %v1906 = vmul.f32 %v1789, %v1892
  %v1907 = vmul.f32 %v1790, %v1892
  %v1908 = vmul.f32 %v1791, %v1892
  %v1909 = vmul.f32 %v1792, %v1892
  %v1910 = vmul.f32 %v1793, %v1892
  %v1911 = vmul.f32 %v1794, %v1892
  %v1912 = vmul.f32 %v1795, %v1892
  %v1913 = vmul.f32 %v1796, %v1892
  %v1914 = vmul.f32 %v1797, %v1892
  %v1915 = vmul.f32 %v1798, %v1892
  %v1916 = vmul.f32 %v1799, %v1892
  %v1917 = vmul.f32 %v1800, %v1892
  %v1918 = vmul.f32 %v1801, %v1892
  %v1919 = vmul.f32 %v1802, %v1892
  %v1920 = vmul.f32 %v1803, %v1892
  %v1921 = vmul.f32 %v1804, %v1892
  %v1922 = vmul.f32 %v1805, %v1892
  %v1923 = vmul.f32 %v1806, %v1892
  %v1924 = vmul.f32 %v1807, %v1892
  %v1925 = vmul.f32 %v1808, %v1892
  %v1926 = vmul.f32 %v1809, %v1892
  %v1927 = vmul.f32 %v1810, %v1892
  %v1928 = vmul.f32 %v1811, %v1892
  %v1929 = vmul.f32 %v1812, %v1892
  %v1930 = vmul.f32 %v1813, %v1892
  %v1931 = vmul.f32 %v1814, %v1892
  %v1932 = vmul.f32 %v1815, %v1892
  %v1933 = vmul.f32 %v1816, %v1892
  %v1934 = vmul.f32 %v1817, %v1892
  %v1935 = vmul.f32 %v1818, %v1892
  %v1936 = vmul.f32 %v1819, %v1892
  %v1937 = vmul.f32 %v1820, %v1892
  %v1938 = vmul.f32 %v1821, %v1892
  %v1939 = vmul.f32 %v1822, %v1892
  %v1940 = vmul.f32 %v1823, %v1892
  %v1941 = vmul.f32 %v1824, %v1892
  %v1942 = vmul.f32 %v1825, %v1892
  %v1943 = vmul.f32 %v1826, %v1892
  %v1944 = vmul.f32 %v1827, %v1892
  %v1945 = vmul.f32 %v1828, %v1892
  %v1946 = vmul.f32 %v1829, %v1892
  %v1947 = vmul.f32 %v1830, %v1892
  %v1948 = vmul.f32 %v1831, %v1892
  %v1949 = vmul.f32 %v1832, %v1892
  %v1950 = vmul.f32 %v1833, %v1892
  %v1951 = vmul.f32 %v1834, %v1892
  %v1952 = vmul.f32 %v1835, %v1892
  %v1953 = vmul.f32 %v1836, %v1892
  %v1954 = vmul.f32 %v1837, %v1892
  %v1955 = vmul.f32 %v1838, %v1892
  %v1956 = vmul.f32 %v1839, %v1892
  %v1957 = vmul.f32 %v1840, %v1892
  %v1958 = vmul.f32 %v1841, %v1892
  %v1959 = vmul.f32 %v1842, %v1892
  %v1960 = vmul.f32 %v1843, %v1892
  %v1961 = vmul.f32 %v1844, %v1892
  %v1962 = vmul.f32 %v1845, %v1892
  %v1963 = vmul.f32 %v1846, %v1892
  %v1964 = vmul.f32 %v1847, %v1892
  %v1965 = vmul.f32 %v1848, %v1892
  %v1966 = vmul.f32 %v1849, %v1892
  %v1967 = vmul.f32 %v1850, %v1892
  %v1968 = vmul.f32 %v1851, %v1892
  %v1969 = vmul.f32 %v1852, %v1892
  %v1970 = vmul.f32 %v1853, %v1892
  %v1971 = vmul.f32 %v1854, %v1892
  %v1972 = vmul.f32 %v1855, %v1892
  %v1973 = vmul.f32 %v1856, %v1892
  %v1974 = vmul.f32 %v1857, %v1892
  %v1975 = vmul.f32 %v1858, %v1892
  %v1976 = vmul.f32 %v1859, %v1892
  %v1977 = vmul.f32 %v1860, %v1892
  %v1978 = vmul.f32 %v1861, %v1892
  %v1979 = vmul.f32 %v1862, %v1892
  %v1980 = vmul.f32 %v1863, %v1892
  %v1981 = vmul.f32 %v1864, %v1892
  %v1982 = vmul.f32 %v1865, %v1892
  %v1983 = vmul.f32 %v1866, %v1892
  %v1984 = vmul.f32 %v1867, %v1892
  %v1985 = vmul.f32 %v1868, %v1892
  %v1986 = vmul.f32 %v1869, %v1892
  %v1987 = vmul.f32 %v1870, %v1892
  %v1988 = vmul.f32 %v1871, %v1892
  %v1989 = vmul.f32 %v1872, %v1892
  %v1990 = vmul.f32 %v1873, %v1892
  %v1991 = vmul.f32 %v1874, %v1892
  %v1992 = vmul.f32 %v1875, %v1892
  %v1993 = vmul.f32 %v1876, %v1892
  %v1994 = vmul.f32 %v1877, %v1892
  %v1995 = vmul.f32 %v1878, %v1892
  %v1996 = vmul.f32 %v1879, %v1892
  %v1997 = vmul.f32 %v1880, %v1892
  %v1998 = vmul.f32 %v1881, %v1892
  %v1999 = vmul.f32 %v1882, %v1892
  %v2000 = vmul.f32 %v1883, %v1892
  %v2001 = vmul.f32 %v1884, %v1892
  %v2002 = vmul.f32 %v1885, %v1892
  %v2003 = vmul.f32 %v1886, %v1892
  %v2004 = vld [vmem:[%s4] sm:$0x1]
  %v2006 = vlaneseq
  %v2007 = vshrl.u32 %v2006, 7
  %v2008 = vsub.s32 0, %v2007
  %v2009 = vrot.slane %v2004, %v2008
  %v2011 = vadd.f32 %v1894, %v2009
  %v2012 = vadd.f32 %v1895, %v2009
  %v2013 = vadd.f32 %v1896, %v2009
  %v2014 = vadd.f32 %v1897, %v2009
  %v2015 = vadd.f32 %v1898, %v2009
  %v2016 = vadd.f32 %v1899, %v2009
  %v2017 = vadd.f32 %v1900, %v2009
  %v2018 = vadd.f32 %v1901, %v2009
  %v2019 = vadd.f32 %v1902, %v2009
  %v2020 = vadd.f32 %v1903, %v2009
  %v2021 = vadd.f32 %v1904, %v2009
  %v2022 = vadd.f32 %v1905, %v2009
  %v2023 = vadd.f32 %v1906, %v2009
  %v2024 = vadd.f32 %v1907, %v2009
  %v2025 = vadd.f32 %v1908, %v2009
  %v2026 = vadd.f32 %v1909, %v2009
  %v2027 = vadd.f32 %v1910, %v2009
  %v2028 = vadd.f32 %v1911, %v2009
  %v2029 = vadd.f32 %v1912, %v2009
  %v2030 = vadd.f32 %v1913, %v2009
  %v2031 = vadd.f32 %v1914, %v2009
  %v2032 = vadd.f32 %v1915, %v2009
  %v2033 = vadd.f32 %v1916, %v2009
  %v2034 = vadd.f32 %v1917, %v2009
  %v2035 = vadd.f32 %v1918, %v2009
  %v2036 = vadd.f32 %v1919, %v2009
  %v2037 = vadd.f32 %v1920, %v2009
  %v2038 = vadd.f32 %v1921, %v2009
  %v2039 = vadd.f32 %v1922, %v2009
  %v2040 = vadd.f32 %v1923, %v2009
  %v2041 = vadd.f32 %v1924, %v2009
  %v2042 = vadd.f32 %v1925, %v2009
  %v2043 = vadd.f32 %v1926, %v2009
  %v2044 = vadd.f32 %v1927, %v2009
  %v2045 = vadd.f32 %v1928, %v2009
  %v2046 = vadd.f32 %v1929, %v2009
  %v2047 = vadd.f32 %v1930, %v2009
  %v2048 = vadd.f32 %v1931, %v2009
  %v2049 = vadd.f32 %v1932, %v2009
  %v2050 = vadd.f32 %v1933, %v2009
  %v2051 = vadd.f32 %v1934, %v2009
  %v2052 = vadd.f32 %v1935, %v2009
  %v2053 = vadd.f32 %v1936, %v2009
  %v2054 = vadd.f32 %v1937, %v2009
  %v2055 = vadd.f32 %v1938, %v2009
  %v2056 = vadd.f32 %v1939, %v2009
  %v2057 = vadd.f32 %v1940, %v2009
  %v2058 = vadd.f32 %v1941, %v2009
  %v2059 = vadd.f32 %v1942, %v2009
  %v2060 = vadd.f32 %v1943, %v2009
  %v2061 = vadd.f32 %v1944, %v2009
  %v2062 = vadd.f32 %v1945, %v2009
  %v2063 = vadd.f32 %v1946, %v2009
  %v2064 = vadd.f32 %v1947, %v2009
  %v2065 = vadd.f32 %v1948, %v2009
  %v2066 = vadd.f32 %v1949, %v2009
  %v2067 = vadd.f32 %v1950, %v2009
  %v2068 = vadd.f32 %v1951, %v2009
  %v2069 = vadd.f32 %v1952, %v2009
  %v2070 = vadd.f32 %v1953, %v2009
  %v2071 = vadd.f32 %v1954, %v2009
  %v2072 = vadd.f32 %v1955, %v2009
  %v2073 = vadd.f32 %v1956, %v2009
  %v2074 = vadd.f32 %v1957, %v2009
  %v2075 = vadd.f32 %v1958, %v2009
  %v2076 = vadd.f32 %v1959, %v2009
  %v2077 = vadd.f32 %v1960, %v2009
  %v2078 = vadd.f32 %v1961, %v2009
  %v2079 = vadd.f32 %v1962, %v2009
  %v2080 = vadd.f32 %v1963, %v2009
  %v2081 = vadd.f32 %v1964, %v2009
  %v2082 = vadd.f32 %v1965, %v2009
  %v2083 = vadd.f32 %v1966, %v2009
  %v2084 = vadd.f32 %v1967, %v2009
  %v2085 = vadd.f32 %v1968, %v2009
  %v2086 = vadd.f32 %v1969, %v2009
  %v2087 = vadd.f32 %v1970, %v2009
  %v2088 = vadd.f32 %v1971, %v2009
  %v2089 = vadd.f32 %v1972, %v2009
  %v2090 = vadd.f32 %v1973, %v2009
  %v2091 = vadd.f32 %v1974, %v2009
  %v2092 = vadd.f32 %v1975, %v2009
  %v2093 = vadd.f32 %v1976, %v2009
  %v2094 = vadd.f32 %v1977, %v2009
  %v2095 = vadd.f32 %v1978, %v2009
  %v2096 = vadd.f32 %v1979, %v2009
  %v2097 = vadd.f32 %v1980, %v2009
  %v2098 = vadd.f32 %v1981, %v2009
  %v2099 = vadd.f32 %v1982, %v2009
  %v2100 = vadd.f32 %v1983, %v2009
  %v2101 = vadd.f32 %v1984, %v2009
  %v2102 = vadd.f32 %v1985, %v2009
  %v2103 = vadd.f32 %v1986, %v2009
  %v2104 = vadd.f32 %v1987, %v2009
  %v2105 = vadd.f32 %v1988, %v2009
  %v2106 = vadd.f32 %v1989, %v2009
  %v2107 = vadd.f32 %v1990, %v2009
  %v2108 = vadd.f32 %v1991, %v2009
  %v2109 = vadd.f32 %v1992, %v2009
  %v2110 = vadd.f32 %v1993, %v2009
  %v2111 = vadd.f32 %v1994, %v2009
  %v2112 = vadd.f32 %v1995, %v2009
  %v2113 = vadd.f32 %v1996, %v2009
  %v2114 = vadd.f32 %v1997, %v2009
  %v2115 = vadd.f32 %v1998, %v2009
  %v2116 = vadd.f32 %v1999, %v2009
  %v2117 = vadd.f32 %v2000, %v2009
  %v2118 = vadd.f32 %v2001, %v2009
  %v2119 = vadd.f32 %v2002, %v2009
  %v2120 = vadd.f32 %v2003, %v2009
  %v2121 = vpack.c.bf16 %v2012, %v2011
  %v2122 = vpack.c.bf16 %v2014, %v2013
  %v2123 = vpack.c.bf16 %v2016, %v2015
  %v2124 = vpack.c.bf16 %v2018, %v2017
  %v2125 = vpack.c.bf16 %v2020, %v2019
  %v2126 = vpack.c.bf16 %v2022, %v2021
  %v2127 = vpack.c.bf16 %v2024, %v2023
  %v2128 = vpack.c.bf16 %v2026, %v2025
  %v2129 = vpack.c.bf16 %v2028, %v2027
  %v2130 = vpack.c.bf16 %v2030, %v2029
  %v2131 = vpack.c.bf16 %v2032, %v2031
  %v2132 = vpack.c.bf16 %v2034, %v2033
  %v2133 = vpack.c.bf16 %v2036, %v2035
  %v2134 = vpack.c.bf16 %v2038, %v2037
  %v2135 = vpack.c.bf16 %v2040, %v2039
  %v2136 = vpack.c.bf16 %v2042, %v2041
  %v2137 = vpack.c.bf16 %v2044, %v2043
  %v2138 = vpack.c.bf16 %v2046, %v2045
  %v2139 = vpack.c.bf16 %v2048, %v2047
  %v2140 = vpack.c.bf16 %v2050, %v2049
  %v2141 = vpack.c.bf16 %v2052, %v2051
  %v2142 = vpack.c.bf16 %v2054, %v2053
  %v2143 = vpack.c.bf16 %v2056, %v2055
  %v2144 = vpack.c.bf16 %v2058, %v2057
  %v2145 = vpack.c.bf16 %v2060, %v2059
  %v2146 = vpack.c.bf16 %v2062, %v2061
  %v2147 = vpack.c.bf16 %v2064, %v2063
  %v2148 = vpack.c.bf16 %v2066, %v2065
  %v2149 = vpack.c.bf16 %v2068, %v2067
  %v2150 = vpack.c.bf16 %v2070, %v2069
  %v2151 = vpack.c.bf16 %v2072, %v2071
  %v2152 = vpack.c.bf16 %v2074, %v2073
  %v2153 = vpack.c.bf16 %v2076, %v2075
  %v2154 = vpack.c.bf16 %v2078, %v2077
  %v2155 = vpack.c.bf16 %v2080, %v2079
  %v2156 = vpack.c.bf16 %v2082, %v2081
  %v2157 = vpack.c.bf16 %v2084, %v2083
  %v2158 = vpack.c.bf16 %v2086, %v2085
  %v2159 = vpack.c.bf16 %v2088, %v2087
  %v2160 = vpack.c.bf16 %v2090, %v2089
  %v2161 = vpack.c.bf16 %v2092, %v2091
  %v2162 = vpack.c.bf16 %v2094, %v2093
  %v2163 = vpack.c.bf16 %v2096, %v2095
  %v2164 = vpack.c.bf16 %v2098, %v2097
  %v2165 = vpack.c.bf16 %v2100, %v2099
  %v2166 = vpack.c.bf16 %v2102, %v2101
  %v2167 = vpack.c.bf16 %v2104, %v2103
  %v2168 = vpack.c.bf16 %v2106, %v2105
  %v2169 = vpack.c.bf16 %v2108, %v2107
  %v2170 = vpack.c.bf16 %v2110, %v2109
  %v2171 = vpack.c.bf16 %v2112, %v2111
  %v2172 = vpack.c.bf16 %v2114, %v2113
  %v2173 = vpack.c.bf16 %v2116, %v2115
  %v2174 = vpack.c.bf16 %v2118, %v2117
  %v2175 = vpack.c.bf16 %v2120, %v2119
  %v2231 = vunpack.c.l.b16 %v2121
  %v2232 = vunpack.c.h.b16 %v2121
  %v2233 = vunpack.c.l.b16 %v2122
  %v2234 = vunpack.c.h.b16 %v2122
  %v2235 = vunpack.c.l.b16 %v2123
  %v2236 = vunpack.c.h.b16 %v2123
  %v2237 = vunpack.c.l.b16 %v2124
  %v2238 = vunpack.c.h.b16 %v2124
  %v2239 = vunpack.c.l.b16 %v2125
  %v2240 = vunpack.c.h.b16 %v2125
  %v2241 = vunpack.c.l.b16 %v2126
  %v2242 = vunpack.c.h.b16 %v2126
  %v2243 = vunpack.c.l.b16 %v2127
  %v2244 = vunpack.c.h.b16 %v2127
  %v2245 = vunpack.c.l.b16 %v2128
  %v2246 = vunpack.c.h.b16 %v2128
  %v2247 = vunpack.c.l.b16 %v2129
  %v2248 = vunpack.c.h.b16 %v2129
  %v2249 = vunpack.c.l.b16 %v2130
  %v2250 = vunpack.c.h.b16 %v2130
  %v2251 = vunpack.c.l.b16 %v2131
  %v2252 = vunpack.c.h.b16 %v2131
  %v2253 = vunpack.c.l.b16 %v2132
  %v2254 = vunpack.c.h.b16 %v2132
  %v2255 = vunpack.c.l.b16 %v2133
  %v2256 = vunpack.c.h.b16 %v2133
  %v2257 = vunpack.c.l.b16 %v2134
  %v2258 = vunpack.c.h.b16 %v2134
  %v2259 = vunpack.c.l.b16 %v2135
  %v2260 = vunpack.c.h.b16 %v2135
  %v2261 = vunpack.c.l.b16 %v2136
  %v2262 = vunpack.c.h.b16 %v2136
  %v2263 = vunpack.c.l.b16 %v2137
  %v2264 = vunpack.c.h.b16 %v2137
  %v2265 = vunpack.c.l.b16 %v2138
  %v2266 = vunpack.c.h.b16 %v2138
  %v2267 = vunpack.c.l.b16 %v2139
  %v2268 = vunpack.c.h.b16 %v2139
  %v2269 = vunpack.c.l.b16 %v2140
  %v2270 = vunpack.c.h.b16 %v2140
  %v2271 = vunpack.c.l.b16 %v2141
  %v2272 = vunpack.c.h.b16 %v2141
  %v2273 = vunpack.c.l.b16 %v2142
  %v2274 = vunpack.c.h.b16 %v2142
  %v2275 = vunpack.c.l.b16 %v2143
  %v2276 = vunpack.c.h.b16 %v2143
  %v2277 = vunpack.c.l.b16 %v2144
  %v2278 = vunpack.c.h.b16 %v2144
  %v2279 = vunpack.c.l.b16 %v2145
  %v2280 = vunpack.c.h.b16 %v2145
  %v2281 = vunpack.c.l.b16 %v2146
  %v2282 = vunpack.c.h.b16 %v2146
  %v2283 = vunpack.c.l.b16 %v2147
  %v2284 = vunpack.c.h.b16 %v2147
  %v2285 = vunpack.c.l.b16 %v2148
  %v2286 = vunpack.c.h.b16 %v2148
  %v2287 = vunpack.c.l.b16 %v2149
  %v2288 = vunpack.c.h.b16 %v2149
  %v2289 = vunpack.c.l.b16 %v2150
  %v2290 = vunpack.c.h.b16 %v2150
  %v2291 = vunpack.c.l.b16 %v2151
  %v2292 = vunpack.c.h.b16 %v2151
  %v2293 = vunpack.c.l.b16 %v2152
  %v2294 = vunpack.c.h.b16 %v2152
  %v2295 = vunpack.c.l.b16 %v2153
  %v2296 = vunpack.c.h.b16 %v2153
  %v2297 = vunpack.c.l.b16 %v2154
  %v2298 = vunpack.c.h.b16 %v2154
  %v2299 = vunpack.c.l.b16 %v2155
  %v2300 = vunpack.c.h.b16 %v2155
  %v2301 = vunpack.c.l.b16 %v2156
  %v2302 = vunpack.c.h.b16 %v2156
  %v2303 = vunpack.c.l.b16 %v2157
  %v2304 = vunpack.c.h.b16 %v2157
  %v2305 = vunpack.c.l.b16 %v2158
  %v2306 = vunpack.c.h.b16 %v2158
  %v2307 = vunpack.c.l.b16 %v2159
  %v2308 = vunpack.c.h.b16 %v2159
  %v2309 = vunpack.c.l.b16 %v2160
  %v2310 = vunpack.c.h.b16 %v2160
  %v2311 = vunpack.c.l.b16 %v2161
  %v2312 = vunpack.c.h.b16 %v2161
  %v2313 = vunpack.c.l.b16 %v2162
  %v2314 = vunpack.c.h.b16 %v2162
  %v2315 = vunpack.c.l.b16 %v2163
  %v2316 = vunpack.c.h.b16 %v2163
  %v2317 = vunpack.c.l.b16 %v2164
  %v2318 = vunpack.c.h.b16 %v2164
  %v2319 = vunpack.c.l.b16 %v2165
  %v2320 = vunpack.c.h.b16 %v2165
  %v2321 = vunpack.c.l.b16 %v2166
  %v2322 = vunpack.c.h.b16 %v2166
  %v2323 = vunpack.c.l.b16 %v2167
  %v2324 = vunpack.c.h.b16 %v2167
  %v2325 = vunpack.c.l.b16 %v2168
  %v2326 = vunpack.c.h.b16 %v2168
  %v2327 = vunpack.c.l.b16 %v2169
  %v2328 = vunpack.c.h.b16 %v2169
  %v2329 = vunpack.c.l.b16 %v2170
  %v2330 = vunpack.c.h.b16 %v2170
  %v2331 = vunpack.c.l.b16 %v2171
  %v2332 = vunpack.c.h.b16 %v2171
  %v2333 = vunpack.c.l.b16 %v2172
  %v2334 = vunpack.c.h.b16 %v2172
  %v2335 = vunpack.c.l.b16 %v2173
  %v2336 = vunpack.c.h.b16 %v2173
  %v2337 = vunpack.c.l.b16 %v2174
  %v2338 = vunpack.c.h.b16 %v2174
  %v2339 = vunpack.c.l.b16 %v2175
  %v2340 = vunpack.c.h.b16 %v2175
  %v2341 = vpack.c.b16 %v2231, %v2231
  %v2342 = vpack.c.b16 %v2232, %v2232
  %v2343 = vpack.c.b16 %v2233, %v2233
  %v2344 = vpack.c.b16 %v2234, %v2234
  %v2345 = vpack.c.b16 %v2235, %v2235
  %v2346 = vpack.c.b16 %v2236, %v2236
  %v2347 = vpack.c.b16 %v2237, %v2237
  %v2348 = vpack.c.b16 %v2238, %v2238
  %v2349 = vpack.c.b16 %v2239, %v2239
  %v2350 = vpack.c.b16 %v2240, %v2240
  %v2351 = vpack.c.b16 %v2241, %v2241
  %v2352 = vpack.c.b16 %v2242, %v2242
  %v2353 = vpack.c.b16 %v2243, %v2243
  %v2354 = vpack.c.b16 %v2244, %v2244
  %v2355 = vpack.c.b16 %v2245, %v2245
  %v2356 = vpack.c.b16 %v2246, %v2246
  %v2357 = vpack.c.b16 %v2247, %v2247
  %v2358 = vpack.c.b16 %v2248, %v2248
  %v2359 = vpack.c.b16 %v2249, %v2249
  %v2360 = vpack.c.b16 %v2250, %v2250
  %v2361 = vpack.c.b16 %v2251, %v2251
  %v2362 = vpack.c.b16 %v2252, %v2252
  %v2363 = vpack.c.b16 %v2253, %v2253
  %v2364 = vpack.c.b16 %v2254, %v2254
  %v2365 = vpack.c.b16 %v2255, %v2255
  %v2366 = vpack.c.b16 %v2256, %v2256
  %v2367 = vpack.c.b16 %v2257, %v2257
  %v2368 = vpack.c.b16 %v2258, %v2258
  %v2369 = vpack.c.b16 %v2259, %v2259
  %v2370 = vpack.c.b16 %v2260, %v2260
  %v2371 = vpack.c.b16 %v2261, %v2261
  %v2372 = vpack.c.b16 %v2262, %v2262
  %v2373 = vpack.c.b16 %v2263, %v2263
  %v2374 = vpack.c.b16 %v2264, %v2264
  %v2375 = vpack.c.b16 %v2265, %v2265
  %v2376 = vpack.c.b16 %v2266, %v2266
  %v2377 = vpack.c.b16 %v2267, %v2267
  %v2378 = vpack.c.b16 %v2268, %v2268
  %v2379 = vpack.c.b16 %v2269, %v2269
  %v2380 = vpack.c.b16 %v2270, %v2270
  %v2381 = vpack.c.b16 %v2271, %v2271
  %v2382 = vpack.c.b16 %v2272, %v2272
  %v2383 = vpack.c.b16 %v2273, %v2273
  %v2384 = vpack.c.b16 %v2274, %v2274
  %v2385 = vpack.c.b16 %v2275, %v2275
  %v2386 = vpack.c.b16 %v2276, %v2276
  %v2387 = vpack.c.b16 %v2277, %v2277
  %v2388 = vpack.c.b16 %v2278, %v2278
  %v2389 = vpack.c.b16 %v2279, %v2279
  %v2390 = vpack.c.b16 %v2280, %v2280
  %v2391 = vpack.c.b16 %v2281, %v2281
  %v2392 = vpack.c.b16 %v2282, %v2282
  %v2393 = vpack.c.b16 %v2283, %v2283
  %v2394 = vpack.c.b16 %v2284, %v2284
  %v2395 = vpack.c.b16 %v2285, %v2285
  %v2396 = vpack.c.b16 %v2286, %v2286
  %v2397 = vpack.c.b16 %v2287, %v2287
  %v2398 = vpack.c.b16 %v2288, %v2288
  %v2399 = vpack.c.b16 %v2289, %v2289
  %v2400 = vpack.c.b16 %v2290, %v2290
  %v2401 = vpack.c.b16 %v2291, %v2291
  %v2402 = vpack.c.b16 %v2292, %v2292
  %v2403 = vpack.c.b16 %v2293, %v2293
  %v2404 = vpack.c.b16 %v2294, %v2294
  %v2405 = vpack.c.b16 %v2295, %v2295
  %v2406 = vpack.c.b16 %v2296, %v2296
  %v2407 = vpack.c.b16 %v2297, %v2297
  %v2408 = vpack.c.b16 %v2298, %v2298
  %v2409 = vpack.c.b16 %v2299, %v2299
  %v2410 = vpack.c.b16 %v2300, %v2300
  %v2411 = vpack.c.b16 %v2301, %v2301
  %v2412 = vpack.c.b16 %v2302, %v2302
  %v2413 = vpack.c.b16 %v2303, %v2303
  %v2414 = vpack.c.b16 %v2304, %v2304
  %v2415 = vpack.c.b16 %v2305, %v2305
  %v2416 = vpack.c.b16 %v2306, %v2306
  %v2417 = vpack.c.b16 %v2307, %v2307
  %v2418 = vpack.c.b16 %v2308, %v2308
  %v2419 = vpack.c.b16 %v2309, %v2309
  %v2420 = vpack.c.b16 %v2310, %v2310
  %v2421 = vpack.c.b16 %v2311, %v2311
  %v2422 = vpack.c.b16 %v2312, %v2312
  %v2423 = vpack.c.b16 %v2313, %v2313
  %v2424 = vpack.c.b16 %v2314, %v2314
  %v2425 = vpack.c.b16 %v2315, %v2315
  %v2426 = vpack.c.b16 %v2316, %v2316
  %v2427 = vpack.c.b16 %v2317, %v2317
  %v2428 = vpack.c.b16 %v2318, %v2318
  %v2429 = vpack.c.b16 %v2319, %v2319
  %v2430 = vpack.c.b16 %v2320, %v2320
  %v2431 = vpack.c.b16 %v2321, %v2321
  %v2432 = vpack.c.b16 %v2322, %v2322
  %v2433 = vpack.c.b16 %v2323, %v2323
  %v2434 = vpack.c.b16 %v2324, %v2324
  %v2435 = vpack.c.b16 %v2325, %v2325
  %v2436 = vpack.c.b16 %v2326, %v2326
  %v2437 = vpack.c.b16 %v2327, %v2327
  %v2438 = vpack.c.b16 %v2328, %v2328
  %v2439 = vpack.c.b16 %v2329, %v2329
  %v2440 = vpack.c.b16 %v2330, %v2330
  %v2441 = vpack.c.b16 %v2331, %v2331
  %v2442 = vpack.c.b16 %v2332, %v2332
  %v2443 = vpack.c.b16 %v2333, %v2333
  %v2444 = vpack.c.b16 %v2334, %v2334
  %v2445 = vpack.c.b16 %v2335, %v2335
  %v2446 = vpack.c.b16 %v2336, %v2336
  %v2447 = vpack.c.b16 %v2337, %v2337
  %v2448 = vpack.c.b16 %v2338, %v2338
  %v2449 = vpack.c.b16 %v2339, %v2339
  %v2450 = vpack.c.b16 %v2340, %v2340
  %2561 = vst [vmem:[%s5] sm:$0xf] %v2341
  %2562 = vst [vmem:[%s5 + $0x4] sm:$0xf] %v2342
  %2563 = vst [vmem:[%s5 + $0x8] sm:$0xf] %v2343
  %2564 = vst [vmem:[%s5 + $0xc] sm:$0xf] %v2344
  %2565 = vst [vmem:[%s5 + $0x10] sm:$0xf] %v2345
  %2566 = vst [vmem:[%s5 + $0x14] sm:$0xf] %v2346
  %2567 = vst [vmem:[%s5 + $0x18] sm:$0xf] %v2347
  %2568 = vst [vmem:[%s5 + $0x1c] sm:$0xf] %v2348
  %2569 = vst [vmem:[%s5 + $0x20] sm:$0xf] %v2349
  %2570 = vst [vmem:[%s5 + $0x24] sm:$0xf] %v2350
  %2571 = vst [vmem:[%s5 + $0x28] sm:$0xf] %v2351
  %2572 = vst [vmem:[%s5 + $0x2c] sm:$0xf] %v2352
  %2573 = vst [vmem:[%s5 + $0x30] sm:$0xf] %v2353
  %2574 = vst [vmem:[%s5 + $0x34] sm:$0xf] %v2354
  %2575 = vst [vmem:[%s5 + $0x38] sm:$0xf] %v2355
  %2576 = vst [vmem:[%s5 + $0x3c] sm:$0xf] %v2356
  %2577 = vst [vmem:[%s5 + $0x40] sm:$0xf] %v2357
  %2578 = vst [vmem:[%s5 + $0x44] sm:$0xf] %v2358
  %2579 = vst [vmem:[%s5 + $0x48] sm:$0xf] %v2359
  %2580 = vst [vmem:[%s5 + $0x4c] sm:$0xf] %v2360
  %2581 = vst [vmem:[%s5 + $0x50] sm:$0xf] %v2361
  %2582 = vst [vmem:[%s5 + $0x54] sm:$0xf] %v2362
  %2583 = vst [vmem:[%s5 + $0x58] sm:$0xf] %v2363
  %2584 = vst [vmem:[%s5 + $0x5c] sm:$0xf] %v2364
  %2585 = vst [vmem:[%s5 + $0x60] sm:$0xf] %v2365
  %2586 = vst [vmem:[%s5 + $0x64] sm:$0xf] %v2366
  %2587 = vst [vmem:[%s5 + $0x68] sm:$0xf] %v2367
  %2588 = vst [vmem:[%s5 + $0x6c] sm:$0xf] %v2368
  %2589 = vst [vmem:[%s5 + $0x70] sm:$0xf] %v2369
  %2590 = vst [vmem:[%s5 + $0x74] sm:$0xf] %v2370
  %2591 = vst [vmem:[%s5 + $0x78] sm:$0xf] %v2371
  %2592 = vst [vmem:[%s5 + $0x7c] sm:$0xf] %v2372
  %2593 = vst [vmem:[%s5 + $0x80] sm:$0xf] %v2373
  %2594 = vst [vmem:[%s5 + $0x84] sm:$0xf] %v2374
  %2595 = vst [vmem:[%s5 + $0x88] sm:$0xf] %v2375
  %2596 = vst [vmem:[%s5 + $0x8c] sm:$0xf] %v2376
  %2597 = vst [vmem:[%s5 + $0x90] sm:$0xf] %v2377
  %2598 = vst [vmem:[%s5 + $0x94] sm:$0xf] %v2378
  %2599 = vst [vmem:[%s5 + $0x98] sm:$0xf] %v2379
  %2600 = vst [vmem:[%s5 + $0x9c] sm:$0xf] %v2380
  %2601 = vst [vmem:[%s5 + $0xa0] sm:$0xf] %v2381
  %2602 = vst [vmem:[%s5 + $0xa4] sm:$0xf] %v2382
  %2603 = vst [vmem:[%s5 + $0xa8] sm:$0xf] %v2383
  %2604 = vst [vmem:[%s5 + $0xac] sm:$0xf] %v2384
  %2605 = vst [vmem:[%s5 + $0xb0] sm:$0xf] %v2385
  %2606 = vst [vmem:[%s5 + $0xb4] sm:$0xf] %v2386
  %2607 = vst [vmem:[%s5 + $0xb8] sm:$0xf] %v2387
  %2608 = vst [vmem:[%s5 + $0xbc] sm:$0xf] %v2388
  %2609 = vst [vmem:[%s5 + $0xc0] sm:$0xf] %v2389
  %2610 = vst [vmem:[%s5 + $0xc4] sm:$0xf] %v2390
  %2611 = vst [vmem:[%s5 + $0xc8] sm:$0xf] %v2391
  %2612 = vst [vmem:[%s5 + $0xcc] sm:$0xf] %v2392
  %2613 = vst [vmem:[%s5 + $0xd0] sm:$0xf] %v2393
  %2614 = vst [vmem:[%s5 + $0xd4] sm:$0xf] %v2394
  %2615 = vst [vmem:[%s5 + $0xd8] sm:$0xf] %v2395
  %2616 = vst [vmem:[%s5 + $0xdc] sm:$0xf] %v2396
  %2617 = vst [vmem:[%s5 + $0xe0] sm:$0xf] %v2397
  %2618 = vst [vmem:[%s5 + $0xe4] sm:$0xf] %v2398
  %2619 = vst [vmem:[%s5 + $0xe8] sm:$0xf] %v2399
  %2620 = vst [vmem:[%s5 + $0xec] sm:$0xf] %v2400
  %2621 = vst [vmem:[%s5 + $0xf0] sm:$0xf] %v2401
  %2622 = vst [vmem:[%s5 + $0xf4] sm:$0xf] %v2402
  %2623 = vst [vmem:[%s5 + $0xf8] sm:$0xf] %v2403
  %2624 = vst [vmem:[%s5 + $0xfc] sm:$0xf] %v2404
  %2625 = vst [vmem:[%s5 + $0x100] sm:$0xf] %v2405
  %2626 = vst [vmem:[%s5 + $0x104] sm:$0xf] %v2406
  %2627 = vst [vmem:[%s5 + $0x108] sm:$0xf] %v2407
  %2628 = vst [vmem:[%s5 + $0x10c] sm:$0xf] %v2408
  %2629 = vst [vmem:[%s5 + $0x110] sm:$0xf] %v2409
  %2630 = vst [vmem:[%s5 + $0x114] sm:$0xf] %v2410
  %2631 = vst [vmem:[%s5 + $0x118] sm:$0xf] %v2411
  %2632 = vst [vmem:[%s5 + $0x11c] sm:$0xf] %v2412
  %2633 = vst [vmem:[%s5 + $0x120] sm:$0xf] %v2413
  %2634 = vst [vmem:[%s5 + $0x124] sm:$0xf] %v2414
  %2635 = vst [vmem:[%s5 + $0x128] sm:$0xf] %v2415
  %2636 = vst [vmem:[%s5 + $0x12c] sm:$0xf] %v2416
  %2637 = vst [vmem:[%s5 + $0x130] sm:$0xf] %v2417
  %2638 = vst [vmem:[%s5 + $0x134] sm:$0xf] %v2418
  %2639 = vst [vmem:[%s5 + $0x138] sm:$0xf] %v2419
  %2640 = vst [vmem:[%s5 + $0x13c] sm:$0xf] %v2420
  %2641 = vst [vmem:[%s5 + $0x140] sm:$0xf] %v2421
  %2642 = vst [vmem:[%s5 + $0x144] sm:$0xf] %v2422
  %2643 = vst [vmem:[%s5 + $0x148] sm:$0xf] %v2423
  %2644 = vst [vmem:[%s5 + $0x14c] sm:$0xf] %v2424
  %2645 = vst [vmem:[%s5 + $0x150] sm:$0xf] %v2425
  %2646 = vst [vmem:[%s5 + $0x154] sm:$0xf] %v2426
  %2647 = vst [vmem:[%s5 + $0x158] sm:$0xf] %v2427
  %2648 = vst [vmem:[%s5 + $0x15c] sm:$0xf] %v2428
  %2649 = vst [vmem:[%s5 + $0x160] sm:$0xf] %v2429
  %2650 = vst [vmem:[%s5 + $0x164] sm:$0xf] %v2430
  %2651 = vst [vmem:[%s5 + $0x168] sm:$0xf] %v2431
  %2652 = vst [vmem:[%s5 + $0x16c] sm:$0xf] %v2432
  %2653 = vst [vmem:[%s5 + $0x170] sm:$0xf] %v2433
  %2654 = vst [vmem:[%s5 + $0x174] sm:$0xf] %v2434
  %2655 = vst [vmem:[%s5 + $0x178] sm:$0xf] %v2435
  %2656 = vst [vmem:[%s5 + $0x17c] sm:$0xf] %v2436
  %2657 = vst [vmem:[%s5 + $0x180] sm:$0xf] %v2437
  %2658 = vst [vmem:[%s5 + $0x184] sm:$0xf] %v2438
  %2659 = vst [vmem:[%s5 + $0x188] sm:$0xf] %v2439
  %2660 = vst [vmem:[%s5 + $0x18c] sm:$0xf] %v2440
  %2661 = vst [vmem:[%s5 + $0x190] sm:$0xf] %v2441
  %2662 = vst [vmem:[%s5 + $0x194] sm:$0xf] %v2442
  %2663 = vst [vmem:[%s5 + $0x198] sm:$0xf] %v2443
  %2664 = vst [vmem:[%s5 + $0x19c] sm:$0xf] %v2444
  %2665 = vst [vmem:[%s5 + $0x1a0] sm:$0xf] %v2445
  %2666 = vst [vmem:[%s5 + $0x1a4] sm:$0xf] %v2446
  %2667 = vst [vmem:[%s5 + $0x1a8] sm:$0xf] %v2447
  %2668 = vst [vmem:[%s5 + $0x1ac] sm:$0xf] %v2448
  %2669 = vst [vmem:[%s5 + $0x1b0] sm:$0xf] %v2449
  %2670 = vst [vmem:[%s5 + $0x1b4] sm:$0xf] %v2450
  // Predicated region
  $region22: #{model_forward.2} parent=0 // pred_check
    _
  $region23: #{model_forward.2} parent=0 // pred_check_branch
    %2672 = sbr.rel (0) target = $region25
  $region24: #{model_forward.2} parent=0 // pred_region
    _
  $region25: #{model_forward.2} parent=0 // pred_fallthru
    _
  // Predicated region
  $region26: #{model_forward.2} parent=0 // pred_check
    _
  $region27: #{model_forward.2} parent=0 // pred_check_branch
    %2674 = sbr.rel (0) target = $region29
  $region28: #{model_forward.2} parent=0 // pred_region
    _
  $region29: #{model_forward.2} parent=0 // pred_fallthru
    _

// kernel: model_forward.3
$region0: #{model_forward.3}
  #allocation0 [shape = 'u32[]', space=smem, size = 0x4, offset = 0x4, fixed_abs, tag = 'smem constant byte address 0x4 - core index']
  #allocation1 [shape = 'u32[144,128]{1,0:T(1,128)}', space=vmem, size = 0x12000, scoped, tag = 'internal scratch']
  #allocation2 [shape = 'f32[96,128]{1,0:T(8,128)}', space=vmem, size = 0xc000, scoped, tag = 'scratch operand']
  %s0 = inlined_call_operand.vmem [shape: bf16[96,10368], index: 0, kind: input, shape index: {}]
  %s1 = inlined_call_operand.vmem [shape: bf16[10368,128], index: 1, kind: input, shape index: {}]
  %s2 = inlined_call_operand.vmem [shape: f32[1,128], index: 2, kind: input, shape index: {}]
  %s3 = inlined_call_operand.vmem [shape: f32[1,128], index: 3, kind: input, shape index: {}]
  %s4 = inlined_call_operand.vmem [shape: f32[1,128], index: 4, kind: input, shape index: {}]
  %s5 = inlined_call_operand.hbm [shape: f32[96,128], index: 5, kind: output, shape index: {}]
  %s6 = sld [smem:[#allocation0]]
  $region87: #{model_forward.3} parent=0
    _
  %s8 = ssub.s32 1, %s6
  %s9 = scalar_select 0, %s8, %s6
  $region1: #{model_forward.3} parent=0
    #allocation3 [shape = 'u8[1327104]{0}', space=vmem, size = 0x144000, scoped, tag = 'input window, operand 0']
    #allocation4 [shape = 'u8[49152]{0}', space=vmem, size = 0xc000, scoped, tag = 'output window, operand 0, single buffered']
    #allocation5 [shape = 's32[2]{0}', space=sflag, size = 0x8, scoped, tag = 'scoped memory for model_forward.3']
    %10 = vsyncpa [#allocation5], 0
    loop: start=0, step=1, limit=5
    $region2: #{model_forward.3} parent=1 // loop_pre_header
      _
    $region3: #{model_forward.3} parent=1 // loop_header
      %s12 = sphi 0, %s16
      %p13 = scmp.ge.s32.totalorder %s12, 5
      %s22 = sphi 0, %s24
      %s25 = sphi 0, %s22
      %s26 = sphi 0, %s25
      %s42 = sphi 0, %s26
      %s48 = sphi 0, %s50
      %s51 = sphi 0, %s48
      %s52 = sphi 0, %s51
      %s68 = sphi 0, %s52
      %s72 = sphi 0, %s72
      %s74 = sphi 0, %s72
      %s75 = sphi 0, %s74
      %s89 = sphi 0, %s75
      %s93 = sphi 0, %s93
      %s95 = sphi 0, %s93
      %s96 = sphi 0, %s95
      %s110 = sphi 0, %s96
      %s114 = sphi 0, %s114
      %s116 = sphi 0, %s114
      %s117 = sphi 0, %s116
      %s131 = sphi 0, %s117
      %s135 = sphi 0, %s135
      %s137 = sphi 0, %s135
      %s138 = sphi 0, %s137
      %s152 = sphi 0, %s138
    $region4: #{model_forward.3} parent=1 // loop_header_branch
      %15 = sbr.rel (%p13) target = $region8
    $region5: #{model_forward.3} parent=1 // loop_body
      %s17 = ssub.s32 %s12, 1
      %s18 = ssub.s32 %s12, 2
      %s19 = sadd.s32 %s12, 1
      %s20 = ssub.s32 %s12, %s19
      %p21 = scmp.eq.s32.totalorder %s20, 0
      %s23 = sadd.s32 %s22, 1
      %s24 = scalar_select %p21, %s22, %s23
      %p27 = pneg %p21
      %p28 = scmp.eq.s32.totalorder %s12, 2
      %p29 = por %p27, %p28
      %p30 = scmp.ne.s32.totalorder %s22, %s25
      %p31 = scmp.eq.s32.totalorder %s12, 0
      %p32 = por %p30, %p31
      %p33 = scmp.ne.s32.totalorder %s22, %s25
      %p34 = scmp.eq.s32.totalorder %s17, 2
      %p35 = por %p33, %p34
      %p36 = scmp.ne.s32.totalorder %s25, %s26
      %p37 = scmp.eq.s32.totalorder %s17, 0
      %p38 = por %p36, %p37
      %p39 = scmp.ne.s32.totalorder %s25, %s26
      %p40 = scmp.eq.s32.totalorder %s18, 2
      %p41 = por %p39, %p40
      %p43 = scmp.ne.s32.totalorder %s26, %s42
      %p44 = scmp.eq.s32.totalorder %s18, 0
      %p45 = por %p43, %p44
      %s46 = ssub.s32 %s12, %s19
      %p47 = scmp.eq.s32.totalorder %s46, 0
      %s49 = sadd.s32 %s48, 1
      %s50 = scalar_select %p47, %s48, %s49
      %p53 = pneg %p47
      %p54 = scmp.eq.s32.totalorder %s12, 2
      %p55 = por %p53, %p54
      %p56 = scmp.ne.s32.totalorder %s48, %s51
      %p57 = scmp.eq.s32.totalorder %s12, 0
      %p58 = por %p56, %p57
      %p59 = scmp.ne.s32.totalorder %s48, %s51
      %p60 = scmp.eq.s32.totalorder %s17, 2
      %p61 = por %p59, %p60
      %p62 = scmp.ne.s32.totalorder %s51, %s52
      %p63 = scmp.eq.s32.totalorder %s17, 0
      %p64 = por %p62, %p63
      %p65 = scmp.ne.s32.totalorder %s51, %s52
      %p66 = scmp.eq.s32.totalorder %s18, 2
      %p67 = por %p65, %p66
      %p69 = scmp.ne.s32.totalorder %s52, %s68
      %p70 = scmp.eq.s32.totalorder %s18, 0
      %p71 = por %p69, %p70
      %s73 = sadd.s32 %s72, 1
      %p76 = scmp.eq.s32.totalorder %s12, 2
      %p77 = scmp.ne.s32.totalorder %s72, %s74
      %p78 = scmp.eq.s32.totalorder %s12, 0
      %p79 = por %p77, %p78
      %p80 = scmp.ne.s32.totalorder %s72, %s74
      %p81 = scmp.eq.s32.totalorder %s17, 2
      %p82 = por %p80, %p81
      %p83 = scmp.ne.s32.totalorder %s74, %s75
      %p84 = scmp.eq.s32.totalorder %s17, 0
      %p85 = por %p83, %p84
      %p86 = scmp.ne.s32.totalorder %s74, %s75
      %p87 = scmp.eq.s32.totalorder %s18, 2
      %p88 = por %p86, %p87
      %p90 = scmp.ne.s32.totalorder %s75, %s89
      %p91 = scmp.eq.s32.totalorder %s18, 0
      %p92 = por %p90, %p91
      %s94 = sadd.s32 %s93, 1
      %p97 = scmp.eq.s32.totalorder %s12, 2
      %p98 = scmp.ne.s32.totalorder %s93, %s95
      %p99 = scmp.eq.s32.totalorder %s12, 0
      %p100 = por %p98, %p99
      %p101 = scmp.ne.s32.totalorder %s93, %s95
      %p102 = scmp.eq.s32.totalorder %s17, 2
      %p103 = por %p101, %p102
      %p104 = scmp.ne.s32.totalorder %s95, %s96
      %p105 = scmp.eq.s32.totalorder %s17, 0
      %p106 = por %p104, %p105
      %p107 = scmp.ne.s32.totalorder %s95, %s96
      %p108 = scmp.eq.s32.totalorder %s18, 2
      %p109 = por %p107, %p108
      %p111 = scmp.ne.s32.totalorder %s96, %s110
      %p112 = scmp.eq.s32.totalorder %s18, 0
      %p113 = por %p111, %p112
      %s115 = sadd.s32 %s114, 1
      %p118 = scmp.eq.s32.totalorder %s12, 2
      %p119 = scmp.ne.s32.totalorder %s114, %s116
      %p120 = scmp.eq.s32.totalorder %s12, 0
      %p121 = por %p119, %p120
      %p122 = scmp.ne.s32.totalorder %s114, %s116
      %p123 = scmp.eq.s32.totalorder %s17, 2
      %p124 = por %p122, %p123
      %p125 = scmp.ne.s32.totalorder %s116, %s117
      %p126 = scmp.eq.s32.totalorder %s17, 0
      %p127 = por %p125, %p126
      %p128 = scmp.ne.s32.totalorder %s116, %s117
      %p129 = scmp.eq.s32.totalorder %s18, 2
      %p130 = por %p128, %p129
      %p132 = scmp.ne.s32.totalorder %s117, %s131
      %p133 = scmp.eq.s32.totalorder %s18, 0
      %p134 = por %p132, %p133
      %s136 = sadd.s32 %s135, 1
      %p139 = scmp.eq.s32.totalorder %s12, 2
      %p140 = scmp.ne.s32.totalorder %s135, %s137
      %p141 = scmp.eq.s32.totalorder %s12, 0
      %p142 = por %p140, %p141
      %p143 = scmp.ne.s32.totalorder %s135, %s137
      %p144 = scmp.eq.s32.totalorder %s17, 2
      %p145 = por %p143, %p144
      %p146 = scmp.ne.s32.totalorder %s137, %s138
      %p147 = scmp.eq.s32.totalorder %s17, 0
      %p148 = por %p146, %p147
      %p149 = scmp.ne.s32.totalorder %s137, %s138
      %p150 = scmp.eq.s32.totalorder %s18, 2
      %p151 = por %p149, %p150
      %p153 = scmp.ne.s32.totalorder %s138, %s152
      %p154 = scmp.eq.s32.totalorder %s18, 0
      %p155 = por %p153, %p154
      %p156 = scmp.le.s32.totalorder 1, %s12
      %p157 = scmp.lt.s32.totalorder %s12, 4
      %p158 = pnand %p156, %p157
      %p159 = pneg %p158
      // Predicated region
      $region9: #{model_forward.3} parent=5 // pred_check
        _
      $region10: #{model_forward.3} parent=5 // pred_check_branch
        %161 = sbr.rel (%p158) target = $region12
      $region11: #{model_forward.3} parent=5 // pred_region
        %s162 = ssub.s32 %s12, 1
        // Predicated region
        $region13: #{model_forward.3} parent=11 // pred_check
          %p163 = pneg %p85
        $region14: #{model_forward.3} parent=11 // pred_check_branch
          %165 = sbr.rel (%p163) target = $region16
        $region15: #{model_forward.3} parent=11 // pred_region
          _
        $region16: #{model_forward.3} parent=11 // pred_fallthru
          _
        // Predicated region
        $region17: #{model_forward.3} parent=11 // pred_check
          %p166 = pneg %p106
        $region18: #{model_forward.3} parent=11 // pred_check_branch
          %168 = sbr.rel (%p166) target = $region20
        $region19: #{model_forward.3} parent=11 // pred_region
          _
        $region20: #{model_forward.3} parent=11 // pred_fallthru
          _
        // Predicated region
        $region21: #{model_forward.3} parent=11 // pred_check
          %p169 = pneg %p127
        $region22: #{model_forward.3} parent=11 // pred_check_branch
          %171 = sbr.rel (%p169) target = $region24
        $region23: #{model_forward.3} parent=11 // pred_region
          _
        $region24: #{model_forward.3} parent=11 // pred_fallthru
          _
      $region12: #{model_forward.3} parent=5 // pred_fallthru
        _
      %p172 = scmp.lt.s32.totalorder %s12, 3
      // Predicated region
      $region25: #{model_forward.3} parent=5 // pred_check
        %p173 = pneg %p172
      $region26: #{model_forward.3} parent=5 // pred_check_branch
        %175 = sbr.rel (%p173) target = $region28
      $region27: #{model_forward.3} parent=5 // pred_region
        // Predicated region
        $region29: #{model_forward.3} parent=27 // pred_check
          %p176 = pneg %p32
        $region30: #{model_forward.3} parent=27 // pred_check_branch
          %178 = sbr.rel (%p176) target = $region32
        $region31: #{model_forward.3} parent=27 // pred_region
          %s179 = sand.u32 %s22, 1
          %s180 = sand.u32 %s22, 1
          %s181 = smul.addr %s180, 1296
          %s182 = scalar_lea.vmem [#allocation3], %s181
          %s183 = smul.u32 27, %s12
          %s184 = smul.addr %s183, 4
          %s185 = scalar_lea.vmem %s0, %s184
          // Predicated region
          $region33: #{model_forward.3} parent=31 // pred_check
            _
          $region34: #{model_forward.3} parent=31 // pred_check_branch
            %187 = sbr.rel (0) target = $region36
          $region35: #{model_forward.3} parent=31 // pred_region
            // Predicated region
            $region37: #{model_forward.3} parent=35 // pred_check
              _
            $region38: #{model_forward.3} parent=35 // pred_check_branch
              %189 = sbr.rel (0) target = $region40
            $region39: #{model_forward.3} parent=35 // pred_region
              %s190 = scalar_lea.vmem %s185, 104
              %s191 = scalar_lea.vmem %s182, 104 [#allocation3]
              loop: start=0, step=1, limit=1
              $region41: #{model_forward.3} parent=39 // loop_pre_header
                _
              $region42: #{model_forward.3} parent=39 // loop_header
                %s193 = sphi 0, %s197
                %p194 = scmp.ge.s32.totalorder %s193, 1
                %s198 = sphi %s185, %s185
                %s199 = sphi %s182, %s182
              $region43: #{model_forward.3} parent=39 // loop_header_branch
                %196 = sbr.rel (%p194) target = $region47
              $region44: #{model_forward.3} parent=39 // loop_body
                %v200 = vld [vmem:[%s198] sm:$0xff]
                %201 = vst [vmem:[%s199] sm:$0xff] %v200
                %v202 = vld [vmem:[%s198 + $0x8] sm:$0xff]
                %203 = vst [vmem:[%s199 + $0x8] sm:$0xff] %v202
                %v204 = vld [vmem:[%s198 + $0x10] sm:$0xff]
                %205 = vst [vmem:[%s199 + $0x10] sm:$0xff] %v204
                %v206 = vld [vmem:[%s198 + $0x18] sm:$0xff]
                %207 = vst [vmem:[%s199 + $0x18] sm:$0xff] %v206
                %v208 = vld [vmem:[%s198 + $0x20] sm:$0xff]
                %209 = vst [vmem:[%s199 + $0x20] sm:$0xff] %v208
                %v210 = vld [vmem:[%s198 + $0x28] sm:$0xff]
                %211 = vst [vmem:[%s199 + $0x28] sm:$0xff] %v210
                %v212 = vld [vmem:[%s198 + $0x30] sm:$0xff]
                %213 = vst [vmem:[%s199 + $0x30] sm:$0xff] %v212
                %v214 = vld [vmem:[%s198 + $0x38] sm:$0xff]
                %215 = vst [vmem:[%s199 + $0x38] sm:$0xff] %v214
                %v216 = vld [vmem:[%s198 + $0x40] sm:$0xff]
                %217 = vst [vmem:[%s199 + $0x40] sm:$0xff] %v216
                %v218 = vld [vmem:[%s198 + $0x48] sm:$0xff]
                %219 = vst [vmem:[%s199 + $0x48] sm:$0xff] %v218
                %v220 = vld [vmem:[%s198 + $0x50] sm:$0xff]
                %221 = vst [vmem:[%s199 + $0x50] sm:$0xff] %v220
                %v222 = vld [vmem:[%s198 + $0x58] sm:$0xff]
                %223 = vst [vmem:[%s199 + $0x58] sm:$0xff] %v222
                %v224 = vld [vmem:[%s198 + $0x60] sm:$0xff]
                %225 = vst [vmem:[%s199 + $0x60] sm:$0xff] %v224
                %v226 = vld [vmem:[%s198 + $0x144] sm:$0xff]
                %227 = vst [vmem:[%s199 + $0x6c] sm:$0xff] %v226
                %v228 = vld [vmem:[%s198 + $0x14c] sm:$0xff]
                %229 = vst [vmem:[%s199 + $0x74] sm:$0xff] %v228
                %v230 = vld [vmem:[%s198 + $0x154] sm:$0xff]
                %231 = vst [vmem:[%s199 + $0x7c] sm:$0xff] %v230
                %v232 = vld [vmem:[%s198 + $0x15c] sm:$0xff]
                %233 = vst [vmem:[%s199 + $0x84] sm:$0xff] %v232
                %v234 = vld [vmem:[%s198 + $0x164] sm:$0xff]
                %235 = vst [vmem:[%s199 + $0x8c] sm:$0xff] %v234
                %v236 = vld [vmem:[%s198 + $0x16c] sm:$0xff]
                %237 = vst [vmem:[%s199 + $0x94] sm:$0xff] %v236
                %v238 = vld [vmem:[%s198 + $0x174] sm:$0xff]
                %239 = vst [vmem:[%s199 + $0x9c] sm:$0xff] %v238
                %v240 = vld [vmem:[%s198 + $0x17c] sm:$0xff]
                %241 = vst [vmem:[%s199 + $0xa4] sm:$0xff] %v240
                %v242 = vld [vmem:[%s198 + $0x184] sm:$0xff]
                %243 = vst [vmem:[%s199 + $0xac] sm:$0xff] %v242
                %v244 = vld [vmem:[%s198 + $0x18c] sm:$0xff]
                %245 = vst [vmem:[%s199 + $0xb4] sm:$0xff] %v244
                %v246 = vld [vmem:[%s198 + $0x194] sm:$0xff]
                %247 = vst [vmem:[%s199 + $0xbc] sm:$0xff] %v246
                %v248 = vld [vmem:[%s198 + $0x19c] sm:$0xff]
                %249 = vst [vmem:[%s199 + $0xc4] sm:$0xff] %v248
                %v250 = vld [vmem:[%s198 + $0x1a4] sm:$0xff]
                %251 = vst [vmem:[%s199 + $0xcc] sm:$0xff] %v250
                %v252 = vld [vmem:[%s198 + $0x288] sm:$0xff]
                %253 = vst [vmem:[%s199 + $0xd8] sm:$0xff] %v252
                %v254 = vld [vmem:[%s198 + $0x290] sm:$0xff]
                %255 = vst [vmem:[%s199 + $0xe0] sm:$0xff] %v254
                %v256 = vld [vmem:[%s198 + $0x298] sm:$0xff]
                %257 = vst [vmem:[%s199 + $0xe8] sm:$0xff] %v256
                %v258 = vld [vmem:[%s198 + $0x2a0] sm:$0xff]
                %259 = vst [vmem:[%s199 + $0xf0] sm:$0xff] %v258
                %v260 = vld [vmem:[%s198 + $0x2a8] sm:$0xff]
                %261 = vst [vmem:[%s199 + $0xf8] sm:$0xff] %v260
                %v262 = vld [vmem:[%s198 + $0x2b0] sm:$0xff]
                %263 = vst [vmem:[%s199 + $0x100] sm:$0xff] %v262
                %v264 = vld [vmem:[%s198 + $0x2b8] sm:$0xff]
                %265 = vst [vmem:[%s199 + $0x108] sm:$0xff] %v264
                %v266 = vld [vmem:[%s198 + $0x2c0] sm:$0xff]
                %267 = vst [vmem:[%s199 + $0x110] sm:$0xff] %v266
                %v268 = vld [vmem:[%s198 + $0x2c8] sm:$0xff]
                %269 = vst [vmem:[%s199 + $0x118] sm:$0xff] %v268
                %v270 = vld [vmem:[%s198 + $0x2d0] sm:$0xff]
                %271 = vst [vmem:[%s199 + $0x120] sm:$0xff] %v270
                %v272 = vld [vmem:[%s198 + $0x2d8] sm:$0xff]
                %273 = vst [vmem:[%s199 + $0x128] sm:$0xff] %v272
                %v274 = vld [vmem:[%s198 + $0x2e0] sm:$0xff]
                %275 = vst [vmem:[%s199 + $0x130] sm:$0xff] %v274
                %v276 = vld [vmem:[%s198 + $0x2e8] sm:$0xff]
                %277 = vst [vmem:[%s199 + $0x138] sm:$0xff] %v276
                %v278 = vld [vmem:[%s198 + $0x3cc] sm:$0xff]
                %279 = vst [vmem:[%s199 + $0x144] sm:$0xff] %v278
                %v280 = vld [vmem:[%s198 + $0x3d4] sm:$0xff]
                %281 = vst [vmem:[%s199 + $0x14c] sm:$0xff] %v280
                %v282 = vld [vmem:[%s198 + $0x3dc] sm:$0xff]
                %283 = vst [vmem:[%s199 + $0x154] sm:$0xff] %v282
                %v284 = vld [vmem:[%s198 + $0x3e4] sm:$0xff]
                %285 = vst [vmem:[%s199 + $0x15c] sm:$0xff] %v284
                %v286 = vld [vmem:[%s198 + $0x3ec] sm:$0xff]
                %287 = vst [vmem:[%s199 + $0x164] sm:$0xff] %v286
                %v288 = vld [vmem:[%s198 + $0x3f4] sm:$0xff]
                %289 = vst [vmem:[%s199 + $0x16c] sm:$0xff] %v288
                %v290 = vld [vmem:[%s198 + $0x3fc] sm:$0xff]
                %291 = vst [vmem:[%s199 + $0x174] sm:$0xff] %v290
                %v292 = vld [vmem:[%s198 + $0x404] sm:$0xff]
                %293 = vst [vmem:[%s199 + $0x17c] sm:$0xff] %v292
                %v294 = vld [vmem:[%s198 + $0x40c] sm:$0xff]
                %295 = vst [vmem:[%s199 + $0x184] sm:$0xff] %v294
                %v296 = vld [vmem:[%s198 + $0x414] sm:$0xff]
                %297 = vst [vmem:[%s199 + $0x18c] sm:$0xff] %v296
                %v298 = vld [vmem:[%s198 + $0x41c] sm:$0xff]
                %299 = vst [vmem:[%s199 + $0x194] sm:$0xff] %v298
                %v300 = vld [vmem:[%s198 + $0x424] sm:$0xff]
                %301 = vst [vmem:[%s199 + $0x19c] sm:$0xff] %v300
                %v302 = vld [vmem:[%s198 + $0x42c] sm:$0xff]
                %303 = vst [vmem:[%s199 + $0x1a4] sm:$0xff] %v302
                %v304 = vld [vmem:[%s198 + $0x510] sm:$0xff]
                %305 = vst [vmem:[%s199 + $0x1b0] sm:$0xff] %v304
                %v306 = vld [vmem:[%s198 + $0x518] sm:$0xff]
                %307 = vst [vmem:[%s199 + $0x1b8] sm:$0xff] %v306
                %v308 = vld [vmem:[%s198 + $0x520] sm:$0xff]
                %309 = vst [vmem:[%s199 + $0x1c0] sm:$0xff] %v308
                %v310 = vld [vmem:[%s198 + $0x528] sm:$0xff]
                %311 = vst [vmem:[%s199 + $0x1c8] sm:$0xff] %v310
                %v312 = vld [vmem:[%s198 + $0x530] sm:$0xff]
                %313 = vst [vmem:[%s199 + $0x1d0] sm:$0xff] %v312
                %v314 = vld [vmem:[%s198 + $0x538] sm:$0xff]
                %315 = vst [vmem:[%s199 + $0x1d8] sm:$0xff] %v314
                %v316 = vld [vmem:[%s198 + $0x540] sm:$0xff]
                %317 = vst [vmem:[%s199 + $0x1e0] sm:$0xff] %v316
                %v318 = vld [vmem:[%s198 + $0x548] sm:$0xff]
                %319 = vst [vmem:[%s199 + $0x1e8] sm:$0xff] %v318
                %v320 = vld [vmem:[%s198 + $0x550] sm:$0xff]
                %321 = vst [vmem:[%s199 + $0x1f0] sm:$0xff] %v320
                %v322 = vld [vmem:[%s198 + $0x558] sm:$0xff]
                %323 = vst [vmem:[%s199 + $0x1f8] sm:$0xff] %v322
                %v324 = vld [vmem:[%s198 + $0x560] sm:$0xff]
                %325 = vst [vmem:[%s199 + $0x200] sm:$0xff] %v324
                %v326 = vld [vmem:[%s198 + $0x568] sm:$0xff]
                %327 = vst [vmem:[%s199 + $0x208] sm:$0xff] %v326
                %v328 = vld [vmem:[%s198 + $0x570] sm:$0xff]
                %329 = vst [vmem:[%s199 + $0x210] sm:$0xff] %v328
                %v330 = vld [vmem:[%s198 + $0x654] sm:$0xff]
                %331 = vst [vmem:[%s199 + $0x21c] sm:$0xff] %v330
                %v332 = vld [vmem:[%s198 + $0x65c] sm:$0xff]
                %333 = vst [vmem:[%s199 + $0x224] sm:$0xff] %v332
                %v334 = vld [vmem:[%s198 + $0x664] sm:$0xff]
                %335 = vst [vmem:[%s199 + $0x22c] sm:$0xff] %v334
                %v336 = vld [vmem:[%s198 + $0x66c] sm:$0xff]
                %337 = vst [vmem:[%s199 + $0x234] sm:$0xff] %v336
                %v338 = vld [vmem:[%s198 + $0x674] sm:$0xff]
                %339 = vst [vmem:[%s199 + $0x23c] sm:$0xff] %v338
                %v340 = vld [vmem:[%s198 + $0x67c] sm:$0xff]
                %341 = vst [vmem:[%s199 + $0x244] sm:$0xff] %v340
                %v342 = vld [vmem:[%s198 + $0x684] sm:$0xff]
                %343 = vst [vmem:[%s199 + $0x24c] sm:$0xff] %v342
                %v344 = vld [vmem:[%s198 + $0x68c] sm:$0xff]
                %345 = vst [vmem:[%s199 + $0x254] sm:$0xff] %v344
                %v346 = vld [vmem:[%s198 + $0x694] sm:$0xff]
                %347 = vst [vmem:[%s199 + $0x25c] sm:$0xff] %v346
                %v348 = vld [vmem:[%s198 + $0x69c] sm:$0xff]
                %349 = vst [vmem:[%s199 + $0x264] sm:$0xff] %v348
                %v350 = vld [vmem:[%s198 + $0x6a4] sm:$0xff]
                %351 = vst [vmem:[%s199 + $0x26c] sm:$0xff] %v350
                %v352 = vld [vmem:[%s198 + $0x6ac] sm:$0xff]
                %353 = vst [vmem:[%s199 + $0x274] sm:$0xff] %v352
                %v354 = vld [vmem:[%s198 + $0x6b4] sm:$0xff]
                %355 = vst [vmem:[%s199 + $0x27c] sm:$0xff] %v354
                %v356 = vld [vmem:[%s198 + $0x798] sm:$0xff]
                %357 = vst [vmem:[%s199 + $0x288] sm:$0xff] %v356
                %v358 = vld [vmem:[%s198 + $0x7a0] sm:$0xff]
                %359 = vst [vmem:[%s199 + $0x290] sm:$0xff] %v358
                %v360 = vld [vmem:[%s198 + $0x7a8] sm:$0xff]
                %361 = vst [vmem:[%s199 + $0x298] sm:$0xff] %v360
                %v362 = vld [vmem:[%s198 + $0x7b0] sm:$0xff]
                %363 = vst [vmem:[%s199 + $0x2a0] sm:$0xff] %v362
                %v364 = vld [vmem:[%s198 + $0x7b8] sm:$0xff]
                %365 = vst [vmem:[%s199 + $0x2a8] sm:$0xff] %v364
                %v366 = vld [vmem:[%s198 + $0x7c0] sm:$0xff]
                %367 = vst [vmem:[%s199 + $0x2b0] sm:$0xff] %v366
                %v368 = vld [vmem:[%s198 + $0x7c8] sm:$0xff]
                %369 = vst [vmem:[%s199 + $0x2b8] sm:$0xff] %v368
                %v370 = vld [vmem:[%s198 + $0x7d0] sm:$0xff]
                %371 = vst [vmem:[%s199 + $0x2c0] sm:$0xff] %v370
                %v372 = vld [vmem:[%s198 + $0x7d8] sm:$0xff]
                %373 = vst [vmem:[%s199 + $0x2c8] sm:$0xff] %v372
                %v374 = vld [vmem:[%s198 + $0x7e0] sm:$0xff]
                %375 = vst [vmem:[%s199 + $0x2d0] sm:$0xff] %v374
                %v376 = vld [vmem:[%s198 + $0x7e8] sm:$0xff]
                %377 = vst [vmem:[%s199 + $0x2d8] sm:$0xff] %v376
                %v378 = vld [vmem:[%s198 + $0x7f0] sm:$0xff]
                %379 = vst [vmem:[%s199 + $0x2e0] sm:$0xff] %v378
                %v380 = vld [vmem:[%s198 + $0x7f8] sm:$0xff]
                %381 = vst [vmem:[%s199 + $0x2e8] sm:$0xff] %v380
                %v382 = vld [vmem:[%s198 + $0x8dc] sm:$0xff]
                %383 = vst [vmem:[%s199 + $0x2f4] sm:$0xff] %v382
                %v384 = vld [vmem:[%s198 + $0x8e4] sm:$0xff]
                %385 = vst [vmem:[%s199 + $0x2fc] sm:$0xff] %v384
                %v386 = vld [vmem:[%s198 + $0x8ec] sm:$0xff]
                %387 = vst [vmem:[%s199 + $0x304] sm:$0xff] %v386
                %v388 = vld [vmem:[%s198 + $0x8f4] sm:$0xff]
                %389 = vst [vmem:[%s199 + $0x30c] sm:$0xff] %v388
                %v390 = vld [vmem:[%s198 + $0x8fc] sm:$0xff]
                %391 = vst [vmem:[%s199 + $0x314] sm:$0xff] %v390
                %v392 = vld [vmem:[%s198 + $0x904] sm:$0xff]
                %393 = vst [vmem:[%s199 + $0x31c] sm:$0xff] %v392
                %v394 = vld [vmem:[%s198 + $0x90c] sm:$0xff]
                %395 = vst [vmem:[%s199 + $0x324] sm:$0xff] %v394
                %v396 = vld [vmem:[%s198 + $0x914] sm:$0xff]
                %397 = vst [vmem:[%s199 + $0x32c] sm:$0xff] %v396
                %v398 = vld [vmem:[%s198 + $0x91c] sm:$0xff]
                %399 = vst [vmem:[%s199 + $0x334] sm:$0xff] %v398
                %v400 = vld [vmem:[%s198 + $0x924] sm:$0xff]
                %401 = vst [vmem:[%s199 + $0x33c] sm:$0xff] %v400
                %v402 = vld [vmem:[%s198 + $0x92c] sm:$0xff]
                %403 = vst [vmem:[%s199 + $0x344] sm:$0xff] %v402
                %v404 = vld [vmem:[%s198 + $0x934] sm:$0xff]
                %405 = vst [vmem:[%s199 + $0x34c] sm:$0xff] %v404
                %v406 = vld [vmem:[%s198 + $0x93c] sm:$0xff]
                %407 = vst [vmem:[%s199 + $0x354] sm:$0xff] %v406
                %v408 = vld [vmem:[%s198 + $0xa20] sm:$0xff]
                %409 = vst [vmem:[%s199 + $0x360] sm:$0xff] %v408
                %v410 = vld [vmem:[%s198 + $0xa28] sm:$0xff]
                %411 = vst [vmem:[%s199 + $0x368] sm:$0xff] %v410
                %v412 = vld [vmem:[%s198 + $0xa30] sm:$0xff]
                %413 = vst [vmem:[%s199 + $0x370] sm:$0xff] %v412
                %v414 = vld [vmem:[%s198 + $0xa38] sm:$0xff]
                %415 = vst [vmem:[%s199 + $0x378] sm:$0xff] %v414
                %v416 = vld [vmem:[%s198 + $0xa40] sm:$0xff]
                %417 = vst [vmem:[%s199 + $0x380] sm:$0xff] %v416
                %v418 = vld [vmem:[%s198 + $0xa48] sm:$0xff]
                %419 = vst [vmem:[%s199 + $0x388] sm:$0xff] %v418
                %v420 = vld [vmem:[%s198 + $0xa50] sm:$0xff]
                %421 = vst [vmem:[%s199 + $0x390] sm:$0xff] %v420
                %v422 = vld [vmem:[%s198 + $0xa58] sm:$0xff]
                %423 = vst [vmem:[%s199 + $0x398] sm:$0xff] %v422
                %v424 = vld [vmem:[%s198 + $0xa60] sm:$0xff]
                %425 = vst [vmem:[%s199 + $0x3a0] sm:$0xff] %v424
                %v426 = vld [vmem:[%s198 + $0xa68] sm:$0xff]
                %427 = vst [vmem:[%s199 + $0x3a8] sm:$0xff] %v426
                %v428 = vld [vmem:[%s198 + $0xa70] sm:$0xff]
                %429 = vst [vmem:[%s199 + $0x3b0] sm:$0xff] %v428
                %v430 = vld [vmem:[%s198 + $0xa78] sm:$0xff]
                %431 = vst [vmem:[%s199 + $0x3b8] sm:$0xff] %v430
                %v432 = vld [vmem:[%s198 + $0xa80] sm:$0xff]
                %433 = vst [vmem:[%s199 + $0x3c0] sm:$0xff] %v432
                %v434 = vld [vmem:[%s198 + $0xb64] sm:$0xff]
                %435 = vst [vmem:[%s199 + $0x3cc] sm:$0xff] %v434
                %v436 = vld [vmem:[%s198 + $0xb6c] sm:$0xff]
                %437 = vst [vmem:[%s199 + $0x3d4] sm:$0xff] %v436
                %v438 = vld [vmem:[%s198 + $0xb74] sm:$0xff]
                %439 = vst [vmem:[%s199 + $0x3dc] sm:$0xff] %v438
                %v440 = vld [vmem:[%s198 + $0xb7c] sm:$0xff]
                %441 = vst [vmem:[%s199 + $0x3e4] sm:$0xff] %v440
                %v442 = vld [vmem:[%s198 + $0xb84] sm:$0xff]
                %443 = vst [vmem:[%s199 + $0x3ec] sm:$0xff] %v442
                %v444 = vld [vmem:[%s198 + $0xb8c] sm:$0xff]
                %445 = vst [vmem:[%s199 + $0x3f4] sm:$0xff] %v444
                %v446 = vld [vmem:[%s198 + $0xb94] sm:$0xff]
                %447 = vst [vmem:[%s199 + $0x3fc] sm:$0xff] %v446
                %v448 = vld [vmem:[%s198 + $0xb9c] sm:$0xff]
                %449 = vst [vmem:[%s199 + $0x404] sm:$0xff] %v448
                %v450 = vld [vmem:[%s198 + $0xba4] sm:$0xff]
                %451 = vst [vmem:[%s199 + $0x40c] sm:$0xff] %v450
                %v452 = vld [vmem:[%s198 + $0xbac] sm:$0xff]
                %453 = vst [vmem:[%s199 + $0x414] sm:$0xff] %v452
                %v454 = vld [vmem:[%s198 + $0xbb4] sm:$0xff]
                %455 = vst [vmem:[%s199 + $0x41c] sm:$0xff] %v454
                %v456 = vld [vmem:[%s198 + $0xbbc] sm:$0xff]
                %457 = vst [vmem:[%s199 + $0x424] sm:$0xff] %v456
                %v458 = vld [vmem:[%s198 + $0xbc4] sm:$0xff]
                %459 = vst [vmem:[%s199 + $0x42c] sm:$0xff] %v458
                %v460 = vld [vmem:[%s198 + $0xca8] sm:$0xff]
                %461 = vst [vmem:[%s199 + $0x438] sm:$0xff] %v460
                %v462 = vld [vmem:[%s198 + $0xcb0] sm:$0xff]
                %463 = vst [vmem:[%s199 + $0x440] sm:$0xff] %v462
                %v464 = vld [vmem:[%s198 + $0xcb8] sm:$0xff]
                %465 = vst [vmem:[%s199 + $0x448] sm:$0xff] %v464
                %v466 = vld [vmem:[%s198 + $0xcc0] sm:$0xff]
                %467 = vst [vmem:[%s199 + $0x450] sm:$0xff] %v466
                %v468 = vld [vmem:[%s198 + $0xcc8] sm:$0xff]
                %469 = vst [vmem:[%s199 + $0x458] sm:$0xff] %v468
                %v470 = vld [vmem:[%s198 + $0xcd0] sm:$0xff]
                %471 = vst [vmem:[%s199 + $0x460] sm:$0xff] %v470
                %v472 = vld [vmem:[%s198 + $0xcd8] sm:$0xff]
                %473 = vst [vmem:[%s199 + $0x468] sm:$0xff] %v472
                %v474 = vld [vmem:[%s198 + $0xce0] sm:$0xff]
                %475 = vst [vmem:[%s199 + $0x470] sm:$0xff] %v474
                %v476 = vld [vmem:[%s198 + $0xce8] sm:$0xff]
                %477 = vst [vmem:[%s199 + $0x478] sm:$0xff] %v476
                %v478 = vld [vmem:[%s198 + $0xcf0] sm:$0xff]
                %479 = vst [vmem:[%s199 + $0x480] sm:$0xff] %v478
                %v480 = vld [vmem:[%s198 + $0xcf8] sm:$0xff]
                %481 = vst [vmem:[%s199 + $0x488] sm:$0xff] %v480
                %v482 = vld [vmem:[%s198 + $0xd00] sm:$0xff]
                %483 = vst [vmem:[%s199 + $0x490] sm:$0xff] %v482
                %v484 = vld [vmem:[%s198 + $0xd08] sm:$0xff]
                %485 = vst [vmem:[%s199 + $0x498] sm:$0xff] %v484
                %v486 = vld [vmem:[%s198 + $0xdec] sm:$0xff]
                %487 = vst [vmem:[%s199 + $0x4a4] sm:$0xff] %v486
                %v488 = vld [vmem:[%s198 + $0xdf4] sm:$0xff]
                %489 = vst [vmem:[%s199 + $0x4ac] sm:$0xff] %v488
                %v490 = vld [vmem:[%s198 + $0xdfc] sm:$0xff]
                %491 = vst [vmem:[%s199 + $0x4b4] sm:$0xff] %v490
                %v492 = vld [vmem:[%s198 + $0xe04] sm:$0xff]
                %493 = vst [vmem:[%s199 + $0x4bc] sm:$0xff] %v492
                %v494 = vld [vmem:[%s198 + $0xe0c] sm:$0xff]
                %495 = vst [vmem:[%s199 + $0x4c4] sm:$0xff] %v494
                %v496 = vld [vmem:[%s198 + $0xe14] sm:$0xff]
                %497 = vst [vmem:[%s199 + $0x4cc] sm:$0xff] %v496
                %v498 = vld [vmem:[%s198 + $0xe1c] sm:$0xff]
                %499 = vst [vmem:[%s199 + $0x4d4] sm:$0xff] %v498
                %v500 = vld [vmem:[%s198 + $0xe24] sm:$0xff]
                %501 = vst [vmem:[%s199 + $0x4dc] sm:$0xff] %v500
                %v502 = vld [vmem:[%s198 + $0xe2c] sm:$0xff]
                %503 = vst [vmem:[%s199 + $0x4e4] sm:$0xff] %v502
                %v504 = vld [vmem:[%s198 + $0xe34] sm:$0xff]
                %505 = vst [vmem:[%s199 + $0x4ec] sm:$0xff] %v504
                %v506 = vld [vmem:[%s198 + $0xe3c] sm:$0xff]
                %507 = vst [vmem:[%s199 + $0x4f4] sm:$0xff] %v506
                %v508 = vld [vmem:[%s198 + $0xe44] sm:$0xff]
                %509 = vst [vmem:[%s199 + $0x4fc] sm:$0xff] %v508
                %v510 = vld [vmem:[%s198 + $0xe4c] sm:$0xff]
                %511 = vst [vmem:[%s199 + $0x504] sm:$0xff] %v510
              $region45: #{model_forward.3} parent=39 // loop_footer
                %s197 = sadd.s32 1, %s193
              $region46: #{model_forward.3} parent=39 // loop_footer_branch
                %192 = sbr.rel target = $region42
              $region47: #{model_forward.3} parent=39 // loop_exit
                _
              loop: start=0, step=1, limit=1
              $region48: #{model_forward.3} parent=39 // loop_pre_header
                _
              $region49: #{model_forward.3} parent=39 // loop_header
                %s514 = sphi 0, %s518
                %p515 = scmp.ge.s32.totalorder %s514, 1
                %s519 = sphi %s190, %s190
                %s520 = sphi %s191, %s191
              $region50: #{model_forward.3} parent=39 // loop_header_branch
                %517 = sbr.rel (%p515) target = $region54
              $region51: #{model_forward.3} parent=39 // loop_body
                %v521 = vld [vmem:[%s519] sm:$0xf]
                %522 = vst [vmem:[%s520] sm:$0xf] %v521
                %v523 = vld [vmem:[%s519 + $0x144] sm:$0xf]
                %524 = vst [vmem:[%s520 + $0x6c] sm:$0xf] %v523
                %v525 = vld [vmem:[%s519 + $0x288] sm:$0xf]
                %526 = vst [vmem:[%s520 + $0xd8] sm:$0xf] %v525
                %v527 = vld [vmem:[%s519 + $0x3cc] sm:$0xf]
                %528 = vst [vmem:[%s520 + $0x144] sm:$0xf] %v527
                %v529 = vld [vmem:[%s519 + $0x510] sm:$0xf]
                %530 = vst [vmem:[%s520 + $0x1b0] sm:$0xf] %v529
                %v531 = vld [vmem:[%s519 + $0x654] sm:$0xf]
                %532 = vst [vmem:[%s520 + $0x21c] sm:$0xf] %v531
                %v533 = vld [vmem:[%s519 + $0x798] sm:$0xf]
                %534 = vst [vmem:[%s520 + $0x288] sm:$0xf] %v533
                %v535 = vld [vmem:[%s519 + $0x8dc] sm:$0xf]
                %536 = vst [vmem:[%s520 + $0x2f4] sm:$0xf] %v535
                %v537 = vld [vmem:[%s519 + $0xa20] sm:$0xf]
                %538 = vst [vmem:[%s520 + $0x360] sm:$0xf] %v537
                %v539 = vld [vmem:[%s519 + $0xb64] sm:$0xf]
                %540 = vst [vmem:[%s520 + $0x3cc] sm:$0xf] %v539
                %v541 = vld [vmem:[%s519 + $0xca8] sm:$0xf]
                %542 = vst [vmem:[%s520 + $0x438] sm:$0xf] %v541
                %v543 = vld [vmem:[%s519 + $0xdec] sm:$0xf]
                %544 = vst [vmem:[%s520 + $0x4a4] sm:$0xf] %v543
              $region52: #{model_forward.3} parent=39 // loop_footer
                %s518 = sadd.s32 1, %s514
              $region53: #{model_forward.3} parent=39 // loop_footer_branch
                %513 = sbr.rel target = $region49
              $region54: #{model_forward.3} parent=39 // loop_exit
                _
            $region40: #{model_forward.3} parent=35 // pred_fallthru
              _
          $region36: #{model_forward.3} parent=31 // pred_fallthru
            _
          %545 = vnop
        $region32: #{model_forward.3} parent=27 // pred_fallthru
          _
        // Predicated region
        $region55: #{model_forward.3} parent=27 // pred_check
          %p546 = pneg %p58
        $region56: #{model_forward.3} parent=27 // pred_check_branch
          %548 = sbr.rel (%p546) target = $region58
        $region57: #{model_forward.3} parent=27 // pred_region
          %s549 = smul.u32 432, %s12
          %p550 = scmp.lt.s32.totalorder %s549, 1295
          %s551 = scalar_select %p550, %s549, 1295
          %s552 = smul.addr %s551, 4
          %s553 = scalar_lea.vmem %s1, %s552
          %s554 = smul.u32 432, %s12
        $region58: #{model_forward.3} parent=27 // pred_fallthru
          _
      $region28: #{model_forward.3} parent=5 // pred_fallthru
        _
      %p555 = scmp.le.s32.totalorder 1, %s12
      %p556 = scmp.lt.s32.totalorder %s12, 4
      %p557 = pnand %p555, %p556
      %p558 = pneg %p557
      // Predicated region
      $region59: #{model_forward.3} parent=5 // pred_check
        _
      $region60: #{model_forward.3} parent=5 // pred_check_branch
        %560 = sbr.rel (%p557) target = $region62
      $region61: #{model_forward.3} parent=5 // pred_region
        %s561 = ssub.s32 %s12, 1
        %s562 = sand.u32 %s25, 1
        %s563 = sand.u32 %s25, 1
        %s564 = smul.addr %s563, 1296
        %s565 = scalar_lea.vmem [#allocation3], %s564
        // Predicated region
        $region63: #{model_forward.3} parent=61 // pred_check
          %p566 = pneg %p38
        $region64: #{model_forward.3} parent=61 // pred_check_branch
          %568 = sbr.rel (%p566) target = $region66
        $region65: #{model_forward.3} parent=61 // pred_region
          _
        $region66: #{model_forward.3} parent=61 // pred_fallthru
          _
        %s569 = sand.u32 %s25, 1
        %s570 = sand.u32 %s25, 1
        %s571 = smul.addr %s570, 1296
        %s572 = scalar_lea.vmem [#allocation3], %s571
        %p573 = pneg %p38
        %p574 = pneg %p35
        %s575 = smul.u32 432, %s17
        %p576 = scmp.lt.s32.totalorder %s575, 1295
        %s577 = scalar_select %p576, %s575, 1295
        %s578 = smul.addr %s577, 4
        %s579 = scalar_lea.vmem %s1, %s578
        %p580 = pneg %p64
        %p581 = pneg %p61
        %p582 = pneg %p85
        %p583 = pneg %p82
        %p584 = pneg %p106
        %p585 = pneg %p103
        %p586 = pneg %p127
        %p587 = pneg %p124
        %p588 = pneg %p148
        %p589 = pneg %p145
        %s590 = smul.u32 27, %s17
        %s591 = smul.u32 432, %s17
        %p592 = scmp.lt.s32.totalorder %s591, 1295
        %s593 = scalar_select %p592, %s591, 1295
        %s594 = smul.addr %s593, 4
        %s595 = scalar_lea.vmem %s1, %s594
        %s596 = smul.u32 432, %s17
        %p598 = scmp.eq.s32.totalorder %s17, 0
        // Predicated region
        $region67: #{model_forward.3} parent=61 // pred_check
          %p599 = pneg %p598
        $region68: #{model_forward.3} parent=61 // pred_check_branch
          %601 = sbr.rel (%p599) target = $region70
        $region69: #{model_forward.3} parent=61 // pred_region
          %602 = vst [vmem:[#allocation2] sm:$0xff] 0.0
          %603 = vst [vmem:[#allocation2 + $0x8] sm:$0xff] 0.0
          %604 = vst [vmem:[#allocation2 + $0x10] sm:$0xff] 0.0
          %605 = vst [vmem:[#allocation2 + $0x18] sm:$0xff] 0.0
          %606 = vst [vmem:[#allocation2 + $0x20] sm:$0xff] 0.0
          %607 = vst [vmem:[#allocation2 + $0x28] sm:$0xff] 0.0
          %608 = vst [vmem:[#allocation2 + $0x30] sm:$0xff] 0.0
          %609 = vst [vmem:[#allocation2 + $0x38] sm:$0xff] 0.0
          %610 = vst [vmem:[#allocation2 + $0x40] sm:$0xff] 0.0
          %611 = vst [vmem:[#allocation2 + $0x48] sm:$0xff] 0.0
          %612 = vst [vmem:[#allocation2 + $0x50] sm:$0xff] 0.0
          %613 = vst [vmem:[#allocation2 + $0x58] sm:$0xff] 0.0
        $region70: #{model_forward.3} parent=61 // pred_fallthru
          _
        %v614 = vld [vmem:[#allocation2] sm:$0xff]
        %v615 = vld [vmem:[#allocation2 + $0x8] sm:$0xff]
        %v616 = vld [vmem:[#allocation2 + $0x10] sm:$0xff]
        %v617 = vld [vmem:[#allocation2 + $0x18] sm:$0xff]
        %v618 = vld [vmem:[#allocation2 + $0x20] sm:$0xff]
        %v619 = vld [vmem:[#allocation2 + $0x28] sm:$0xff]
        %v620 = vld [vmem:[#allocation2 + $0x30] sm:$0xff]
        %v621 = vld [vmem:[#allocation2 + $0x38] sm:$0xff]
        %v622 = vld [vmem:[#allocation2 + $0x40] sm:$0xff]
        %v623 = vld [vmem:[#allocation2 + $0x48] sm:$0xff]
        %v624 = vld [vmem:[#allocation2 + $0x50] sm:$0xff]
        %v625 = vld [vmem:[#allocation2 + $0x58] sm:$0xff]
        %v626 = vld [vmem:[%s565] sm:$0xff]
        %v627 = vld [vmem:[%s565 + $0x8] sm:$0xff]
        %v628 = vld [vmem:[%s565 + $0x10] sm:$0xff]
        %v629 = vld [vmem:[%s565 + $0x18] sm:$0xff]
        %v630 = vld [vmem:[%s565 + $0x20] sm:$0xff]
        %v631 = vld [vmem:[%s565 + $0x28] sm:$0xff]
        %v632 = vld [vmem:[%s565 + $0x30] sm:$0xff]
        %v633 = vld [vmem:[%s565 + $0x38] sm:$0xff]
        %v634 = vld [vmem:[%s565 + $0x40] sm:$0xff]
        %v635 = vld [vmem:[%s565 + $0x48] sm:$0xff]
        %v636 = vld [vmem:[%s565 + $0x50] sm:$0xff]
        %v637 = vld [vmem:[%s565 + $0x58] sm:$0xff]
        %v638 = vld [vmem:[%s565 + $0x60] sm:$0xff]
        %v639 = vld [vmem:[%s565 + $0x68] sm:$0xf]
        %v640 = vld [vmem:[%s565 + $0x6c] sm:$0xff]
        %v641 = vld [vmem:[%s565 + $0x74] sm:$0xff]
        %v642 = vld [vmem:[%s565 + $0x7c] sm:$0xff]
        %v643 = vld [vmem:[%s565 + $0x84] sm:$0xff]
        %v644 = vld [vmem:[%s565 + $0x8c] sm:$0xff]
        %v645 = vld [vmem:[%s565 + $0x94] sm:$0xff]
        %v646 = vld [vmem:[%s565 + $0x9c] sm:$0xff]
        %v647 = vld [vmem:[%s565 + $0xa4] sm:$0xff]
        %v648 = vld [vmem:[%s565 + $0xac] sm:$0xff]
        %v649 = vld [vmem:[%s565 + $0xb4] sm:$0xff]
        %v650 = vld [vmem:[%s565 + $0xbc] sm:$0xff]
        %v651 = vld [vmem:[%s565 + $0xc4] sm:$0xff]
        %v652 = vld [vmem:[%s565 + $0xcc] sm:$0xff]
        %v653 = vld [vmem:[%s565 + $0xd4] sm:$0xf]
        %v654 = vld [vmem:[%s565 + $0xd8] sm:$0xff]
        %v655 = vld [vmem:[%s565 + $0xe0] sm:$0xff]
        %v656 = vld [vmem:[%s565 + $0xe8] sm:$0xff]
        %v657 = vld [vmem:[%s565 + $0xf0] sm:$0xff]
        %v658 = vld [vmem:[%s565 + $0xf8] sm:$0xff]
        %v659 = vld [vmem:[%s565 + $0x100] sm:$0xff]
        %v660 = vld [vmem:[%s565 + $0x108] sm:$0xff]
        %v661 = vld [vmem:[%s565 + $0x110] sm:$0xff]
        %v662 = vld [vmem:[%s565 + $0x118] sm:$0xff]
        %v663 = vld [vmem:[%s565 + $0x120] sm:$0xff]
        %v664 = vld [vmem:[%s565 + $0x128] sm:$0xff]
        %v665 = vld [vmem:[%s565 + $0x130] sm:$0xff]
        %v666 = vld [vmem:[%s565 + $0x138] sm:$0xff]
        %v667 = vld [vmem:[%s565 + $0x140] sm:$0xf]
        %v668 = vld [vmem:[%s565 + $0x144] sm:$0xff]
        %v669 = vld [vmem:[%s565 + $0x14c] sm:$0xff]
        %v670 = vld [vmem:[%s565 + $0x154] sm:$0xff]
        %v671 = vld [vmem:[%s565 + $0x15c] sm:$0xff]
        %v672 = vld [vmem:[%s565 + $0x164] sm:$0xff]
        %v673 = vld [vmem:[%s565 + $0x16c] sm:$0xff]
        %v674 = vld [vmem:[%s565 + $0x174] sm:$0xff]
        %v675 = vld [vmem:[%s565 + $0x17c] sm:$0xff]
        %v676 = vld [vmem:[%s565 + $0x184] sm:$0xff]
        %v677 = vld [vmem:[%s565 + $0x18c] sm:$0xff]
        %v678 = vld [vmem:[%s565 + $0x194] sm:$0xff]
        %v679 = vld [vmem:[%s565 + $0x19c] sm:$0xff]
        %v680 = vld [vmem:[%s565 + $0x1a4] sm:$0xff]
        %v681 = vld [vmem:[%s565 + $0x1ac] sm:$0xf]
        %v682 = vld [vmem:[%s565 + $0x1b0] sm:$0xff]
        %v683 = vld [vmem:[%s565 + $0x1b8] sm:$0xff]
        %v684 = vld [vmem:[%s565 + $0x1c0] sm:$0xff]
        %v685 = vld [vmem:[%s565 + $0x1c8] sm:$0xff]
        %v686 = vld [vmem:[%s565 + $0x1d0] sm:$0xff]
        %v687 = vld [vmem:[%s565 + $0x1d8] sm:$0xff]
        %v688 = vld [vmem:[%s565 + $0x1e0] sm:$0xff]
        %v689 = vld [vmem:[%s565 + $0x1e8] sm:$0xff]
        %v690 = vld [vmem:[%s565 + $0x1f0] sm:$0xff]
        %v691 = vld [vmem:[%s565 + $0x1f8] sm:$0xff]
        %v692 = vld [vmem:[%s565 + $0x200] sm:$0xff]
        %v693 = vld [vmem:[%s565 + $0x208] sm:$0xff]
        %v694 = vld [vmem:[%s565 + $0x210] sm:$0xff]
        %v695 = vld [vmem:[%s565 + $0x218] sm:$0xf]
        %v696 = vld [vmem:[%s565 + $0x21c] sm:$0xff]
        %v697 = vld [vmem:[%s565 + $0x224] sm:$0xff]
        %v698 = vld [vmem:[%s565 + $0x22c] sm:$0xff]
        %v699 = vld [vmem:[%s565 + $0x234] sm:$0xff]
        %v700 = vld [vmem:[%s565 + $0x23c] sm:$0xff]
        %v701 = vld [vmem:[%s565 + $0x244] sm:$0xff]
        %v702 = vld [vmem:[%s565 + $0x24c] sm:$0xff]
        %v703 = vld [vmem:[%s565 + $0x254] sm:$0xff]
        %v704 = vld [vmem:[%s565 + $0x25c] sm:$0xff]
        %v705 = vld [vmem:[%s565 + $0x264] sm:$0xff]
        %v706 = vld [vmem:[%s565 + $0x26c] sm:$0xff]
        %v707 = vld [vmem:[%s565 + $0x274] sm:$0xff]
        %v708 = vld [vmem:[%s565 + $0x27c] sm:$0xff]
        %v709 = vld [vmem:[%s565 + $0x284] sm:$0xf]
        %v710 = vld [vmem:[%s565 + $0x288] sm:$0xff]
        %v711 = vld [vmem:[%s565 + $0x290] sm:$0xff]
        %v712 = vld [vmem:[%s565 + $0x298] sm:$0xff]
        %v713 = vld [vmem:[%s565 + $0x2a0] sm:$0xff]
        %v714 = vld [vmem:[%s565 + $0x2a8] sm:$0xff]
        %v715 = vld [vmem:[%s565 + $0x2b0] sm:$0xff]
        %v716 = vld [vmem:[%s565 + $0x2b8] sm:$0xff]
        %v717 = vld [vmem:[%s565 + $0x2c0] sm:$0xff]
        %v718 = vld [vmem:[%s565 + $0x2c8] sm:$0xff]
        %v719 = vld [vmem:[%s565 + $0x2d0] sm:$0xff]
        %v720 = vld [vmem:[%s565 + $0x2d8] sm:$0xff]
        %v721 = vld [vmem:[%s565 + $0x2e0] sm:$0xff]
        %v722 = vld [vmem:[%s565 + $0x2e8] sm:$0xff]
        %v723 = vld [vmem:[%s565 + $0x2f0] sm:$0xf]
        %v724 = vld [vmem:[%s565 + $0x2f4] sm:$0xff]
        %v725 = vld [vmem:[%s565 + $0x2fc] sm:$0xff]
        %v726 = vld [vmem:[%s565 + $0x304] sm:$0xff]
        %v727 = vld [vmem:[%s565 + $0x30c] sm:$0xff]
        %v728 = vld [vmem:[%s565 + $0x314] sm:$0xff]
        %v729 = vld [vmem:[%s565 + $0x31c] sm:$0xff]
        %v730 = vld [vmem:[%s565 + $0x324] sm:$0xff]
        %v731 = vld [vmem:[%s565 + $0x32c] sm:$0xff]
        %v732 = vld [vmem:[%s565 + $0x334] sm:$0xff]
        %v733 = vld [vmem:[%s565 + $0x33c] sm:$0xff]
        %v734 = vld [vmem:[%s565 + $0x344] sm:$0xff]
        %v735 = vld [vmem:[%s565 + $0x34c] sm:$0xff]
        %v736 = vld [vmem:[%s565 + $0x354] sm:$0xff]
        %v737 = vld [vmem:[%s565 + $0x35c] sm:$0xf]
        %v738 = vld [vmem:[%s565 + $0x360] sm:$0xff]
        %v739 = vld [vmem:[%s565 + $0x368] sm:$0xff]
        %v740 = vld [vmem:[%s565 + $0x370] sm:$0xff]
        %v741 = vld [vmem:[%s565 + $0x378] sm:$0xff]
        %v742 = vld [vmem:[%s565 + $0x380] sm:$0xff]
        %v743 = vld [vmem:[%s565 + $0x388] sm:$0xff]
        %v744 = vld [vmem:[%s565 + $0x390] sm:$0xff]
        %v745 = vld [vmem:[%s565 + $0x398] sm:$0xff]
        %v746 = vld [vmem:[%s565 + $0x3a0] sm:$0xff]
        %v747 = vld [vmem:[%s565 + $0x3a8] sm:$0xff]
        %v748 = vld [vmem:[%s565 + $0x3b0] sm:$0xff]
        %v749 = vld [vmem:[%s565 + $0x3b8] sm:$0xff]
        %v750 = vld [vmem:[%s565 + $0x3c0] sm:$0xff]
        %v751 = vld [vmem:[%s565 + $0x3c8] sm:$0xf]
        %v752 = vld [vmem:[%s565 + $0x3cc] sm:$0xff]
        %v753 = vld [vmem:[%s565 + $0x3d4] sm:$0xff]
        %v754 = vld [vmem:[%s565 + $0x3dc] sm:$0xff]
        %v755 = vld [vmem:[%s565 + $0x3e4] sm:$0xff]
        %v756 = vld [vmem:[%s565 + $0x3ec] sm:$0xff]
        %v757 = vld [vmem:[%s565 + $0x3f4] sm:$0xff]
        %v758 = vld [vmem:[%s565 + $0x3fc] sm:$0xff]
        %v759 = vld [vmem:[%s565 + $0x404] sm:$0xff]
        %v760 = vld [vmem:[%s565 + $0x40c] sm:$0xff]
        %v761 = vld [vmem:[%s565 + $0x414] sm:$0xff]
        %v762 = vld [vmem:[%s565 + $0x41c] sm:$0xff]
        %v763 = vld [vmem:[%s565 + $0x424] sm:$0xff]
        %v764 = vld [vmem:[%s565 + $0x42c] sm:$0xff]
        %v765 = vld [vmem:[%s565 + $0x434] sm:$0xf]
        %v766 = vld [vmem:[%s565 + $0x438] sm:$0xff]
        %v767 = vld [vmem:[%s565 + $0x440] sm:$0xff]
        %v768 = vld [vmem:[%s565 + $0x448] sm:$0xff]
        %v769 = vld [vmem:[%s565 + $0x450] sm:$0xff]
        %v770 = vld [vmem:[%s565 + $0x458] sm:$0xff]
        %v771 = vld [vmem:[%s565 + $0x460] sm:$0xff]
        %v772 = vld [vmem:[%s565 + $0x468] sm:$0xff]
        %v773 = vld [vmem:[%s565 + $0x470] sm:$0xff]
        %v774 = vld [vmem:[%s565 + $0x478] sm:$0xff]
        %v775 = vld [vmem:[%s565 + $0x480] sm:$0xff]
        %v776 = vld [vmem:[%s565 + $0x488] sm:$0xff]
        %v777 = vld [vmem:[%s565 + $0x490] sm:$0xff]
        %v778 = vld [vmem:[%s565 + $0x498] sm:$0xff]
        %v779 = vld [vmem:[%s565 + $0x4a0] sm:$0xf]
        %v780 = vld [vmem:[%s565 + $0x4a4] sm:$0xff]
        %v781 = vld [vmem:[%s565 + $0x4ac] sm:$0xff]
        %v782 = vld [vmem:[%s565 + $0x4b4] sm:$0xff]
        %v783 = vld [vmem:[%s565 + $0x4bc] sm:$0xff]
        %v784 = vld [vmem:[%s565 + $0x4c4] sm:$0xff]
        %v785 = vld [vmem:[%s565 + $0x4cc] sm:$0xff]
        %v786 = vld [vmem:[%s565 + $0x4d4] sm:$0xff]
        %v787 = vld [vmem:[%s565 + $0x4dc] sm:$0xff]
        %v788 = vld [vmem:[%s565 + $0x4e4] sm:$0xff]
        %v789 = vld [vmem:[%s565 + $0x4ec] sm:$0xff]
        %v790 = vld [vmem:[%s565 + $0x4f4] sm:$0xff]
        %v791 = vld [vmem:[%s565 + $0x4fc] sm:$0xff]
        %v792 = vld [vmem:[%s565 + $0x504] sm:$0xff]
        %v793 = vld [vmem:[%s565 + $0x50c] sm:$0xf]
        %v794 = vld [vmem:[%s595] sm:$0xf]
        %v795 = vld [vmem:[%s595 + $0x4] sm:$0xf]
        %v796 = vld [vmem:[%s595 + $0x8] sm:$0xf]
        %v797 = vld [vmem:[%s595 + $0xc] sm:$0xf]
        %v798 = vld [vmem:[%s595 + $0x10] sm:$0xf]
        %v799 = vld [vmem:[%s595 + $0x14] sm:$0xf]
        %v800 = vld [vmem:[%s595 + $0x18] sm:$0xf]
        %v801 = vld [vmem:[%s595 + $0x1c] sm:$0xf]
        %v802 = vld [vmem:[%s595 + $0x20] sm:$0xf]
        %v803 = vld [vmem:[%s595 + $0x24] sm:$0xf]
        %v804 = vld [vmem:[%s595 + $0x28] sm:$0xf]
        %v805 = vld [vmem:[%s595 + $0x2c] sm:$0xf]
        %v806 = vld [vmem:[%s595 + $0x30] sm:$0xf]
        %v807 = vld [vmem:[%s595 + $0x34] sm:$0xf]
        %v808 = vld [vmem:[%s595 + $0x38] sm:$0xf]
        %v809 = vld [vmem:[%s595 + $0x3c] sm:$0xf]
        %v810 = vld [vmem:[%s595 + $0x40] sm:$0xf]
        %v811 = vld [vmem:[%s595 + $0x44] sm:$0xf]
        %v812 = vld [vmem:[%s595 + $0x48] sm:$0xf]
        %v813 = vld [vmem:[%s595 + $0x4c] sm:$0xf]
        %v814 = vld [vmem:[%s595 + $0x50] sm:$0xf]
        %v815 = vld [vmem:[%s595 + $0x54] sm:$0xf]
        %v816 = vld [vmem:[%s595 + $0x58] sm:$0xf]
        %v817 = vld [vmem:[%s595 + $0x5c] sm:$0xf]
        %v818 = vld [vmem:[%s595 + $0x60] sm:$0xf]
        %v819 = vld [vmem:[%s595 + $0x64] sm:$0xf]
        %v820 = vld [vmem:[%s595 + $0x68] sm:$0xf]
        %v821 = vld [vmem:[%s595 + $0x6c] sm:$0xf]
        %v822 = vld [vmem:[%s595 + $0x70] sm:$0xf]
        %v823 = vld [vmem:[%s595 + $0x74] sm:$0xf]
        %v824 = vld [vmem:[%s595 + $0x78] sm:$0xf]
        %v825 = vld [vmem:[%s595 + $0x7c] sm:$0xf]
        %v826 = vld [vmem:[%s595 + $0x80] sm:$0xf]
        %v827 = vld [vmem:[%s595 + $0x84] sm:$0xf]
        %v828 = vld [vmem:[%s595 + $0x88] sm:$0xf]
        %v829 = vld [vmem:[%s595 + $0x8c] sm:$0xf]
        %v830 = vld [vmem:[%s595 + $0x90] sm:$0xf]
        %v831 = vld [vmem:[%s595 + $0x94] sm:$0xf]
        %v832 = vld [vmem:[%s595 + $0x98] sm:$0xf]
        %v833 = vld [vmem:[%s595 + $0x9c] sm:$0xf]
        %v834 = vld [vmem:[%s595 + $0xa0] sm:$0xf]
        %v835 = vld [vmem:[%s595 + $0xa4] sm:$0xf]
        %v836 = vld [vmem:[%s595 + $0xa8] sm:$0xf]
        %v837 = vld [vmem:[%s595 + $0xac] sm:$0xf]
        %v838 = vld [vmem:[%s595 + $0xb0] sm:$0xf]
        %v839 = vld [vmem:[%s595 + $0xb4] sm:$0xf]
        %v840 = vld [vmem:[%s595 + $0xb8] sm:$0xf]
        %v841 = vld [vmem:[%s595 + $0xbc] sm:$0xf]
        %v842 = vld [vmem:[%s595 + $0xc0] sm:$0xf]
        %v843 = vld [vmem:[%s595 + $0xc4] sm:$0xf]
        %v844 = vld [vmem:[%s595 + $0xc8] sm:$0xf]
        %v845 = vld [vmem:[%s595 + $0xcc] sm:$0xf]
        %v846 = vld [vmem:[%s595 + $0xd0] sm:$0xf]
        %v847 = vld [vmem:[%s595 + $0xd4] sm:$0xf]
        %v848 = vld [vmem:[%s595 + $0xd8] sm:$0xf]
        %v849 = vld [vmem:[%s595 + $0xdc] sm:$0xf]
        %v850 = vld [vmem:[%s595 + $0xe0] sm:$0xf]
        %v851 = vld [vmem:[%s595 + $0xe4] sm:$0xf]
        %v852 = vld [vmem:[%s595 + $0xe8] sm:$0xf]
        %v853 = vld [vmem:[%s595 + $0xec] sm:$0xf]
        %v854 = vld [vmem:[%s595 + $0xf0] sm:$0xf]
        %v855 = vld [vmem:[%s595 + $0xf4] sm:$0xf]
        %v856 = vld [vmem:[%s595 + $0xf8] sm:$0xf]
        %v857 = vld [vmem:[%s595 + $0xfc] sm:$0xf]
        %v858 = vld [vmem:[%s595 + $0x100] sm:$0xf]
        %v859 = vld [vmem:[%s595 + $0x104] sm:$0xf]
        %v860 = vld [vmem:[%s595 + $0x108] sm:$0xf]
        %v861 = vld [vmem:[%s595 + $0x10c] sm:$0xf]
        %v862 = vld [vmem:[%s595 + $0x110] sm:$0xf]
        %v863 = vld [vmem:[%s595 + $0x114] sm:$0xf]
        %v864 = vld [vmem:[%s595 + $0x118] sm:$0xf]
        %v865 = vld [vmem:[%s595 + $0x11c] sm:$0xf]
        %v866 = vld [vmem:[%s595 + $0x120] sm:$0xf]
        %v867 = vld [vmem:[%s595 + $0x124] sm:$0xf]
        %v868 = vld [vmem:[%s595 + $0x128] sm:$0xf]
        %v869 = vld [vmem:[%s595 + $0x12c] sm:$0xf]
        %v870 = vld [vmem:[%s595 + $0x130] sm:$0xf]
        %v871 = vld [vmem:[%s595 + $0x134] sm:$0xf]
        %v872 = vld [vmem:[%s595 + $0x138] sm:$0xf]
        %v873 = vld [vmem:[%s595 + $0x13c] sm:$0xf]
        %v874 = vld [vmem:[%s595 + $0x140] sm:$0xf]
        %v875 = vld [vmem:[%s595 + $0x144] sm:$0xf]
        %v876 = vld [vmem:[%s595 + $0x148] sm:$0xf]
        %v877 = vld [vmem:[%s595 + $0x14c] sm:$0xf]
        %v878 = vld [vmem:[%s595 + $0x150] sm:$0xf]
        %v879 = vld [vmem:[%s595 + $0x154] sm:$0xf]
        %v880 = vld [vmem:[%s595 + $0x158] sm:$0xf]
        %v881 = vld [vmem:[%s595 + $0x15c] sm:$0xf]
        %v882 = vld [vmem:[%s595 + $0x160] sm:$0xf]
        %v883 = vld [vmem:[%s595 + $0x164] sm:$0xf]
        %v884 = vld [vmem:[%s595 + $0x168] sm:$0xf]
        %v885 = vld [vmem:[%s595 + $0x16c] sm:$0xf]
        %v886 = vld [vmem:[%s595 + $0x170] sm:$0xf]
        %v887 = vld [vmem:[%s595 + $0x174] sm:$0xf]
        %v888 = vld [vmem:[%s595 + $0x178] sm:$0xf]
        %v889 = vld [vmem:[%s595 + $0x17c] sm:$0xf]
        %v890 = vld [vmem:[%s595 + $0x180] sm:$0xf]
        %v891 = vld [vmem:[%s595 + $0x184] sm:$0xf]
        %v892 = vld [vmem:[%s595 + $0x188] sm:$0xf]
        %v893 = vld [vmem:[%s595 + $0x18c] sm:$0xf]
        %v894 = vld [vmem:[%s595 + $0x190] sm:$0xf]
        %v895 = vld [vmem:[%s595 + $0x194] sm:$0xf]
        %v896 = vld [vmem:[%s595 + $0x198] sm:$0xf]
        %v897 = vld [vmem:[%s595 + $0x19c] sm:$0xf]
        %v898 = vld [vmem:[%s595 + $0x1a0] sm:$0xf]
        %v899 = vld [vmem:[%s595 + $0x1a4] sm:$0xf]
        %v900 = vld [vmem:[%s595 + $0x1a8] sm:$0xf]
        %v901 = vld [vmem:[%s595 + $0x1ac] sm:$0xf]
        %v902 = vld [vmem:[%s595 + $0x1b0] sm:$0xf]
        %v903 = vld [vmem:[%s595 + $0x1b4] sm:$0xf]
        %v904 = vld [vmem:[%s595 + $0x1b8] sm:$0xf]
        %v905 = vld [vmem:[%s595 + $0x1bc] sm:$0xf]
        %v906 = vld [vmem:[%s595 + $0x1c0] sm:$0xf]
        %v907 = vld [vmem:[%s595 + $0x1c4] sm:$0xf]
        %v908 = vld [vmem:[%s595 + $0x1c8] sm:$0xf]
        %v909 = vld [vmem:[%s595 + $0x1cc] sm:$0xf]
        %v910 = vld [vmem:[%s595 + $0x1d0] sm:$0xf]
        %v911 = vld [vmem:[%s595 + $0x1d4] sm:$0xf]
        %v912 = vld [vmem:[%s595 + $0x1d8] sm:$0xf]
        %v913 = vld [vmem:[%s595 + $0x1dc] sm:$0xf]
        %v914 = vld [vmem:[%s595 + $0x1e0] sm:$0xf]
        %v915 = vld [vmem:[%s595 + $0x1e4] sm:$0xf]
        %v916 = vld [vmem:[%s595 + $0x1e8] sm:$0xf]
        %v917 = vld [vmem:[%s595 + $0x1ec] sm:$0xf]
        %v918 = vld [vmem:[%s595 + $0x1f0] sm:$0xf]
        %v919 = vld [vmem:[%s595 + $0x1f4] sm:$0xf]
        %v920 = vld [vmem:[%s595 + $0x1f8] sm:$0xf]
        %v921 = vld [vmem:[%s595 + $0x1fc] sm:$0xf]
        %v922 = vld [vmem:[%s595 + $0x200] sm:$0xf]
        %v923 = vld [vmem:[%s595 + $0x204] sm:$0xf]
        %v924 = vld [vmem:[%s595 + $0x208] sm:$0xf]
        %v925 = vld [vmem:[%s595 + $0x20c] sm:$0xf]
        %v926 = vld [vmem:[%s595 + $0x210] sm:$0xf]
        %v927 = vld [vmem:[%s595 + $0x214] sm:$0xf]
        %v928 = vld [vmem:[%s595 + $0x218] sm:$0xf]
        %v929 = vld [vmem:[%s595 + $0x21c] sm:$0xf]
        %v930 = vld [vmem:[%s595 + $0x220] sm:$0xf]
        %v931 = vld [vmem:[%s595 + $0x224] sm:$0xf]
        %v932 = vld [vmem:[%s595 + $0x228] sm:$0xf]
        %v933 = vld [vmem:[%s595 + $0x22c] sm:$0xf]
        %v934 = vld [vmem:[%s595 + $0x230] sm:$0xf]
        %v935 = vld [vmem:[%s595 + $0x234] sm:$0xf]
        %v936 = vld [vmem:[%s595 + $0x238] sm:$0xf]
        %v937 = vld [vmem:[%s595 + $0x23c] sm:$0xf]
        %v938 = vld [vmem:[%s595 + $0x240] sm:$0xf]
        %v939 = vld [vmem:[%s595 + $0x244] sm:$0xf]
        %v940 = vld [vmem:[%s595 + $0x248] sm:$0xf]
        %v941 = vld [vmem:[%s595 + $0x24c] sm:$0xf]
        %v942 = vld [vmem:[%s595 + $0x250] sm:$0xf]
        %v943 = vld [vmem:[%s595 + $0x254] sm:$0xf]
        %v944 = vld [vmem:[%s595 + $0x258] sm:$0xf]
        %v945 = vld [vmem:[%s595 + $0x25c] sm:$0xf]
        %v946 = vld [vmem:[%s595 + $0x260] sm:$0xf]
        %v947 = vld [vmem:[%s595 + $0x264] sm:$0xf]
        %v948 = vld [vmem:[%s595 + $0x268] sm:$0xf]
        %v949 = vld [vmem:[%s595 + $0x26c] sm:$0xf]
        %v950 = vld [vmem:[%s595 + $0x270] sm:$0xf]
        %v951 = vld [vmem:[%s595 + $0x274] sm:$0xf]
        %v952 = vld [vmem:[%s595 + $0x278] sm:$0xf]
        %v953 = vld [vmem:[%s595 + $0x27c] sm:$0xf]
        %v954 = vld [vmem:[%s595 + $0x280] sm:$0xf]
        %v955 = vld [vmem:[%s595 + $0x284] sm:$0xf]
        %v956 = vld [vmem:[%s595 + $0x288] sm:$0xf]
        %v957 = vld [vmem:[%s595 + $0x28c] sm:$0xf]
        %v958 = vld [vmem:[%s595 + $0x290] sm:$0xf]
        %v959 = vld [vmem:[%s595 + $0x294] sm:$0xf]
        %v960 = vld [vmem:[%s595 + $0x298] sm:$0xf]
        %v961 = vld [vmem:[%s595 + $0x29c] sm:$0xf]
        %v962 = vld [vmem:[%s595 + $0x2a0] sm:$0xf]
        %v963 = vld [vmem:[%s595 + $0x2a4] sm:$0xf]
        %v964 = vld [vmem:[%s595 + $0x2a8] sm:$0xf]
        %v965 = vld [vmem:[%s595 + $0x2ac] sm:$0xf]
        %v966 = vld [vmem:[%s595 + $0x2b0] sm:$0xf]
        %v967 = vld [vmem:[%s595 + $0x2b4] sm:$0xf]
        %v968 = vld [vmem:[%s595 + $0x2b8] sm:$0xf]
        %v969 = vld [vmem:[%s595 + $0x2bc] sm:$0xf]
        %v970 = vld [vmem:[%s595 + $0x2c0] sm:$0xf]
        %v971 = vld [vmem:[%s595 + $0x2c4] sm:$0xf]
        %v972 = vld [vmem:[%s595 + $0x2c8] sm:$0xf]
        %v973 = vld [vmem:[%s595 + $0x2cc] sm:$0xf]
        %v974 = vld [vmem:[%s595 + $0x2d0] sm:$0xf]
        %v975 = vld [vmem:[%s595 + $0x2d4] sm:$0xf]
        %v976 = vld [vmem:[%s595 + $0x2d8] sm:$0xf]
        %v977 = vld [vmem:[%s595 + $0x2dc] sm:$0xf]
        %v978 = vld [vmem:[%s595 + $0x2e0] sm:$0xf]
        %v979 = vld [vmem:[%s595 + $0x2e4] sm:$0xf]
        %v980 = vld [vmem:[%s595 + $0x2e8] sm:$0xf]
        %v981 = vld [vmem:[%s595 + $0x2ec] sm:$0xf]
        %v982 = vld [vmem:[%s595 + $0x2f0] sm:$0xf]
        %v983 = vld [vmem:[%s595 + $0x2f4] sm:$0xf]
        %v984 = vld [vmem:[%s595 + $0x2f8] sm:$0xf]
        %v985 = vld [vmem:[%s595 + $0x2fc] sm:$0xf]
        %v986 = vld [vmem:[%s595 + $0x300] sm:$0xf]
        %v987 = vld [vmem:[%s595 + $0x304] sm:$0xf]
        %v988 = vld [vmem:[%s595 + $0x308] sm:$0xf]
        %v989 = vld [vmem:[%s595 + $0x30c] sm:$0xf]
        %v990 = vld [vmem:[%s595 + $0x310] sm:$0xf]
        %v991 = vld [vmem:[%s595 + $0x314] sm:$0xf]
        %v992 = vld [vmem:[%s595 + $0x318] sm:$0xf]
        %v993 = vld [vmem:[%s595 + $0x31c] sm:$0xf]
        %v994 = vld [vmem:[%s595 + $0x320] sm:$0xf]
        %v995 = vld [vmem:[%s595 + $0x324] sm:$0xf]
        %v996 = vld [vmem:[%s595 + $0x328] sm:$0xf]
        %v997 = vld [vmem:[%s595 + $0x32c] sm:$0xf]
        %v998 = vld [vmem:[%s595 + $0x330] sm:$0xf]
        %v999 = vld [vmem:[%s595 + $0x334] sm:$0xf]
        %v1000 = vld [vmem:[%s595 + $0x338] sm:$0xf]
        %v1001 = vld [vmem:[%s595 + $0x33c] sm:$0xf]
        %v1002 = vld [vmem:[%s595 + $0x340] sm:$0xf]
        %v1003 = vld [vmem:[%s595 + $0x344] sm:$0xf]
        %v1004 = vld [vmem:[%s595 + $0x348] sm:$0xf]
        %v1005 = vld [vmem:[%s595 + $0x34c] sm:$0xf]
        %v1006 = vld [vmem:[%s595 + $0x350] sm:$0xf]
        %v1007 = vld [vmem:[%s595 + $0x354] sm:$0xf]
        %v1008 = vld [vmem:[%s595 + $0x358] sm:$0xf]
        %v1009 = vld [vmem:[%s595 + $0x35c] sm:$0xf]
        %v1010 = vld [vmem:[%s595 + $0x360] sm:$0xf]
        %v1011 = vld [vmem:[%s595 + $0x364] sm:$0xf]
        %v1012 = vld [vmem:[%s595 + $0x368] sm:$0xf]
        %v1013 = vld [vmem:[%s595 + $0x36c] sm:$0xf]
        %v1014 = vld [vmem:[%s595 + $0x370] sm:$0xf]
        %v1015 = vld [vmem:[%s595 + $0x374] sm:$0xf]
        %v1016 = vld [vmem:[%s595 + $0x378] sm:$0xf]
        %v1017 = vld [vmem:[%s595 + $0x37c] sm:$0xf]
        %v1018 = vld [vmem:[%s595 + $0x380] sm:$0xf]
        %v1019 = vld [vmem:[%s595 + $0x384] sm:$0xf]
        %v1020 = vld [vmem:[%s595 + $0x388] sm:$0xf]
        %v1021 = vld [vmem:[%s595 + $0x38c] sm:$0xf]
        %v1022 = vld [vmem:[%s595 + $0x390] sm:$0xf]
        %v1023 = vld [vmem:[%s595 + $0x394] sm:$0xf]
        %v1024 = vld [vmem:[%s595 + $0x398] sm:$0xf]
        %v1025 = vld [vmem:[%s595 + $0x39c] sm:$0xf]
        %v1026 = vld [vmem:[%s595 + $0x3a0] sm:$0xf]
        %v1027 = vld [vmem:[%s595 + $0x3a4] sm:$0xf]
        %v1028 = vld [vmem:[%s595 + $0x3a8] sm:$0xf]
        %v1029 = vld [vmem:[%s595 + $0x3ac] sm:$0xf]
        %v1030 = vld [vmem:[%s595 + $0x3b0] sm:$0xf]
        %v1031 = vld [vmem:[%s595 + $0x3b4] sm:$0xf]
        %v1032 = vld [vmem:[%s595 + $0x3b8] sm:$0xf]
        %v1033 = vld [vmem:[%s595 + $0x3bc] sm:$0xf]
        %v1034 = vld [vmem:[%s595 + $0x3c0] sm:$0xf]
        %v1035 = vld [vmem:[%s595 + $0x3c4] sm:$0xf]
        %v1036 = vld [vmem:[%s595 + $0x3c8] sm:$0xf]
        %v1037 = vld [vmem:[%s595 + $0x3cc] sm:$0xf]
        %v1038 = vld [vmem:[%s595 + $0x3d0] sm:$0xf]
        %v1039 = vld [vmem:[%s595 + $0x3d4] sm:$0xf]
        %v1040 = vld [vmem:[%s595 + $0x3d8] sm:$0xf]
        %v1041 = vld [vmem:[%s595 + $0x3dc] sm:$0xf]
        %v1042 = vld [vmem:[%s595 + $0x3e0] sm:$0xf]
        %v1043 = vld [vmem:[%s595 + $0x3e4] sm:$0xf]
        %v1044 = vld [vmem:[%s595 + $0x3e8] sm:$0xf]
        %v1045 = vld [vmem:[%s595 + $0x3ec] sm:$0xf]
        %v1046 = vld [vmem:[%s595 + $0x3f0] sm:$0xf]
        %v1047 = vld [vmem:[%s595 + $0x3f4] sm:$0xf]
        %v1048 = vld [vmem:[%s595 + $0x3f8] sm:$0xf]
        %v1049 = vld [vmem:[%s595 + $0x3fc] sm:$0xf]
        %v1050 = vld [vmem:[%s595 + $0x400] sm:$0xf]
        %v1051 = vld [vmem:[%s595 + $0x404] sm:$0xf]
        %v1052 = vld [vmem:[%s595 + $0x408] sm:$0xf]
        %v1053 = vld [vmem:[%s595 + $0x40c] sm:$0xf]
        %v1054 = vld [vmem:[%s595 + $0x410] sm:$0xf]
        %v1055 = vld [vmem:[%s595 + $0x414] sm:$0xf]
        %v1056 = vld [vmem:[%s595 + $0x418] sm:$0xf]
        %v1057 = vld [vmem:[%s595 + $0x41c] sm:$0xf]
        %v1058 = vld [vmem:[%s595 + $0x420] sm:$0xf]
        %v1059 = vld [vmem:[%s595 + $0x424] sm:$0xf]
        %v1060 = vld [vmem:[%s595 + $0x428] sm:$0xf]
        %v1061 = vld [vmem:[%s595 + $0x42c] sm:$0xf]
        %v1062 = vld [vmem:[%s595 + $0x430] sm:$0xf]
        %v1063 = vld [vmem:[%s595 + $0x434] sm:$0xf]
        %v1064 = vld [vmem:[%s595 + $0x438] sm:$0xf]
        %v1065 = vld [vmem:[%s595 + $0x43c] sm:$0xf]
        %v1066 = vld [vmem:[%s595 + $0x440] sm:$0xf]
        %v1067 = vld [vmem:[%s595 + $0x444] sm:$0xf]
        %v1068 = vld [vmem:[%s595 + $0x448] sm:$0xf]
        %v1069 = vld [vmem:[%s595 + $0x44c] sm:$0xf]
        %v1070 = vld [vmem:[%s595 + $0x450] sm:$0xf]
        %v1071 = vld [vmem:[%s595 + $0x454] sm:$0xf]
        %v1072 = vld [vmem:[%s595 + $0x458] sm:$0xf]
        %v1073 = vld [vmem:[%s595 + $0x45c] sm:$0xf]
        %v1074 = vld [vmem:[%s595 + $0x460] sm:$0xf]
        %v1075 = vld [vmem:[%s595 + $0x464] sm:$0xf]
        %v1076 = vld [vmem:[%s595 + $0x468] sm:$0xf]
        %v1077 = vld [vmem:[%s595 + $0x46c] sm:$0xf]
        %v1078 = vld [vmem:[%s595 + $0x470] sm:$0xf]
        %v1079 = vld [vmem:[%s595 + $0x474] sm:$0xf]
        %v1080 = vld [vmem:[%s595 + $0x478] sm:$0xf]
        %v1081 = vld [vmem:[%s595 + $0x47c] sm:$0xf]
        %v1082 = vld [vmem:[%s595 + $0x480] sm:$0xf]
        %v1083 = vld [vmem:[%s595 + $0x484] sm:$0xf]
        %v1084 = vld [vmem:[%s595 + $0x488] sm:$0xf]
        %v1085 = vld [vmem:[%s595 + $0x48c] sm:$0xf]
        %v1086 = vld [vmem:[%s595 + $0x490] sm:$0xf]
        %v1087 = vld [vmem:[%s595 + $0x494] sm:$0xf]
        %v1088 = vld [vmem:[%s595 + $0x498] sm:$0xf]
        %v1089 = vld [vmem:[%s595 + $0x49c] sm:$0xf]
        %v1090 = vld [vmem:[%s595 + $0x4a0] sm:$0xf]
        %v1091 = vld [vmem:[%s595 + $0x4a4] sm:$0xf]
        %v1092 = vld [vmem:[%s595 + $0x4a8] sm:$0xf]
        %v1093 = vld [vmem:[%s595 + $0x4ac] sm:$0xf]
        %v1094 = vld [vmem:[%s595 + $0x4b0] sm:$0xf]
        %v1095 = vld [vmem:[%s595 + $0x4b4] sm:$0xf]
        %v1096 = vld [vmem:[%s595 + $0x4b8] sm:$0xf]
        %v1097 = vld [vmem:[%s595 + $0x4bc] sm:$0xf]
        %v1098 = vld [vmem:[%s595 + $0x4c0] sm:$0xf]
        %v1099 = vld [vmem:[%s595 + $0x4c4] sm:$0xf]
        %v1100 = vld [vmem:[%s595 + $0x4c8] sm:$0xf]
        %v1101 = vld [vmem:[%s595 + $0x4cc] sm:$0xf]
        %v1102 = vld [vmem:[%s595 + $0x4d0] sm:$0xf]
        %v1103 = vld [vmem:[%s595 + $0x4d4] sm:$0xf]
        %v1104 = vld [vmem:[%s595 + $0x4d8] sm:$0xf]
        %v1105 = vld [vmem:[%s595 + $0x4dc] sm:$0xf]
        %v1106 = vld [vmem:[%s595 + $0x4e0] sm:$0xf]
        %v1107 = vld [vmem:[%s595 + $0x4e4] sm:$0xf]
        %v1108 = vld [vmem:[%s595 + $0x4e8] sm:$0xf]
        %v1109 = vld [vmem:[%s595 + $0x4ec] sm:$0xf]
        %v1110 = vld [vmem:[%s595 + $0x4f0] sm:$0xf]
        %v1111 = vld [vmem:[%s595 + $0x4f4] sm:$0xf]
        %v1112 = vld [vmem:[%s595 + $0x4f8] sm:$0xf]
        %v1113 = vld [vmem:[%s595 + $0x4fc] sm:$0xf]
        %v1114 = vld [vmem:[%s595 + $0x500] sm:$0xf]
        %v1115 = vld [vmem:[%s595 + $0x504] sm:$0xf]
        %v1116 = vld [vmem:[%s595 + $0x508] sm:$0xf]
        %v1117 = vld [vmem:[%s595 + $0x50c] sm:$0xf]
        %v1118 = vld [vmem:[%s595 + $0x510] sm:$0xf]
        %v1119 = vld [vmem:[%s595 + $0x514] sm:$0xf]
        %v1120 = vld [vmem:[%s595 + $0x518] sm:$0xf]
        %v1121 = vld [vmem:[%s595 + $0x51c] sm:$0xf]
        %v1122 = vld [vmem:[%s595 + $0x520] sm:$0xf]
        %v1123 = vld [vmem:[%s595 + $0x524] sm:$0xf]
        %v1124 = vld [vmem:[%s595 + $0x528] sm:$0xf]
        %v1125 = vld [vmem:[%s595 + $0x52c] sm:$0xf]
        %v1126 = vld [vmem:[%s595 + $0x530] sm:$0xf]
        %v1127 = vld [vmem:[%s595 + $0x534] sm:$0xf]
        %v1128 = vld [vmem:[%s595 + $0x538] sm:$0xf]
        %v1129 = vld [vmem:[%s595 + $0x53c] sm:$0xf]
        %v1130 = vld [vmem:[%s595 + $0x540] sm:$0xf]
        %v1131 = vld [vmem:[%s595 + $0x544] sm:$0xf]
        %v1132 = vld [vmem:[%s595 + $0x548] sm:$0xf]
        %v1133 = vld [vmem:[%s595 + $0x54c] sm:$0xf]
        %v1134 = vld [vmem:[%s595 + $0x550] sm:$0xf]
        %v1135 = vld [vmem:[%s595 + $0x554] sm:$0xf]
        %v1136 = vld [vmem:[%s595 + $0x558] sm:$0xf]
        %v1137 = vld [vmem:[%s595 + $0x55c] sm:$0xf]
        %v1138 = vld [vmem:[%s595 + $0x560] sm:$0xf]
        %v1139 = vld [vmem:[%s595 + $0x564] sm:$0xf]
        %v1140 = vld [vmem:[%s595 + $0x568] sm:$0xf]
        %v1141 = vld [vmem:[%s595 + $0x56c] sm:$0xf]
        %v1142 = vld [vmem:[%s595 + $0x570] sm:$0xf]
        %v1143 = vld [vmem:[%s595 + $0x574] sm:$0xf]
        %v1144 = vld [vmem:[%s595 + $0x578] sm:$0xf]
        %v1145 = vld [vmem:[%s595 + $0x57c] sm:$0xf]
        %v1146 = vld [vmem:[%s595 + $0x580] sm:$0xf]
        %v1147 = vld [vmem:[%s595 + $0x584] sm:$0xf]
        %v1148 = vld [vmem:[%s595 + $0x588] sm:$0xf]
        %v1149 = vld [vmem:[%s595 + $0x58c] sm:$0xf]
        %v1150 = vld [vmem:[%s595 + $0x590] sm:$0xf]
        %v1151 = vld [vmem:[%s595 + $0x594] sm:$0xf]
        %v1152 = vld [vmem:[%s595 + $0x598] sm:$0xf]
        %v1153 = vld [vmem:[%s595 + $0x59c] sm:$0xf]
        %v1154 = vld [vmem:[%s595 + $0x5a0] sm:$0xf]
        %v1155 = vld [vmem:[%s595 + $0x5a4] sm:$0xf]
        %v1156 = vld [vmem:[%s595 + $0x5a8] sm:$0xf]
        %v1157 = vld [vmem:[%s595 + $0x5ac] sm:$0xf]
        %v1158 = vld [vmem:[%s595 + $0x5b0] sm:$0xf]
        %v1159 = vld [vmem:[%s595 + $0x5b4] sm:$0xf]
        %v1160 = vld [vmem:[%s595 + $0x5b8] sm:$0xf]
        %v1161 = vld [vmem:[%s595 + $0x5bc] sm:$0xf]
        %v1162 = vld [vmem:[%s595 + $0x5c0] sm:$0xf]
        %v1163 = vld [vmem:[%s595 + $0x5c4] sm:$0xf]
        %v1164 = vld [vmem:[%s595 + $0x5c8] sm:$0xf]
        %v1165 = vld [vmem:[%s595 + $0x5cc] sm:$0xf]
        %v1166 = vld [vmem:[%s595 + $0x5d0] sm:$0xf]
        %v1167 = vld [vmem:[%s595 + $0x5d4] sm:$0xf]
        %v1168 = vld [vmem:[%s595 + $0x5d8] sm:$0xf]
        %v1169 = vld [vmem:[%s595 + $0x5dc] sm:$0xf]
        %v1170 = vld [vmem:[%s595 + $0x5e0] sm:$0xf]
        %v1171 = vld [vmem:[%s595 + $0x5e4] sm:$0xf]
        %v1172 = vld [vmem:[%s595 + $0x5e8] sm:$0xf]
        %v1173 = vld [vmem:[%s595 + $0x5ec] sm:$0xf]
        %v1174 = vld [vmem:[%s595 + $0x5f0] sm:$0xf]
        %v1175 = vld [vmem:[%s595 + $0x5f4] sm:$0xf]
        %v1176 = vld [vmem:[%s595 + $0x5f8] sm:$0xf]
        %v1177 = vld [vmem:[%s595 + $0x5fc] sm:$0xf]
        %v1178 = vld [vmem:[%s595 + $0x600] sm:$0xf]
        %v1179 = vld [vmem:[%s595 + $0x604] sm:$0xf]
        %v1180 = vld [vmem:[%s595 + $0x608] sm:$0xf]
        %v1181 = vld [vmem:[%s595 + $0x60c] sm:$0xf]
        %v1182 = vld [vmem:[%s595 + $0x610] sm:$0xf]
        %v1183 = vld [vmem:[%s595 + $0x614] sm:$0xf]
        %v1184 = vld [vmem:[%s595 + $0x618] sm:$0xf]
        %v1185 = vld [vmem:[%s595 + $0x61c] sm:$0xf]
        %v1186 = vld [vmem:[%s595 + $0x620] sm:$0xf]
        %v1187 = vld [vmem:[%s595 + $0x624] sm:$0xf]
        %v1188 = vld [vmem:[%s595 + $0x628] sm:$0xf]
        %v1189 = vld [vmem:[%s595 + $0x62c] sm:$0xf]
        %v1190 = vld [vmem:[%s595 + $0x630] sm:$0xf]
        %v1191 = vld [vmem:[%s595 + $0x634] sm:$0xf]
        %v1192 = vld [vmem:[%s595 + $0x638] sm:$0xf]
        %v1193 = vld [vmem:[%s595 + $0x63c] sm:$0xf]
        %v1194 = vld [vmem:[%s595 + $0x640] sm:$0xf]
        %v1195 = vld [vmem:[%s595 + $0x644] sm:$0xf]
        %v1196 = vld [vmem:[%s595 + $0x648] sm:$0xf]
        %v1197 = vld [vmem:[%s595 + $0x64c] sm:$0xf]
        %v1198 = vld [vmem:[%s595 + $0x650] sm:$0xf]
        %v1199 = vld [vmem:[%s595 + $0x654] sm:$0xf]
        %v1200 = vld [vmem:[%s595 + $0x658] sm:$0xf]
        %v1201 = vld [vmem:[%s595 + $0x65c] sm:$0xf]
        %v1202 = vld [vmem:[%s595 + $0x660] sm:$0xf]
        %v1203 = vld [vmem:[%s595 + $0x664] sm:$0xf]
        %v1204 = vld [vmem:[%s595 + $0x668] sm:$0xf]
        %v1205 = vld [vmem:[%s595 + $0x66c] sm:$0xf]
        %v1206 = vld [vmem:[%s595 + $0x670] sm:$0xf]
        %v1207 = vld [vmem:[%s595 + $0x674] sm:$0xf]
        %v1208 = vld [vmem:[%s595 + $0x678] sm:$0xf]
        %v1209 = vld [vmem:[%s595 + $0x67c] sm:$0xf]
        %v1210 = vld [vmem:[%s595 + $0x680] sm:$0xf]
        %v1211 = vld [vmem:[%s595 + $0x684] sm:$0xf]
        %v1212 = vld [vmem:[%s595 + $0x688] sm:$0xf]
        %v1213 = vld [vmem:[%s595 + $0x68c] sm:$0xf]
        %v1214 = vld [vmem:[%s595 + $0x690] sm:$0xf]
        %v1215 = vld [vmem:[%s595 + $0x694] sm:$0xf]
        %v1216 = vld [vmem:[%s595 + $0x698] sm:$0xf]
        %v1217 = vld [vmem:[%s595 + $0x69c] sm:$0xf]
        %v1218 = vld [vmem:[%s595 + $0x6a0] sm:$0xf]
        %v1219 = vld [vmem:[%s595 + $0x6a4] sm:$0xf]
        %v1220 = vld [vmem:[%s595 + $0x6a8] sm:$0xf]
        %v1221 = vld [vmem:[%s595 + $0x6ac] sm:$0xf]
        %v1222 = vld [vmem:[%s595 + $0x6b0] sm:$0xf]
        %v1223 = vld [vmem:[%s595 + $0x6b4] sm:$0xf]
        %v1224 = vld [vmem:[%s595 + $0x6b8] sm:$0xf]
        %v1225 = vld [vmem:[%s595 + $0x6bc] sm:$0xf]
        %v1394 = vunpack.c.l.b16 %v626
        %v1395 = vunpack.c.h.b16 %v626
        %v1396 = vunpack.c.l.b16 %v627
        %v1397 = vunpack.c.h.b16 %v627
        %v1398 = vunpack.c.l.b16 %v628
        %v1399 = vunpack.c.h.b16 %v628
        %v1400 = vunpack.c.l.b16 %v629
        %v1401 = vunpack.c.h.b16 %v629
        %v1402 = vunpack.c.l.b16 %v630
        %v1403 = vunpack.c.h.b16 %v630
        %v1404 = vunpack.c.l.b16 %v631
        %v1405 = vunpack.c.h.b16 %v631
        %v1406 = vunpack.c.l.b16 %v632
        %v1407 = vunpack.c.h.b16 %v632
        %v1408 = vunpack.c.l.b16 %v633
        %v1409 = vunpack.c.h.b16 %v633
        %v1410 = vunpack.c.l.b16 %v634
        %v1411 = vunpack.c.h.b16 %v634
        %v1412 = vunpack.c.l.b16 %v635
        %v1413 = vunpack.c.h.b16 %v635
        %v1414 = vunpack.c.l.b16 %v636
        %v1415 = vunpack.c.h.b16 %v636
        %v1416 = vunpack.c.l.b16 %v637
        %v1417 = vunpack.c.h.b16 %v637
        %v1418 = vunpack.c.l.b16 %v638
        %v1419 = vunpack.c.h.b16 %v638
        %v1420 = vunpack.c.l.b16 %v639
        %v1421 = vunpack.c.l.b16 %v640
        %v1422 = vunpack.c.h.b16 %v640
        %v1423 = vunpack.c.l.b16 %v641
        %v1424 = vunpack.c.h.b16 %v641
        %v1425 = vunpack.c.l.b16 %v642
        %v1426 = vunpack.c.h.b16 %v642
        %v1427 = vunpack.c.l.b16 %v643
        %v1428 = vunpack.c.h.b16 %v643
        %v1429 = vunpack.c.l.b16 %v644
        %v1430 = vunpack.c.h.b16 %v644
        %v1431 = vunpack.c.l.b16 %v645
        %v1432 = vunpack.c.h.b16 %v645
        %v1433 = vunpack.c.l.b16 %v646
        %v1434 = vunpack.c.h.b16 %v646
        %v1435 = vunpack.c.l.b16 %v647
        %v1436 = vunpack.c.h.b16 %v647
        %v1437 = vunpack.c.l.b16 %v648
        %v1438 = vunpack.c.h.b16 %v648
        %v1439 = vunpack.c.l.b16 %v649
        %v1440 = vunpack.c.h.b16 %v649
        %v1441 = vunpack.c.l.b16 %v650
        %v1442 = vunpack.c.h.b16 %v650
        %v1443 = vunpack.c.l.b16 %v651
        %v1444 = vunpack.c.h.b16 %v651
        %v1445 = vunpack.c.l.b16 %v652
        %v1446 = vunpack.c.h.b16 %v652
        %v1447 = vunpack.c.l.b16 %v653
        %v1448 = vunpack.c.l.b16 %v654
        %v1449 = vunpack.c.h.b16 %v654
        %v1450 = vunpack.c.l.b16 %v655
        %v1451 = vunpack.c.h.b16 %v655
        %v1452 = vunpack.c.l.b16 %v656
        %v1453 = vunpack.c.h.b16 %v656
        %v1454 = vunpack.c.l.b16 %v657
        %v1455 = vunpack.c.h.b16 %v657
        %v1456 = vunpack.c.l.b16 %v658
        %v1457 = vunpack.c.h.b16 %v658
        %v1458 = vunpack.c.l.b16 %v659
        %v1459 = vunpack.c.h.b16 %v659
        %v1460 = vunpack.c.l.b16 %v660
        %v1461 = vunpack.c.h.b16 %v660
        %v1462 = vunpack.c.l.b16 %v661
        %v1463 = vunpack.c.h.b16 %v661
        %v1464 = vunpack.c.l.b16 %v662
        %v1465 = vunpack.c.h.b16 %v662
        %v1466 = vunpack.c.l.b16 %v663
        %v1467 = vunpack.c.h.b16 %v663
        %v1468 = vunpack.c.l.b16 %v664
        %v1469 = vunpack.c.h.b16 %v664
        %v1470 = vunpack.c.l.b16 %v665
        %v1471 = vunpack.c.h.b16 %v665
        %v1472 = vunpack.c.l.b16 %v666
        %v1473 = vunpack.c.h.b16 %v666
        %v1474 = vunpack.c.l.b16 %v667
        %v1475 = vunpack.c.l.b16 %v668
        %v1476 = vunpack.c.h.b16 %v668
        %v1477 = vunpack.c.l.b16 %v669
        %v1478 = vunpack.c.h.b16 %v669
        %v1479 = vunpack.c.l.b16 %v670
        %v1480 = vunpack.c.h.b16 %v670
        %v1481 = vunpack.c.l.b16 %v671
        %v1482 = vunpack.c.h.b16 %v671
        %v1483 = vunpack.c.l.b16 %v672
        %v1484 = vunpack.c.h.b16 %v672
        %v1485 = vunpack.c.l.b16 %v673
        %v1486 = vunpack.c.h.b16 %v673
        %v1487 = vunpack.c.l.b16 %v674
        %v1488 = vunpack.c.h.b16 %v674
        %v1489 = vunpack.c.l.b16 %v675
        %v1490 = vunpack.c.h.b16 %v675
        %v1491 = vunpack.c.l.b16 %v676
        %v1492 = vunpack.c.h.b16 %v676
        %v1493 = vunpack.c.l.b16 %v677
        %v1494 = vunpack.c.h.b16 %v677
        %v1495 = vunpack.c.l.b16 %v678
        %v1496 = vunpack.c.h.b16 %v678
        %v1497 = vunpack.c.l.b16 %v679
        %v1498 = vunpack.c.h.b16 %v679
        %v1499 = vunpack.c.l.b16 %v680
        %v1500 = vunpack.c.h.b16 %v680
        %v1501 = vunpack.c.l.b16 %v681
        %v1502 = vunpack.c.l.b16 %v682
        %v1503 = vunpack.c.h.b16 %v682
        %v1504 = vunpack.c.l.b16 %v683
        %v1505 = vunpack.c.h.b16 %v683
        %v1506 = vunpack.c.l.b16 %v684
        %v1507 = vunpack.c.h.b16 %v684
        %v1508 = vunpack.c.l.b16 %v685
        %v1509 = vunpack.c.h.b16 %v685
        %v1510 = vunpack.c.l.b16 %v686
        %v1511 = vunpack.c.h.b16 %v686
        %v1512 = vunpack.c.l.b16 %v687
        %v1513 = vunpack.c.h.b16 %v687
        %v1514 = vunpack.c.l.b16 %v688
        %v1515 = vunpack.c.h.b16 %v688
        %v1516 = vunpack.c.l.b16 %v689
        %v1517 = vunpack.c.h.b16 %v689
        %v1518 = vunpack.c.l.b16 %v690
        %v1519 = vunpack.c.h.b16 %v690
        %v1520 = vunpack.c.l.b16 %v691
        %v1521 = vunpack.c.h.b16 %v691
        %v1522 = vunpack.c.l.b16 %v692
        %v1523 = vunpack.c.h.b16 %v692
        %v1524 = vunpack.c.l.b16 %v693
        %v1525 = vunpack.c.h.b16 %v693
        %v1526 = vunpack.c.l.b16 %v694
        %v1527 = vunpack.c.h.b16 %v694
        %v1528 = vunpack.c.l.b16 %v695
        %v1529 = vunpack.c.l.b16 %v696
        %v1530 = vunpack.c.h.b16 %v696
        %v1531 = vunpack.c.l.b16 %v697
        %v1532 = vunpack.c.h.b16 %v697
        %v1533 = vunpack.c.l.b16 %v698
        %v1534 = vunpack.c.h.b16 %v698
        %v1535 = vunpack.c.l.b16 %v699
        %v1536 = vunpack.c.h.b16 %v699
        %v1537 = vunpack.c.l.b16 %v700
        %v1538 = vunpack.c.h.b16 %v700
        %v1539 = vunpack.c.l.b16 %v701
        %v1540 = vunpack.c.h.b16 %v701
        %v1541 = vunpack.c.l.b16 %v702
        %v1542 = vunpack.c.h.b16 %v702
        %v1543 = vunpack.c.l.b16 %v703
        %v1544 = vunpack.c.h.b16 %v703
        %v1545 = vunpack.c.l.b16 %v704
        %v1546 = vunpack.c.h.b16 %v704
        %v1547 = vunpack.c.l.b16 %v705
        %v1548 = vunpack.c.h.b16 %v705
        %v1549 = vunpack.c.l.b16 %v706
        %v1550 = vunpack.c.h.b16 %v706
        %v1551 = vunpack.c.l.b16 %v707
        %v1552 = vunpack.c.h.b16 %v707
        %v1553 = vunpack.c.l.b16 %v708
        %v1554 = vunpack.c.h.b16 %v708
        %v1555 = vunpack.c.l.b16 %v709
        %v1556 = vunpack.c.l.b16 %v710
        %v1557 = vunpack.c.h.b16 %v710
        %v1558 = vunpack.c.l.b16 %v711
        %v1559 = vunpack.c.h.b16 %v711
        %v1560 = vunpack.c.l.b16 %v712
        %v1561 = vunpack.c.h.b16 %v712
        %v1562 = vunpack.c.l.b16 %v713
        %v1563 = vunpack.c.h.b16 %v713
        %v1564 = vunpack.c.l.b16 %v714
        %v1565 = vunpack.c.h.b16 %v714
        %v1566 = vunpack.c.l.b16 %v715
        %v1567 = vunpack.c.h.b16 %v715
        %v1568 = vunpack.c.l.b16 %v716
        %v1569 = vunpack.c.h.b16 %v716
        %v1570 = vunpack.c.l.b16 %v717
        %v1571 = vunpack.c.h.b16 %v717
        %v1572 = vunpack.c.l.b16 %v718
        %v1573 = vunpack.c.h.b16 %v718
        %v1574 = vunpack.c.l.b16 %v719
        %v1575 = vunpack.c.h.b16 %v719
        %v1576 = vunpack.c.l.b16 %v720
        %v1577 = vunpack.c.h.b16 %v720
        %v1578 = vunpack.c.l.b16 %v721
        %v1579 = vunpack.c.h.b16 %v721
        %v1580 = vunpack.c.l.b16 %v722
        %v1581 = vunpack.c.h.b16 %v722
        %v1582 = vunpack.c.l.b16 %v723
        %v1583 = vunpack.c.l.b16 %v724
        %v1584 = vunpack.c.h.b16 %v724
        %v1585 = vunpack.c.l.b16 %v725
        %v1586 = vunpack.c.h.b16 %v725
        %v1587 = vunpack.c.l.b16 %v726
        %v1588 = vunpack.c.h.b16 %v726
        %v1589 = vunpack.c.l.b16 %v727
        %v1590 = vunpack.c.h.b16 %v727
        %v1591 = vunpack.c.l.b16 %v728
        %v1592 = vunpack.c.h.b16 %v728
        %v1593 = vunpack.c.l.b16 %v729
        %v1594 = vunpack.c.h.b16 %v729
        %v1595 = vunpack.c.l.b16 %v730
        %v1596 = vunpack.c.h.b16 %v730
        %v1597 = vunpack.c.l.b16 %v731
        %v1598 = vunpack.c.h.b16 %v731
        %v1599 = vunpack.c.l.b16 %v732
        %v1600 = vunpack.c.h.b16 %v732
        %v1601 = vunpack.c.l.b16 %v733
        %v1602 = vunpack.c.h.b16 %v733
        %v1603 = vunpack.c.l.b16 %v734
        %v1604 = vunpack.c.h.b16 %v734
        %v1605 = vunpack.c.l.b16 %v735
        %v1606 = vunpack.c.h.b16 %v735
        %v1607 = vunpack.c.l.b16 %v736
        %v1608 = vunpack.c.h.b16 %v736
        %v1609 = vunpack.c.l.b16 %v737
        %v1610 = vunpack.c.l.b16 %v738
        %v1611 = vunpack.c.h.b16 %v738
        %v1612 = vunpack.c.l.b16 %v739
        %v1613 = vunpack.c.h.b16 %v739
        %v1614 = vunpack.c.l.b16 %v740
        %v1615 = vunpack.c.h.b16 %v740
        %v1616 = vunpack.c.l.b16 %v741
        %v1617 = vunpack.c.h.b16 %v741
        %v1618 = vunpack.c.l.b16 %v742
        %v1619 = vunpack.c.h.b16 %v742
        %v1620 = vunpack.c.l.b16 %v743
        %v1621 = vunpack.c.h.b16 %v743
        %v1622 = vunpack.c.l.b16 %v744
        %v1623 = vunpack.c.h.b16 %v744
        %v1624 = vunpack.c.l.b16 %v745
        %v1625 = vunpack.c.h.b16 %v745
        %v1626 = vunpack.c.l.b16 %v746
        %v1627 = vunpack.c.h.b16 %v746
        %v1628 = vunpack.c.l.b16 %v747
        %v1629 = vunpack.c.h.b16 %v747
        %v1630 = vunpack.c.l.b16 %v748
        %v1631 = vunpack.c.h.b16 %v748
        %v1632 = vunpack.c.l.b16 %v749
        %v1633 = vunpack.c.h.b16 %v749
        %v1634 = vunpack.c.l.b16 %v750
        %v1635 = vunpack.c.h.b16 %v750
        %v1636 = vunpack.c.l.b16 %v751
        %v1637 = vunpack.c.l.b16 %v752
        %v1638 = vunpack.c.h.b16 %v752
        %v1639 = vunpack.c.l.b16 %v753
        %v1640 = vunpack.c.h.b16 %v753
        %v1641 = vunpack.c.l.b16 %v754
        %v1642 = vunpack.c.h.b16 %v754
        %v1643 = vunpack.c.l.b16 %v755
        %v1644 = vunpack.c.h.b16 %v755
        %v1645 = vunpack.c.l.b16 %v756
        %v1646 = vunpack.c.h.b16 %v756
        %v1647 = vunpack.c.l.b16 %v757
        %v1648 = vunpack.c.h.b16 %v757
        %v1649 = vunpack.c.l.b16 %v758
        %v1650 = vunpack.c.h.b16 %v758
        %v1651 = vunpack.c.l.b16 %v759
        %v1652 = vunpack.c.h.b16 %v759
        %v1653 = vunpack.c.l.b16 %v760
        %v1654 = vunpack.c.h.b16 %v760
        %v1655 = vunpack.c.l.b16 %v761
        %v1656 = vunpack.c.h.b16 %v761
        %v1657 = vunpack.c.l.b16 %v762
        %v1658 = vunpack.c.h.b16 %v762
        %v1659 = vunpack.c.l.b16 %v763
        %v1660 = vunpack.c.h.b16 %v763
        %v1661 = vunpack.c.l.b16 %v764
        %v1662 = vunpack.c.h.b16 %v764
        %v1663 = vunpack.c.l.b16 %v765
        %v1664 = vunpack.c.l.b16 %v766
        %v1665 = vunpack.c.h.b16 %v766
        %v1666 = vunpack.c.l.b16 %v767
        %v1667 = vunpack.c.h.b16 %v767
        %v1668 = vunpack.c.l.b16 %v768
        %v1669 = vunpack.c.h.b16 %v768
        %v1670 = vunpack.c.l.b16 %v769
        %v1671 = vunpack.c.h.b16 %v769
        %v1672 = vunpack.c.l.b16 %v770
        %v1673 = vunpack.c.h.b16 %v770
        %v1674 = vunpack.c.l.b16 %v771
        %v1675 = vunpack.c.h.b16 %v771
        %v1676 = vunpack.c.l.b16 %v772
        %v1677 = vunpack.c.h.b16 %v772
        %v1678 = vunpack.c.l.b16 %v773
        %v1679 = vunpack.c.h.b16 %v773
        %v1680 = vunpack.c.l.b16 %v774
        %v1681 = vunpack.c.h.b16 %v774
        %v1682 = vunpack.c.l.b16 %v775
        %v1683 = vunpack.c.h.b16 %v775
        %v1684 = vunpack.c.l.b16 %v776
        %v1685 = vunpack.c.h.b16 %v776
        %v1686 = vunpack.c.l.b16 %v777
        %v1687 = vunpack.c.h.b16 %v777
        %v1688 = vunpack.c.l.b16 %v778
        %v1689 = vunpack.c.h.b16 %v778
        %v1690 = vunpack.c.l.b16 %v779
        %v1691 = vunpack.c.l.b16 %v780
        %v1692 = vunpack.c.h.b16 %v780
        %v1693 = vunpack.c.l.b16 %v781
        %v1694 = vunpack.c.h.b16 %v781
        %v1695 = vunpack.c.l.b16 %v782
        %v1696 = vunpack.c.h.b16 %v782
        %v1697 = vunpack.c.l.b16 %v783
        %v1698 = vunpack.c.h.b16 %v783
        %v1699 = vunpack.c.l.b16 %v784
        %v1700 = vunpack.c.h.b16 %v784
        %v1701 = vunpack.c.l.b16 %v785
        %v1702 = vunpack.c.h.b16 %v785
        %v1703 = vunpack.c.l.b16 %v786
        %v1704 = vunpack.c.h.b16 %v786
        %v1705 = vunpack.c.l.b16 %v787
        %v1706 = vunpack.c.h.b16 %v787
        %v1707 = vunpack.c.l.b16 %v788
        %v1708 = vunpack.c.h.b16 %v788
        %v1709 = vunpack.c.l.b16 %v789
        %v1710 = vunpack.c.h.b16 %v789
        %v1711 = vunpack.c.l.b16 %v790
        %v1712 = vunpack.c.h.b16 %v790
        %v1713 = vunpack.c.l.b16 %v791
        %v1714 = vunpack.c.h.b16 %v791
        %v1715 = vunpack.c.l.b16 %v792
        %v1716 = vunpack.c.h.b16 %v792
        %v1717 = vunpack.c.l.b16 %v793
        %v1718 = vpack.c.b16 %v1421, %v1394
        %v1719 = vpack.c.b16 %v1422, %v1395
        %v1720 = vpack.c.b16 %v1423, %v1396
        %v1721 = vpack.c.b16 %v1424, %v1397
        %v1722 = vpack.c.b16 %v1425, %v1398
        %v1723 = vpack.c.b16 %v1426, %v1399
        %v1724 = vpack.c.b16 %v1427, %v1400
        %v1725 = vpack.c.b16 %v1428, %v1401
        %v1726 = vpack.c.b16 %v1429, %v1402
        %v1727 = vpack.c.b16 %v1430, %v1403
        %v1728 = vpack.c.b16 %v1431, %v1404
        %v1729 = vpack.c.b16 %v1432, %v1405
        %v1730 = vpack.c.b16 %v1433, %v1406
        %v1731 = vpack.c.b16 %v1434, %v1407
        %v1732 = vpack.c.b16 %v1435, %v1408
        %v1733 = vpack.c.b16 %v1436, %v1409
        %v1734 = vpack.c.b16 %v1437, %v1410
        %v1735 = vpack.c.b16 %v1438, %v1411
        %v1736 = vpack.c.b16 %v1439, %v1412
        %v1737 = vpack.c.b16 %v1440, %v1413
        %v1738 = vpack.c.b16 %v1441, %v1414
        %v1739 = vpack.c.b16 %v1442, %v1415
        %v1740 = vpack.c.b16 %v1443, %v1416
        %v1741 = vpack.c.b16 %v1444, %v1417
        %v1742 = vpack.c.b16 %v1445, %v1418
        %v1743 = vpack.c.b16 %v1446, %v1419
        %v1744 = vpack.c.b16 %v1447, %v1420
        %v1745 = vpack.c.b16 %v1475, %v1448
        %v1746 = vpack.c.b16 %v1476, %v1449
        %v1747 = vpack.c.b16 %v1477, %v1450
        %v1748 = vpack.c.b16 %v1478, %v1451
        %v1749 = vpack.c.b16 %v1479, %v1452
        %v1750 = vpack.c.b16 %v1480, %v1453
        %v1751 = vpack.c.b16 %v1481, %v1454
        %v1752 = vpack.c.b16 %v1482, %v1455
        %v1753 = vpack.c.b16 %v1483, %v1456
        %v1754 = vpack.c.b16 %v1484, %v1457
        %v1755 = vpack.c.b16 %v1485, %v1458
        %v1756 = vpack.c.b16 %v1486, %v1459
        %v1757 = vpack.c.b16 %v1487, %v1460
        %v1758 = vpack.c.b16 %v1488, %v1461
        %v1759 = vpack.c.b16 %v1489, %v1462
        %v1760 = vpack.c.b16 %v1490, %v1463
        %v1761 = vpack.c.b16 %v1491, %v1464
        %v1762 = vpack.c.b16 %v1492, %v1465
        %v1763 = vpack.c.b16 %v1493, %v1466
        %v1764 = vpack.c.b16 %v1494, %v1467
        %v1765 = vpack.c.b16 %v1495, %v1468
        %v1766 = vpack.c.b16 %v1496, %v1469
        %v1767 = vpack.c.b16 %v1497, %v1470
        %v1768 = vpack.c.b16 %v1498, %v1471
        %v1769 = vpack.c.b16 %v1499, %v1472
        %v1770 = vpack.c.b16 %v1500, %v1473
        %v1771 = vpack.c.b16 %v1501, %v1474
        %v1772 = vpack.c.b16 %v1529, %v1502
        %v1773 = vpack.c.b16 %v1530, %v1503
        %v1774 = vpack.c.b16 %v1531, %v1504
        %v1775 = vpack.c.b16 %v1532, %v1505
        %v1776 = vpack.c.b16 %v1533, %v1506
        %v1777 = vpack.c.b16 %v1534, %v1507
        %v1778 = vpack.c.b16 %v1535, %v1508
        %v1779 = vpack.c.b16 %v1536, %v1509
        %v1780 = vpack.c.b16 %v1537, %v1510
        %v1781 = vpack.c.b16 %v1538, %v1511
        %v1782 = vpack.c.b16 %v1539, %v1512
        %v1783 = vpack.c.b16 %v1540, %v1513
        %v1784 = vpack.c.b16 %v1541, %v1514
        %v1785 = vpack.c.b16 %v1542, %v1515
        %v1786 = vpack.c.b16 %v1543, %v1516
        %v1787 = vpack.c.b16 %v1544, %v1517
        %v1788 = vpack.c.b16 %v1545, %v1518
        %v1789 = vpack.c.b16 %v1546, %v1519
        %v1790 = vpack.c.b16 %v1547, %v1520
        %v1791 = vpack.c.b16 %v1548, %v1521
        %v1792 = vpack.c.b16 %v1549, %v1522
        %v1793 = vpack.c.b16 %v1550, %v1523
        %v1794 = vpack.c.b16 %v1551, %v1524
        %v1795 = vpack.c.b16 %v1552, %v1525
        %v1796 = vpack.c.b16 %v1553, %v1526
        %v1797 = vpack.c.b16 %v1554, %v1527
        %v1798 = vpack.c.b16 %v1555, %v1528
        %v1799 = vpack.c.b16 %v1583, %v1556
        %v1800 = vpack.c.b16 %v1584, %v1557
        %v1801 = vpack.c.b16 %v1585, %v1558
        %v1802 = vpack.c.b16 %v1586, %v1559
        %v1803 = vpack.c.b16 %v1587, %v1560
        %v1804 = vpack.c.b16 %v1588, %v1561
        %v1805 = vpack.c.b16 %v1589, %v1562
        %v1806 = vpack.c.b16 %v1590, %v1563
        %v1807 = vpack.c.b16 %v1591, %v1564
        %v1808 = vpack.c.b16 %v1592, %v1565
        %v1809 = vpack.c.b16 %v1593, %v1566
        %v1810 = vpack.c.b16 %v1594, %v1567
        %v1811 = vpack.c.b16 %v1595, %v1568
        %v1812 = vpack.c.b16 %v1596, %v1569
        %v1813 = vpack.c.b16 %v1597, %v1570
        %v1814 = vpack.c.b16 %v1598, %v1571
        %v1815 = vpack.c.b16 %v1599, %v1572
        %v1816 = vpack.c.b16 %v1600, %v1573
        %v1817 = vpack.c.b16 %v1601, %v1574
        %v1818 = vpack.c.b16 %v1602, %v1575
        %v1819 = vpack.c.b16 %v1603, %v1576
        %v1820 = vpack.c.b16 %v1604, %v1577
        %v1821 = vpack.c.b16 %v1605, %v1578
        %v1822 = vpack.c.b16 %v1606, %v1579
        %v1823 = vpack.c.b16 %v1607, %v1580
        %v1824 = vpack.c.b16 %v1608, %v1581
        %v1825 = vpack.c.b16 %v1609, %v1582
        %v1826 = vpack.c.b16 %v1637, %v1610
        %v1827 = vpack.c.b16 %v1638, %v1611
        %v1828 = vpack.c.b16 %v1639, %v1612
        %v1829 = vpack.c.b16 %v1640, %v1613
        %v1830 = vpack.c.b16 %v1641, %v1614
        %v1831 = vpack.c.b16 %v1642, %v1615
        %v1832 = vpack.c.b16 %v1643, %v1616
        %v1833 = vpack.c.b16 %v1644, %v1617
        %v1834 = vpack.c.b16 %v1645, %v1618
        %v1835 = vpack.c.b16 %v1646, %v1619
        %v1836 = vpack.c.b16 %v1647, %v1620
        %v1837 = vpack.c.b16 %v1648, %v1621
        %v1838 = vpack.c.b16 %v1649, %v1622
        %v1839 = vpack.c.b16 %v1650, %v1623
        %v1840 = vpack.c.b16 %v1651, %v1624
        %v1841 = vpack.c.b16 %v1652, %v1625
        %v1842 = vpack.c.b16 %v1653, %v1626
        %v1843 = vpack.c.b16 %v1654, %v1627
        %v1844 = vpack.c.b16 %v1655, %v1628
        %v1845 = vpack.c.b16 %v1656, %v1629
        %v1846 = vpack.c.b16 %v1657, %v1630
        %v1847 = vpack.c.b16 %v1658, %v1631
        %v1848 = vpack.c.b16 %v1659, %v1632
        %v1849 = vpack.c.b16 %v1660, %v1633
        %v1850 = vpack.c.b16 %v1661, %v1634
        %v1851 = vpack.c.b16 %v1662, %v1635
        %v1852 = vpack.c.b16 %v1663, %v1636
        %v1853 = vpack.c.b16 %v1691, %v1664
        %v1854 = vpack.c.b16 %v1692, %v1665
        %v1855 = vpack.c.b16 %v1693, %v1666
        %v1856 = vpack.c.b16 %v1694, %v1667
        %v1857 = vpack.c.b16 %v1695, %v1668
        %v1858 = vpack.c.b16 %v1696, %v1669
        %v1859 = vpack.c.b16 %v1697, %v1670
        %v1860 = vpack.c.b16 %v1698, %v1671
        %v1861 = vpack.c.b16 %v1699, %v1672
        %v1862 = vpack.c.b16 %v1700, %v1673
        %v1863 = vpack.c.b16 %v1701, %v1674
        %v1864 = vpack.c.b16 %v1702, %v1675
        %v1865 = vpack.c.b16 %v1703, %v1676
        %v1866 = vpack.c.b16 %v1704, %v1677
        %v1867 = vpack.c.b16 %v1705, %v1678
        %v1868 = vpack.c.b16 %v1706, %v1679
        %v1869 = vpack.c.b16 %v1707, %v1680
        %v1870 = vpack.c.b16 %v1708, %v1681
        %v1871 = vpack.c.b16 %v1709, %v1682
        %v1872 = vpack.c.b16 %v1710, %v1683
        %v1873 = vpack.c.b16 %v1711, %v1684
        %v1874 = vpack.c.b16 %v1712, %v1685
        %v1875 = vpack.c.b16 %v1713, %v1686
        %v1876 = vpack.c.b16 %v1714, %v1687
        %v1877 = vpack.c.b16 %v1715, %v1688
        %v1878 = vpack.c.b16 %v1716, %v1689
        %v1879 = vpack.c.b16 %v1717, %v1690
        %v2474 = vunpack.c.l.b16 %v794
        %v2475 = vunpack.c.l.b16 %v795
        %v2476 = vunpack.c.l.b16 %v796
        %v2477 = vunpack.c.l.b16 %v797
        %v2478 = vunpack.c.l.b16 %v798
        %v2479 = vunpack.c.l.b16 %v799
        %v2480 = vunpack.c.l.b16 %v800
        %v2481 = vunpack.c.l.b16 %v801
        %v2482 = vunpack.c.l.b16 %v802
        %v2483 = vunpack.c.l.b16 %v803
        %v2484 = vunpack.c.l.b16 %v804
        %v2485 = vunpack.c.l.b16 %v805
        %v2486 = vunpack.c.l.b16 %v806
        %v2487 = vunpack.c.l.b16 %v807
        %v2488 = vunpack.c.l.b16 %v808
        %v2489 = vunpack.c.l.b16 %v809
        %v2490 = vunpack.c.l.b16 %v810
        %v2491 = vunpack.c.l.b16 %v811
        %v2492 = vunpack.c.l.b16 %v812
        %v2493 = vunpack.c.l.b16 %v813
        %v2494 = vunpack.c.l.b16 %v814
        %v2495 = vunpack.c.l.b16 %v815
        %v2496 = vunpack.c.l.b16 %v816
        %v2497 = vunpack.c.l.b16 %v817
        %v2498 = vunpack.c.l.b16 %v818
        %v2499 = vunpack.c.l.b16 %v819
        %v2500 = vunpack.c.l.b16 %v820
        %v2501 = vunpack.c.l.b16 %v821
        %v2502 = vunpack.c.l.b16 %v822
        %v2503 = vunpack.c.l.b16 %v823
        %v2504 = vunpack.c.l.b16 %v824
        %v2505 = vunpack.c.l.b16 %v825
        %v2506 = vunpack.c.l.b16 %v826
        %v2507 = vunpack.c.l.b16 %v827
        %v2508 = vunpack.c.l.b16 %v828
        %v2509 = vunpack.c.l.b16 %v829
        %v2510 = vunpack.c.l.b16 %v830
        %v2511 = vunpack.c.l.b16 %v831
        %v2512 = vunpack.c.l.b16 %v832
        %v2513 = vunpack.c.l.b16 %v833
        %v2514 = vunpack.c.l.b16 %v834
        %v2515 = vunpack.c.l.b16 %v835
        %v2516 = vunpack.c.l.b16 %v836
        %v2517 = vunpack.c.l.b16 %v837
        %v2518 = vunpack.c.l.b16 %v838
        %v2519 = vunpack.c.l.b16 %v839
        %v2520 = vunpack.c.l.b16 %v840
        %v2521 = vunpack.c.l.b16 %v841
        %v2522 = vunpack.c.l.b16 %v842
        %v2523 = vunpack.c.l.b16 %v843
        %v2524 = vunpack.c.l.b16 %v844
        %v2525 = vunpack.c.l.b16 %v845
        %v2526 = vunpack.c.l.b16 %v846
        %v2527 = vunpack.c.l.b16 %v847
        %v2528 = vunpack.c.l.b16 %v848
        %v2529 = vunpack.c.l.b16 %v849
        %v2530 = vunpack.c.l.b16 %v850
        %v2531 = vunpack.c.l.b16 %v851
        %v2532 = vunpack.c.l.b16 %v852
        %v2533 = vunpack.c.l.b16 %v853
        %v2534 = vunpack.c.l.b16 %v854
        %v2535 = vunpack.c.l.b16 %v855
        %v2536 = vunpack.c.l.b16 %v856
        %v2537 = vunpack.c.l.b16 %v857
        %v2538 = vunpack.c.l.b16 %v858
        %v2539 = vunpack.c.l.b16 %v859
        %v2540 = vunpack.c.l.b16 %v860
        %v2541 = vunpack.c.l.b16 %v861
        %v2542 = vunpack.c.l.b16 %v862
        %v2543 = vunpack.c.l.b16 %v863
        %v2544 = vunpack.c.l.b16 %v864
        %v2545 = vunpack.c.l.b16 %v865
        %v2546 = vunpack.c.l.b16 %v866
        %v2547 = vunpack.c.l.b16 %v867
        %v2548 = vunpack.c.l.b16 %v868
        %v2549 = vunpack.c.l.b16 %v869
        %v2550 = vunpack.c.l.b16 %v870
        %v2551 = vunpack.c.l.b16 %v871
        %v2552 = vunpack.c.l.b16 %v872
        %v2553 = vunpack.c.l.b16 %v873
        %v2554 = vunpack.c.l.b16 %v874
        %v2555 = vunpack.c.l.b16 %v875
        %v2556 = vunpack.c.l.b16 %v876
        %v2557 = vunpack.c.l.b16 %v877
        %v2558 = vunpack.c.l.b16 %v878
        %v2559 = vunpack.c.l.b16 %v879
        %v2560 = vunpack.c.l.b16 %v880
        %v2561 = vunpack.c.l.b16 %v881
        %v2562 = vunpack.c.l.b16 %v882
        %v2563 = vunpack.c.l.b16 %v883
        %v2564 = vunpack.c.l.b16 %v884
        %v2565 = vunpack.c.l.b16 %v885
        %v2566 = vunpack.c.l.b16 %v886
        %v2567 = vunpack.c.l.b16 %v887
        %v2568 = vunpack.c.l.b16 %v888
        %v2569 = vunpack.c.l.b16 %v889
        %v2570 = vunpack.c.l.b16 %v890
        %v2571 = vunpack.c.l.b16 %v891
        %v2572 = vunpack.c.l.b16 %v892
        %v2573 = vunpack.c.l.b16 %v893
        %v2574 = vunpack.c.l.b16 %v894
        %v2575 = vunpack.c.l.b16 %v895
        %v2576 = vunpack.c.l.b16 %v896
        %v2577 = vunpack.c.l.b16 %v897
        %v2578 = vunpack.c.l.b16 %v898
        %v2579 = vunpack.c.l.b16 %v899
        %v2580 = vunpack.c.l.b16 %v900
        %v2581 = vunpack.c.l.b16 %v901
        %v2582 = vunpack.c.l.b16 %v902
        %v2583 = vunpack.c.l.b16 %v903
        %v2584 = vunpack.c.l.b16 %v904
        %v2585 = vunpack.c.l.b16 %v905
        %v2586 = vunpack.c.l.b16 %v906
        %v2587 = vunpack.c.l.b16 %v907
        %v2588 = vunpack.c.l.b16 %v908
        %v2589 = vunpack.c.l.b16 %v909
        %v2590 = vunpack.c.l.b16 %v910
        %v2591 = vunpack.c.l.b16 %v911
        %v2592 = vunpack.c.l.b16 %v912
        %v2593 = vunpack.c.l.b16 %v913
        %v2594 = vunpack.c.l.b16 %v914
        %v2595 = vunpack.c.l.b16 %v915
        %v2596 = vunpack.c.l.b16 %v916
        %v2597 = vunpack.c.l.b16 %v917
        %v2598 = vunpack.c.l.b16 %v918
        %v2599 = vunpack.c.l.b16 %v919
        %v2600 = vunpack.c.l.b16 %v920
        %v2601 = vunpack.c.l.b16 %v921
        %v2602 = vunpack.c.l.b16 %v922
        %v2603 = vunpack.c.l.b16 %v923
        %v2604 = vunpack.c.l.b16 %v924
        %v2605 = vunpack.c.l.b16 %v925
        %v2606 = vunpack.c.l.b16 %v926
        %v2607 = vunpack.c.l.b16 %v927
        %v2608 = vunpack.c.l.b16 %v928
        %v2609 = vunpack.c.l.b16 %v929
        %v2610 = vunpack.c.l.b16 %v930
        %v2611 = vunpack.c.l.b16 %v931
        %v2612 = vunpack.c.l.b16 %v932
        %v2613 = vunpack.c.l.b16 %v933
        %v2614 = vunpack.c.l.b16 %v934
        %v2615 = vunpack.c.l.b16 %v935
        %v2616 = vunpack.c.l.b16 %v936
        %v2617 = vunpack.c.l.b16 %v937
        %v2618 = vunpack.c.l.b16 %v938
        %v2619 = vunpack.c.l.b16 %v939
        %v2620 = vunpack.c.l.b16 %v940
        %v2621 = vunpack.c.l.b16 %v941
        %v2622 = vunpack.c.l.b16 %v942
        %v2623 = vunpack.c.l.b16 %v943
        %v2624 = vunpack.c.l.b16 %v944
        %v2625 = vunpack.c.l.b16 %v945
        %v2626 = vunpack.c.l.b16 %v946
        %v2627 = vunpack.c.l.b16 %v947
        %v2628 = vunpack.c.l.b16 %v948
        %v2629 = vunpack.c.l.b16 %v949
        %v2630 = vunpack.c.l.b16 %v950
        %v2631 = vunpack.c.l.b16 %v951
        %v2632 = vunpack.c.l.b16 %v952
        %v2633 = vunpack.c.l.b16 %v953
        %v2634 = vunpack.c.l.b16 %v954
        %v2635 = vunpack.c.l.b16 %v955
        %v2636 = vunpack.c.l.b16 %v956
        %v2637 = vunpack.c.l.b16 %v957
        %v2638 = vunpack.c.l.b16 %v958
        %v2639 = vunpack.c.l.b16 %v959
        %v2640 = vunpack.c.l.b16 %v960
        %v2641 = vunpack.c.l.b16 %v961
        %v2642 = vunpack.c.l.b16 %v962
        %v2643 = vunpack.c.l.b16 %v963
        %v2644 = vunpack.c.l.b16 %v964
        %v2645 = vunpack.c.l.b16 %v965
        %v2646 = vunpack.c.l.b16 %v966
        %v2647 = vunpack.c.l.b16 %v967
        %v2648 = vunpack.c.l.b16 %v968
        %v2649 = vunpack.c.l.b16 %v969
        %v2650 = vunpack.c.l.b16 %v970
        %v2651 = vunpack.c.l.b16 %v971
        %v2652 = vunpack.c.l.b16 %v972
        %v2653 = vunpack.c.l.b16 %v973
        %v2654 = vunpack.c.l.b16 %v974
        %v2655 = vunpack.c.l.b16 %v975
        %v2656 = vunpack.c.l.b16 %v976
        %v2657 = vunpack.c.l.b16 %v977
        %v2658 = vunpack.c.l.b16 %v978
        %v2659 = vunpack.c.l.b16 %v979
        %v2660 = vunpack.c.l.b16 %v980
        %v2661 = vunpack.c.l.b16 %v981
        %v2662 = vunpack.c.l.b16 %v982
        %v2663 = vunpack.c.l.b16 %v983
        %v2664 = vunpack.c.l.b16 %v984
        %v2665 = vunpack.c.l.b16 %v985
        %v2666 = vunpack.c.l.b16 %v986
        %v2667 = vunpack.c.l.b16 %v987
        %v2668 = vunpack.c.l.b16 %v988
        %v2669 = vunpack.c.l.b16 %v989
        %v2670 = vunpack.c.l.b16 %v990
        %v2671 = vunpack.c.l.b16 %v991
        %v2672 = vunpack.c.l.b16 %v992
        %v2673 = vunpack.c.l.b16 %v993
        %v2674 = vunpack.c.l.b16 %v994
        %v2675 = vunpack.c.l.b16 %v995
        %v2676 = vunpack.c.l.b16 %v996
        %v2677 = vunpack.c.l.b16 %v997
        %v2678 = vunpack.c.l.b16 %v998
        %v2679 = vunpack.c.l.b16 %v999
        %v2680 = vunpack.c.l.b16 %v1000
        %v2681 = vunpack.c.l.b16 %v1001
        %v2682 = vunpack.c.l.b16 %v1002
        %v2683 = vunpack.c.l.b16 %v1003
        %v2684 = vunpack.c.l.b16 %v1004
        %v2685 = vunpack.c.l.b16 %v1005
        %v2686 = vunpack.c.l.b16 %v1006
        %v2687 = vunpack.c.l.b16 %v1007
        %v2688 = vunpack.c.l.b16 %v1008
        %v2689 = vunpack.c.l.b16 %v1009
        %v2690 = vunpack.c.l.b16 %v1010
        %v2691 = vunpack.c.l.b16 %v1011
        %v2692 = vunpack.c.l.b16 %v1012
        %v2693 = vunpack.c.l.b16 %v1013
        %v2694 = vunpack.c.l.b16 %v1014
        %v2695 = vunpack.c.l.b16 %v1015
        %v2696 = vunpack.c.l.b16 %v1016
        %v2697 = vunpack.c.l.b16 %v1017
        %v2698 = vunpack.c.l.b16 %v1018
        %v2699 = vunpack.c.l.b16 %v1019
        %v2700 = vunpack.c.l.b16 %v1020
        %v2701 = vunpack.c.l.b16 %v1021
        %v2702 = vunpack.c.l.b16 %v1022
        %v2703 = vunpack.c.l.b16 %v1023
        %v2704 = vunpack.c.l.b16 %v1024
        %v2705 = vunpack.c.l.b16 %v1025
        %v2706 = vunpack.c.l.b16 %v1026
        %v2707 = vunpack.c.l.b16 %v1027
        %v2708 = vunpack.c.l.b16 %v1028
        %v2709 = vunpack.c.l.b16 %v1029
        %v2710 = vunpack.c.l.b16 %v1030
        %v2711 = vunpack.c.l.b16 %v1031
        %v2712 = vunpack.c.l.b16 %v1032
        %v2713 = vunpack.c.l.b16 %v1033
        %v2714 = vunpack.c.l.b16 %v1034
        %v2715 = vunpack.c.l.b16 %v1035
        %v2716 = vunpack.c.l.b16 %v1036
        %v2717 = vunpack.c.l.b16 %v1037
        %v2718 = vunpack.c.l.b16 %v1038
        %v2719 = vunpack.c.l.b16 %v1039
        %v2720 = vunpack.c.l.b16 %v1040
        %v2721 = vunpack.c.l.b16 %v1041
        %v2722 = vunpack.c.l.b16 %v1042
        %v2723 = vunpack.c.l.b16 %v1043
        %v2724 = vunpack.c.l.b16 %v1044
        %v2725 = vunpack.c.l.b16 %v1045
        %v2726 = vunpack.c.l.b16 %v1046
        %v2727 = vunpack.c.l.b16 %v1047
        %v2728 = vunpack.c.l.b16 %v1048
        %v2729 = vunpack.c.l.b16 %v1049
        %v2730 = vunpack.c.l.b16 %v1050
        %v2731 = vunpack.c.l.b16 %v1051
        %v2732 = vunpack.c.l.b16 %v1052
        %v2733 = vunpack.c.l.b16 %v1053
        %v2734 = vunpack.c.l.b16 %v1054
        %v2735 = vunpack.c.l.b16 %v1055
        %v2736 = vunpack.c.l.b16 %v1056
        %v2737 = vunpack.c.l.b16 %v1057
        %v2738 = vunpack.c.l.b16 %v1058
        %v2739 = vunpack.c.l.b16 %v1059
        %v2740 = vunpack.c.l.b16 %v1060
        %v2741 = vunpack.c.l.b16 %v1061
        %v2742 = vunpack.c.l.b16 %v1062
        %v2743 = vunpack.c.l.b16 %v1063
        %v2744 = vunpack.c.l.b16 %v1064
        %v2745 = vunpack.c.l.b16 %v1065
        %v2746 = vunpack.c.l.b16 %v1066
        %v2747 = vunpack.c.l.b16 %v1067
        %v2748 = vunpack.c.l.b16 %v1068
        %v2749 = vunpack.c.l.b16 %v1069
        %v2750 = vunpack.c.l.b16 %v1070
        %v2751 = vunpack.c.l.b16 %v1071
        %v2752 = vunpack.c.l.b16 %v1072
        %v2753 = vunpack.c.l.b16 %v1073
        %v2754 = vunpack.c.l.b16 %v1074
        %v2755 = vunpack.c.l.b16 %v1075
        %v2756 = vunpack.c.l.b16 %v1076
        %v2757 = vunpack.c.l.b16 %v1077
        %v2758 = vunpack.c.l.b16 %v1078
        %v2759 = vunpack.c.l.b16 %v1079
        %v2760 = vunpack.c.l.b16 %v1080
        %v2761 = vunpack.c.l.b16 %v1081
        %v2762 = vunpack.c.l.b16 %v1082
        %v2763 = vunpack.c.l.b16 %v1083
        %v2764 = vunpack.c.l.b16 %v1084
        %v2765 = vunpack.c.l.b16 %v1085
        %v2766 = vunpack.c.l.b16 %v1086
        %v2767 = vunpack.c.l.b16 %v1087
        %v2768 = vunpack.c.l.b16 %v1088
        %v2769 = vunpack.c.l.b16 %v1089
        %v2770 = vunpack.c.l.b16 %v1090
        %v2771 = vunpack.c.l.b16 %v1091
        %v2772 = vunpack.c.l.b16 %v1092
        %v2773 = vunpack.c.l.b16 %v1093
        %v2774 = vunpack.c.l.b16 %v1094
        %v2775 = vunpack.c.l.b16 %v1095
        %v2776 = vunpack.c.l.b16 %v1096
        %v2777 = vunpack.c.l.b16 %v1097
        %v2778 = vunpack.c.l.b16 %v1098
        %v2779 = vunpack.c.l.b16 %v1099
        %v2780 = vunpack.c.l.b16 %v1100
        %v2781 = vunpack.c.l.b16 %v1101
        %v2782 = vunpack.c.l.b16 %v1102
        %v2783 = vunpack.c.l.b16 %v1103
        %v2784 = vunpack.c.l.b16 %v1104
        %v2785 = vunpack.c.l.b16 %v1105
        %v2786 = vunpack.c.l.b16 %v1106
        %v2787 = vunpack.c.l.b16 %v1107
        %v2788 = vunpack.c.l.b16 %v1108
        %v2789 = vunpack.c.l.b16 %v1109
        %v2790 = vunpack.c.l.b16 %v1110
        %v2791 = vunpack.c.l.b16 %v1111
        %v2792 = vunpack.c.l.b16 %v1112
        %v2793 = vunpack.c.l.b16 %v1113
        %v2794 = vunpack.c.l.b16 %v1114
        %v2795 = vunpack.c.l.b16 %v1115
        %v2796 = vunpack.c.l.b16 %v1116
        %v2797 = vunpack.c.l.b16 %v1117
        %v2798 = vunpack.c.l.b16 %v1118
        %v2799 = vunpack.c.l.b16 %v1119
        %v2800 = vunpack.c.l.b16 %v1120
        %v2801 = vunpack.c.l.b16 %v1121
        %v2802 = vunpack.c.l.b16 %v1122
        %v2803 = vunpack.c.l.b16 %v1123
        %v2804 = vunpack.c.l.b16 %v1124
        %v2805 = vunpack.c.l.b16 %v1125
        %v2806 = vunpack.c.l.b16 %v1126
        %v2807 = vunpack.c.l.b16 %v1127
        %v2808 = vunpack.c.l.b16 %v1128
        %v2809 = vunpack.c.l.b16 %v1129
        %v2810 = vunpack.c.l.b16 %v1130
        %v2811 = vunpack.c.l.b16 %v1131
        %v2812 = vunpack.c.l.b16 %v1132
        %v2813 = vunpack.c.l.b16 %v1133
        %v2814 = vunpack.c.l.b16 %v1134
        %v2815 = vunpack.c.l.b16 %v1135
        %v2816 = vunpack.c.l.b16 %v1136
        %v2817 = vunpack.c.l.b16 %v1137
        %v2818 = vunpack.c.l.b16 %v1138
        %v2819 = vunpack.c.l.b16 %v1139
        %v2820 = vunpack.c.l.b16 %v1140
        %v2821 = vunpack.c.l.b16 %v1141
        %v2822 = vunpack.c.l.b16 %v1142
        %v2823 = vunpack.c.l.b16 %v1143
        %v2824 = vunpack.c.l.b16 %v1144
        %v2825 = vunpack.c.l.b16 %v1145
        %v2826 = vunpack.c.l.b16 %v1146
        %v2827 = vunpack.c.l.b16 %v1147
        %v2828 = vunpack.c.l.b16 %v1148
        %v2829 = vunpack.c.l.b16 %v1149
        %v2830 = vunpack.c.l.b16 %v1150
        %v2831 = vunpack.c.l.b16 %v1151
        %v2832 = vunpack.c.l.b16 %v1152
        %v2833 = vunpack.c.l.b16 %v1153
        %v2834 = vunpack.c.l.b16 %v1154
        %v2835 = vunpack.c.l.b16 %v1155
        %v2836 = vunpack.c.l.b16 %v1156
        %v2837 = vunpack.c.l.b16 %v1157
        %v2838 = vunpack.c.l.b16 %v1158
        %v2839 = vunpack.c.l.b16 %v1159
        %v2840 = vunpack.c.l.b16 %v1160
        %v2841 = vunpack.c.l.b16 %v1161
        %v2842 = vunpack.c.l.b16 %v1162
        %v2843 = vunpack.c.l.b16 %v1163
        %v2844 = vunpack.c.l.b16 %v1164
        %v2845 = vunpack.c.l.b16 %v1165
        %v2846 = vunpack.c.l.b16 %v1166
        %v2847 = vunpack.c.l.b16 %v1167
        %v2848 = vunpack.c.l.b16 %v1168
        %v2849 = vunpack.c.l.b16 %v1169
        %v2850 = vunpack.c.l.b16 %v1170
        %v2851 = vunpack.c.l.b16 %v1171
        %v2852 = vunpack.c.l.b16 %v1172
        %v2853 = vunpack.c.l.b16 %v1173
        %v2854 = vunpack.c.l.b16 %v1174
        %v2855 = vunpack.c.l.b16 %v1175
        %v2856 = vunpack.c.l.b16 %v1176
        %v2857 = vunpack.c.l.b16 %v1177
        %v2858 = vunpack.c.l.b16 %v1178
        %v2859 = vunpack.c.l.b16 %v1179
        %v2860 = vunpack.c.l.b16 %v1180
        %v2861 = vunpack.c.l.b16 %v1181
        %v2862 = vunpack.c.l.b16 %v1182
        %v2863 = vunpack.c.l.b16 %v1183
        %v2864 = vunpack.c.l.b16 %v1184
        %v2865 = vunpack.c.l.b16 %v1185
        %v2866 = vunpack.c.l.b16 %v1186
        %v2867 = vunpack.c.l.b16 %v1187
        %v2868 = vunpack.c.l.b16 %v1188
        %v2869 = vunpack.c.l.b16 %v1189
        %v2870 = vunpack.c.l.b16 %v1190
        %v2871 = vunpack.c.l.b16 %v1191
        %v2872 = vunpack.c.l.b16 %v1192
        %v2873 = vunpack.c.l.b16 %v1193
        %v2874 = vunpack.c.l.b16 %v1194
        %v2875 = vunpack.c.l.b16 %v1195
        %v2876 = vunpack.c.l.b16 %v1196
        %v2877 = vunpack.c.l.b16 %v1197
        %v2878 = vunpack.c.l.b16 %v1198
        %v2879 = vunpack.c.l.b16 %v1199
        %v2880 = vunpack.c.l.b16 %v1200
        %v2881 = vunpack.c.l.b16 %v1201
        %v2882 = vunpack.c.l.b16 %v1202
        %v2883 = vunpack.c.l.b16 %v1203
        %v2884 = vunpack.c.l.b16 %v1204
        %v2885 = vunpack.c.l.b16 %v1205
        %v2886 = vunpack.c.l.b16 %v1206
        %v2887 = vunpack.c.l.b16 %v1207
        %v2888 = vunpack.c.l.b16 %v1208
        %v2889 = vunpack.c.l.b16 %v1209
        %v2890 = vunpack.c.l.b16 %v1210
        %v2891 = vunpack.c.l.b16 %v1211
        %v2892 = vunpack.c.l.b16 %v1212
        %v2893 = vunpack.c.l.b16 %v1213
        %v2894 = vunpack.c.l.b16 %v1214
        %v2895 = vunpack.c.l.b16 %v1215
        %v2896 = vunpack.c.l.b16 %v1216
        %v2897 = vunpack.c.l.b16 %v1217
        %v2898 = vunpack.c.l.b16 %v1218
        %v2899 = vunpack.c.l.b16 %v1219
        %v2900 = vunpack.c.l.b16 %v1220
        %v2901 = vunpack.c.l.b16 %v1221
        %v2902 = vunpack.c.l.b16 %v1222
        %v2903 = vunpack.c.l.b16 %v1223
        %v2904 = vunpack.c.l.b16 %v1224
        %v2905 = vunpack.c.l.b16 %v1225
        %v2906 = vpack.c.b16 %v2475, %v2474
        %v2907 = vpack.c.b16 %v2477, %v2476
        %v2908 = vpack.c.b16 %v2479, %v2478
        %v2909 = vpack.c.b16 %v2481, %v2480
        %v2910 = vpack.c.b16 %v2483, %v2482
        %v2911 = vpack.c.b16 %v2485, %v2484
        %v2912 = vpack.c.b16 %v2487, %v2486
        %v2913 = vpack.c.b16 %v2489, %v2488
        %v2914 = vpack.c.b16 %v2491, %v2490
        %v2915 = vpack.c.b16 %v2493, %v2492
        %v2916 = vpack.c.b16 %v2495, %v2494
        %v2917 = vpack.c.b16 %v2497, %v2496
        %v2918 = vpack.c.b16 %v2499, %v2498
        %v2919 = vpack.c.b16 %v2501, %v2500
        %v2920 = vpack.c.b16 %v2503, %v2502
        %v2921 = vpack.c.b16 %v2505, %v2504
        %v2922 = vpack.c.b16 %v2507, %v2506
        %v2923 = vpack.c.b16 %v2509, %v2508
        %v2924 = vpack.c.b16 %v2511, %v2510
        %v2925 = vpack.c.b16 %v2513, %v2512
        %v2926 = vpack.c.b16 %v2515, %v2514
        %v2927 = vpack.c.b16 %v2517, %v2516
        %v2928 = vpack.c.b16 %v2519, %v2518
        %v2929 = vpack.c.b16 %v2521, %v2520
        %v2930 = vpack.c.b16 %v2523, %v2522
        %v2931 = vpack.c.b16 %v2525, %v2524
        %v2932 = vpack.c.b16 %v2527, %v2526
        %v2933 = vpack.c.b16 %v2529, %v2528
        %v2934 = vpack.c.b16 %v2531, %v2530
        %v2935 = vpack.c.b16 %v2533, %v2532
        %v2936 = vpack.c.b16 %v2535, %v2534
        %v2937 = vpack.c.b16 %v2537, %v2536
        %v2938 = vpack.c.b16 %v2539, %v2538
        %v2939 = vpack.c.b16 %v2541, %v2540
        %v2940 = vpack.c.b16 %v2543, %v2542
        %v2941 = vpack.c.b16 %v2545, %v2544
        %v2942 = vpack.c.b16 %v2547, %v2546
        %v2943 = vpack.c.b16 %v2549, %v2548
        %v2944 = vpack.c.b16 %v2551, %v2550
        %v2945 = vpack.c.b16 %v2553, %v2552
        %v2946 = vpack.c.b16 %v2555, %v2554
        %v2947 = vpack.c.b16 %v2557, %v2556
        %v2948 = vpack.c.b16 %v2559, %v2558
        %v2949 = vpack.c.b16 %v2561, %v2560
        %v2950 = vpack.c.b16 %v2563, %v2562
        %v2951 = vpack.c.b16 %v2565, %v2564
        %v2952 = vpack.c.b16 %v2567, %v2566
        %v2953 = vpack.c.b16 %v2569, %v2568
        %v2954 = vpack.c.b16 %v2571, %v2570
        %v2955 = vpack.c.b16 %v2573, %v2572
        %v2956 = vpack.c.b16 %v2575, %v2574
        %v2957 = vpack.c.b16 %v2577, %v2576
        %v2958 = vpack.c.b16 %v2579, %v2578
        %v2959 = vpack.c.b16 %v2581, %v2580
        %v2960 = vpack.c.b16 %v2583, %v2582
        %v2961 = vpack.c.b16 %v2585, %v2584
        %v2962 = vpack.c.b16 %v2587, %v2586
        %v2963 = vpack.c.b16 %v2589, %v2588
        %v2964 = vpack.c.b16 %v2591, %v2590
        %v2965 = vpack.c.b16 %v2593, %v2592
        %v2966 = vpack.c.b16 %v2595, %v2594
        %v2967 = vpack.c.b16 %v2597, %v2596
        %v2968 = vpack.c.b16 %v2599, %v2598
        %v2969 = vpack.c.b16 %v2601, %v2600
        %v2970 = vpack.c.b16 %v2603, %v2602
        %v2971 = vpack.c.b16 %v2605, %v2604
        %v2972 = vpack.c.b16 %v2607, %v2606
        %v2973 = vpack.c.b16 %v2609, %v2608
        %v2974 = vpack.c.b16 %v2611, %v2610
        %v2975 = vpack.c.b16 %v2613, %v2612
        %v2976 = vpack.c.b16 %v2615, %v2614
        %v2977 = vpack.c.b16 %v2617, %v2616
        %v2978 = vpack.c.b16 %v2619, %v2618
        %v2979 = vpack.c.b16 %v2621, %v2620
        %v2980 = vpack.c.b16 %v2623, %v2622
        %v2981 = vpack.c.b16 %v2625, %v2624
        %v2982 = vpack.c.b16 %v2627, %v2626
        %v2983 = vpack.c.b16 %v2629, %v2628
        %v2984 = vpack.c.b16 %v2631, %v2630
        %v2985 = vpack.c.b16 %v2633, %v2632
        %v2986 = vpack.c.b16 %v2635, %v2634
        %v2987 = vpack.c.b16 %v2637, %v2636
        %v2988 = vpack.c.b16 %v2639, %v2638
        %v2989 = vpack.c.b16 %v2641, %v2640
        %v2990 = vpack.c.b16 %v2643, %v2642
        %v2991 = vpack.c.b16 %v2645, %v2644
        %v2992 = vpack.c.b16 %v2647, %v2646
        %v2993 = vpack.c.b16 %v2649, %v2648
        %v2994 = vpack.c.b16 %v2651, %v2650
        %v2995 = vpack.c.b16 %v2653, %v2652
        %v2996 = vpack.c.b16 %v2655, %v2654
        %v2997 = vpack.c.b16 %v2657, %v2656
        %v2998 = vpack.c.b16 %v2659, %v2658
        %v2999 = vpack.c.b16 %v2661, %v2660
        %v3000 = vpack.c.b16 %v2663, %v2662
        %v3001 = vpack.c.b16 %v2665, %v2664
        %v3002 = vpack.c.b16 %v2667, %v2666
        %v3003 = vpack.c.b16 %v2669, %v2668
        %v3004 = vpack.c.b16 %v2671, %v2670
        %v3005 = vpack.c.b16 %v2673, %v2672
        %v3006 = vpack.c.b16 %v2675, %v2674
        %v3007 = vpack.c.b16 %v2677, %v2676
        %v3008 = vpack.c.b16 %v2679, %v2678
        %v3009 = vpack.c.b16 %v2681, %v2680
        %v3010 = vpack.c.b16 %v2683, %v2682
        %v3011 = vpack.c.b16 %v2685, %v2684
        %v3012 = vpack.c.b16 %v2687, %v2686
        %v3013 = vpack.c.b16 %v2689, %v2688
        %v3014 = vpack.c.b16 %v2691, %v2690
        %v3015 = vpack.c.b16 %v2693, %v2692
        %v3016 = vpack.c.b16 %v2695, %v2694
        %v3017 = vpack.c.b16 %v2697, %v2696
        %v3018 = vpack.c.b16 %v2699, %v2698
        %v3019 = vpack.c.b16 %v2701, %v2700
        %v3020 = vpack.c.b16 %v2703, %v2702
        %v3021 = vpack.c.b16 %v2705, %v2704
        %v3022 = vpack.c.b16 %v2707, %v2706
        %v3023 = vpack.c.b16 %v2709, %v2708
        %v3024 = vpack.c.b16 %v2711, %v2710
        %v3025 = vpack.c.b16 %v2713, %v2712
        %v3026 = vpack.c.b16 %v2715, %v2714
        %v3027 = vpack.c.b16 %v2717, %v2716
        %v3028 = vpack.c.b16 %v2719, %v2718
        %v3029 = vpack.c.b16 %v2721, %v2720
        %v3030 = vpack.c.b16 %v2723, %v2722
        %v3031 = vpack.c.b16 %v2725, %v2724
        %v3032 = vpack.c.b16 %v2727, %v2726
        %v3033 = vpack.c.b16 %v2729, %v2728
        %v3034 = vpack.c.b16 %v2731, %v2730
        %v3035 = vpack.c.b16 %v2733, %v2732
        %v3036 = vpack.c.b16 %v2735, %v2734
        %v3037 = vpack.c.b16 %v2737, %v2736
        %v3038 = vpack.c.b16 %v2739, %v2738
        %v3039 = vpack.c.b16 %v2741, %v2740
        %v3040 = vpack.c.b16 %v2743, %v2742
        %v3041 = vpack.c.b16 %v2745, %v2744
        %v3042 = vpack.c.b16 %v2747, %v2746
        %v3043 = vpack.c.b16 %v2749, %v2748
        %v3044 = vpack.c.b16 %v2751, %v2750
        %v3045 = vpack.c.b16 %v2753, %v2752
        %v3046 = vpack.c.b16 %v2755, %v2754
        %v3047 = vpack.c.b16 %v2757, %v2756
        %v3048 = vpack.c.b16 %v2759, %v2758
        %v3049 = vpack.c.b16 %v2761, %v2760
        %v3050 = vpack.c.b16 %v2763, %v2762
        %v3051 = vpack.c.b16 %v2765, %v2764
        %v3052 = vpack.c.b16 %v2767, %v2766
        %v3053 = vpack.c.b16 %v2769, %v2768
        %v3054 = vpack.c.b16 %v2771, %v2770
        %v3055 = vpack.c.b16 %v2773, %v2772
        %v3056 = vpack.c.b16 %v2775, %v2774
        %v3057 = vpack.c.b16 %v2777, %v2776
        %v3058 = vpack.c.b16 %v2779, %v2778
        %v3059 = vpack.c.b16 %v2781, %v2780
        %v3060 = vpack.c.b16 %v2783, %v2782
        %v3061 = vpack.c.b16 %v2785, %v2784
        %v3062 = vpack.c.b16 %v2787, %v2786
        %v3063 = vpack.c.b16 %v2789, %v2788
        %v3064 = vpack.c.b16 %v2791, %v2790
        %v3065 = vpack.c.b16 %v2793, %v2792
        %v3066 = vpack.c.b16 %v2795, %v2794
        %v3067 = vpack.c.b16 %v2797, %v2796
        %v3068 = vpack.c.b16 %v2799, %v2798
        %v3069 = vpack.c.b16 %v2801, %v2800
        %v3070 = vpack.c.b16 %v2803, %v2802
        %v3071 = vpack.c.b16 %v2805, %v2804
        %v3072 = vpack.c.b16 %v2807, %v2806
        %v3073 = vpack.c.b16 %v2809, %v2808
        %v3074 = vpack.c.b16 %v2811, %v2810
        %v3075 = vpack.c.b16 %v2813, %v2812
        %v3076 = vpack.c.b16 %v2815, %v2814
        %v3077 = vpack.c.b16 %v2817, %v2816
        %v3078 = vpack.c.b16 %v2819, %v2818
        %v3079 = vpack.c.b16 %v2821, %v2820
        %v3080 = vpack.c.b16 %v2823, %v2822
        %v3081 = vpack.c.b16 %v2825, %v2824
        %v3082 = vpack.c.b16 %v2827, %v2826
        %v3083 = vpack.c.b16 %v2829, %v2828
        %v3084 = vpack.c.b16 %v2831, %v2830
        %v3085 = vpack.c.b16 %v2833, %v2832
        %v3086 = vpack.c.b16 %v2835, %v2834
        %v3087 = vpack.c.b16 %v2837, %v2836
        %v3088 = vpack.c.b16 %v2839, %v2838
        %v3089 = vpack.c.b16 %v2841, %v2840
        %v3090 = vpack.c.b16 %v2843, %v2842
        %v3091 = vpack.c.b16 %v2845, %v2844
        %v3092 = vpack.c.b16 %v2847, %v2846
        %v3093 = vpack.c.b16 %v2849, %v2848
        %v3094 = vpack.c.b16 %v2851, %v2850
        %v3095 = vpack.c.b16 %v2853, %v2852
        %v3096 = vpack.c.b16 %v2855, %v2854
        %v3097 = vpack.c.b16 %v2857, %v2856
        %v3098 = vpack.c.b16 %v2859, %v2858
        %v3099 = vpack.c.b16 %v2861, %v2860
        %v3100 = vpack.c.b16 %v2863, %v2862
        %v3101 = vpack.c.b16 %v2865, %v2864
        %v3102 = vpack.c.b16 %v2867, %v2866
        %v3103 = vpack.c.b16 %v2869, %v2868
        %v3104 = vpack.c.b16 %v2871, %v2870
        %v3105 = vpack.c.b16 %v2873, %v2872
        %v3106 = vpack.c.b16 %v2875, %v2874
        %v3107 = vpack.c.b16 %v2877, %v2876
        %v3108 = vpack.c.b16 %v2879, %v2878
        %v3109 = vpack.c.b16 %v2881, %v2880
        %v3110 = vpack.c.b16 %v2883, %v2882
        %v3111 = vpack.c.b16 %v2885, %v2884
        %v3112 = vpack.c.b16 %v2887, %v2886
        %v3113 = vpack.c.b16 %v2889, %v2888
        %v3114 = vpack.c.b16 %v2891, %v2890
        %v3115 = vpack.c.b16 %v2893, %v2892
        %v3116 = vpack.c.b16 %v2895, %v2894
        %v3117 = vpack.c.b16 %v2897, %v2896
        %v3118 = vpack.c.b16 %v2899, %v2898
        %v3119 = vpack.c.b16 %v2901, %v2900
        %v3120 = vpack.c.b16 %v2903, %v2902
        %v3121 = vpack.c.b16 %v2905, %v2904
        %3338 = vmatprep.subr.bf16.mxu0 0
        %3339 = vmatpush1.bf16.msra.mxu0 %v2906
        %3340 = vmatprep.subr.bf16.mxu0 0
        %3341 = vmatpush1.bf16.msra.mxu0 %v2907
        %3342 = vmatprep.subr.bf16.mxu0 0
        %3343 = vmatpush1.bf16.msra.mxu0 %v2908
        %3344 = vmatprep.subr.bf16.mxu0 0
        %3345 = vmatpush1.bf16.msra.mxu0 %v2909
        %3346 = vmatprep.subr.bf16.mxu0 0
        %3347 = vmatpush1.bf16.msra.mxu0 %v2910
        %3348 = vmatprep.subr.bf16.mxu0 0
        %3349 = vmatpush1.bf16.msra.mxu0 %v2911
        %3350 = vmatprep.subr.bf16.mxu0 0
        %3351 = vmatpush1.bf16.msra.mxu0 %v2912
        %3352 = vmatprep.subr.bf16.mxu0 0
        %3353 = vmatpush1.bf16.msra.mxu0 %v2913
        %3354 = vmatprep.subr.bf16.mxu0 0
        %3355 = vmatpush1.bf16.msra.mxu0 %v2914
        %3356 = vmatprep.subr.bf16.mxu0 0
        %3357 = vmatpush1.bf16.msra.mxu0 %v2915
        %3358 = vmatprep.subr.bf16.mxu0 0
        %3359 = vmatpush1.bf16.msra.mxu0 %v2916
        %3360 = vmatprep.subr.bf16.mxu0 0
        %3361 = vmatpush1.bf16.msra.mxu0 %v2917
        %3362 = vmatprep.subr.bf16.mxu0 0
        %3363 = vmatpush1.bf16.msra.mxu0 %v2918
        %3364 = vmatprep.subr.bf16.mxu0 0
        %3365 = vmatpush1.bf16.msra.mxu0 %v2919
        %3366 = vmatprep.subr.bf16.mxu0 0
        %3367 = vmatpush1.bf16.msra.mxu0 %v2920
        %3368 = vmatprep.subr.bf16.mxu0 0
        %3369 = vmatpush1.bf16.msra.mxu0 %v2921
        %3370 = vmatprep.mubr.bf16.mxu0 %v1719
        %3371 = vmatmul.mubr.bf16.gmra.mrb[0].mxu0 %v1718
        %v3372 = vpop.f32.mrb[0].mxu0
        %v3373 = vadd.f32 0.0, %v3372
        %v3374 = vpop.f32.mrb[0].mxu0
        %v3375 = vpop.f32.mrb[0].mxu0
        %v3376 = vadd.f32 0.0, %v3375
        %v3377 = vpop.f32.mrb[0].mxu0
        %3378 = vmatprep.mubr.bf16.mxu0 %v1746
        %3379 = vmatmul.mubr.bf16.gmra.mrb[0].mxu0 %v1745
        %v3380 = vpop.f32.mrb[0].mxu0
        %v3381 = vadd.f32 0.0, %v3380
        %v3382 = vpop.f32.mrb[0].mxu0
        %v3383 = vpop.f32.mrb[0].mxu0
        %v3384 = vadd.f32 0.0, %v3383
        %v3385 = vpop.f32.mrb[0].mxu0
        %3386 = vmatprep.mubr.bf16.mxu0 %v1773
        %3387 = vmatmul.mubr.bf16.gmra.mrb[0].mxu0 %v1772
        %v3388 = vpop.f32.mrb[0].mxu0
        %v3389 = vadd.f32 0.0, %v3388
        %v3390 = vpop.f32.mrb[0].mxu0
        %v3391 = vpop.f32.mrb[0].mxu0
        %v3392 = vadd.f32 0.0, %v3391
        %v3393 = vpop.f32.mrb[0].mxu0
        %3394 = vmatprep.mubr.bf16.mxu0 %v1800
        %3395 = vmatmul.mubr.bf16.gmra.mrb[0].mxu0 %v1799
        %v3396 = vpop.f32.mrb[0].mxu0
        %v3397 = vadd.f32 0.0, %v3396
        %v3398 = vpop.f32.mrb[0].mxu0
        %v3399 = vpop.f32.mrb[0].mxu0
        %v3400 = vadd.f32 0.0, %v3399
        %v3401 = vpop.f32.mrb[0].mxu0
        %3402 = vmatprep.mubr.bf16.mxu0 %v1827
        %3403 = vmatmul.mubr.bf16.gmra.mrb[0].mxu0 %v1826
        %v3404 = vpop.f32.mrb[0].mxu0
        %v3405 = vadd.f32 0.0, %v3404
        %v3406 = vpop.f32.mrb[0].mxu0
        %v3407 = vpop.f32.mrb[0].mxu0
        %v3408 = vadd.f32 0.0, %v3407
        %v3409 = vpop.f32.mrb[0].mxu0
        %3410 = vmatprep.mubr.bf16.mxu0 %v1854
        %3411 = vmatmul.mubr.bf16.gmra.mrb[0].mxu0 %v1853
        %v3412 = vpop.f32.mrb[0].mxu0
        %v3413 = vadd.f32 0.0, %v3412
        %v3414 = vpop.f32.mrb[0].mxu0
        %v3415 = vpop.f32.mrb[0].mxu0
        %v3416 = vadd.f32 0.0, %v3415
        %v3417 = vpop.f32.mrb[0].mxu0
        %3418 = vdwg.mxu0
        %3419 = vmatprep.subr.bf16.mxu0 0
        %3420 = vmatpush1.bf16.msra.mxu0 %v2922
        %3421 = vmatprep.subr.bf16.mxu0 0
        %3422 = vmatpush1.bf16.msra.mxu0 %v2923
        %3423 = vmatprep.subr.bf16.mxu0 0
        %3424 = vmatpush1.bf16.msra.mxu0 %v2924
        %3425 = vmatprep.subr.bf16.mxu0 0
        %3426 = vmatpush1.bf16.msra.mxu0 %v2925
        %3427 = vmatprep.subr.bf16.mxu0 0
        %3428 = vmatpush1.bf16.msra.mxu0 %v2926
        %3429 = vmatprep.subr.bf16.mxu0 0
        %3430 = vmatpush1.bf16.msra.mxu0 %v2927
        %3431 = vmatprep.subr.bf16.mxu0 0
        %3432 = vmatpush1.bf16.msra.mxu0 %v2928
        %3433 = vmatprep.subr.bf16.mxu0 0
        %3434 = vmatpush1.bf16.msra.mxu0 %v2929
        %3435 = vmatprep.subr.bf16.mxu0 0
        %3436 = vmatpush1.bf16.msra.mxu0 %v2930
        %3437 = vmatprep.subr.bf16.mxu0 0
        %3438 = vmatpush1.bf16.msra.mxu0 %v2931
        %3439 = vmatprep.subr.bf16.mxu0 0
        %3440 = vmatpush1.bf16.msra.mxu0 %v2932
        %3441 = vmatprep.subr.bf16.mxu0 0
        %3442 = vmatpush1.bf16.msra.mxu0 %v2933
        %3443 = vmatprep.subr.bf16.mxu0 0
        %3444 = vmatpush1.bf16.msra.mxu0 %v2934
        %3445 = vmatprep.subr.bf16.mxu0 0
        %3446 = vmatpush1.bf16.msra.mxu0 %v2935
        %3447 = vmatprep.subr.bf16.mxu0 0
        %3448 = vmatpush1.bf16.msra.mxu0 %v2936
        %3449 = vmatprep.subr.bf16.mxu0 0
        %3450 = vmatpush1.bf16.msra.mxu0 %v2937
        %3451 = vmatprep.mubr.bf16.mxu0 %v1721
        %3452 = vmatmul.mubr.bf16.gmra.mrb[0].mxu0 %v1720
        %v3453 = vpop.f32.mrb[0].mxu0
        %v3454 = vadd.f32 %v3373, %v3453
        %v3455 = vpop.f32.mrb[0].mxu0
        %v3456 = vpop.f32.mrb[0].mxu0
        %v3457 = vadd.f32 %v3376, %v3456
        %v3458 = vpop.f32.mrb[0].mxu0
        %3459 = vmatprep.mubr.bf16.mxu0 %v1748
        %3460 = vmatmul.mubr.bf16.gmra.mrb[0].mxu0 %v1747
        %v3461 = vpop.f32.mrb[0].mxu0
        %v3462 = vadd.f32 %v3381, %v3461
        %v3463 = vpop.f32.mrb[0].mxu0
        %v3464 = vpop.f32.mrb[0].mxu0
        %v3465 = vadd.f32 %v3384, %v3464
        %v3466 = vpop.f32.mrb[0].mxu0
        %3467 = vmatprep.mubr.bf16.mxu0 %v1775
        %3468 = vmatmul.mubr.bf16.gmra.mrb[0].mxu0 %v1774
        %v3469 = vpop.f32.mrb[0].mxu0
        %v3470 = vadd.f32 %v3389, %v3469
        %v3471 = vpop.f32.mrb[0].mxu0
        %v3472 = vpop.f32.mrb[0].mxu0
        %v3473 = vadd.f32 %v3392, %v3472
        %v3474 = vpop.f32.mrb[0].mxu0
        %3475 = vmatprep.mubr.bf16.mxu0 %v1802
        %3476 = vmatmul.mubr.bf16.gmra.mrb[0].mxu0 %v1801
        %v3477 = vpop.f32.mrb[0].mxu0
        %v3478 = vadd.f32 %v3397, %v3477
        %v3479 = vpop.f32.mrb[0].mxu0
        %v3480 = vpop.f32.mrb[0].mxu0
        %v3481 = vadd.f32 %v3400, %v3480
        %v3482 = vpop.f32.mrb[0].mxu0
        %3483 = vmatprep.mubr.bf16.mxu0 %v1829
        %3484 = vmatmul.mubr.bf16.gmra.mrb[0].mxu0 %v1828
        %v3485 = vpop.f32.mrb[0].mxu0
        %v3486 = vadd.f32 %v3405, %v3485
        %v3487 = vpop.f32.mrb[0].mxu0
        %v3488 = vpop.f32.mrb[0].mxu0
        %v3489 = vadd.f32 %v3408, %v3488
        %v3490 = vpop.f32.mrb[0].mxu0
        %3491 = vmatprep.mubr.bf16.mxu0 %v1856
        %3492 = vmatmul.mubr.bf16.gmra.mrb[0].mxu0 %v1855
        %v3493 = vpop.f32.mrb[0].mxu0
        %v3494 = vadd.f32 %v3413, %v3493
        %v3495 = vpop.f32.mrb[0].mxu0
        %v3496 = vpop.f32.mrb[0].mxu0
        %v3497 = vadd.f32 %v3416, %v3496
        %v3498 = vpop.f32.mrb[0].mxu0
        %3499 = vdwg.mxu0
        %3500 = vmatprep.subr.bf16.mxu0 0
        %3501 = vmatpush1.bf16.msra.mxu0 %v2938
        %3502 = vmatprep.subr.bf16.mxu0 0
        %3503 = vmatpush1.bf16.msra.mxu0 %v2939
        %3504 = vmatprep.subr.bf16.mxu0 0
        %3505 = vmatpush1.bf16.msra.mxu0 %v2940
        %3506 = vmatprep.subr.bf16.mxu0 0
        %3507 = vmatpush1.bf16.msra.mxu0 %v2941
        %3508 = vmatprep.subr.bf16.mxu0 0
        %3509 = vmatpush1.bf16.msra.mxu0 %v2942
        %3510 = vmatprep.subr.bf16.mxu0 0
        %3511 = vmatpush1.bf16.msra.mxu0 %v2943
        %3512 = vmatprep.subr.bf16.mxu0 0
        %3513 = vmatpush1.bf16.msra.mxu0 %v2944
        %3514 = vmatprep.subr.bf16.mxu0 0
        %3515 = vmatpush1.bf16.msra.mxu0 %v2945
        %3516 = vmatprep.subr.bf16.mxu0 0
        %3517 = vmatpush1.bf16.msra.mxu0 %v2946
        %3518 = vmatprep.subr.bf16.mxu0 0
        %3519 = vmatpush1.bf16.msra.mxu0 %v2947
        %3520 = vmatprep.subr.bf16.mxu0 0
        %3521 = vmatpush1.bf16.msra.mxu0 %v2948
        %3522 = vmatprep.subr.bf16.mxu0 0
        %3523 = vmatpush1.bf16.msra.mxu0 %v2949
        %3524 = vmatprep.subr.bf16.mxu0 0
        %3525 = vmatpush1.bf16.msra.mxu0 %v2950
        %3526 = vmatprep.subr.bf16.mxu0 0
        %3527 = vmatpush1.bf16.msra.mxu0 %v2951
        %3528 = vmatprep.subr.bf16.mxu0 0
        %3529 = vmatpush1.bf16.msra.mxu0 %v2952
        %3530 = vmatprep.subr.bf16.mxu0 0
        %3531 = vmatpush1.bf16.msra.mxu0 %v2953
        %3532 = vmatprep.mubr.bf16.mxu0 %v1723
        %3533 = vmatmul.mubr.bf16.gmra.mrb[0].mxu0 %v1722
        %v3534 = vpop.f32.mrb[0].mxu0
        %v3535 = vadd.f32 %v3454, %v3534
        %v3536 = vpop.f32.mrb[0].mxu0
        %v3537 = vpop.f32.mrb[0].mxu0
        %v3538 = vadd.f32 %v3457, %v3537
        %v3539 = vpop.f32.mrb[0].mxu0
        %3540 = vmatprep.mubr.bf16.mxu0 %v1750
        %3541 = vmatmul.mubr.bf16.gmra.mrb[0].mxu0 %v1749
        %v3542 = vpop.f32.mrb[0].mxu0
        %v3543 = vadd.f32 %v3462, %v3542
        %v3544 = vpop.f32.mrb[0].mxu0
        %v3545 = vpop.f32.mrb[0].mxu0
        %v3546 = vadd.f32 %v3465, %v3545
        %v3547 = vpop.f32.mrb[0].mxu0
        %3548 = vmatprep.mubr.bf16.mxu0 %v1777
        %3549 = vmatmul.mubr.bf16.gmra.mrb[0].mxu0 %v1776
        %v3550 = vpop.f32.mrb[0].mxu0
        %v3551 = vadd.f32 %v3470, %v3550
        %v3552 = vpop.f32.mrb[0].mxu0
        %v3553 = vpop.f32.mrb[0].mxu0
        %v3554 = vadd.f32 %v3473, %v3553
        %v3555 = vpop.f32.mrb[0].mxu0
        %3556 = vmatprep.mubr.bf16.mxu0 %v1804
        %3557 = vmatmul.mubr.bf16.gmra.mrb[0].mxu0 %v1803
        %v3558 = vpop.f32.mrb[0].mxu0
        %v3559 = vadd.f32 %v3478, %v3558
        %v3560 = vpop.f32.mrb[0].mxu0
        %v3561 = vpop.f32.mrb[0].mxu0
        %v3562 = vadd.f32 %v3481, %v3561
        %v3563 = vpop.f32.mrb[0].mxu0
        %3564 = vmatprep.mubr.bf16.mxu0 %v1831
        %3565 = vmatmul.mubr.bf16.gmra.mrb[0].mxu0 %v1830
        %v3566 = vpop.f32.mrb[0].mxu0
        %v3567 = vadd.f32 %v3486, %v3566
        %v3568 = vpop.f32.mrb[0].mxu0
        %v3569 = vpop.f32.mrb[0].mxu0
        %v3570 = vadd.f32 %v3489, %v3569
        %v3571 = vpop.f32.mrb[0].mxu0
        %3572 = vmatprep.mubr.bf16.mxu0 %v1858
        %3573 = vmatmul.mubr.bf16.gmra.mrb[0].mxu0 %v1857
        %v3574 = vpop.f32.mrb[0].mxu0
        %v3575 = vadd.f32 %v3494, %v3574
        %v3576 = vpop.f32.mrb[0].mxu0
        %v3577 = vpop.f32.mrb[0].mxu0
        %v3578 = vadd.f32 %v3497, %v3577
        %v3579 = vpop.f32.mrb[0].mxu0
        %3580 = vdwg.mxu0
        %3581 = vmatprep.subr.bf16.mxu0 0
        %3582 = vmatpush1.bf16.msra.mxu0 %v2954
        %3583 = vmatprep.subr.bf16.mxu0 0
        %3584 = vmatpush1.bf16.msra.mxu0 %v2955
        %3585 = vmatprep.subr.bf16.mxu0 0
        %3586 = vmatpush1.bf16.msra.mxu0 %v2956
        %3587 = vmatprep.subr.bf16.mxu0 0
        %3588 = vmatpush1.bf16.msra.mxu0 %v2957
        %3589 = vmatprep.subr.bf16.mxu0 0
        %3590 = vmatpush1.bf16.msra.mxu0 %v2958
        %3591 = vmatprep.subr.bf16.mxu0 0
        %3592 = vmatpush1.bf16.msra.mxu0 %v2959
        %3593 = vmatprep.subr.bf16.mxu0 0
        %3594 = vmatpush1.bf16.msra.mxu0 %v2960
        %3595 = vmatprep.subr.bf16.mxu0 0
        %3596 = vmatpush1.bf16.msra.mxu0 %v2961
        %3597 = vmatprep.subr.bf16.mxu0 0
        %3598 = vmatpush1.bf16.msra.mxu0 %v2962
        %3599 = vmatprep.subr.bf16.mxu0 0
        %3600 = vmatpush1.bf16.msra.mxu0 %v2963
        %3601 = vmatprep.subr.bf16.mxu0 0
        %3602 = vmatpush1.bf16.msra.mxu0 %v2964
        %3603 = vmatprep.subr.bf16.mxu0 0
        %3604 = vmatpush1.bf16.msra.mxu0 %v2965
        %3605 = vmatprep.subr.bf16.mxu0 0
        %3606 = vmatpush1.bf16.msra.mxu0 %v2966
        %3607 = vmatprep.subr.bf16.mxu0 0
        %3608 = vmatpush1.bf16.msra.mxu0 %v2967
        %3609 = vmatprep.subr.bf16.mxu0 0
        %3610 = vmatpush1.bf16.msra.mxu0 %v2968
        %3611 = vmatprep.subr.bf16.mxu0 0
        %3612 = vmatpush1.bf16.msra.mxu0 %v2969
        %3613 = vmatprep.mubr.bf16.mxu0 %v1725
        %3614 = vmatmul.mubr.bf16.gmra.mrb[0].mxu0 %v1724
        %v3615 = vpop.f32.mrb[0].mxu0
        %v3616 = vadd.f32 %v3535, %v3615
        %v3617 = vpop.f32.mrb[0].mxu0
        %v3618 = vpop.f32.mrb[0].mxu0
        %v3619 = vadd.f32 %v3538, %v3618
        %v3620 = vpop.f32.mrb[0].mxu0
        %3621 = vmatprep.mubr.bf16.mxu0 %v1752
        %3622 = vmatmul.mubr.bf16.gmra.mrb[0].mxu0 %v1751
        %v3623 = vpop.f32.mrb[0].mxu0
        %v3624 = vadd.f32 %v3543, %v3623
        %v3625 = vpop.f32.mrb[0].mxu0
        %v3626 = vpop.f32.mrb[0].mxu0
        %v3627 = vadd.f32 %v3546, %v3626
        %v3628 = vpop.f32.mrb[0].mxu0
        %3629 = vmatprep.mubr.bf16.mxu0 %v1779
        %3630 = vmatmul.mubr.bf16.gmra.mrb[0].mxu0 %v1778
        %v3631 = vpop.f32.mrb[0].mxu0
        %v3632 = vadd.f32 %v3551, %v3631
        %v3633 = vpop.f32.mrb[0].mxu0
        %v3634 = vpop.f32.mrb[0].mxu0
        %v3635 = vadd.f32 %v3554, %v3634
        %v3636 = vpop.f32.mrb[0].mxu0
        %3637 = vmatprep.mubr.bf16.mxu0 %v1806
        %3638 = vmatmul.mubr.bf16.gmra.mrb[0].mxu0 %v1805
        %v3639 = vpop.f32.mrb[0].mxu0
        %v3640 = vadd.f32 %v3559, %v3639
        %v3641 = vpop.f32.mrb[0].mxu0
        %v3642 = vpop.f32.mrb[0].mxu0
        %v3643 = vadd.f32 %v3562, %v3642
        %v3644 = vpop.f32.mrb[0].mxu0
        %3645 = vmatprep.mubr.bf16.mxu0 %v1833
        %3646 = vmatmul.mubr.bf16.gmra.mrb[0].mxu0 %v1832
        %v3647 = vpop.f32.mrb[0].mxu0
        %v3648 = vadd.f32 %v3567, %v3647
        %v3649 = vpop.f32.mrb[0].mxu0
        %v3650 = vpop.f32.mrb[0].mxu0
        %v3651 = vadd.f32 %v3570, %v3650
        %v3652 = vpop.f32.mrb[0].mxu0
        %3653 = vmatprep.mubr.bf16.mxu0 %v1860
        %3654 = vmatmul.mubr.bf16.gmra.mrb[0].mxu0 %v1859
        %v3655 = vpop.f32.mrb[0].mxu0
        %v3656 = vadd.f32 %v3575, %v3655
        %v3657 = vpop.f32.mrb[0].mxu0
        %v3658 = vpop.f32.mrb[0].mxu0
        %v3659 = vadd.f32 %v3578, %v3658
        %v3660 = vpop.f32.mrb[0].mxu0
        %3661 = vdwg.mxu0
        %3662 = vmatprep.subr.bf16.mxu0 0
        %3663 = vmatpush1.bf16.msra.mxu0 %v2970
        %3664 = vmatprep.subr.bf16.mxu0 0
        %3665 = vmatpush1.bf16.msra.mxu0 %v2971
        %3666 = vmatprep.subr.bf16.mxu0 0
        %3667 = vmatpush1.bf16.msra.mxu0 %v2972
        %3668 = vmatprep.subr.bf16.mxu0 0
        %3669 = vmatpush1.bf16.msra.mxu0 %v2973
        %3670 = vmatprep.subr.bf16.mxu0 0
        %3671 = vmatpush1.bf16.msra.mxu0 %v2974
        %3672 = vmatprep.subr.bf16.mxu0 0
        %3673 = vmatpush1.bf16.msra.mxu0 %v2975
        %3674 = vmatprep.subr.bf16.mxu0 0
        %3675 = vmatpush1.bf16.msra.mxu0 %v2976
        %3676 = vmatprep.subr.bf16.mxu0 0
        %3677 = vmatpush1.bf16.msra.mxu0 %v2977
        %3678 = vmatprep.subr.bf16.mxu0 0
        %3679 = vmatpush1.bf16.msra.mxu0 %v2978
        %3680 = vmatprep.subr.bf16.mxu0 0
        %3681 = vmatpush1.bf16.msra.mxu0 %v2979
        %3682 = vmatprep.subr.bf16.mxu0 0
        %3683 = vmatpush1.bf16.msra.mxu0 %v2980
        %3684 = vmatprep.subr.bf16.mxu0 0
        %3685 = vmatpush1.bf16.msra.mxu0 %v2981
        %3686 = vmatprep.subr.bf16.mxu0 0
        %3687 = vmatpush1.bf16.msra.mxu0 %v2982
        %3688 = vmatprep.subr.bf16.mxu0 0
        %3689 = vmatpush1.bf16.msra.mxu0 %v2983
        %3690 = vmatprep.subr.bf16.mxu0 0
        %3691 = vmatpush1.bf16.msra.mxu0 %v2984
        %3692 = vmatprep.subr.bf16.mxu0 0
        %3693 = vmatpush1.bf16.msra.mxu0 %v2985
        %3694 = vmatprep.mubr.bf16.mxu0 %v1727
        %3695 = vmatmul.mubr.bf16.gmra.mrb[0].mxu0 %v1726
        %v3696 = vpop.f32.mrb[0].mxu0
        %v3697 = vadd.f32 %v3616, %v3696
        %v3698 = vpop.f32.mrb[0].mxu0
        %v3699 = vpop.f32.mrb[0].mxu0
        %v3700 = vadd.f32 %v3619, %v3699
        %v3701 = vpop.f32.mrb[0].mxu0
        %3702 = vmatprep.mubr.bf16.mxu0 %v1754
        %3703 = vmatmul.mubr.bf16.gmra.mrb[0].mxu0 %v1753
        %v3704 = vpop.f32.mrb[0].mxu0
        %v3705 = vadd.f32 %v3624, %v3704
        %v3706 = vpop.f32.mrb[0].mxu0
        %v3707 = vpop.f32.mrb[0].mxu0
        %v3708 = vadd.f32 %v3627, %v3707
        %v3709 = vpop.f32.mrb[0].mxu0
        %3710 = vmatprep.mubr.bf16.mxu0 %v1781
        %3711 = vmatmul.mubr.bf16.gmra.mrb[0].mxu0 %v1780
        %v3712 = vpop.f32.mrb[0].mxu0
        %v3713 = vadd.f32 %v3632, %v3712
        %v3714 = vpop.f32.mrb[0].mxu0
        %v3715 = vpop.f32.mrb[0].mxu0
        %v3716 = vadd.f32 %v3635, %v3715
        %v3717 = vpop.f32.mrb[0].mxu0
        %3718 = vmatprep.mubr.bf16.mxu0 %v1808
        %3719 = vmatmul.mubr.bf16.gmra.mrb[0].mxu0 %v1807
        %v3720 = vpop.f32.mrb[0].mxu0
        %v3721 = vadd.f32 %v3640, %v3720
        %v3722 = vpop.f32.mrb[0].mxu0
        %v3723 = vpop.f32.mrb[0].mxu0
        %v3724 = vadd.f32 %v3643, %v3723
        %v3725 = vpop.f32.mrb[0].mxu0
        %3726 = vmatprep.mubr.bf16.mxu0 %v1835
        %3727 = vmatmul.mubr.bf16.gmra.mrb[0].mxu0 %v1834
        %v3728 = vpop.f32.mrb[0].mxu0
        %v3729 = vadd.f32 %v3648, %v3728
        %v3730 = vpop.f32.mrb[0].mxu0
        %v3731 = vpop.f32.mrb[0].mxu0
        %v3732 = vadd.f32 %v3651, %v3731
        %v3733 = vpop.f32.mrb[0].mxu0
        %3734 = vmatprep.mubr.bf16.mxu0 %v1862
        %3735 = vmatmul.mubr.bf16.gmra.mrb[0].mxu0 %v1861
        %v3736 = vpop.f32.mrb[0].mxu0
        %v3737 = vadd.f32 %v3656, %v3736
        %v3738 = vpop.f32.mrb[0].mxu0
        %v3739 = vpop.f32.mrb[0].mxu0
        %v3740 = vadd.f32 %v3659, %v3739
        %v3741 = vpop.f32.mrb[0].mxu0
        %3742 = vdwg.mxu0
        %3743 = vmatprep.subr.bf16.mxu0 0
        %3744 = vmatpush1.bf16.msra.mxu0 %v2986
        %3745 = vmatprep.subr.bf16.mxu0 0
        %3746 = vmatpush1.bf16.msra.mxu0 %v2987
        %3747 = vmatprep.subr.bf16.mxu0 0
        %3748 = vmatpush1.bf16.msra.mxu0 %v2988
        %3749 = vmatprep.subr.bf16.mxu0 0
        %3750 = vmatpush1.bf16.msra.mxu0 %v2989
        %3751 = vmatprep.subr.bf16.mxu0 0
        %3752 = vmatpush1.bf16.msra.mxu0 %v2990
        %3753 = vmatprep.subr.bf16.mxu0 0
        %3754 = vmatpush1.bf16.msra.mxu0 %v2991
        %3755 = vmatprep.subr.bf16.mxu0 0
        %3756 = vmatpush1.bf16.msra.mxu0 %v2992
        %3757 = vmatprep.subr.bf16.mxu0 0
        %3758 = vmatpush1.bf16.msra.mxu0 %v2993
        %3759 = vmatprep.subr.bf16.mxu0 0
        %3760 = vmatpush1.bf16.msra.mxu0 %v2994
        %3761 = vmatprep.subr.bf16.mxu0 0
        %3762 = vmatpush1.bf16.msra.mxu0 %v2995
        %3763 = vmatprep.subr.bf16.mxu0 0
        %3764 = vmatpush1.bf16.msra.mxu0 %v2996
        %3765 = vmatprep.subr.bf16.mxu0 0
        %3766 = vmatpush1.bf16.msra.mxu0 %v2997
        %3767 = vmatprep.subr.bf16.mxu0 0
        %3768 = vmatpush1.bf16.msra.mxu0 %v2998
        %3769 = vmatprep.subr.bf16.mxu0 0
        %3770 = vmatpush1.bf16.msra.mxu0 %v2999
        %3771 = vmatprep.subr.bf16.mxu0 0
        %3772 = vmatpush1.bf16.msra.mxu0 %v3000
        %3773 = vmatprep.subr.bf16.mxu0 0
        %3774 = vmatpush1.bf16.msra.mxu0 %v3001
        %3775 = vmatprep.mubr.bf16.mxu0 %v1729
        %3776 = vmatmul.mubr.bf16.gmra.mrb[0].mxu0 %v1728
        %v3777 = vpop.f32.mrb[0].mxu0
        %v3778 = vadd.f32 %v3697, %v3777
        %v3779 = vpop.f32.mrb[0].mxu0
        %v3780 = vpop.f32.mrb[0].mxu0
        %v3781 = vadd.f32 %v3700, %v3780
        %v3782 = vpop.f32.mrb[0].mxu0
        %3783 = vmatprep.mubr.bf16.mxu0 %v1756
        %3784 = vmatmul.mubr.bf16.gmra.mrb[0].mxu0 %v1755
        %v3785 = vpop.f32.mrb[0].mxu0
        %v3786 = vadd.f32 %v3705, %v3785
        %v3787 = vpop.f32.mrb[0].mxu0
        %v3788 = vpop.f32.mrb[0].mxu0
        %v3789 = vadd.f32 %v3708, %v3788
        %v3790 = vpop.f32.mrb[0].mxu0
        %3791 = vmatprep.mubr.bf16.mxu0 %v1783
        %3792 = vmatmul.mubr.bf16.gmra.mrb[0].mxu0 %v1782
        %v3793 = vpop.f32.mrb[0].mxu0
        %v3794 = vadd.f32 %v3713, %v3793
        %v3795 = vpop.f32.mrb[0].mxu0
        %v3796 = vpop.f32.mrb[0].mxu0
        %v3797 = vadd.f32 %v3716, %v3796
        %v3798 = vpop.f32.mrb[0].mxu0
        %3799 = vmatprep.mubr.bf16.mxu0 %v1810
        %3800 = vmatmul.mubr.bf16.gmra.mrb[0].mxu0 %v1809
        %v3801 = vpop.f32.mrb[0].mxu0
        %v3802 = vadd.f32 %v3721, %v3801
        %v3803 = vpop.f32.mrb[0].mxu0
        %v3804 = vpop.f32.mrb[0].mxu0
        %v3805 = vadd.f32 %v3724, %v3804
        %v3806 = vpop.f32.mrb[0].mxu0
        %3807 = vmatprep.mubr.bf16.mxu0 %v1837
        %3808 = vmatmul.mubr.bf16.gmra.mrb[0].mxu0 %v1836
        %v3809 = vpop.f32.mrb[0].mxu0
        %v3810 = vadd.f32 %v3729, %v3809
        %v3811 = vpop.f32.mrb[0].mxu0
        %v3812 = vpop.f32.mrb[0].mxu0
        %v3813 = vadd.f32 %v3732, %v3812
        %v3814 = vpop.f32.mrb[0].mxu0
        %3815 = vmatprep.mubr.bf16.mxu0 %v1864
        %3816 = vmatmul.mubr.bf16.gmra.mrb[0].mxu0 %v1863
        %v3817 = vpop.f32.mrb[0].mxu0
        %v3818 = vadd.f32 %v3737, %v3817
        %v3819 = vpop.f32.mrb[0].mxu0
        %v3820 = vpop.f32.mrb[0].mxu0
        %v3821 = vadd.f32 %v3740, %v3820
        %v3822 = vpop.f32.mrb[0].mxu0
        %3823 = vdwg.mxu0
        %3824 = vmatprep.subr.bf16.mxu0 0
        %3825 = vmatpush1.bf16.msra.mxu0 %v3002
        %3826 = vmatprep.subr.bf16.mxu0 0
        %3827 = vmatpush1.bf16.msra.mxu0 %v3003
        %3828 = vmatprep.subr.bf16.mxu0 0
        %3829 = vmatpush1.bf16.msra.mxu0 %v3004
        %3830 = vmatprep.subr.bf16.mxu0 0
        %3831 = vmatpush1.bf16.msra.mxu0 %v3005
        %3832 = vmatprep.subr.bf16.mxu0 0
        %3833 = vmatpush1.bf16.msra.mxu0 %v3006
        %3834 = vmatprep.subr.bf16.mxu0 0
        %3835 = vmatpush1.bf16.msra.mxu0 %v3007
        %3836 = vmatprep.subr.bf16.mxu0 0
        %3837 = vmatpush1.bf16.msra.mxu0 %v3008
        %3838 = vmatprep.subr.bf16.mxu0 0
        %3839 = vmatpush1.bf16.msra.mxu0 %v3009
        %3840 = vmatprep.subr.bf16.mxu0 0
        %3841 = vmatpush1.bf16.msra.mxu0 %v3010
        %3842 = vmatprep.subr.bf16.mxu0 0
        %3843 = vmatpush1.bf16.msra.mxu0 %v3011
        %3844 = vmatprep.subr.bf16.mxu0 0
        %3845 = vmatpush1.bf16.msra.mxu0 %v3012
        %3846 = vmatprep.subr.bf16.mxu0 0
        %3847 = vmatpush1.bf16.msra.mxu0 %v3013
        %3848 = vmatprep.subr.bf16.mxu0 0
        %3849 = vmatpush1.bf16.msra.mxu0 %v3014
        %3850 = vmatprep.subr.bf16.mxu0 0
        %3851 = vmatpush1.bf16.msra.mxu0 %v3015
        %3852 = vmatprep.subr.bf16.mxu0 0
        %3853 = vmatpush1.bf16.msra.mxu0 %v3016
        %3854 = vmatprep.subr.bf16.mxu0 0
        %3855 = vmatpush1.bf16.msra.mxu0 %v3017
        %3856 = vmatprep.mubr.bf16.mxu0 %v1731
        %3857 = vmatmul.mubr.bf16.gmra.mrb[0].mxu0 %v1730
        %v3858 = vpop.f32.mrb[0].mxu0
        %v3859 = vadd.f32 %v3778, %v3858
        %v3860 = vpop.f32.mrb[0].mxu0
        %v3861 = vpop.f32.mrb[0].mxu0
        %v3862 = vadd.f32 %v3781, %v3861
        %v3863 = vpop.f32.mrb[0].mxu0
        %3864 = vmatprep.mubr.bf16.mxu0 %v1758
        %3865 = vmatmul.mubr.bf16.gmra.mrb[0].mxu0 %v1757
        %v3866 = vpop.f32.mrb[0].mxu0
        %v3867 = vadd.f32 %v3786, %v3866
        %v3868 = vpop.f32.mrb[0].mxu0
        %v3869 = vpop.f32.mrb[0].mxu0
        %v3870 = vadd.f32 %v3789, %v3869
        %v3871 = vpop.f32.mrb[0].mxu0
        %3872 = vmatprep.mubr.bf16.mxu0 %v1785
        %3873 = vmatmul.mubr.bf16.gmra.mrb[0].mxu0 %v1784
        %v3874 = vpop.f32.mrb[0].mxu0
        %v3875 = vadd.f32 %v3794, %v3874
        %v3876 = vpop.f32.mrb[0].mxu0
        %v3877 = vpop.f32.mrb[0].mxu0
        %v3878 = vadd.f32 %v3797, %v3877
        %v3879 = vpop.f32.mrb[0].mxu0
        %3880 = vmatprep.mubr.bf16.mxu0 %v1812
        %3881 = vmatmul.mubr.bf16.gmra.mrb[0].mxu0 %v1811
        %v3882 = vpop.f32.mrb[0].mxu0
        %v3883 = vadd.f32 %v3802, %v3882
        %v3884 = vpop.f32.mrb[0].mxu0
        %v3885 = vpop.f32.mrb[0].mxu0
        %v3886 = vadd.f32 %v3805, %v3885
        %v3887 = vpop.f32.mrb[0].mxu0
        %3888 = vmatprep.mubr.bf16.mxu0 %v1839
        %3889 = vmatmul.mubr.bf16.gmra.mrb[0].mxu0 %v1838
        %v3890 = vpop.f32.mrb[0].mxu0
        %v3891 = vadd.f32 %v3810, %v3890
        %v3892 = vpop.f32.mrb[0].mxu0
        %v3893 = vpop.f32.mrb[0].mxu0
        %v3894 = vadd.f32 %v3813, %v3893
        %v3895 = vpop.f32.mrb[0].mxu0
        %3896 = vmatprep.mubr.bf16.mxu0 %v1866
        %3897 = vmatmul.mubr.bf16.gmra.mrb[0].mxu0 %v1865
        %v3898 = vpop.f32.mrb[0].mxu0
        %v3899 = vadd.f32 %v3818, %v3898
        %v3900 = vpop.f32.mrb[0].mxu0
        %v3901 = vpop.f32.mrb[0].mxu0
        %v3902 = vadd.f32 %v3821, %v3901
        %v3903 = vpop.f32.mrb[0].mxu0
        %3904 = vdwg.mxu0
        %3905 = vmatprep.subr.bf16.mxu0 0
        %3906 = vmatpush1.bf16.msra.mxu0 %v3018
        %3907 = vmatprep.subr.bf16.mxu0 0
        %3908 = vmatpush1.bf16.msra.mxu0 %v3019
        %3909 = vmatprep.subr.bf16.mxu0 0
        %3910 = vmatpush1.bf16.msra.mxu0 %v3020
        %3911 = vmatprep.subr.bf16.mxu0 0
        %3912 = vmatpush1.bf16.msra.mxu0 %v3021
        %3913 = vmatprep.subr.bf16.mxu0 0
        %3914 = vmatpush1.bf16.msra.mxu0 %v3022
        %3915 = vmatprep.subr.bf16.mxu0 0
        %3916 = vmatpush1.bf16.msra.mxu0 %v3023
        %3917 = vmatprep.subr.bf16.mxu0 0
        %3918 = vmatpush1.bf16.msra.mxu0 %v3024
        %3919 = vmatprep.subr.bf16.mxu0 0
        %3920 = vmatpush1.bf16.msra.mxu0 %v3025
        %3921 = vmatprep.subr.bf16.mxu0 0
        %3922 = vmatpush1.bf16.msra.mxu0 %v3026
        %3923 = vmatprep.subr.bf16.mxu0 0
        %3924 = vmatpush1.bf16.msra.mxu0 %v3027
        %3925 = vmatprep.subr.bf16.mxu0 0
        %3926 = vmatpush1.bf16.msra.mxu0 %v3028
        %3927 = vmatprep.subr.bf16.mxu0 0
        %3928 = vmatpush1.bf16.msra.mxu0 %v3029
        %3929 = vmatprep.subr.bf16.mxu0 0
        %3930 = vmatpush1.bf16.msra.mxu0 %v3030
        %3931 = vmatprep.subr.bf16.mxu0 0
        %3932 = vmatpush1.bf16.msra.mxu0 %v3031
        %3933 = vmatprep.subr.bf16.mxu0 0
        %3934 = vmatpush1.bf16.msra.mxu0 %v3032
        %3935 = vmatprep.subr.bf16.mxu0 0
        %3936 = vmatpush1.bf16.msra.mxu0 %v3033
        %3937 = vmatprep.mubr.bf16.mxu0 %v1733
        %3938 = vmatmul.mubr.bf16.gmra.mrb[0].mxu0 %v1732
        %v3939 = vpop.f32.mrb[0].mxu0
        %v3940 = vadd.f32 %v3859, %v3939
        %v3941 = vpop.f32.mrb[0].mxu0
        %v3942 = vpop.f32.mrb[0].mxu0
        %v3943 = vadd.f32 %v3862, %v3942
        %v3944 = vpop.f32.mrb[0].mxu0
        %3945 = vmatprep.mubr.bf16.mxu0 %v1760
        %3946 = vmatmul.mubr.bf16.gmra.mrb[0].mxu0 %v1759
        %v3947 = vpop.f32.mrb[0].mxu0
        %v3948 = vadd.f32 %v3867, %v3947
        %v3949 = vpop.f32.mrb[0].mxu0
        %v3950 = vpop.f32.mrb[0].mxu0
        %v3951 = vadd.f32 %v3870, %v3950
        %v3952 = vpop.f32.mrb[0].mxu0
        %3953 = vmatprep.mubr.bf16.mxu0 %v1787
        %3954 = vmatmul.mubr.bf16.gmra.mrb[0].mxu0 %v1786
        %v3955 = vpop.f32.mrb[0].mxu0
        %v3956 = vadd.f32 %v3875, %v3955
        %v3957 = vpop.f32.mrb[0].mxu0
        %v3958 = vpop.f32.mrb[0].mxu0
        %v3959 = vadd.f32 %v3878, %v3958
        %v3960 = vpop.f32.mrb[0].mxu0
        %3961 = vmatprep.mubr.bf16.mxu0 %v1814
        %3962 = vmatmul.mubr.bf16.gmra.mrb[0].mxu0 %v1813
        %v3963 = vpop.f32.mrb[0].mxu0
        %v3964 = vadd.f32 %v3883, %v3963
        %v3965 = vpop.f32.mrb[0].mxu0
        %v3966 = vpop.f32.mrb[0].mxu0
        %v3967 = vadd.f32 %v3886, %v3966
        %v3968 = vpop.f32.mrb[0].mxu0
        %3969 = vmatprep.mubr.bf16.mxu0 %v1841
        %3970 = vmatmul.mubr.bf16.gmra.mrb[0].mxu0 %v1840
        %v3971 = vpop.f32.mrb[0].mxu0
        %v3972 = vadd.f32 %v3891, %v3971
        %v3973 = vpop.f32.mrb[0].mxu0
        %v3974 = vpop.f32.mrb[0].mxu0
        %v3975 = vadd.f32 %v3894, %v3974
        %v3976 = vpop.f32.mrb[0].mxu0
        %3977 = vmatprep.mubr.bf16.mxu0 %v1868
        %3978 = vmatmul.mubr.bf16.gmra.mrb[0].mxu0 %v1867
        %v3979 = vpop.f32.mrb[0].mxu0
        %v3980 = vadd.f32 %v3899, %v3979
        %v3981 = vpop.f32.mrb[0].mxu0
        %v3982 = vpop.f32.mrb[0].mxu0
        %v3983 = vadd.f32 %v3902, %v3982
        %v3984 = vpop.f32.mrb[0].mxu0
        %3985 = vdwg.mxu0
        %3986 = vmatprep.subr.bf16.mxu0 0
        %3987 = vmatpush1.bf16.msra.mxu0 %v3034
        %3988 = vmatprep.subr.bf16.mxu0 0
        %3989 = vmatpush1.bf16.msra.mxu0 %v3035
        %3990 = vmatprep.subr.bf16.mxu0 0
        %3991 = vmatpush1.bf16.msra.mxu0 %v3036
        %3992 = vmatprep.subr.bf16.mxu0 0
        %3993 = vmatpush1.bf16.msra.mxu0 %v3037
        %3994 = vmatprep.subr.bf16.mxu0 0
        %3995 = vmatpush1.bf16.msra.mxu0 %v3038
        %3996 = vmatprep.subr.bf16.mxu0 0
        %3997 = vmatpush1.bf16.msra.mxu0 %v3039
        %3998 = vmatprep.subr.bf16.mxu0 0
        %3999 = vmatpush1.bf16.msra.mxu0 %v3040
        %4000 = vmatprep.subr.bf16.mxu0 0
        %4001 = vmatpush1.bf16.msra.mxu0 %v3041
        %4002 = vmatprep.subr.bf16.mxu0 0
        %4003 = vmatpush1.bf16.msra.mxu0 %v3042
        %4004 = vmatprep.subr.bf16.mxu0 0
        %4005 = vmatpush1.bf16.msra.mxu0 %v3043
        %4006 = vmatprep.subr.bf16.mxu0 0
        %4007 = vmatpush1.bf16.msra.mxu0 %v3044
        %4008 = vmatprep.subr.bf16.mxu0 0
        %4009 = vmatpush1.bf16.msra.mxu0 %v3045
        %4010 = vmatprep.subr.bf16.mxu0 0
        %4011 = vmatpush1.bf16.msra.mxu0 %v3046
        %4012 = vmatprep.subr.bf16.mxu0 0
        %4013 = vmatpush1.bf16.msra.mxu0 %v3047
        %4014 = vmatprep.subr.bf16.mxu0 0
        %4015 = vmatpush1.bf16.msra.mxu0 %v3048
        %4016 = vmatprep.subr.bf16.mxu0 0
        %4017 = vmatpush1.bf16.msra.mxu0 %v3049
        %4018 = vmatprep.mubr.bf16.mxu0 %v1735
        %4019 = vmatmul.mubr.bf16.gmra.mrb[0].mxu0 %v1734
        %v4020 = vpop.f32.mrb[0].mxu0
        %v4021 = vadd.f32 %v3940, %v4020
        %v4022 = vpop.f32.mrb[0].mxu0
        %v4023 = vpop.f32.mrb[0].mxu0
        %v4024 = vadd.f32 %v3943, %v4023
        %v4025 = vpop.f32.mrb[0].mxu0
        %4026 = vmatprep.mubr.bf16.mxu0 %v1762
        %4027 = vmatmul.mubr.bf16.gmra.mrb[0].mxu0 %v1761
        %v4028 = vpop.f32.mrb[0].mxu0
        %v4029 = vadd.f32 %v3948, %v4028
        %v4030 = vpop.f32.mrb[0].mxu0
        %v4031 = vpop.f32.mrb[0].mxu0
        %v4032 = vadd.f32 %v3951, %v4031
        %v4033 = vpop.f32.mrb[0].mxu0
        %4034 = vmatprep.mubr.bf16.mxu0 %v1789
        %4035 = vmatmul.mubr.bf16.gmra.mrb[0].mxu0 %v1788
        %v4036 = vpop.f32.mrb[0].mxu0
        %v4037 = vadd.f32 %v3956, %v4036
        %v4038 = vpop.f32.mrb[0].mxu0
        %v4039 = vpop.f32.mrb[0].mxu0
        %v4040 = vadd.f32 %v3959, %v4039
        %v4041 = vpop.f32.mrb[0].mxu0
        %4042 = vmatprep.mubr.bf16.mxu0 %v1816
        %4043 = vmatmul.mubr.bf16.gmra.mrb[0].mxu0 %v1815
        %v4044 = vpop.f32.mrb[0].mxu0
        %v4045 = vadd.f32 %v3964, %v4044
        %v4046 = vpop.f32.mrb[0].mxu0
        %v4047 = vpop.f32.mrb[0].mxu0
        %v4048 = vadd.f32 %v3967, %v4047
        %v4049 = vpop.f32.mrb[0].mxu0
        %4050 = vmatprep.mubr.bf16.mxu0 %v1843
        %4051 = vmatmul.mubr.bf16.gmra.mrb[0].mxu0 %v1842
        %v4052 = vpop.f32.mrb[0].mxu0
        %v4053 = vadd.f32 %v3972, %v4052
        %v4054 = vpop.f32.mrb[0].mxu0
        %v4055 = vpop.f32.mrb[0].mxu0
        %v4056 = vadd.f32 %v3975, %v4055
        %v4057 = vpop.f32.mrb[0].mxu0
        %4058 = vmatprep.mubr.bf16.mxu0 %v1870
        %4059 = vmatmul.mubr.bf16.gmra.mrb[0].mxu0 %v1869
        %v4060 = vpop.f32.mrb[0].mxu0
        %v4061 = vadd.f32 %v3980, %v4060
        %v4062 = vpop.f32.mrb[0].mxu0
        %v4063 = vpop.f32.mrb[0].mxu0
        %v4064 = vadd.f32 %v3983, %v4063
        %v4065 = vpop.f32.mrb[0].mxu0
        %4066 = vdwg.mxu0
        %4067 = vmatprep.subr.bf16.mxu0 0
        %4068 = vmatpush1.bf16.msra.mxu0 %v3050
        %4069 = vmatprep.subr.bf16.mxu0 0
        %4070 = vmatpush1.bf16.msra.mxu0 %v3051
        %4071 = vmatprep.subr.bf16.mxu0 0
        %4072 = vmatpush1.bf16.msra.mxu0 %v3052
        %4073 = vmatprep.subr.bf16.mxu0 0
        %4074 = vmatpush1.bf16.msra.mxu0 %v3053
        %4075 = vmatprep.subr.bf16.mxu0 0
        %4076 = vmatpush1.bf16.msra.mxu0 %v3054
        %4077 = vmatprep.subr.bf16.mxu0 0
        %4078 = vmatpush1.bf16.msra.mxu0 %v3055
        %4079 = vmatprep.subr.bf16.mxu0 0
        %4080 = vmatpush1.bf16.msra.mxu0 %v3056
        %4081 = vmatprep.subr.bf16.mxu0 0
        %4082 = vmatpush1.bf16.msra.mxu0 %v3057
        %4083 = vmatprep.subr.bf16.mxu0 0
        %4084 = vmatpush1.bf16.msra.mxu0 %v3058
        %4085 = vmatprep.subr.bf16.mxu0 0
        %4086 = vmatpush1.bf16.msra.mxu0 %v3059
        %4087 = vmatprep.subr.bf16.mxu0 0
        %4088 = vmatpush1.bf16.msra.mxu0 %v3060
        %4089 = vmatprep.subr.bf16.mxu0 0
        %4090 = vmatpush1.bf16.msra.mxu0 %v3061
        %4091 = vmatprep.subr.bf16.mxu0 0
        %4092 = vmatpush1.bf16.msra.mxu0 %v3062
        %4093 = vmatprep.subr.bf16.mxu0 0
        %4094 = vmatpush1.bf16.msra.mxu0 %v3063
        %4095 = vmatprep.subr.bf16.mxu0 0
        %4096 = vmatpush1.bf16.msra.mxu0 %v3064
        %4097 = vmatprep.subr.bf16.mxu0 0
        %4098 = vmatpush1.bf16.msra.mxu0 %v3065
        %4099 = vmatprep.mubr.bf16.mxu0 %v1737
        %4100 = vmatmul.mubr.bf16.gmra.mrb[0].mxu0 %v1736
        %v4101 = vpop.f32.mrb[0].mxu0
        %v4102 = vadd.f32 %v4021, %v4101
        %v4103 = vpop.f32.mrb[0].mxu0
        %v4104 = vpop.f32.mrb[0].mxu0
        %v4105 = vadd.f32 %v4024, %v4104
        %v4106 = vpop.f32.mrb[0].mxu0
        %4107 = vmatprep.mubr.bf16.mxu0 %v1764
        %4108 = vmatmul.mubr.bf16.gmra.mrb[0].mxu0 %v1763
        %v4109 = vpop.f32.mrb[0].mxu0
        %v4110 = vadd.f32 %v4029, %v4109
        %v4111 = vpop.f32.mrb[0].mxu0
        %v4112 = vpop.f32.mrb[0].mxu0
        %v4113 = vadd.f32 %v4032, %v4112
        %v4114 = vpop.f32.mrb[0].mxu0
        %4115 = vmatprep.mubr.bf16.mxu0 %v1791
        %4116 = vmatmul.mubr.bf16.gmra.mrb[0].mxu0 %v1790
        %v4117 = vpop.f32.mrb[0].mxu0
        %v4118 = vadd.f32 %v4037, %v4117
        %v4119 = vpop.f32.mrb[0].mxu0
        %v4120 = vpop.f32.mrb[0].mxu0
        %v4121 = vadd.f32 %v4040, %v4120
        %v4122 = vpop.f32.mrb[0].mxu0
        %4123 = vmatprep.mubr.bf16.mxu0 %v1818
        %4124 = vmatmul.mubr.bf16.gmra.mrb[0].mxu0 %v1817
        %v4125 = vpop.f32.mrb[0].mxu0
        %v4126 = vadd.f32 %v4045, %v4125
        %v4127 = vpop.f32.mrb[0].mxu0
        %v4128 = vpop.f32.mrb[0].mxu0
        %v4129 = vadd.f32 %v4048, %v4128
        %v4130 = vpop.f32.mrb[0].mxu0
        %4131 = vmatprep.mubr.bf16.mxu0 %v1845
        %4132 = vmatmul.mubr.bf16.gmra.mrb[0].mxu0 %v1844
        %v4133 = vpop.f32.mrb[0].mxu0
        %v4134 = vadd.f32 %v4053, %v4133
        %v4135 = vpop.f32.mrb[0].mxu0
        %v4136 = vpop.f32.mrb[0].mxu0
        %v4137 = vadd.f32 %v4056, %v4136
        %v4138 = vpop.f32.mrb[0].mxu0
        %4139 = vmatprep.mubr.bf16.mxu0 %v1872
        %4140 = vmatmul.mubr.bf16.gmra.mrb[0].mxu0 %v1871
        %v4141 = vpop.f32.mrb[0].mxu0
        %v4142 = vadd.f32 %v4061, %v4141
        %v4143 = vpop.f32.mrb[0].mxu0
        %v4144 = vpop.f32.mrb[0].mxu0
        %v4145 = vadd.f32 %v4064, %v4144
        %v4146 = vpop.f32.mrb[0].mxu0
        %4147 = vdwg.mxu0
        %4148 = vmatprep.subr.bf16.mxu0 0
        %4149 = vmatpush1.bf16.msra.mxu0 %v3066
        %4150 = vmatprep.subr.bf16.mxu0 0
        %4151 = vmatpush1.bf16.msra.mxu0 %v3067
        %4152 = vmatprep.subr.bf16.mxu0 0
        %4153 = vmatpush1.bf16.msra.mxu0 %v3068
        %4154 = vmatprep.subr.bf16.mxu0 0
        %4155 = vmatpush1.bf16.msra.mxu0 %v3069
        %4156 = vmatprep.subr.bf16.mxu0 0
        %4157 = vmatpush1.bf16.msra.mxu0 %v3070
        %4158 = vmatprep.subr.bf16.mxu0 0
        %4159 = vmatpush1.bf16.msra.mxu0 %v3071
        %4160 = vmatprep.subr.bf16.mxu0 0
        %4161 = vmatpush1.bf16.msra.mxu0 %v3072
        %4162 = vmatprep.subr.bf16.mxu0 0
        %4163 = vmatpush1.bf16.msra.mxu0 %v3073
        %4164 = vmatprep.subr.bf16.mxu0 0
        %4165 = vmatpush1.bf16.msra.mxu0 %v3074
        %4166 = vmatprep.subr.bf16.mxu0 0
        %4167 = vmatpush1.bf16.msra.mxu0 %v3075
        %4168 = vmatprep.subr.bf16.mxu0 0
        %4169 = vmatpush1.bf16.msra.mxu0 %v3076
        %4170 = vmatprep.subr.bf16.mxu0 0
        %4171 = vmatpush1.bf16.msra.mxu0 %v3077
        %4172 = vmatprep.subr.bf16.mxu0 0
        %4173 = vmatpush1.bf16.msra.mxu0 %v3078
        %4174 = vmatprep.subr.bf16.mxu0 0
        %4175 = vmatpush1.bf16.msra.mxu0 %v3079
        %4176 = vmatprep.subr.bf16.mxu0 0
        %4177 = vmatpush1.bf16.msra.mxu0 %v3080
        %4178 = vmatprep.subr.bf16.mxu0 0
        %4179 = vmatpush1.bf16.msra.mxu0 %v3081
        %4180 = vmatprep.mubr.bf16.mxu0 %v1739
        %4181 = vmatmul.mubr.bf16.gmra.mrb[0].mxu0 %v1738
        %v4182 = vpop.f32.mrb[0].mxu0
        %v4183 = vadd.f32 %v4102, %v4182
        %v4184 = vpop.f32.mrb[0].mxu0
        %v4185 = vpop.f32.mrb[0].mxu0
        %v4186 = vadd.f32 %v4105, %v4185
        %v4187 = vpop.f32.mrb[0].mxu0
        %4188 = vmatprep.mubr.bf16.mxu0 %v1766
        %4189 = vmatmul.mubr.bf16.gmra.mrb[0].mxu0 %v1765
        %v4190 = vpop.f32.mrb[0].mxu0
        %v4191 = vadd.f32 %v4110, %v4190
        %v4192 = vpop.f32.mrb[0].mxu0
        %v4193 = vpop.f32.mrb[0].mxu0
        %v4194 = vadd.f32 %v4113, %v4193
        %v4195 = vpop.f32.mrb[0].mxu0
        %4196 = vmatprep.mubr.bf16.mxu0 %v1793
        %4197 = vmatmul.mubr.bf16.gmra.mrb[0].mxu0 %v1792
        %v4198 = vpop.f32.mrb[0].mxu0
        %v4199 = vadd.f32 %v4118, %v4198
        %v4200 = vpop.f32.mrb[0].mxu0
        %v4201 = vpop.f32.mrb[0].mxu0
        %v4202 = vadd.f32 %v4121, %v4201
        %v4203 = vpop.f32.mrb[0].mxu0
        %4204 = vmatprep.mubr.bf16.mxu0 %v1820
        %4205 = vmatmul.mubr.bf16.gmra.mrb[0].mxu0 %v1819
        %v4206 = vpop.f32.mrb[0].mxu0
        %v4207 = vadd.f32 %v4126, %v4206
        %v4208 = vpop.f32.mrb[0].mxu0
        %v4209 = vpop.f32.mrb[0].mxu0
        %v4210 = vadd.f32 %v4129, %v4209
        %v4211 = vpop.f32.mrb[0].mxu0
        %4212 = vmatprep.mubr.bf16.mxu0 %v1847
        %4213 = vmatmul.mubr.bf16.gmra.mrb[0].mxu0 %v1846
        %v4214 = vpop.f32.mrb[0].mxu0
        %v4215 = vadd.f32 %v4134, %v4214
        %v4216 = vpop.f32.mrb[0].mxu0
        %v4217 = vpop.f32.mrb[0].mxu0
        %v4218 = vadd.f32 %v4137, %v4217
        %v4219 = vpop.f32.mrb[0].mxu0
        %4220 = vmatprep.mubr.bf16.mxu0 %v1874
        %4221 = vmatmul.mubr.bf16.gmra.mrb[0].mxu0 %v1873
        %v4222 = vpop.f32.mrb[0].mxu0
        %v4223 = vadd.f32 %v4142, %v4222
        %v4224 = vpop.f32.mrb[0].mxu0
        %v4225 = vpop.f32.mrb[0].mxu0
        %v4226 = vadd.f32 %v4145, %v4225
        %v4227 = vpop.f32.mrb[0].mxu0
        %4228 = vdwg.mxu0
        %4229 = vmatprep.subr.bf16.mxu0 0
        %4230 = vmatpush1.bf16.msra.mxu0 %v3082
        %4231 = vmatprep.subr.bf16.mxu0 0
        %4232 = vmatpush1.bf16.msra.mxu0 %v3083
        %4233 = vmatprep.subr.bf16.mxu0 0
        %4234 = vmatpush1.bf16.msra.mxu0 %v3084
        %4235 = vmatprep.subr.bf16.mxu0 0
        %4236 = vmatpush1.bf16.msra.mxu0 %v3085
        %4237 = vmatprep.subr.bf16.mxu0 0
        %4238 = vmatpush1.bf16.msra.mxu0 %v3086
        %4239 = vmatprep.subr.bf16.mxu0 0
        %4240 = vmatpush1.bf16.msra.mxu0 %v3087
        %4241 = vmatprep.subr.bf16.mxu0 0
        %4242 = vmatpush1.bf16.msra.mxu0 %v3088
        %4243 = vmatprep.subr.bf16.mxu0 0
        %4244 = vmatpush1.bf16.msra.mxu0 %v3089
        %4245 = vmatprep.subr.bf16.mxu0 0
        %4246 = vmatpush1.bf16.msra.mxu0 %v3090
        %4247 = vmatprep.subr.bf16.mxu0 0
        %4248 = vmatpush1.bf16.msra.mxu0 %v3091
        %4249 = vmatprep.subr.bf16.mxu0 0
        %4250 = vmatpush1.bf16.msra.mxu0 %v3092
        %4251 = vmatprep.subr.bf16.mxu0 0
        %4252 = vmatpush1.bf16.msra.mxu0 %v3093
        %4253 = vmatprep.subr.bf16.mxu0 0
        %4254 = vmatpush1.bf16.msra.mxu0 %v3094
        %4255 = vmatprep.subr.bf16.mxu0 0
        %4256 = vmatpush1.bf16.msra.mxu0 %v3095
        %4257 = vmatprep.subr.bf16.mxu0 0
        %4258 = vmatpush1.bf16.msra.mxu0 %v3096
        %4259 = vmatprep.subr.bf16.mxu0 0
        %4260 = vmatpush1.bf16.msra.mxu0 %v3097
        %4261 = vmatprep.mubr.bf16.mxu0 %v1741
        %4262 = vmatmul.mubr.bf16.gmra.mrb[0].mxu0 %v1740
        %v4263 = vpop.f32.mrb[0].mxu0
        %v4264 = vadd.f32 %v4183, %v4263
        %v4265 = vpop.f32.mrb[0].mxu0
        %v4266 = vpop.f32.mrb[0].mxu0
        %v4267 = vadd.f32 %v4186, %v4266
        %v4268 = vpop.f32.mrb[0].mxu0
        %4269 = vmatprep.mubr.bf16.mxu0 %v1768
        %4270 = vmatmul.mubr.bf16.gmra.mrb[0].mxu0 %v1767
        %v4271 = vpop.f32.mrb[0].mxu0
        %v4272 = vadd.f32 %v4191, %v4271
        %v4273 = vpop.f32.mrb[0].mxu0
        %v4274 = vpop.f32.mrb[0].mxu0
        %v4275 = vadd.f32 %v4194, %v4274
        %v4276 = vpop.f32.mrb[0].mxu0
        %4277 = vmatprep.mubr.bf16.mxu0 %v1795
        %4278 = vmatmul.mubr.bf16.gmra.mrb[0].mxu0 %v1794
        %v4279 = vpop.f32.mrb[0].mxu0
        %v4280 = vadd.f32 %v4199, %v4279
        %v4281 = vpop.f32.mrb[0].mxu0
        %v4282 = vpop.f32.mrb[0].mxu0
        %v4283 = vadd.f32 %v4202, %v4282
        %v4284 = vpop.f32.mrb[0].mxu0
        %4285 = vmatprep.mubr.bf16.mxu0 %v1822
        %4286 = vmatmul.mubr.bf16.gmra.mrb[0].mxu0 %v1821
        %v4287 = vpop.f32.mrb[0].mxu0
        %v4288 = vadd.f32 %v4207, %v4287
        %v4289 = vpop.f32.mrb[0].mxu0
        %v4290 = vpop.f32.mrb[0].mxu0
        %v4291 = vadd.f32 %v4210, %v4290
        %v4292 = vpop.f32.mrb[0].mxu0
        %4293 = vmatprep.mubr.bf16.mxu0 %v1849
        %4294 = vmatmul.mubr.bf16.gmra.mrb[0].mxu0 %v1848
        %v4295 = vpop.f32.mrb[0].mxu0
        %v4296 = vadd.f32 %v4215, %v4295
        %v4297 = vpop.f32.mrb[0].mxu0
        %v4298 = vpop.f32.mrb[0].mxu0
        %v4299 = vadd.f32 %v4218, %v4298
        %v4300 = vpop.f32.mrb[0].mxu0
        %4301 = vmatprep.mubr.bf16.mxu0 %v1876
        %4302 = vmatmul.mubr.bf16.gmra.mrb[0].mxu0 %v1875
        %v4303 = vpop.f32.mrb[0].mxu0
        %v4304 = vadd.f32 %v4223, %v4303
        %v4305 = vpop.f32.mrb[0].mxu0
        %v4306 = vpop.f32.mrb[0].mxu0
        %v4307 = vadd.f32 %v4226, %v4306
        %v4308 = vpop.f32.mrb[0].mxu0
        %4309 = vdwg.mxu0
        %4310 = vmatprep.subr.bf16.mxu0 0
        %4311 = vmatpush1.bf16.msra.mxu0 %v3098
        %4312 = vmatprep.subr.bf16.mxu0 0
        %4313 = vmatpush1.bf16.msra.mxu0 %v3099
        %4314 = vmatprep.subr.bf16.mxu0 0
        %4315 = vmatpush1.bf16.msra.mxu0 %v3100
        %4316 = vmatprep.subr.bf16.mxu0 0
        %4317 = vmatpush1.bf16.msra.mxu0 %v3101
        %4318 = vmatprep.subr.bf16.mxu0 0
        %4319 = vmatpush1.bf16.msra.mxu0 %v3102
        %4320 = vmatprep.subr.bf16.mxu0 0
        %4321 = vmatpush1.bf16.msra.mxu0 %v3103
        %4322 = vmatprep.subr.bf16.mxu0 0
        %4323 = vmatpush1.bf16.msra.mxu0 %v3104
        %4324 = vmatprep.subr.bf16.mxu0 0
        %4325 = vmatpush1.bf16.msra.mxu0 %v3105
        %4326 = vmatprep.subr.bf16.mxu0 0
        %4327 = vmatpush1.bf16.msra.mxu0 %v3106
        %4328 = vmatprep.subr.bf16.mxu0 0
        %4329 = vmatpush1.bf16.msra.mxu0 %v3107
        %4330 = vmatprep.subr.bf16.mxu0 0
        %4331 = vmatpush1.bf16.msra.mxu0 %v3108
        %4332 = vmatprep.subr.bf16.mxu0 0
        %4333 = vmatpush1.bf16.msra.mxu0 %v3109
        %4334 = vmatprep.subr.bf16.mxu0 0
        %4335 = vmatpush1.bf16.msra.mxu0 %v3110
        %4336 = vmatprep.subr.bf16.mxu0 0
        %4337 = vmatpush1.bf16.msra.mxu0 %v3111
        %4338 = vmatprep.subr.bf16.mxu0 0
        %4339 = vmatpush1.bf16.msra.mxu0 %v3112
        %4340 = vmatprep.subr.bf16.mxu0 0
        %4341 = vmatpush1.bf16.msra.mxu0 %v3113
        %4342 = vmatprep.mubr.bf16.mxu0 %v1743
        %4343 = vmatmul.mubr.bf16.gmra.mrb[0].mxu0 %v1742
        %v4344 = vpop.f32.mrb[0].mxu0
        %v4345 = vadd.f32 %v4264, %v4344
        %v4346 = vpop.f32.mrb[0].mxu0
        %v4347 = vpop.f32.mrb[0].mxu0
        %v4348 = vadd.f32 %v4267, %v4347
        %v4349 = vpop.f32.mrb[0].mxu0
        %4350 = vmatprep.mubr.bf16.mxu0 %v1770
        %4351 = vmatmul.mubr.bf16.gmra.mrb[0].mxu0 %v1769
        %v4352 = vpop.f32.mrb[0].mxu0
        %v4353 = vadd.f32 %v4272, %v4352
        %v4354 = vpop.f32.mrb[0].mxu0
        %v4355 = vpop.f32.mrb[0].mxu0
        %v4356 = vadd.f32 %v4275, %v4355
        %v4357 = vpop.f32.mrb[0].mxu0
        %4358 = vmatprep.mubr.bf16.mxu0 %v1797
        %4359 = vmatmul.mubr.bf16.gmra.mrb[0].mxu0 %v1796
        %v4360 = vpop.f32.mrb[0].mxu0
        %v4361 = vadd.f32 %v4280, %v4360
        %v4362 = vpop.f32.mrb[0].mxu0
        %v4363 = vpop.f32.mrb[0].mxu0
        %v4364 = vadd.f32 %v4283, %v4363
        %v4365 = vpop.f32.mrb[0].mxu0
        %4366 = vmatprep.mubr.bf16.mxu0 %v1824
        %4367 = vmatmul.mubr.bf16.gmra.mrb[0].mxu0 %v1823
        %v4368 = vpop.f32.mrb[0].mxu0
        %v4369 = vadd.f32 %v4288, %v4368
        %v4370 = vpop.f32.mrb[0].mxu0
        %v4371 = vpop.f32.mrb[0].mxu0
        %v4372 = vadd.f32 %v4291, %v4371
        %v4373 = vpop.f32.mrb[0].mxu0
        %4374 = vmatprep.mubr.bf16.mxu0 %v1851
        %4375 = vmatmul.mubr.bf16.gmra.mrb[0].mxu0 %v1850
        %v4376 = vpop.f32.mrb[0].mxu0
        %v4377 = vadd.f32 %v4296, %v4376
        %v4378 = vpop.f32.mrb[0].mxu0
        %v4379 = vpop.f32.mrb[0].mxu0
        %v4380 = vadd.f32 %v4299, %v4379
        %v4381 = vpop.f32.mrb[0].mxu0
        %4382 = vmatprep.mubr.bf16.mxu0 %v1878
        %4383 = vmatmul.mubr.bf16.gmra.mrb[0].mxu0 %v1877
        %v4384 = vpop.f32.mrb[0].mxu0
        %v4385 = vadd.f32 %v4304, %v4384
        %v4386 = vpop.f32.mrb[0].mxu0
        %v4387 = vpop.f32.mrb[0].mxu0
        %v4388 = vadd.f32 %v4307, %v4387
        %v4389 = vpop.f32.mrb[0].mxu0
        %4390 = vdwg.mxu0
        %4391 = vmatprep.subr.bf16.mxu0 0
        %4392 = vmatpush1.bf16.msra.mxu0 %v3114
        %4393 = vmatprep.subr.bf16.mxu0 0
        %4394 = vmatpush1.bf16.msra.mxu0 %v3115
        %4395 = vmatprep.subr.bf16.mxu0 0
        %4396 = vmatpush1.bf16.msra.mxu0 %v3116
        %4397 = vmatprep.subr.bf16.mxu0 0
        %4398 = vmatpush1.bf16.msra.mxu0 %v3117
        %4399 = vmatprep.subr.bf16.mxu0 0
        %4400 = vmatpush1.bf16.msra.mxu0 %v3118
        %4401 = vmatprep.subr.bf16.mxu0 0
        %4402 = vmatpush1.bf16.msra.mxu0 %v3119
        %4403 = vmatprep.subr.bf16.mxu0 0
        %4404 = vmatpush1.bf16.msra.mxu0 %v3120
        %4405 = vmatprep.subr.bf16.mxu0 0
        %4406 = vmatpush1.bf16.msra.mxu0 %v3121
        %4407 = vmatprep.subr.bf16.mxu0 0
        %4408 = vmatpush1.bf16.msra.mxu0 0
        %4409 = vmatprep.subr.bf16.mxu0 0
        %4410 = vmatpush1.bf16.msra.mxu0 0
        %4411 = vmatprep.subr.bf16.mxu0 0
        %4412 = vmatpush1.bf16.msra.mxu0 0
        %4413 = vmatprep.subr.bf16.mxu0 0
        %4414 = vmatpush1.bf16.msra.mxu0 0
        %4415 = vmatprep.subr.bf16.mxu0 0
        %4416 = vmatpush1.bf16.msra.mxu0 0
        %4417 = vmatprep.subr.bf16.mxu0 0
        %4418 = vmatpush1.bf16.msra.mxu0 0
        %4419 = vmatprep.subr.bf16.mxu0 0
        %4420 = vmatpush1.bf16.msra.mxu0 0
        %4421 = vmatprep.subr.bf16.mxu0 0
        %4422 = vmatpush1.bf16.msra.mxu0 0
        %4423 = vmatprep.mubr.bf16.mxu0 0
        %4424 = vmatmul.mubr.bf16.gmra.mrb[0].mxu0 %v1744
        %v4425 = vpop.f32.mrb[0].mxu0
        %v4426 = vadd.f32 %v4345, %v4425
        %v4427 = vpop.f32.mrb[0].mxu0
        %v4428 = vpop.f32.mrb[0].mxu0
        %v4429 = vadd.f32 %v4348, %v4428
        %v4430 = vpop.f32.mrb[0].mxu0
        %4431 = vmatprep.mubr.bf16.mxu0 0
        %4432 = vmatmul.mubr.bf16.gmra.mrb[0].mxu0 %v1771
        %v4433 = vpop.f32.mrb[0].mxu0
        %v4434 = vadd.f32 %v4353, %v4433
        %v4435 = vpop.f32.mrb[0].mxu0
        %v4436 = vpop.f32.mrb[0].mxu0
        %v4437 = vadd.f32 %v4356, %v4436
        %v4438 = vpop.f32.mrb[0].mxu0
        %4439 = vmatprep.mubr.bf16.mxu0 0
        %4440 = vmatmul.mubr.bf16.gmra.mrb[0].mxu0 %v1798
        %v4441 = vpop.f32.mrb[0].mxu0
        %v4442 = vadd.f32 %v4361, %v4441
        %v4443 = vpop.f32.mrb[0].mxu0
        %v4444 = vpop.f32.mrb[0].mxu0
        %v4445 = vadd.f32 %v4364, %v4444
        %v4446 = vpop.f32.mrb[0].mxu0
        %4447 = vmatprep.mubr.bf16.mxu0 0
        %4448 = vmatmul.mubr.bf16.gmra.mrb[0].mxu0 %v1825
        %v4449 = vpop.f32.mrb[0].mxu0
        %v4450 = vadd.f32 %v4369, %v4449
        %v4451 = vpop.f32.mrb[0].mxu0
        %v4452 = vpop.f32.mrb[0].mxu0
        %v4453 = vadd.f32 %v4372, %v4452
        %v4454 = vpop.f32.mrb[0].mxu0
        %4455 = vmatprep.mubr.bf16.mxu0 0
        %4456 = vmatmul.mubr.bf16.gmra.mrb[0].mxu0 %v1852
        %v4457 = vpop.f32.mrb[0].mxu0
        %v4458 = vadd.f32 %v4377, %v4457
        %v4459 = vpop.f32.mrb[0].mxu0
        %v4460 = vpop.f32.mrb[0].mxu0
        %v4461 = vadd.f32 %v4380, %v4460
        %v4462 = vpop.f32.mrb[0].mxu0
        %4463 = vmatprep.mubr.bf16.mxu0 0
        %4464 = vmatmul.mubr.bf16.gmra.mrb[0].mxu0 %v1879
        %v4465 = vpop.f32.mrb[0].mxu0
        %v4466 = vadd.f32 %v4385, %v4465
        %v4467 = vpop.f32.mrb[0].mxu0
        %v4468 = vpop.f32.mrb[0].mxu0
        %v4469 = vadd.f32 %v4388, %v4468
        %v4470 = vpop.f32.mrb[0].mxu0
        %4471 = vdwg.mxu0
        %v4472 = vadd.f32 %v614, %v4426
        %v4473 = vadd.f32 %v615, %v4429
        %v4474 = vadd.f32 %v616, %v4434
        %v4475 = vadd.f32 %v617, %v4437
        %v4476 = vadd.f32 %v618, %v4442
        %v4477 = vadd.f32 %v619, %v4445
        %v4478 = vadd.f32 %v620, %v4450
        %v4479 = vadd.f32 %v621, %v4453
        %v4480 = vadd.f32 %v622, %v4458
        %v4481 = vadd.f32 %v623, %v4461
        %v4482 = vadd.f32 %v624, %v4466
        %v4483 = vadd.f32 %v625, %v4469
        %4484 = vst [vmem:[#allocation2] sm:$0xff] %v4472
        %4485 = vst [vmem:[#allocation2 + $0x8] sm:$0xff] %v4473
        %4486 = vst [vmem:[#allocation2 + $0x10] sm:$0xff] %v4474
        %4487 = vst [vmem:[#allocation2 + $0x18] sm:$0xff] %v4475
        %4488 = vst [vmem:[#allocation2 + $0x20] sm:$0xff] %v4476
        %4489 = vst [vmem:[#allocation2 + $0x28] sm:$0xff] %v4477
        %4490 = vst [vmem:[#allocation2 + $0x30] sm:$0xff] %v4478
        %4491 = vst [vmem:[#allocation2 + $0x38] sm:$0xff] %v4479
        %4492 = vst [vmem:[#allocation2 + $0x40] sm:$0xff] %v4480
        %4493 = vst [vmem:[#allocation2 + $0x48] sm:$0xff] %v4481
        %4494 = vst [vmem:[#allocation2 + $0x50] sm:$0xff] %v4482
        %4495 = vst [vmem:[#allocation2 + $0x58] sm:$0xff] %v4483
        %p4496 = scmp.eq.s32.totalorder %s17, 2
        // Predicated region
        $region71: #{model_forward.3} parent=61 // pred_check
          %p4497 = pneg %p4496
        $region72: #{model_forward.3} parent=61 // pred_check_branch
          %4499 = sbr.rel (%p4497) target = $region74
        $region73: #{model_forward.3} parent=61 // pred_region
          %v4500 = vld [vmem:[#allocation2] sm:$0xff]
          %v4501 = vld [vmem:[#allocation2 + $0x8] sm:$0xff]
          %v4502 = vld [vmem:[#allocation2 + $0x10] sm:$0xff]
          %v4503 = vld [vmem:[#allocation2 + $0x18] sm:$0xff]
          %v4504 = vld [vmem:[#allocation2 + $0x20] sm:$0xff]
          %v4505 = vld [vmem:[#allocation2 + $0x28] sm:$0xff]
          %v4506 = vld [vmem:[#allocation2 + $0x30] sm:$0xff]
          %v4507 = vld [vmem:[#allocation2 + $0x38] sm:$0xff]
          %v4508 = vld [vmem:[#allocation2 + $0x40] sm:$0xff]
          %v4509 = vld [vmem:[#allocation2 + $0x48] sm:$0xff]
          %v4510 = vld [vmem:[#allocation2 + $0x50] sm:$0xff]
          %v4511 = vld [vmem:[#allocation2 + $0x58] sm:$0xff]
          %v4512 = vld [vmem:[%s2] sm:$0x1]
          %v4514 = vlaneseq
          %v4515 = vshrl.u32 %v4514, 7
          %v4516 = vsub.s32 0, %v4515
          %v4517 = vrot.slane %v4512, %v4516
          %v4519 = vadd.f32 %v4500, %v4517
          %v4520 = vadd.f32 %v4501, %v4517
          %v4521 = vadd.f32 %v4502, %v4517
          %v4522 = vadd.f32 %v4503, %v4517
          %v4523 = vadd.f32 %v4504, %v4517
          %v4524 = vadd.f32 %v4505, %v4517
          %v4525 = vadd.f32 %v4506, %v4517
          %v4526 = vadd.f32 %v4507, %v4517
          %v4527 = vadd.f32 %v4508, %v4517
          %v4528 = vadd.f32 %v4509, %v4517
          %v4529 = vadd.f32 %v4510, %v4517
          %v4530 = vadd.f32 %v4511, %v4517
          %v4531 = vadd.f32 %v4519, %v4520
          %v4532 = vadd.f32 %v4531, %v4521
          %v4533 = vadd.f32 %v4532, %v4522
          %v4534 = vadd.f32 %v4533, %v4523
          %v4535 = vadd.f32 %v4534, %v4524
          %v4536 = vadd.f32 %v4535, %v4525
          %v4537 = vadd.f32 %v4536, %v4526
          %v4538 = vadd.f32 %v4537, %v4527
          %v4539 = vadd.f32 %v4538, %v4528
          %v4540 = vadd.f32 %v4539, %v4529
          %v4541 = vadd.f32 %v4540, %v4530
          %v4542 = vrot.slane %v4541, 4
          %v4543 = vadd.f32 %v4541, %v4542
          %v4544 = vrot.slane %v4543, 2
          %v4545 = vadd.f32 %v4543, %v4544
          %v4546 = vrot.slane %v4545, 1
          %v4547 = vadd.f32 %v4545, %v4546
          %v4548 = vrcp.pop 96.0
          %v4549 = vmul.f32 %v4547, %v4548
          %v4550 = vsub.f32 %v4519, %v4549
          %v4551 = vsub.f32 %v4520, %v4549
          %v4552 = vsub.f32 %v4521, %v4549
          %v4553 = vsub.f32 %v4522, %v4549
          %v4554 = vsub.f32 %v4523, %v4549
          %v4555 = vsub.f32 %v4524, %v4549
          %v4556 = vsub.f32 %v4525, %v4549
          %v4557 = vsub.f32 %v4526, %v4549
          %v4558 = vsub.f32 %v4527, %v4549
          %v4559 = vsub.f32 %v4528, %v4549
          %v4560 = vsub.f32 %v4529, %v4549
          %v4561 = vsub.f32 %v4530, %v4549
          %v4562 = vmul.f32 %v4550, %v4550
          %v4563 = vmul.f32 %v4551, %v4551
          %v4564 = vmul.f32 %v4552, %v4552
          %v4565 = vmul.f32 %v4553, %v4553
          %v4566 = vmul.f32 %v4554, %v4554
          %v4567 = vmul.f32 %v4555, %v4555
          %v4568 = vmul.f32 %v4556, %v4556
          %v4569 = vmul.f32 %v4557, %v4557
          %v4570 = vmul.f32 %v4558, %v4558
          %v4571 = vmul.f32 %v4559, %v4559
          %v4572 = vmul.f32 %v4560, %v4560
          %v4573 = vmul.f32 %v4561, %v4561
          %v4574 = vadd.f32 %v4562, %v4563
          %v4575 = vadd.f32 %v4574, %v4564
          %v4576 = vadd.f32 %v4575, %v4565
          %v4577 = vadd.f32 %v4576, %v4566
          %v4578 = vadd.f32 %v4577, %v4567
          %v4579 = vadd.f32 %v4578, %v4568
          %v4580 = vadd.f32 %v4579, %v4569
          %v4581 = vadd.f32 %v4580, %v4570
          %v4582 = vadd.f32 %v4581, %v4571
          %v4583 = vadd.f32 %v4582, %v4572
          %v4584 = vadd.f32 %v4583, %v4573
          %v4585 = vrot.slane %v4584, 4
          %v4586 = vadd.f32 %v4584, %v4585
          %v4587 = vrot.slane %v4586, 2
          %v4588 = vadd.f32 %v4586, %v4587
          %v4589 = vrot.slane %v4588, 1
          %v4590 = vadd.f32 %v4588, %v4589
          %v4591 = vmul.f32 %v4590, %v4548
          %v4592 = vadd.f32 %v4591, 1e-05
          %v4593 = vrsqrt.pop %v4592
          %v4594 = vmul.f32 %v4550, %v4593
          %v4595 = vmul.f32 %v4551, %v4593
          %v4596 = vmul.f32 %v4552, %v4593
          %v4597 = vmul.f32 %v4553, %v4593
          %v4598 = vmul.f32 %v4554, %v4593
          %v4599 = vmul.f32 %v4555, %v4593
          %v4600 = vmul.f32 %v4556, %v4593
          %v4601 = vmul.f32 %v4557, %v4593
          %v4602 = vmul.f32 %v4558, %v4593
          %v4603 = vmul.f32 %v4559, %v4593
          %v4604 = vmul.f32 %v4560, %v4593
          %v4605 = vmul.f32 %v4561, %v4593
          %v4606 = vld [vmem:[%s3] sm:$0x1]
          %v4608 = vlaneseq
          %v4609 = vshrl.u32 %v4608, 7
          %v4610 = vsub.s32 0, %v4609
          %v4611 = vrot.slane %v4606, %v4610
          %v4613 = vmul.f32 %v4594, %v4611
          %v4614 = vmul.f32 %v4595, %v4611
          %v4615 = vmul.f32 %v4596, %v4611
          %v4616 = vmul.f32 %v4597, %v4611
          %v4617 = vmul.f32 %v4598, %v4611
          %v4618 = vmul.f32 %v4599, %v4611
          %v4619 = vmul.f32 %v4600, %v4611
          %v4620 = vmul.f32 %v4601, %v4611
          %v4621 = vmul.f32 %v4602, %v4611
          %v4622 = vmul.f32 %v4603, %v4611
          %v4623 = vmul.f32 %v4604, %v4611
          %v4624 = vmul.f32 %v4605, %v4611
          %v4625 = vld [vmem:[%s4] sm:$0x1]
          %v4627 = vlaneseq
          %v4628 = vshrl.u32 %v4627, 7
          %v4629 = vsub.s32 0, %v4628
          %v4630 = vrot.slane %v4625, %v4629
          %v4632 = vadd.f32 %v4613, %v4630
          %v4633 = vadd.f32 %v4614, %v4630
          %v4634 = vadd.f32 %v4615, %v4630
          %v4635 = vadd.f32 %v4616, %v4630
          %v4636 = vadd.f32 %v4617, %v4630
          %v4637 = vadd.f32 %v4618, %v4630
          %v4638 = vadd.f32 %v4619, %v4630
          %v4639 = vadd.f32 %v4620, %v4630
          %v4640 = vadd.f32 %v4621, %v4630
          %v4641 = vadd.f32 %v4622, %v4630
          %v4642 = vadd.f32 %v4623, %v4630
          %v4643 = vadd.f32 %v4624, %v4630
          %v4644 = vmul.f32 %v4632, 0.5
          %v4645 = vmul.f32 %v4633, 0.5
          %v4646 = vmul.f32 %v4634, 0.5
          %v4647 = vmul.f32 %v4635, 0.5
          %v4648 = vmul.f32 %v4636, 0.5
          %v4649 = vmul.f32 %v4637, 0.5
          %v4650 = vmul.f32 %v4638, 0.5
          %v4651 = vmul.f32 %v4639, 0.5
          %v4652 = vmul.f32 %v4640, 0.5
          %v4653 = vmul.f32 %v4641, 0.5
          %v4654 = vmul.f32 %v4642, 0.5
          %v4655 = vmul.f32 %v4643, 0.5
          %v4656 = vmul.f32 %v4632, %v4632
          %v4657 = vmul.f32 %v4633, %v4633
          %v4658 = vmul.f32 %v4634, %v4634
          %v4659 = vmul.f32 %v4635, %v4635
          %v4660 = vmul.f32 %v4636, %v4636
          %v4661 = vmul.f32 %v4637, %v4637
          %v4662 = vmul.f32 %v4638, %v4638
          %v4663 = vmul.f32 %v4639, %v4639
          %v4664 = vmul.f32 %v4640, %v4640
          %v4665 = vmul.f32 %v4641, %v4641
          %v4666 = vmul.f32 %v4642, %v4642
          %v4667 = vmul.f32 %v4643, %v4643
          %v4668 = vmul.f32 %v4656, %v4632
          %v4669 = vmul.f32 %v4657, %v4633
          %v4670 = vmul.f32 %v4658, %v4634
          %v4671 = vmul.f32 %v4659, %v4635
          %v4672 = vmul.f32 %v4660, %v4636
          %v4673 = vmul.f32 %v4661, %v4637
          %v4674 = vmul.f32 %v4662, %v4638
          %v4675 = vmul.f32 %v4663, %v4639
          %v4676 = vmul.f32 %v4664, %v4640
          %v4677 = vmul.f32 %v4665, %v4641
          %v4678 = vmul.f32 %v4666, %v4642
          %v4679 = vmul.f32 %v4667, %v4643
          %v4680 = vmul.f32 %v4668, 0.044715
          %v4681 = vmul.f32 %v4669, 0.044715
          %v4682 = vmul.f32 %v4670, 0.044715
          %v4683 = vmul.f32 %v4671, 0.044715
          %v4684 = vmul.f32 %v4672, 0.044715
          %v4685 = vmul.f32 %v4673, 0.044715
          %v4686 = vmul.f32 %v4674, 0.044715
          %v4687 = vmul.f32 %v4675, 0.044715
          %v4688 = vmul.f32 %v4676, 0.044715
          %v4689 = vmul.f32 %v4677, 0.044715
          %v4690 = vmul.f32 %v4678, 0.044715
          %v4691 = vmul.f32 %v4679, 0.044715
          %v4692 = vadd.f32 %v4632, %v4680
          %v4693 = vadd.f32 %v4633, %v4681
          %v4694 = vadd.f32 %v4634, %v4682
          %v4695 = vadd.f32 %v4635, %v4683
          %v4696 = vadd.f32 %v4636, %v4684
          %v4697 = vadd.f32 %v4637, %v4685
          %v4698 = vadd.f32 %v4638, %v4686
          %v4699 = vadd.f32 %v4639, %v4687
          %v4700 = vadd.f32 %v4640, %v4688
          %v4701 = vadd.f32 %v4641, %v4689
          %v4702 = vadd.f32 %v4642, %v4690
          %v4703 = vadd.f32 %v4643, %v4691
          %v4704 = vmul.f32 %v4692, 0.7978846
          %v4705 = vmul.f32 %v4693, 0.7978846
          %v4706 = vmul.f32 %v4694, 0.7978846
          %v4707 = vmul.f32 %v4695, 0.7978846
          %v4708 = vmul.f32 %v4696, 0.7978846
          %v4709 = vmul.f32 %v4697, 0.7978846
          %v4710 = vmul.f32 %v4698, 0.7978846
          %v4711 = vmul.f32 %v4699, 0.7978846
          %v4712 = vmul.f32 %v4700, 0.7978846
          %v4713 = vmul.f32 %v4701, 0.7978846
          %v4714 = vmul.f32 %v4702, 0.7978846
          %v4715 = vmul.f32 %v4703, 0.7978846
          %v4716 = vtanh.pop %v4704
          %v4717 = vtanh.pop %v4705
          %v4718 = vtanh.pop %v4706
          %v4719 = vtanh.pop %v4707
          %v4720 = vtanh.pop %v4708
          %v4721 = vtanh.pop %v4709
          %v4722 = vtanh.pop %v4710
          %v4723 = vtanh.pop %v4711
          %v4724 = vtanh.pop %v4712
          %v4725 = vtanh.pop %v4713
          %v4726 = vtanh.pop %v4714
          %v4727 = vtanh.pop %v4715
          %v4728 = vadd.f32 %v4716, 1.0
          %v4729 = vadd.f32 %v4717, 1.0
          %v4730 = vadd.f32 %v4718, 1.0
          %v4731 = vadd.f32 %v4719, 1.0
          %v4732 = vadd.f32 %v4720, 1.0
          %v4733 = vadd.f32 %v4721, 1.0
          %v4734 = vadd.f32 %v4722, 1.0
          %v4735 = vadd.f32 %v4723, 1.0
          %v4736 = vadd.f32 %v4724, 1.0
          %v4737 = vadd.f32 %v4725, 1.0
          %v4738 = vadd.f32 %v4726, 1.0
          %v4739 = vadd.f32 %v4727, 1.0
          %v4740 = vmul.f32 %v4644, %v4728
          %v4741 = vmul.f32 %v4645, %v4729
          %v4742 = vmul.f32 %v4646, %v4730
          %v4743 = vmul.f32 %v4647, %v4731
          %v4744 = vmul.f32 %v4648, %v4732
          %v4745 = vmul.f32 %v4649, %v4733
          %v4746 = vmul.f32 %v4650, %v4734
          %v4747 = vmul.f32 %v4651, %v4735
          %v4748 = vmul.f32 %v4652, %v4736
          %v4749 = vmul.f32 %v4653, %v4737
          %v4750 = vmul.f32 %v4654, %v4738
          %v4751 = vmul.f32 %v4655, %v4739
          %4752 = vst [vmem:[#allocation4] sm:$0xff] %v4740
          %4753 = vst [vmem:[#allocation4 + $0x8] sm:$0xff] %v4741
          %4754 = vst [vmem:[#allocation4 + $0x10] sm:$0xff] %v4742
          %4755 = vst [vmem:[#allocation4 + $0x18] sm:$0xff] %v4743
          %4756 = vst [vmem:[#allocation4 + $0x20] sm:$0xff] %v4744
          %4757 = vst [vmem:[#allocation4 + $0x28] sm:$0xff] %v4745
          %4758 = vst [vmem:[#allocation4 + $0x30] sm:$0xff] %v4746
          %4759 = vst [vmem:[#allocation4 + $0x38] sm:$0xff] %v4747
          %4760 = vst [vmem:[#allocation4 + $0x40] sm:$0xff] %v4748
          %4761 = vst [vmem:[#allocation4 + $0x48] sm:$0xff] %v4749
          %4762 = vst [vmem:[#allocation4 + $0x50] sm:$0xff] %v4750
          %4763 = vst [vmem:[#allocation4 + $0x58] sm:$0xff] %v4751
        $region74: #{model_forward.3} parent=61 // pred_fallthru
          _
        // Predicated region
        $region75: #{model_forward.3} parent=61 // pred_check
          %p4764 = pneg %p145
        $region76: #{model_forward.3} parent=61 // pred_check_branch
          %4766 = sbr.rel (%p4764) target = $region78
        $region77: #{model_forward.3} parent=61 // pred_region
          %s4768 = ssub.s32 1536, 1536
          %4769 = vsyncadd [#allocation5], %s4768
          %s4770 = sshll.u32 [#allocation4], 4
          %s4771 = int_to_ptr.vmem [resolvable:$true] %s4770
          %4776 = dma.vmem_to_hbm [thread:$0]  %s4771, 1536, %s5, [#allocation5], 128, 128, 8
        $region78: #{model_forward.3} parent=61 // pred_fallthru
          _
        // Predicated region
        $region79: #{model_forward.3} parent=61 // pred_check
          %p4777 = pneg %p145
        $region80: #{model_forward.3} parent=61 // pred_check_branch
          %4779 = sbr.rel (%p4777) target = $region82
        $region81: #{model_forward.3} parent=61 // pred_region
          %4780 = dma.done [#allocation5], 1536
        $region82: #{model_forward.3} parent=61 // pred_fallthru
          _
      $region62: #{model_forward.3} parent=5 // pred_fallthru
        _
      %p4781 = scmp.le.s32.totalorder 2, %s12
      // Predicated region
      $region83: #{model_forward.3} parent=5 // pred_check
        %p4782 = pneg %p4781
      $region84: #{model_forward.3} parent=5 // pred_check_branch
        %4784 = sbr.rel (%p4782) target = $region86
      $region85: #{model_forward.3} parent=5 // pred_region
        %s4785 = ssub.s32 %s12, 2
      $region86: #{model_forward.3} parent=5 // pred_fallthru
        _
    $region6: #{model_forward.3} parent=1 // loop_footer
      %s16 = sadd.s32 1, %s12
    $region7: #{model_forward.3} parent=1 // loop_footer_branch
      %11 = sbr.rel target = $region3
    $region8: #{model_forward.3} parent=1 // loop_exit
      _
    %4786 = vsyncpa [#allocation5], 1
    %s4787 = scalar_lea.sflag [#allocation5], 1
    %4788 = vsyncpa %s4787, 1

</llo_original>
